<compile_context>
chip_gen: v5e
topology: v5e:2x2
jax: 0.10.0
libtpu: 0.0.40
codegen_flags: <defaults>
</compile_context>

<pallas_src>
import functools

import jax
import jax.numpy as jnp
import numpy as np
from jax import lax
from jax.experimental import pallas as pl
from jax.experimental.pallas import tpu as pltpu

EPS = 1e-5


def _round_up(v, m):
    return (v + m - 1) // m * m


def _hw_budget():
    """(row_tile_target, vmem_limit_cap): larger tiles/clamp on v5e/v6e (128 MiB VMEM),
    tighter on v7x (64 MiB physical)."""
    try:
        cap = int(getattr(pltpu.get_tpu_info(), "vmem_capacity_bytes", 64 << 20))
    except Exception:
        cap = 64 << 20
    if cap >= (96 << 20):            # v5e / v6e
        return 1024, 96 << 20
    return 512, 44 << 20             # v7x


_ROW_TILE_TARGET, _VMEM_CAP = _hw_budget()


def _row_tiling(rows, target=_ROW_TILE_TARGET):
    """Tile is a multiple of 8; padded row count is a multiple of the tile.
    Never falls back to a huge full-extent tile for awkward row counts."""
    if rows <= target:
        tile = _round_up(max(rows, 8), 8)
        return tile, tile
    tile = (target // 8) * 8
    return tile, _round_up(rows, tile)


def _pad_rows(a, rows_padded):
    rows = a.shape[0]
    if rows == rows_padded:
        return a
    pad = jnp.zeros((rows_padded - rows,) + a.shape[1:], a.dtype)
    return jnp.concatenate([a, pad], axis=0)


def _compiler_params(step_bytes):
    vmem = int(min(max(4 * step_bytes + (4 << 20), 8 << 20), _VMEM_CAP))
    return pltpu.CompilerParams(dimension_semantics=("parallel",),
                                vmem_limit_bytes=vmem)


# --------------------------------------------------------------------------------------
# Kernels
# --------------------------------------------------------------------------------------
def _stats_kernel(x_ref, st_ref):
    """Per-tile single-pass sum / sum-of-squares (zero-padded rows contribute nothing)."""
    x = x_ref[...].astype(jnp.float32)                      # (TR, C)
    st_ref[...] = jnp.concatenate([jnp.sum(x, axis=0, keepdims=True),
                                   jnp.sum(x * x, axis=0, keepdims=True)], axis=0)


def _make_bn1_conv1_kernel(tile_rows, true_rows, need_mask):
    """h1 = relu(bn1(x)) @ W1 (bf16 stored); also emit BN2 partial stats of the f32 h1."""

    def kernel(x_ref, ss1_ref, w1_ref, h1_ref, st_ref):
        x = x_ref[...].astype(jnp.float32)                  # (TR, Cin)
        out1 = jnp.maximum(x * ss1_ref[0:1, :] + ss1_ref[1:2, :], 0.0)
        h1 = jnp.dot(out1.astype(jnp.bfloat16), w1_ref[...],
                     preferred_element_type=jnp.float32)    # (TR, Cmid) f32
        h1_ref[...] = h1.astype(jnp.bfloat16)               # bf16 HBM intermediate
        if need_mask:  # padded tail rows produce relu(shift1)@W1 != 0 -> exclude from stats
            rid = (pl.program_id(0) * tile_rows
                   + lax.broadcasted_iota(jnp.int32, (tile_rows, 1), 0))
            h1 = jnp.where(rid < true_rows, h1, 0.0)
        st_ref[...] = jnp.concatenate([jnp.sum(h1, axis=0, keepdims=True),
                                       jnp.sum(h1 * h1, axis=0, keepdims=True)], axis=0)

    return kernel


def _make_conv2_kernel(H, W, Ho, Wo, stride, cmid):
    """BN2+ReLU once into a zero-bordered VMEM scratch, 3x3 conv as 9 accumulating matmuls."""
    Hp, Wp = H + 2, W + 2

    def _tap(d, size):
        return pl.ds(d, size) if stride == 1 else pl.ds(d, size, stride=stride)

    def kernel(h1_ref, ss2_ref, w2_ref, h2_ref, st_ref, act_ref):
        # Border strips of the scratch are only ever written with zeros: memset once at step 0.
        @pl.when(pl.program_id(0) == 0)
        def _():
            act_ref[...] = jnp.zeros((Hp, Wp, cmid), jnp.bfloat16)

        # BN2 + ReLU applied ONCE for the whole image; stored bf16 (the MXU operand dtype).
        ss = ss2_ref[...]
        scale = ss[0:1, :].reshape(1, 1, cmid)
        shift = ss[1:2, :].reshape(1, 1, cmid)
        act = jnp.maximum(h1_ref[...].astype(jnp.float32) * scale + shift, 0.0)
        act_ref[pl.ds(1, H), pl.ds(1, W), :] = act.astype(jnp.bfloat16)

        # 9 accumulating (Ho*Wo, Cmid)@(Cmid, Cmid) matmuls: no lane-axis concat, only one tap
        # live at a time; f32 accumulation on the MXU result.
        # TODO(synk): verify pl.ds(..., stride=2) taps lower to efficient strided vld on all
        # targets; if not, subsample from a contiguous load of the scratch instead.
        acc = None
        for dy in range(3):
            for dx in range(3):
                tap = act_ref[_tap(dy, Ho), _tap(dx, Wo), :]            # (Ho, Wo, Cmid) bf16
                d = jnp.dot(tap.reshape(Ho * Wo, cmid), w2_ref[dy * 3 + dx],
                            preferred_element_type=jnp.float32)
                acc = d if acc is None else acc + d

        h2_ref[...] = acc.astype(jnp.bfloat16)              # bf16 HBM intermediate
        st_ref[...] = jnp.concatenate([jnp.sum(acc, axis=0, keepdims=True),
                                       jnp.sum(acc * acc, axis=0, keepdims=True)], axis=0)

    return kernel


def _make_out_kernel(use_conv4):
    """BN3+ReLU, conv3 matmul (+ conv4 projection matmul) and residual add."""
    if use_conv4:
        def kernel(h2_ref, xs_ref, ss3_ref, ss1_ref, w3_ref, w4_ref, o_ref):
            a3 = jnp.maximum(h2_ref[...].astype(jnp.float32) * ss3_ref[0:1, :]
                             + ss3_ref[1:2, :], 0.0)
            # residual = conv4(relu(bn1(x))) at the strided positions; recompute out1 from x
            # elementwise instead of round-tripping it through HBM.
            out1s = jnp.maximum(xs_ref[...].astype(jnp.float32) * ss1_ref[0:1, :]
                                + ss1_ref[1:2, :], 0.0)
            out = jnp.dot(a3.astype(jnp.bfloat16), w3_ref[...],
                          preferred_element_type=jnp.float32)
            out = out + jnp.dot(out1s.astype(jnp.bfloat16), w4_ref[...],
                                preferred_element_type=jnp.float32)
            o_ref[...] = out.astype(o_ref.dtype)
        return kernel

    def kernel(h2_ref, xs_ref, ss3_ref, w3_ref, o_ref):
        a3 = jnp.maximum(h2_ref[...].astype(jnp.float32) * ss3_ref[0:1, :]
                         + ss3_ref[1:2, :], 0.0)
        out = jnp.dot(a3.astype(jnp.bfloat16), w3_ref[...],
                      preferred_element_type=jnp.float32)
        o_ref[...] = (out + xs_ref[...].astype(jnp.float32)).astype(o_ref.dtype)
    return kernel


# --------------------------------------------------------------------------------------
# Wrapper (NCHW in / NCHW out, PyTorch parameter layouts)
# --------------------------------------------------------------------------------------
def _scale_shift(partials, gamma, beta, count):
    """Fold per-tile sum/sumsq partials into BN scale/shift (training-mode, biased var)."""
    s = jnp.sum(partials[:, 0, :], axis=0)
    sq = jnp.sum(partials[:, 1, :], axis=0)
    mean = s / count
    var = jnp.maximum(sq / count - mean * mean, 0.0)
    scale = gamma * lax.rsqrt(var + EPS)
    shift = beta - mean * scale
    return jnp.stack([scale, shift], axis=0).astype(jnp.float32)           # (2, C)


@functools.partial(jax.jit, static_argnames=("in_c", "out_c", "stride"))
def residual_block_forward(x_nchw, params, *, in_c, out_c, stride=1):
    g1, b1, g2, b2, g3, b3, w1_oihw, w2_oihw, w3_oihw, w4_oihw = params
    g1, b1, g2, b2, g3, b3 = (p.reshape(-1).astype(jnp.float32)
                              for p in (g1, b1, g2, b2, g3, b3))
    cmid = out_c // 4
    use_conv4 = (in_c != out_c) or (stride != 1)

    # TODO(synk): if the surrounding graph can stay NHWC, drop the entry/exit transposes
    # (each is an extra HBM round trip done by XLA outside the Pallas pipeline).
    x = jnp.transpose(x_nchw, (0, 2, 3, 1)).astype(jnp.float32)            # NCHW -> NHWC
    N, H, W, _ = x.shape
    Ho = (H - 1) // stride + 1
    Wo = (W - 1) // stride + 1
    R, Ro = N * H * W, N * Ho * Wo

    # MXU weights as bf16 operands (accumulation stays f32 inside the kernels).
    w1 = w1_oihw[:, :, 0, 0].T.astype(jnp.bfloat16)                        # (Cin, Cmid)
    w2 = jnp.transpose(w2_oihw, (2, 3, 1, 0)).reshape(9, cmid, cmid)       # (tap, Cin, Cout)
    w2 = w2.astype(jnp.bfloat16)
    w3 = w3_oihw[:, :, 0, 0].T.astype(jnp.bfloat16)                        # (Cmid, Cout)
    w4 = w4_oihw[:, :, 0, 0].T.astype(jnp.bfloat16)                        # (Cin,  Cout)

    tr, Rp = _row_tiling(R)
    gs = Rp // tr
    x2d = _pad_rows(x.reshape(R, in_c), Rp)

    # ---- pass 1: global BN1 statistics ---------------------------------------------------------
    st1 = pl.pallas_call(
        _stats_kernel,
        grid=(gs,),
        in_specs=[pl.BlockSpec((tr, in_c), lambda i: (i, 0))],
        out_specs=pl.BlockSpec((None, 2, in_c), lambda i: (i, 0, 0)),
        out_shape=jax.ShapeDtypeStruct((gs, 2, in_c), jnp.float32),
        compiler_params=_compiler_params((tr * in_c + 2 * in_c) * 4),
        cost_estimate=pl.CostEstimate(flops=3 * R * in_c, transcendentals=0,
                                      bytes_accessed=R * in_c * 4),
    )(x2d)
    ss1 = _scale_shift(st1, g1, b1, R)

    # ---- pass 2: BN1 + ReLU + conv1(1x1) -> bf16 h1, plus BN2 partial stats --------------------
    h1_2d, st2 = pl.pallas_call(
        _make_bn1_conv1_kernel(tr, R, Rp != R),
        grid=(gs,),
        in_specs=[pl.BlockSpec((tr, in_c), lambda i: (i, 0)),
                  pl.BlockSpec((2, in_c), lambda i: (0, 0)),
                  pl.BlockSpec((in_c, cmid), lambda i: (0, 0))],
        out_specs=[pl.BlockSpec((tr, cmid), lambda i: (i, 0)),
                   pl.BlockSpec((None, 2, cmid), lambda i: (i, 0, 0))],
        out_shape=[jax.ShapeDtypeStruct((Rp, cmid), jnp.bfloat16),
                   jax.ShapeDtypeStruct((gs, 2, cmid), jnp.float32)],
        compiler_params=_compiler_params(tr * in_c * 4 + tr * cmid * 6 + in_c * cmid * 2),
        cost_estimate=pl.CostEstimate(flops=2 * R * in_c * cmid + 6 * R * cmid,
                                      transcendentals=0,
                                      bytes_accessed=R * in_c * 4 + R * cmid * 2),
    )(x2d, ss1, w1)
    ss2 = _scale_shift(st2, g2, b2, R)

    # ---- pass 3: BN2 + ReLU + conv2(3x3, stride inside kernel), plus BN3 partial stats ---------
    # TODO(synk): for ResNet-scale H*W*cmid, additionally tile over Ho-row blocks with a 2-row
    # halo (manual DMA) so v7x gets more than N grid steps and a smaller per-step footprint.
    h1_img = h1_2d[:R].reshape(N, H, W, cmid)
    Hp, Wp = H + 2, W + 2
    step3 = ((H * W + Hp * Wp) * cmid * 2 + 3 * Ho * Wo * cmid * 4
             + 9 * cmid * cmid * 2)
    h2, st3 = pl.pallas_call(
        _make_conv2_kernel(H, W, Ho, Wo, stride, cmid),
        grid=(N,),
        in_specs=[pl.BlockSpec((None, H, W, cmid), lambda n: (n, 0, 0, 0)),
                  pl.BlockSpec((2, cmid), lambda n: (0, 0)),
                  pl.BlockSpec((9, cmid, cmid), lambda n: (0, 0, 0))],
        out_specs=[pl.BlockSpec((None, Ho * Wo, cmid), lambda n: (n, 0, 0)),
                   pl.BlockSpec((None, 2, cmid), lambda n: (n, 0, 0))],
        out_shape=[jax.ShapeDtypeStruct((N, Ho * Wo, cmid), jnp.bfloat16),
                   jax.ShapeDtypeStruct((N, 2, cmid), jnp.float32)],
        scratch_shapes=[pltpu.VMEM((Hp, Wp, cmid), jnp.bfloat16)],
        compiler_params=_compiler_params(step3),
        cost_estimate=pl.CostEstimate(flops=2 * Ro * 9 * cmid * cmid + 8 * R * cmid,
                                      transcendentals=0,
                                      bytes_accessed=(R + Ro) * cmid * 2),
    )(h1_img, ss2, w2)
    ss3 = _scale_shift(st3, g3, b3, Ro)

    # ---- pass 4: BN3 + ReLU + conv3 (+ conv4 projection) + residual add ------------------------
    tro, Rop = _row_tiling(Ro)
    gso = Rop // tro
    h2_2d = _pad_rows(h2.reshape(Ro, cmid), Rop)
    xs = _pad_rows(x[:, ::stride, ::stride, :].reshape(Ro, in_c), Rop)
    # TODO(synk): for production Cout < 128, pack the final store as a lane-dense
    # (rows/k, k*Cout) slab to avoid masked vst on the output path.
    if use_conv4:
        in_specs4 = [pl.BlockSpec((tro, cmid), lambda i: (i, 0)),
                     pl.BlockSpec((tro, in_c), lambda i: (i, 0)),
                     pl.BlockSpec((2, cmid), lambda i: (0, 0)),
                     pl.BlockSpec((2, in_c), lambda i: (0, 0)),
                     pl.BlockSpec((cmid, out_c), lambda i: (0, 0)),
                     pl.BlockSpec((in_c, out_c), lambda i: (0, 0))]
        args4 = (h2_2d, xs, ss3, ss1, w3, w4)
        k_in = cmid + in_c
    else:
        in_specs4 = [pl.BlockSpec((tro, cmid), lambda i: (i, 0)),
                     pl.BlockSpec((tro, in_c), lambda i: (i, 0)),
                     pl.BlockSpec((2, cmid), lambda i: (0, 0)),
                     pl.BlockSpec((cmid, out_c), lambda i: (0, 0))]
        args4 = (h2_2d, xs, ss3, w3)
        k_in = cmid
    out2d = pl.pallas_call(
        _make_out_kernel(use_conv4),
        grid=(gso,),
        in_specs=in_specs4,
        out_specs=pl.BlockSpec((tro, out_c), lambda i: (i, 0)),
        out_shape=jax.ShapeDtypeStruct((Rop, out_c), jnp.float32),
        compiler_params=_compiler_params(
            tro * (cmid * 2 + in_c * 4 + out_c * 4) + k_in * out_c * 2),
        cost_estimate=pl.CostEstimate(flops=2 * Ro * k_in * out_c + 8 * Ro * cmid,
                                      transcendentals=0,
                                      bytes_accessed=Ro * (cmid * 2 + in_c * 4 + out_c * 4)),
    )(*args4)

    out = out2d[:Ro].reshape(N, Ho, Wo, out_c)
    return jnp.transpose(out, (0, 3, 1, 2))                                # NHWC -> NCHW


# --------------------------------------------------------------------------------------
# Pure-JAX reference (mirrors the PyTorch forward, training-mode BN)
# --------------------------------------------------------------------------------------
def _conv_ref(x, w_oihw, stride=1, padding=0):
    return lax.conv_general_dilated(
        x, w_oihw, window_strides=(stride, stride),
        padding=[(padding, padding), (padding, padding)],
        dimension_numbers=("NCHW", "OIHW", "NCHW"))


def _bn_ref(x, g, b):
    mean = x.mean(axis=(0, 2, 3), keepdims=True)
    var = ((x - mean) ** 2).mean(axis=(0, 2, 3), keepdims=True)
    return (g.reshape(1, -1, 1, 1) * (x - mean) / jnp.sqrt(var + EPS)
            + b.reshape(1, -1, 1, 1))


def reference_forward(x, params, *, in_c, out_c, stride):
    g1, b1, g2, b2, g3, b3, w1, w2, w3, w4 = params
    residual = x
    out1 = jnp.maximum(_bn_ref(x, g1, b1), 0.0)
    out = _conv_ref(out1, w1)
    out = jnp.maximum(_bn_ref(out, g2, b2), 0.0)
    out = _conv_ref(out, w2, stride=stride, padding=1)
    out = jnp.maximum(_bn_ref(out, g3, b3), 0.0)
    out = _conv_ref(out, w3)
    if in_c != out_c or stride != 1:
        residual = _conv_ref(out1, w4, stride=stride)
    return out + residual


# --------------------------------------------------------------------------------------
def _make_params(key, in_c, out_c):
    cmid = out_c // 4
    ks = jax.random.split(key, 10)
    g1 = 1.0 + 0.1 * jax.random.normal(ks[0], (in_c,), jnp.float32)
    b1 = 0.1 * jax.random.normal(ks[1], (in_c,), jnp.float32)
    g2 = 1.0 + 0.1 * jax.random.normal(ks[2], (cmid,), jnp.float32)
    b2 = 0.1 * jax.random.normal(ks[3], (cmid,), jnp.float32)
    g3 = 1.0 + 0.1 * jax.random.normal(ks[4], (cmid,), jnp.float32)
    b3 = 0.1 * jax.random.normal(ks[5], (cmid,), jnp.float32)
    w1 = jax.random.normal(ks[6], (cmid, in_c, 1, 1), jnp.float32) / np.sqrt(in_c)
    w2 = jax.random.normal(ks[7], (cmid, cmid, 3, 3), jnp.float32) / np.sqrt(9 * cmid)
    w3 = jax.random.normal(ks[8], (out_c, cmid, 1, 1), jnp.float32) / np.sqrt(cmid)
    w4 = jax.random.normal(ks[9], (out_c, in_c, 1, 1), jnp.float32) / np.sqrt(in_c)
    return (g1, b1, g2, b2, g3, b3, w1, w2, w3, w4)


if __name__ == "__main__":
    key = jax.random.PRNGKey(0)
    configs = [
        dict(N=2, H=16, W=16, in_c=8,  out_c=16, stride=1),   # projection residual (conv4)
        dict(N=2, H=16, W=16, in_c=16, out_c=16, stride=1),   # identity residual
        dict(N=2, H=16, W=16, in_c=8,  out_c=16, stride=2),   # strided block (stride in-kernel)
    ]
    for cfg in configs:
        kx, kp, key = jax.random.split(key, 3)
        N, H, W = cfg["N"], cfg["H"], cfg["W"]
        in_c, out_c, stride = cfg["in_c"], cfg["out_c"], cfg["stride"]

        x = jax.random.normal(kx, (N, in_c, H, W), jnp.float32)
        params = _make_params(kp, in_c, out_c)

        out = residual_block_forward(x, params, in_c=in_c, out_c=out_c, stride=stride)
        out = jax.block_until_ready(out)

        ref = reference_forward(x, params, in_c=in_c, out_c=out_c, stride=stride)
        ref = jax.block_until_ready(ref)

        Ho = (H - 1) // stride + 1
        Wo = (W - 1) // stride + 1
        assert out.shape == (N, out_c, Ho, Wo)
        # bf16 MXU operands + bf16 h1/h2 intermediates (f32 accumulation / f32 BN stats).
        np.testing.assert_allclose(np.asarray(out), np.asarray(ref), rtol=5e-2, atol=5e-2)

    print("KERNEL_OK")
</pallas_src>

<mosaic_0001>
module attributes {stable_mosaic.version = 11 : i64} {
  func.func @_stats_kernel(%arg0: i32, %arg1: memref<512x8xf32, #tpu.memory_space<vmem>>, %arg2: memref<1x2x8xf32, #tpu.memory_space<vmem>>) attributes {dimension_semantics = [#tpu.dimension_semantics<parallel>], iteration_bounds = array<i64: 1>, scalar_prefetch = 0 : i64, scratch_operands = 0 : i64, tpu.core_type = #tpu.core_type<tc>, window_params = [{transform_indices = @transform_0, window_bounds = array<i64: 512, 8>}, {transform_indices = @transform_1, window_bounds = array<i64: 1, 2, 8>}]} {
    %c0 = arith.constant 0 : index
    %c0_0 = arith.constant 0 : index
    %0 = vector.load %arg1[%c0, %c0_0] : memref<512x8xf32, #tpu.memory_space<vmem>>, vector<512x8xf32>
    %cst = arith.constant dense<0.000000e+00> : vector<8xf32>
    %1 = vector.multi_reduction <add>, %0, %cst [0] : vector<512x8xf32> to vector<8xf32>
    %2 = vector.shape_cast %1 : vector<8xf32> to vector<1x8xf32>
    %3 = arith.mulf %0, %0 : vector<512x8xf32>
    %cst_1 = arith.constant dense<0.000000e+00> : vector<8xf32>
    %4 = vector.multi_reduction <add>, %3, %cst_1 [0] : vector<512x8xf32> to vector<8xf32>
    %5 = vector.shape_cast %4 : vector<8xf32> to vector<1x8xf32>
    %6 = tpu.concatenate %2, %5 in 0 : vector<1x8xf32>, vector<1x8xf32> -> vector<2x8xf32>
    %c0_2 = arith.constant 0 : index
    %c0_3 = arith.constant 0 : index
    %c0_4 = arith.constant 0 : index
    %7 = vector.load %arg2[%c0_2, %c0_3, %c0_4] : memref<1x2x8xf32, #tpu.memory_space<vmem>>, vector<1x2x8xf32>
    %8 = vector.shape_cast %7 : vector<1x2x8xf32> to vector<2x8xf32>
    %9 = vector.shape_cast %6 : vector<2x8xf32> to vector<1x2x8xf32>
    tpu.vector_store %arg2[%c0_2, %c0_3, %c0_4], %9 {strides = array<i32>} : memref<1x2x8xf32, #tpu.memory_space<vmem>>, vector<1x2x8xf32>,
    return
  }
  func.func @transform_0(%arg0: i32) -> (i32, i32) {
    %c0_i32 = arith.constant 0 : i32
    %c0_i32_0 = arith.constant 0 : i32
    return %arg0, %c0_i32 : i32, i32
  }
  func.func @transform_1(%arg0: i32) -> (i32, i32, i32) {
    %c0_i32 = arith.constant 0 : i32
    %c0_i32_0 = arith.constant 0 : i32
    %c0_i32_1 = arith.constant 0 : i32
    return %arg0, %c0_i32, %c0_i32_0 : i32, i32, i32
  }
}

module attributes {stable_mosaic.version = 11 : i64} {
  func.func @kernel(%arg0: i32, %arg1: memref<512x8xf32, #tpu.memory_space<vmem>>, %arg2: memref<2x8xf32, #tpu.memory_space<vmem>>, %arg3: memref<8x4xbf16, #tpu.memory_space<vmem>>, %arg4: memref<512x4xbf16, #tpu.memory_space<vmem>>, %arg5: memref<1x2x4xf32, #tpu.memory_space<vmem>>) attributes {dimension_semantics = [#tpu.dimension_semantics<parallel>], iteration_bounds = array<i64: 1>, scalar_prefetch = 0 : i64, scratch_operands = 0 : i64, tpu.core_type = #tpu.core_type<tc>, window_params = [{transform_indices = @transform_0, window_bounds = array<i64: 512, 8>}, {pipeline_mode = #tpu.pipeline_mode<synchronous>, transform_indices = @transform_1, window_bounds = array<i64: 2, 8>}, {pipeline_mode = #tpu.pipeline_mode<synchronous>, transform_indices = @transform_2, window_bounds = array<i64: 8, 4>}, {transform_indices = @transform_3, window_bounds = array<i64: 512, 4>}, {transform_indices = @transform_4, window_bounds = array<i64: 1, 2, 4>}]} {
    %c0 = arith.constant 0 : index
    %c0_0 = arith.constant 0 : index
    %0 = vector.load %arg1[%c0, %c0_0] : memref<512x8xf32, #tpu.memory_space<vmem>>, vector<512x8xf32>
    %c0_1 = arith.constant 0 : index
    %c0_2 = arith.constant 0 : index
    %1 = vector.load %arg2[%c0_1, %c0_2] : memref<2x8xf32, #tpu.memory_space<vmem>>, vector<1x8xf32>
    %2 = vector.broadcast %1 : vector<1x8xf32> to vector<512x8xf32>
    %3 = arith.mulf %0, %2 : vector<512x8xf32>
    %c1 = arith.constant 1 : index
    %c0_3 = arith.constant 0 : index
    %4 = vector.load %arg2[%c1, %c0_3] : memref<2x8xf32, #tpu.memory_space<vmem>>, vector<1x8xf32>
    %5 = vector.broadcast %4 : vector<1x8xf32> to vector<512x8xf32>
    %6 = arith.addf %3, %5 : vector<512x8xf32>
    %cst = arith.constant 0.000000e+00 : f32
    %7 = vector.broadcast %cst : f32 to vector<512x8xf32>
    %8 = arith.maximumf %6, %7 : vector<512x8xf32>
    %9 = arith.truncf %8 : vector<512x8xf32> to vector<512x8xbf16>
    %c0_4 = arith.constant 0 : index
    %c0_5 = arith.constant 0 : index
    %10 = vector.load %arg3[%c0_4, %c0_5] : memref<8x4xbf16, #tpu.memory_space<vmem>>, vector<8x4xbf16>
    %cst_6 = arith.constant dense<0.000000e+00> : vector<512x4xf32>
    %11 = tpu.matmul %9, %10, %cst_6 {dimension_numbers = #tpu.dot_dimension_numbers<[1], [0], [0], [1], [0, 0, 1, 1], [], []>} : vector<512x8xbf16>, vector<8x4xbf16>, vector<512x4xf32> -> vector<512x4xf32>
    %12 = arith.truncf %11 : vector<512x4xf32> to vector<512x4xbf16>
    %c0_7 = arith.constant 0 : index
    %c0_8 = arith.constant 0 : index
    %13 = vector.load %arg4[%c0_7, %c0_8] : memref<512x4xbf16, #tpu.memory_space<vmem>>, vector<512x4xbf16>
    tpu.vector_store %arg4[%c0_7, %c0_8], %12 {strides = array<i32>} : memref<512x4xbf16, #tpu.memory_space<vmem>>, vector<512x4xbf16>,
    %cst_9 = arith.constant dense<0.000000e+00> : vector<4xf32>
    %14 = vector.multi_reduction <add>, %11, %cst_9 [0] : vector<512x4xf32> to vector<4xf32>
    %15 = vector.shape_cast %14 : vector<4xf32> to vector<1x4xf32>
    %16 = arith.mulf %11, %11 : vector<512x4xf32>
    %cst_10 = arith.constant dense<0.000000e+00> : vector<4xf32>
    %17 = vector.multi_reduction <add>, %16, %cst_10 [0] : vector<512x4xf32> to vector<4xf32>
    %18 = vector.shape_cast %17 : vector<4xf32> to vector<1x4xf32>
    %19 = tpu.concatenate %15, %18 in 0 : vector<1x4xf32>, vector<1x4xf32> -> vector<2x4xf32>
    %c0_11 = arith.constant 0 : index
    %c0_12 = arith.constant 0 : index
    %c0_13 = arith.constant 0 : index
    %20 = vector.load %arg5[%c0_11, %c0_12, %c0_13] : memref<1x2x4xf32, #tpu.memory_space<vmem>>, vector<1x2x4xf32>
    %21 = vector.shape_cast %20 : vector<1x2x4xf32> to vector<2x4xf32>
    %22 = vector.shape_cast %19 : vector<2x4xf32> to vector<1x2x4xf32>
    tpu.vector_store %arg5[%c0_11, %c0_12, %c0_13], %22 {strides = array<i32>} : memref<1x2x4xf32, #tpu.memory_space<vmem>>, vector<1x2x4xf32>,
    return
  }
  func.func @transform_0(%arg0: i32) -> (i32, i32) {
    %c0_i32 = arith.constant 0 : i32
    %c0_i32_0 = arith.constant 0 : i32
    return %arg0, %c0_i32 : i32, i32
  }
  func.func @transform_1(%arg0: i32) -> (i32, i32) {
    %c0_i32 = arith.constant 0 : i32
    %c0_i32_0 = arith.constant 0 : i32
    %c0_i32_1 = arith.constant 0 : i32
    return %c0_i32, %c0_i32_0 : i32, i32
  }
  func.func @transform_2(%arg0: i32) -> (i32, i32) {
    %c0_i32 = arith.constant 0 : i32
    %c0_i32_0 = arith.constant 0 : i32
    %c0_i32_1 = arith.constant 0 : i32
    return %c0_i32, %c0_i32_0 : i32, i32
  }
  func.func @transform_3(%arg0: i32) -> (i32, i32) {
    %c0_i32 = arith.constant 0 : i32
    %c0_i32_0 = arith.constant 0 : i32
    return %arg0, %c0_i32 : i32, i32
  }
  func.func @transform_4(%arg0: i32) -> (i32, i32, i32) {
    %c0_i32 = arith.constant 0 : i32
    %c0_i32_0 = arith.constant 0 : i32
    %c0_i32_1 = arith.constant 0 : i32
    return %arg0, %c0_i32, %c0_i32_0 : i32, i32, i32
  }
}

module attributes {stable_mosaic.version = 11 : i64} {
  func.func @kernel(%arg0: i32, %arg1: memref<1x16x16x4xbf16, #tpu.memory_space<vmem>>, %arg2: memref<2x4xf32, #tpu.memory_space<vmem>>, %arg3: memref<9x4x4xbf16, #tpu.memory_space<vmem>>, %arg4: memref<1x256x4xbf16, #tpu.memory_space<vmem>>, %arg5: memref<1x2x4xf32, #tpu.memory_space<vmem>>, %arg6: memref<18x18x4xbf16, #tpu.memory_space<vmem>>) attributes {dimension_semantics = [#tpu.dimension_semantics<parallel>], iteration_bounds = array<i64: 2>, scalar_prefetch = 0 : i64, scratch_operands = 1 : i64, tpu.core_type = #tpu.core_type<tc>, window_params = [{transform_indices = @transform_0, window_bounds = array<i64: 1, 16, 16, 4>}, {pipeline_mode = #tpu.pipeline_mode<synchronous>, transform_indices = @transform_1, window_bounds = array<i64: 2, 4>}, {pipeline_mode = #tpu.pipeline_mode<synchronous>, transform_indices = @transform_2, window_bounds = array<i64: 9, 4, 4>}, {transform_indices = @transform_3, window_bounds = array<i64: 1, 256, 4>}, {transform_indices = @transform_4, window_bounds = array<i64: 1, 2, 4>}]} {
    %c0_i32 = arith.constant 0 : i32
    %0 = arith.cmpi eq, %arg0, %c0_i32 : i32
    %1 = arith.extui %0 : i1 to i32
    %c0_i32_0 = arith.constant 0 : i32
    %2 = arith.cmpi ne, %1, %c0_i32_0 : i32
    scf.if %2 {
      %cst_72 = arith.constant 0.000000e+00 : bf16
      %85 = vector.broadcast %cst_72 : bf16 to vector<18x18x4xbf16>
      %c0_73 = arith.constant 0 : index
      %c0_74 = arith.constant 0 : index
      %c0_75 = arith.constant 0 : index
      %86 = vector.load %arg6[%c0_73, %c0_74, %c0_75] : memref<18x18x4xbf16, #tpu.memory_space<vmem>>, vector<18x18x4xbf16>
      tpu.vector_store %arg6[%c0_73, %c0_74, %c0_75], %85 {strides = array<i32>} : memref<18x18x4xbf16, #tpu.memory_space<vmem>>, vector<18x18x4xbf16>,
    } else {
    }
    %c0 = arith.constant 0 : index
    %c0_1 = arith.constant 0 : index
    %3 = vector.load %arg2[%c0, %c0_1] : memref<2x4xf32, #tpu.memory_space<vmem>>, vector<2x4xf32>
    %4 = vector.extract_strided_slice %3 {offsets = [0, 0], sizes = [1, 4], strides = [1, 1]} : vector<2x4xf32> to vector<1x4xf32>
    %5 = vector.shape_cast %4 : vector<1x4xf32> to vector<1x1x4xf32>
    %6 = vector.extract_strided_slice %3 {offsets = [1, 0], sizes = [1, 4], strides = [1, 1]} : vector<2x4xf32> to vector<1x4xf32>
    %7 = vector.shape_cast %6 : vector<1x4xf32> to vector<1x1x4xf32>
    %c0_2 = arith.constant 0 : index
    %c0_3 = arith.constant 0 : index
    %c0_4 = arith.constant 0 : index
    %c0_5 = arith.constant 0 : index
    %8 = vector.load %arg1[%c0_2, %c0_3, %c0_4, %c0_5] : memref<1x16x16x4xbf16, #tpu.memory_space<vmem>>, vector<1x16x16x4xbf16>
    %9 = vector.shape_cast %8 : vector<1x16x16x4xbf16> to vector<16x16x4xbf16>
    %10 = arith.extf %9 : vector<16x16x4xbf16> to vector<16x16x4xf32>
    %11 = vector.broadcast %5 : vector<1x1x4xf32> to vector<16x16x4xf32>
    %12 = arith.mulf %10, %11 : vector<16x16x4xf32>
    %13 = vector.broadcast %7 : vector<1x1x4xf32> to vector<16x16x4xf32>
    %14 = arith.addf %12, %13 : vector<16x16x4xf32>
    %cst = arith.constant 0.000000e+00 : f32
    %15 = vector.broadcast %cst : f32 to vector<16x16x4xf32>
    %16 = arith.maximumf %14, %15 : vector<16x16x4xf32>
    %17 = arith.truncf %16 : vector<16x16x4xf32> to vector<16x16x4xbf16>
    %c1 = arith.constant 1 : index
    %c1_6 = arith.constant 1 : index
    %c0_7 = arith.constant 0 : index
    %18 = vector.load %arg6[%c1, %c1_6, %c0_7] : memref<18x18x4xbf16, #tpu.memory_space<vmem>>, vector<16x16x4xbf16>
    tpu.vector_store %arg6[%c1, %c1_6, %c0_7], %17 {strides = array<i32>} : memref<18x18x4xbf16, #tpu.memory_space<vmem>>, vector<16x16x4xbf16>,
    %c0_8 = arith.constant 0 : index
    %c0_9 = arith.constant 0 : index
    %c0_10 = arith.constant 0 : index
    %19 = vector.load %arg6[%c0_8, %c0_9, %c0_10] : memref<18x18x4xbf16, #tpu.memory_space<vmem>>, vector<16x16x4xbf16>
    %20 = vector.shape_cast %19 : vector<16x16x4xbf16> to vector<256x4xbf16>
    %c0_11 = arith.constant 0 : index
    %c0_12 = arith.constant 0 : index
    %c0_13 = arith.constant 0 : index
    %21 = vector.load %arg3[%c0_11, %c0_12, %c0_13] : memref<9x4x4xbf16, #tpu.memory_space<vmem>>, vector<1x4x4xbf16>
    %22 = vector.shape_cast %21 : vector<1x4x4xbf16> to vector<4x4xbf16>
    %cst_14 = arith.constant dense<0.000000e+00> : vector<256x4xf32>
    %23 = tpu.matmul %20, %22, %cst_14 {dimension_numbers = #tpu.dot_dimension_numbers<[1], [0], [0], [1], [0, 0, 1, 1], [], []>} : vector<256x4xbf16>, vector<4x4xbf16>, vector<256x4xf32> -> vector<256x4xf32>
    %c0_15 = arith.constant 0 : index
    %c1_16 = arith.constant 1 : index
    %c0_17 = arith.constant 0 : index
    %24 = vector.load %arg6[%c0_15, %c1_16, %c0_17] : memref<18x18x4xbf16, #tpu.memory_space<vmem>>, vector<16x16x4xbf16>
    %25 = vector.shape_cast %24 : vector<16x16x4xbf16> to vector<256x4xbf16>
    %c1_18 = arith.constant 1 : index
    %c0_19 = arith.constant 0 : index
    %c0_20 = arith.constant 0 : index
    %26 = vector.load %arg3[%c1_18, %c0_19, %c0_20] : memref<9x4x4xbf16, #tpu.memory_space<vmem>>, vector<1x4x4xbf16>
    %27 = vector.shape_cast %26 : vector<1x4x4xbf16> to vector<4x4xbf16>
    %cst_21 = arith.constant dense<0.000000e+00> : vector<256x4xf32>
    %28 = tpu.matmul %25, %27, %cst_21 {dimension_numbers = #tpu.dot_dimension_numbers<[1], [0], [0], [1], [0, 0, 1, 1], [], []>} : vector<256x4xbf16>, vector<4x4xbf16>, vector<256x4xf32> -> vector<256x4xf32>
    %29 = arith.addf %23, %28 : vector<256x4xf32>
    %c0_22 = arith.constant 0 : index
    %c2 = arith.constant 2 : index
    %c0_23 = arith.constant 0 : index
    %30 = vector.load %arg6[%c0_22, %c2, %c0_23] : memref<18x18x4xbf16, #tpu.memory_space<vmem>>, vector<16x16x4xbf16>
    %31 = vector.shape_cast %30 : vector<16x16x4xbf16> to vector<256x4xbf16>
    %c2_24 = arith.constant 2 : index
    %c0_25 = arith.constant 0 : index
    %c0_26 = arith.constant 0 : index
    %32 = vector.load %arg3[%c2_24, %c0_25, %c0_26] : memref<9x4x4xbf16, #tpu.memory_space<vmem>>, vector<1x4x4xbf16>
    %33 = vector.shape_cast %32 : vector<1x4x4xbf16> to vector<4x4xbf16>
    %cst_27 = arith.constant dense<0.000000e+00> : vector<256x4xf32>
    %34 = tpu.matmul %31, %33, %cst_27 {dimension_numbers = #tpu.dot_dimension_numbers<[1], [0], [0], [1], [0, 0, 1, 1], [], []>} : vector<256x4xbf16>, vector<4x4xbf16>, vector<256x4xf32> -> vector<256x4xf32>
    %35 = arith.addf %29, %34 : vector<256x4xf32>
    %c1_28 = arith.constant 1 : index
    %c0_29 = arith.constant 0 : index
    %c0_30 = arith.constant 0 : index
    %36 = vector.load %arg6[%c1_28, %c0_29, %c0_30] : memref<18x18x4xbf16, #tpu.memory_space<vmem>>, vector<16x16x4xbf16>
    %37 = vector.shape_cast %36 : vector<16x16x4xbf16> to vector<256x4xbf16>
    %c3 = arith.constant 3 : index
    %c0_31 = arith.constant 0 : index
    %c0_32 = arith.constant 0 : index
    %38 = vector.load %arg3[%c3, %c0_31, %c0_32] : memref<9x4x4xbf16, #tpu.memory_space<vmem>>, vector<1x4x4xbf16>
    %39 = vector.shape_cast %38 : vector<1x4x4xbf16> to vector<4x4xbf16>
    %cst_33 = arith.constant dense<0.000000e+00> : vector<256x4xf32>
    %40 = tpu.matmul %37, %39, %cst_33 {dimension_numbers = #tpu.dot_dimension_numbers<[1], [0], [0], [1], [0, 0, 1, 1], [], []>} : vector<256x4xbf16>, vector<4x4xbf16>, vector<256x4xf32> -> vector<256x4xf32>
    %41 = arith.addf %35, %40 : vector<256x4xf32>
    %c1_34 = arith.constant 1 : index
    %c1_35 = arith.constant 1 : index
    %c0_36 = arith.constant 0 : index
    %42 = vector.load %arg6[%c1_34, %c1_35, %c0_36] : memref<18x18x4xbf16, #tpu.memory_space<vmem>>, vector<16x16x4xbf16>
    %43 = vector.shape_cast %42 : vector<16x16x4xbf16> to vector<256x4xbf16>
    %c4 = arith.constant 4 : index
    %c0_37 = arith.constant 0 : index
    %c0_38 = arith.constant 0 : index
    %44 = vector.load %arg3[%c4, %c0_37, %c0_38] : memref<9x4x4xbf16, #tpu.memory_space<vmem>>, vector<1x4x4xbf16>
    %45 = vector.shape_cast %44 : vector<1x4x4xbf16> to vector<4x4xbf16>
    %cst_39 = arith.constant dense<0.000000e+00> : vector<256x4xf32>
    %46 = tpu.matmul %43, %45, %cst_39 {dimension_numbers = #tpu.dot_dimension_numbers<[1], [0], [0], [1], [0, 0, 1, 1], [], []>} : vector<256x4xbf16>, vector<4x4xbf16>, vector<256x4xf32> -> vector<256x4xf32>
    %47 = arith.addf %41, %46 : vector<256x4xf32>
    %c1_40 = arith.constant 1 : index
    %c2_41 = arith.constant 2 : index
    %c0_42 = arith.constant 0 : index
    %48 = vector.load %arg6[%c1_40, %c2_41, %c0_42] : memref<18x18x4xbf16, #tpu.memory_space<vmem>>, vector<16x16x4xbf16>
    %49 = vector.shape_cast %48 : vector<16x16x4xbf16> to vector<256x4xbf16>
    %c5 = arith.constant 5 : index
    %c0_43 = arith.constant 0 : index
    %c0_44 = arith.constant 0 : index
    %50 = vector.load %arg3[%c5, %c0_43, %c0_44] : memref<9x4x4xbf16, #tpu.memory_space<vmem>>, vector<1x4x4xbf16>
    %51 = vector.shape_cast %50 : vector<1x4x4xbf16> to vector<4x4xbf16>
    %cst_45 = arith.constant dense<0.000000e+00> : vector<256x4xf32>
    %52 = tpu.matmul %49, %51, %cst_45 {dimension_numbers = #tpu.dot_dimension_numbers<[1], [0], [0], [1], [0, 0, 1, 1], [], []>} : vector<256x4xbf16>, vector<4x4xbf16>, vector<256x4xf32> -> vector<256x4xf32>
    %53 = arith.addf %47, %52 : vector<256x4xf32>
    %c2_46 = arith.constant 2 : index
    %c0_47 = arith.constant 0 : index
    %c0_48 = arith.constant 0 : index
    %54 = vector.load %arg6[%c2_46, %c0_47, %c0_48] : memref<18x18x4xbf16, #tpu.memory_space<vmem>>, vector<16x16x4xbf16>
    %55 = vector.shape_cast %54 : vector<16x16x4xbf16> to vector<256x4xbf16>
    %c6 = arith.constant 6 : index
    %c0_49 = arith.constant 0 : index
    %c0_50 = arith.constant 0 : index
    %56 = vector.load %arg3[%c6, %c0_49, %c0_50] : memref<9x4x4xbf16, #tpu.memory_space<vmem>>, vector<1x4x4xbf16>
    %57 = vector.shape_cast %56 : vector<1x4x4xbf16> to vector<4x4xbf16>
    %cst_51 = arith.constant dense<0.000000e+00> : vector<256x4xf32>
    %58 = tpu.matmul %55, %57, %cst_51 {dimension_numbers = #tpu.dot_dimension_numbers<[1], [0], [0], [1], [0, 0, 1, 1], [], []>} : vector<256x4xbf16>, vector<4x4xbf16>, vector<256x4xf32> -> vector<256x4xf32>
    %59 = arith.addf %53, %58 : vector<256x4xf32>
    %c2_52 = arith.constant 2 : index
    %c1_53 = arith.constant 1 : index
    %c0_54 = arith.constant 0 : index
    %60 = vector.load %arg6[%c2_52, %c1_53, %c0_54] : memref<18x18x4xbf16, #tpu.memory_space<vmem>>, vector<16x16x4xbf16>
    %61 = vector.shape_cast %60 : vector<16x16x4xbf16> to vector<256x4xbf16>
    %c7 = arith.constant 7 : index
    %c0_55 = arith.constant 0 : index
    %c0_56 = arith.constant 0 : index
    %62 = vector.load %arg3[%c7, %c0_55, %c0_56] : memref<9x4x4xbf16, #tpu.memory_space<vmem>>, vector<1x4x4xbf16>
    %63 = vector.shape_cast %62 : vector<1x4x4xbf16> to vector<4x4xbf16>
    %cst_57 = arith.constant dense<0.000000e+00> : vector<256x4xf32>
    %64 = tpu.matmul %61, %63, %cst_57 {dimension_numbers = #tpu.dot_dimension_numbers<[1], [0], [0], [1], [0, 0, 1, 1], [], []>} : vector<256x4xbf16>, vector<4x4xbf16>, vector<256x4xf32> -> vector<256x4xf32>
    %65 = arith.addf %59, %64 : vector<256x4xf32>
    %c2_58 = arith.constant 2 : index
    %c2_59 = arith.constant 2 : index
    %c0_60 = arith.constant 0 : index
    %66 = vector.load %arg6[%c2_58, %c2_59, %c0_60] : memref<18x18x4xbf16, #tpu.memory_space<vmem>>, vector<16x16x4xbf16>
    %67 = vector.shape_cast %66 : vector<16x16x4xbf16> to vector<256x4xbf16>
    %c8 = arith.constant 8 : index
    %c0_61 = arith.constant 0 : index
    %c0_62 = arith.constant 0 : index
    %68 = vector.load %arg3[%c8, %c0_61, %c0_62] : memref<9x4x4xbf16, #tpu.memory_space<vmem>>, vector<1x4x4xbf16>
    %69 = vector.shape_cast %68 : vector<1x4x4xbf16> to vector<4x4xbf16>
    %cst_63 = arith.constant dense<0.000000e+00> : vector<256x4xf32>
    %70 = tpu.matmul %67, %69, %cst_63 {dimension_numbers = #tpu.dot_dimension_numbers<[1], [0], [0], [1], [0, 0, 1, 1], [], []>} : vector<256x4xbf16>, vector<4x4xbf16>, vector<256x4xf32> -> vector<256x4xf32>
    %71 = arith.addf %65, %70 : vector<256x4xf32>
    %72 = arith.truncf %71 : vector<256x4xf32> to vector<256x4xbf16>
    %c0_64 = arith.constant 0 : index
    %c0_65 = arith.constant 0 : index
    %c0_66 = arith.constant 0 : index
    %73 = vector.load %arg4[%c0_64, %c0_65, %c0_66] : memref<1x256x4xbf16, #tpu.memory_space<vmem>>, vector<1x256x4xbf16>
    %74 = vector.shape_cast %73 : vector<1x256x4xbf16> to vector<256x4xbf16>
    %75 = vector.shape_cast %72 : vector<256x4xbf16> to vector<1x256x4xbf16>
    tpu.vector_store %arg4[%c0_64, %c0_65, %c0_66], %75 {strides = array<i32>} : memref<1x256x4xbf16, #tpu.memory_space<vmem>>, vector<1x256x4xbf16>,
    %cst_67 = arith.constant dense<0.000000e+00> : vector<4xf32>
    %76 = vector.multi_reduction <add>, %71, %cst_67 [0] : vector<256x4xf32> to vector<4xf32>
    %77 = vector.shape_cast %76 : vector<4xf32> to vector<1x4xf32>
    %78 = arith.mulf %71, %71 : vector<256x4xf32>
    %cst_68 = arith.constant dense<0.000000e+00> : vector<4xf32>
    %79 = vector.multi_reduction <add>, %78, %cst_68 [0] : vector<256x4xf32> to vector<4xf32>
    %80 = vector.shape_cast %79 : vector<4xf32> to vector<1x4xf32>
    %81 = tpu.concatenate %77, %80 in 0 : vector<1x4xf32>, vector<1x4xf32> -> vector<2x4xf32>
    %c0_69 = arith.constant 0 : index
    %c0_70 = arith.constant 0 : index
    %c0_71 = arith.constant 0 : index
    %82 = vector.load %arg5[%c0_69, %c0_70, %c0_71] : memref<1x2x4xf32, #tpu.memory_space<vmem>>, vector<1x2x4xf32>
    %83 = vector.shape_cast %82 : vector<1x2x4xf32> to vector<2x4xf32>
    %84 = vector.shape_cast %81 : vector<2x4xf32> to vector<1x2x4xf32>
    tpu.vector_store %arg5[%c0_69, %c0_70, %c0_71], %84 {strides = array<i32>} : memref<1x2x4xf32, #tpu.memory_space<vmem>>, vector<1x2x4xf32>,
    return
  }
  func.func @transform_0(%arg0: i32) -> (i32, i32, i32, i32) {
    %c0_i32 = arith.constant 0 : i32
    %c0_i32_0 = arith.constant 0 : i32
    %c0_i32_1 = arith.constant 0 : i32
    %c0_i32_2 = arith.constant 0 : i32
    return %arg0, %c0_i32, %c0_i32_0, %c0_i32_1 : i32, i32, i32, i32
  }
  func.func @transform_1(%arg0: i32) -> (i32, i32) {
    %c0_i32 = arith.constant 0 : i32
    %c0_i32_0 = arith.constant 0 : i32
    %c0_i32_1 = arith.constant 0 : i32
    return %c0_i32, %c0_i32_0 : i32, i32
  }
  func.func @transform_2(%arg0: i32) -> (i32, i32, i32) {
    %c0_i32 = arith.constant 0 : i32
    %c0_i32_0 = arith.constant 0 : i32
    %c0_i32_1 = arith.constant 0 : i32
    %c0_i32_2 = arith.constant 0 : i32
    return %c0_i32, %c0_i32_0, %c0_i32_1 : i32, i32, i32
  }
  func.func @transform_3(%arg0: i32) -> (i32, i32, i32) {
    %c0_i32 = arith.constant 0 : i32
    %c0_i32_0 = arith.constant 0 : i32
    %c0_i32_1 = arith.constant 0 : i32
    return %arg0, %c0_i32, %c0_i32_0 : i32, i32, i32
  }
  func.func @transform_4(%arg0: i32) -> (i32, i32, i32) {
    %c0_i32 = arith.constant 0 : i32
    %c0_i32_0 = arith.constant 0 : i32
    %c0_i32_1 = arith.constant 0 : i32
    return %arg0, %c0_i32, %c0_i32_0 : i32, i32, i32
  }
}

module attributes {stable_mosaic.version = 11 : i64} {
  func.func @kernel(%arg0: i32, %arg1: memref<512x4xbf16, #tpu.memory_space<vmem>>, %arg2: memref<512x8xf32, #tpu.memory_space<vmem>>, %arg3: memref<2x4xf32, #tpu.memory_space<vmem>>, %arg4: memref<2x8xf32, #tpu.memory_space<vmem>>, %arg5: memref<4x16xbf16, #tpu.memory_space<vmem>>, %arg6: memref<8x16xbf16, #tpu.memory_space<vmem>>, %arg7: memref<512x16xf32, #tpu.memory_space<vmem>>) attributes {dimension_semantics = [#tpu.dimension_semantics<parallel>], iteration_bounds = array<i64: 1>, scalar_prefetch = 0 : i64, scratch_operands = 0 : i64, tpu.core_type = #tpu.core_type<tc>, window_params = [{transform_indices = @transform_0, window_bounds = array<i64: 512, 4>}, {transform_indices = @transform_1, window_bounds = array<i64: 512, 8>}, {pipeline_mode = #tpu.pipeline_mode<synchronous>, transform_indices = @transform_2, window_bounds = array<i64: 2, 4>}, {pipeline_mode = #tpu.pipeline_mode<synchronous>, transform_indices = @transform_3, window_bounds = array<i64: 2, 8>}, {pipeline_mode = #tpu.pipeline_mode<synchronous>, transform_indices = @transform_4, window_bounds = array<i64: 4, 16>}, {pipeline_mode = #tpu.pipeline_mode<synchronous>, transform_indices = @transform_5, window_bounds = array<i64: 8, 16>}, {transform_indices = @transform_6, window_bounds = array<i64: 512, 16>}]} {
    %c0 = arith.constant 0 : index
    %c0_0 = arith.constant 0 : index
    %0 = vector.load %arg1[%c0, %c0_0] : memref<512x4xbf16, #tpu.memory_space<vmem>>, vector<512x4xbf16>
    %1 = arith.extf %0 : vector<512x4xbf16> to vector<512x4xf32>
    %c0_1 = arith.constant 0 : index
    %c0_2 = arith.constant 0 : index
    %2 = vector.load %arg3[%c0_1, %c0_2] : memref<2x4xf32, #tpu.memory_space<vmem>>, vector<1x4xf32>
    %3 = vector.broadcast %2 : vector<1x4xf32> to vector<512x4xf32>
    %4 = arith.mulf %1, %3 : vector<512x4xf32>
    %c1 = arith.constant 1 : index
    %c0_3 = arith.constant 0 : index
    %5 = vector.load %arg3[%c1, %c0_3] : memref<2x4xf32, #tpu.memory_space<vmem>>, vector<1x4xf32>
    %6 = vector.broadcast %5 : vector<1x4xf32> to vector<512x4xf32>
    %7 = arith.addf %4, %6 : vector<512x4xf32>
    %cst = arith.constant 0.000000e+00 : f32
    %8 = vector.broadcast %cst : f32 to vector<512x4xf32>
    %9 = arith.maximumf %7, %8 : vector<512x4xf32>
    %c0_4 = arith.constant 0 : index
    %c0_5 = arith.constant 0 : index
    %10 = vector.load %arg2[%c0_4, %c0_5] : memref<512x8xf32, #tpu.memory_space<vmem>>, vector<512x8xf32>
    %c0_6 = arith.constant 0 : index
    %c0_7 = arith.constant 0 : index
    %11 = vector.load %arg4[%c0_6, %c0_7] : memref<2x8xf32, #tpu.memory_space<vmem>>, vector<1x8xf32>
    %12 = vector.broadcast %11 : vector<1x8xf32> to vector<512x8xf32>
    %13 = arith.mulf %10, %12 : vector<512x8xf32>
    %c1_8 = arith.constant 1 : index
    %c0_9 = arith.constant 0 : index
    %14 = vector.load %arg4[%c1_8, %c0_9] : memref<2x8xf32, #tpu.memory_space<vmem>>, vector<1x8xf32>
    %15 = vector.broadcast %14 : vector<1x8xf32> to vector<512x8xf32>
    %16 = arith.addf %13, %15 : vector<512x8xf32>
    %cst_10 = arith.constant 0.000000e+00 : f32
    %17 = vector.broadcast %cst_10 : f32 to vector<512x8xf32>
    %18 = arith.maximumf %16, %17 : vector<512x8xf32>
    %19 = arith.truncf %9 : vector<512x4xf32> to vector<512x4xbf16>
    %c0_11 = arith.constant 0 : index
    %c0_12 = arith.constant 0 : index
    %20 = vector.load %arg5[%c0_11, %c0_12] : memref<4x16xbf16, #tpu.memory_space<vmem>>, vector<4x16xbf16>
    %cst_13 = arith.constant dense<0.000000e+00> : vector<512x16xf32>
    %21 = tpu.matmul %19, %20, %cst_13 {dimension_numbers = #tpu.dot_dimension_numbers<[1], [0], [0], [1], [0, 0, 1, 1], [], []>} : vector<512x4xbf16>, vector<4x16xbf16>, vector<512x16xf32> -> vector<512x16xf32>
    %22 = arith.truncf %18 : vector<512x8xf32> to vector<512x8xbf16>
    %c0_14 = arith.constant 0 : index
    %c0_15 = arith.constant 0 : index
    %23 = vector.load %arg6[%c0_14, %c0_15] : memref<8x16xbf16, #tpu.memory_space<vmem>>, vector<8x16xbf16>
    %cst_16 = arith.constant dense<0.000000e+00> : vector<512x16xf32>
    %24 = tpu.matmul %22, %23, %cst_16 {dimension_numbers = #tpu.dot_dimension_numbers<[1], [0], [0], [1], [0, 0, 1, 1], [], []>} : vector<512x8xbf16>, vector<8x16xbf16>, vector<512x16xf32> -> vector<512x16xf32>
    %25 = arith.addf %21, %24 : vector<512x16xf32>
    %c0_17 = arith.constant 0 : index
    %c0_18 = arith.constant 0 : index
    %26 = vector.load %arg7[%c0_17, %c0_18] : memref<512x16xf32, #tpu.memory_space<vmem>>, vector<512x16xf32>
    tpu.vector_store %arg7[%c0_17, %c0_18], %25 {strides = array<i32>} : memref<512x16xf32, #tpu.memory_space<vmem>>, vector<512x16xf32>,
    return
  }
  func.func @transform_0(%arg0: i32) -> (i32, i32) {
    %c0_i32 = arith.constant 0 : i32
    %c0_i32_0 = arith.constant 0 : i32
    return %arg0, %c0_i32 : i32, i32
  }
  func.func @transform_1(%arg0: i32) -> (i32, i32) {
    %c0_i32 = arith.constant 0 : i32
    %c0_i32_0 = arith.constant 0 : i32
    return %arg0, %c0_i32 : i32, i32
  }
  func.func @transform_2(%arg0: i32) -> (i32, i32) {
    %c0_i32 = arith.constant 0 : i32
    %c0_i32_0 = arith.constant 0 : i32
    %c0_i32_1 = arith.constant 0 : i32
    return %c0_i32, %c0_i32_0 : i32, i32
  }
  func.func @transform_3(%arg0: i32) -> (i32, i32) {
    %c0_i32 = arith.constant 0 : i32
    %c0_i32_0 = arith.constant 0 : i32
    %c0_i32_1 = arith.constant 0 : i32
    return %c0_i32, %c0_i32_0 : i32, i32
  }
  func.func @transform_4(%arg0: i32) -> (i32, i32) {
    %c0_i32 = arith.constant 0 : i32
    %c0_i32_0 = arith.constant 0 : i32
    %c0_i32_1 = arith.constant 0 : i32
    return %c0_i32, %c0_i32_0 : i32, i32
  }
  func.func @transform_5(%arg0: i32) -> (i32, i32) {
    %c0_i32 = arith.constant 0 : i32
    %c0_i32_0 = arith.constant 0 : i32
    %c0_i32_1 = arith.constant 0 : i32
    return %c0_i32, %c0_i32_0 : i32, i32
  }
  func.func @transform_6(%arg0: i32) -> (i32, i32) {
    %c0_i32 = arith.constant 0 : i32
    %c0_i32_0 = arith.constant 0 : i32
    return %arg0, %c0_i32 : i32, i32
  }
}

</mosaic_0001>

<llo_original>
// kernel: residual_block_forward.4
$region0: #{residual_block_forward.4}
  #allocation0 [shape = 'u32[]', space=smem, size = 0x4, offset = 0x4, fixed_abs, tag = 'smem constant byte address 0x4 - core index']
  #allocation1 [shape = 'u32[72,128]{1,0:T(1,128)}', space=vmem, size = 0x9000, scoped, tag = 'internal scratch']
  %s0 = inlined_call_operand.vmem [shape: f32[512,8], index: 0, kind: input, shape index: {}]
  %s1 = inlined_call_operand.vmem [shape: f32[1,2,8], index: 1, kind: output, shape index: {}]
  %s2 = sld [smem:[#allocation0]]
  $region14: #{residual_block_forward.4} parent=0
    _
  %s4 = ssub.s32 1, %s2
  %s5 = scalar_select 0, %s4, %s2
  // Predicated region
  $region2: #{residual_block_forward.4} parent=0 // pred_check
    _
  $region3: #{residual_block_forward.4} parent=0 // pred_check_branch
    %7 = sbr.rel (0) target = $region5
  $region4: #{residual_block_forward.4} parent=0 // pred_region
    _
  $region5: #{residual_block_forward.4} parent=0 // pred_fallthru
    _
  %v8 = vld [vmem:[%s0] sm:$0xff]
  %v9 = vld [vmem:[%s0 + $0x8] sm:$0xff]
  %v10 = vld [vmem:[%s0 + $0x10] sm:$0xff]
  %v11 = vld [vmem:[%s0 + $0x18] sm:$0xff]
  %v12 = vld [vmem:[%s0 + $0x20] sm:$0xff]
  %v13 = vld [vmem:[%s0 + $0x28] sm:$0xff]
  %v14 = vld [vmem:[%s0 + $0x30] sm:$0xff]
  %v15 = vld [vmem:[%s0 + $0x38] sm:$0xff]
  %v16 = vld [vmem:[%s0 + $0x40] sm:$0xff]
  %v17 = vld [vmem:[%s0 + $0x48] sm:$0xff]
  %v18 = vld [vmem:[%s0 + $0x50] sm:$0xff]
  %v19 = vld [vmem:[%s0 + $0x58] sm:$0xff]
  %v20 = vld [vmem:[%s0 + $0x60] sm:$0xff]
  %v21 = vld [vmem:[%s0 + $0x68] sm:$0xff]
  %v22 = vld [vmem:[%s0 + $0x70] sm:$0xff]
  %v23 = vld [vmem:[%s0 + $0x78] sm:$0xff]
  %v24 = vld [vmem:[%s0 + $0x80] sm:$0xff]
  %v25 = vld [vmem:[%s0 + $0x88] sm:$0xff]
  %v26 = vld [vmem:[%s0 + $0x90] sm:$0xff]
  %v27 = vld [vmem:[%s0 + $0x98] sm:$0xff]
  %v28 = vld [vmem:[%s0 + $0xa0] sm:$0xff]
  %v29 = vld [vmem:[%s0 + $0xa8] sm:$0xff]
  %v30 = vld [vmem:[%s0 + $0xb0] sm:$0xff]
  %v31 = vld [vmem:[%s0 + $0xb8] sm:$0xff]
  %v32 = vld [vmem:[%s0 + $0xc0] sm:$0xff]
  %v33 = vld [vmem:[%s0 + $0xc8] sm:$0xff]
  %v34 = vld [vmem:[%s0 + $0xd0] sm:$0xff]
  %v35 = vld [vmem:[%s0 + $0xd8] sm:$0xff]
  %v36 = vld [vmem:[%s0 + $0xe0] sm:$0xff]
  %v37 = vld [vmem:[%s0 + $0xe8] sm:$0xff]
  %v38 = vld [vmem:[%s0 + $0xf0] sm:$0xff]
  %v39 = vld [vmem:[%s0 + $0xf8] sm:$0xff]
  %v40 = vld [vmem:[%s0 + $0x100] sm:$0xff]
  %v41 = vld [vmem:[%s0 + $0x108] sm:$0xff]
  %v42 = vld [vmem:[%s0 + $0x110] sm:$0xff]
  %v43 = vld [vmem:[%s0 + $0x118] sm:$0xff]
  %v44 = vld [vmem:[%s0 + $0x120] sm:$0xff]
  %v45 = vld [vmem:[%s0 + $0x128] sm:$0xff]
  %v46 = vld [vmem:[%s0 + $0x130] sm:$0xff]
  %v47 = vld [vmem:[%s0 + $0x138] sm:$0xff]
  %v48 = vld [vmem:[%s0 + $0x140] sm:$0xff]
  %v49 = vld [vmem:[%s0 + $0x148] sm:$0xff]
  %v50 = vld [vmem:[%s0 + $0x150] sm:$0xff]
  %v51 = vld [vmem:[%s0 + $0x158] sm:$0xff]
  %v52 = vld [vmem:[%s0 + $0x160] sm:$0xff]
  %v53 = vld [vmem:[%s0 + $0x168] sm:$0xff]
  %v54 = vld [vmem:[%s0 + $0x170] sm:$0xff]
  %v55 = vld [vmem:[%s0 + $0x178] sm:$0xff]
  %v56 = vld [vmem:[%s0 + $0x180] sm:$0xff]
  %v57 = vld [vmem:[%s0 + $0x188] sm:$0xff]
  %v58 = vld [vmem:[%s0 + $0x190] sm:$0xff]
  %v59 = vld [vmem:[%s0 + $0x198] sm:$0xff]
  %v60 = vld [vmem:[%s0 + $0x1a0] sm:$0xff]
  %v61 = vld [vmem:[%s0 + $0x1a8] sm:$0xff]
  %v62 = vld [vmem:[%s0 + $0x1b0] sm:$0xff]
  %v63 = vld [vmem:[%s0 + $0x1b8] sm:$0xff]
  %v64 = vld [vmem:[%s0 + $0x1c0] sm:$0xff]
  %v65 = vld [vmem:[%s0 + $0x1c8] sm:$0xff]
  %v66 = vld [vmem:[%s0 + $0x1d0] sm:$0xff]
  %v67 = vld [vmem:[%s0 + $0x1d8] sm:$0xff]
  %v68 = vld [vmem:[%s0 + $0x1e0] sm:$0xff]
  %v69 = vld [vmem:[%s0 + $0x1e8] sm:$0xff]
  %v70 = vld [vmem:[%s0 + $0x1f0] sm:$0xff]
  %v71 = vld [vmem:[%s0 + $0x1f8] sm:$0xff]
  %vm72 = vcmask 64512
  %v73 = vsel %vm72, %v8, 0.0
  %v74 = vsel %vm72, %v9, 0.0
  %v75 = vadd.f32 %v73, %v74
  %v76 = vsel %vm72, %v10, 0.0
  %v77 = vadd.f32 %v75, %v76
  %v78 = vsel %vm72, %v11, 0.0
  %v79 = vadd.f32 %v77, %v78
  %v80 = vsel %vm72, %v12, 0.0
  %v81 = vadd.f32 %v79, %v80
  %v82 = vsel %vm72, %v13, 0.0
  %v83 = vadd.f32 %v81, %v82
  %v84 = vsel %vm72, %v14, 0.0
  %v85 = vadd.f32 %v83, %v84
  %v86 = vsel %vm72, %v15, 0.0
  %v87 = vadd.f32 %v85, %v86
  %v88 = vsel %vm72, %v16, 0.0
  %v89 = vadd.f32 %v87, %v88
  %v90 = vsel %vm72, %v17, 0.0
  %v91 = vadd.f32 %v89, %v90
  %v92 = vsel %vm72, %v18, 0.0
  %v93 = vadd.f32 %v91, %v92
  %v94 = vsel %vm72, %v19, 0.0
  %v95 = vadd.f32 %v93, %v94
  %v96 = vsel %vm72, %v20, 0.0
  %v97 = vadd.f32 %v95, %v96
  %v98 = vsel %vm72, %v21, 0.0
  %v99 = vadd.f32 %v97, %v98
  %v100 = vsel %vm72, %v22, 0.0
  %v101 = vadd.f32 %v99, %v100
  %v102 = vsel %vm72, %v23, 0.0
  %v103 = vadd.f32 %v101, %v102
  %v104 = vsel %vm72, %v24, 0.0
  %v105 = vadd.f32 %v103, %v104
  %v106 = vsel %vm72, %v25, 0.0
  %v107 = vadd.f32 %v105, %v106
  %v108 = vsel %vm72, %v26, 0.0
  %v109 = vadd.f32 %v107, %v108
  %v110 = vsel %vm72, %v27, 0.0
  %v111 = vadd.f32 %v109, %v110
  %v112 = vsel %vm72, %v28, 0.0
  %v113 = vadd.f32 %v111, %v112
  %v114 = vsel %vm72, %v29, 0.0
  %v115 = vadd.f32 %v113, %v114
  %v116 = vsel %vm72, %v30, 0.0
  %v117 = vadd.f32 %v115, %v116
  %v118 = vsel %vm72, %v31, 0.0
  %v119 = vadd.f32 %v117, %v118
  %v120 = vsel %vm72, %v32, 0.0
  %v121 = vadd.f32 %v119, %v120
  %v122 = vsel %vm72, %v33, 0.0
  %v123 = vadd.f32 %v121, %v122
  %v124 = vsel %vm72, %v34, 0.0
  %v125 = vadd.f32 %v123, %v124
  %v126 = vsel %vm72, %v35, 0.0
  %v127 = vadd.f32 %v125, %v126
  %v128 = vsel %vm72, %v36, 0.0
  %v129 = vadd.f32 %v127, %v128
  %v130 = vsel %vm72, %v37, 0.0
  %v131 = vadd.f32 %v129, %v130
  %v132 = vsel %vm72, %v38, 0.0
  %v133 = vadd.f32 %v131, %v132
  %v134 = vsel %vm72, %v39, 0.0
  %v135 = vadd.f32 %v133, %v134
  %v136 = vsel %vm72, %v40, 0.0
  %v137 = vadd.f32 %v135, %v136
  %v138 = vsel %vm72, %v41, 0.0
  %v139 = vadd.f32 %v137, %v138
  %v140 = vsel %vm72, %v42, 0.0
  %v141 = vadd.f32 %v139, %v140
  %v142 = vsel %vm72, %v43, 0.0
  %v143 = vadd.f32 %v141, %v142
  %v144 = vsel %vm72, %v44, 0.0
  %v145 = vadd.f32 %v143, %v144
  %v146 = vsel %vm72, %v45, 0.0
  %v147 = vadd.f32 %v145, %v146
  %v148 = vsel %vm72, %v46, 0.0
  %v149 = vadd.f32 %v147, %v148
  %v150 = vsel %vm72, %v47, 0.0
  %v151 = vadd.f32 %v149, %v150
  %v152 = vsel %vm72, %v48, 0.0
  %v153 = vadd.f32 %v151, %v152
  %v154 = vsel %vm72, %v49, 0.0
  %v155 = vadd.f32 %v153, %v154
  %v156 = vsel %vm72, %v50, 0.0
  %v157 = vadd.f32 %v155, %v156
  %v158 = vsel %vm72, %v51, 0.0
  %v159 = vadd.f32 %v157, %v158
  %v160 = vsel %vm72, %v52, 0.0
  %v161 = vadd.f32 %v159, %v160
  %v162 = vsel %vm72, %v53, 0.0
  %v163 = vadd.f32 %v161, %v162
  %v164 = vsel %vm72, %v54, 0.0
  %v165 = vadd.f32 %v163, %v164
  %v166 = vsel %vm72, %v55, 0.0
  %v167 = vadd.f32 %v165, %v166
  %v168 = vsel %vm72, %v56, 0.0
  %v169 = vadd.f32 %v167, %v168
  %v170 = vsel %vm72, %v57, 0.0
  %v171 = vadd.f32 %v169, %v170
  %v172 = vsel %vm72, %v58, 0.0
  %v173 = vadd.f32 %v171, %v172
  %v174 = vsel %vm72, %v59, 0.0
  %v175 = vadd.f32 %v173, %v174
  %v176 = vsel %vm72, %v60, 0.0
  %v177 = vadd.f32 %v175, %v176
  %v178 = vsel %vm72, %v61, 0.0
  %v179 = vadd.f32 %v177, %v178
  %v180 = vsel %vm72, %v62, 0.0
  %v181 = vadd.f32 %v179, %v180
  %v182 = vsel %vm72, %v63, 0.0
  %v183 = vadd.f32 %v181, %v182
  %v184 = vsel %vm72, %v64, 0.0
  %v185 = vadd.f32 %v183, %v184
  %v186 = vsel %vm72, %v65, 0.0
  %v187 = vadd.f32 %v185, %v186
  %v188 = vsel %vm72, %v66, 0.0
  %v189 = vadd.f32 %v187, %v188
  %v190 = vsel %vm72, %v67, 0.0
  %v191 = vadd.f32 %v189, %v190
  %v192 = vsel %vm72, %v68, 0.0
  %v193 = vadd.f32 %v191, %v192
  %v194 = vsel %vm72, %v69, 0.0
  %v195 = vadd.f32 %v193, %v194
  %v196 = vsel %vm72, %v70, 0.0
  %v197 = vadd.f32 %v195, %v196
  %v198 = vsel %vm72, %v71, 0.0
  %v199 = vadd.f32 %v197, %v198
  %v200 = vrot.slane %v199, 4
  %v201 = vadd.f32 %v199, %v200
  %v202 = vrot.slane %v201, 2
  %v203 = vadd.f32 %v201, %v202
  %v204 = vrot.slane %v203, 1
  %v205 = vadd.f32 %v203, %v204
  %v206 = vmul.f32 %v8, %v8
  %v207 = vmul.f32 %v9, %v9
  %v208 = vmul.f32 %v10, %v10
  %v209 = vmul.f32 %v11, %v11
  %v210 = vmul.f32 %v12, %v12
  %v211 = vmul.f32 %v13, %v13
  %v212 = vmul.f32 %v14, %v14
  %v213 = vmul.f32 %v15, %v15
  %v214 = vmul.f32 %v16, %v16
  %v215 = vmul.f32 %v17, %v17
  %v216 = vmul.f32 %v18, %v18
  %v217 = vmul.f32 %v19, %v19
  %v218 = vmul.f32 %v20, %v20
  %v219 = vmul.f32 %v21, %v21
  %v220 = vmul.f32 %v22, %v22
  %v221 = vmul.f32 %v23, %v23
  %v222 = vmul.f32 %v24, %v24
  %v223 = vmul.f32 %v25, %v25
  %v224 = vmul.f32 %v26, %v26
  %v225 = vmul.f32 %v27, %v27
  %v226 = vmul.f32 %v28, %v28
  %v227 = vmul.f32 %v29, %v29
  %v228 = vmul.f32 %v30, %v30
  %v229 = vmul.f32 %v31, %v31
  %v230 = vmul.f32 %v32, %v32
  %v231 = vmul.f32 %v33, %v33
  %v232 = vmul.f32 %v34, %v34
  %v233 = vmul.f32 %v35, %v35
  %v234 = vmul.f32 %v36, %v36
  %v235 = vmul.f32 %v37, %v37
  %v236 = vmul.f32 %v38, %v38
  %v237 = vmul.f32 %v39, %v39
  %v238 = vmul.f32 %v40, %v40
  %v239 = vmul.f32 %v41, %v41
  %v240 = vmul.f32 %v42, %v42
  %v241 = vmul.f32 %v43, %v43
  %v242 = vmul.f32 %v44, %v44
  %v243 = vmul.f32 %v45, %v45
  %v244 = vmul.f32 %v46, %v46
  %v245 = vmul.f32 %v47, %v47
  %v246 = vmul.f32 %v48, %v48
  %v247 = vmul.f32 %v49, %v49
  %v248 = vmul.f32 %v50, %v50
  %v249 = vmul.f32 %v51, %v51
  %v250 = vmul.f32 %v52, %v52
  %v251 = vmul.f32 %v53, %v53
  %v252 = vmul.f32 %v54, %v54
  %v253 = vmul.f32 %v55, %v55
  %v254 = vmul.f32 %v56, %v56
  %v255 = vmul.f32 %v57, %v57
  %v256 = vmul.f32 %v58, %v58
  %v257 = vmul.f32 %v59, %v59
  %v258 = vmul.f32 %v60, %v60
  %v259 = vmul.f32 %v61, %v61
  %v260 = vmul.f32 %v62, %v62
  %v261 = vmul.f32 %v63, %v63
  %v262 = vmul.f32 %v64, %v64
  %v263 = vmul.f32 %v65, %v65
  %v264 = vmul.f32 %v66, %v66
  %v265 = vmul.f32 %v67, %v67
  %v266 = vmul.f32 %v68, %v68
  %v267 = vmul.f32 %v69, %v69
  %v268 = vmul.f32 %v70, %v70
  %v269 = vmul.f32 %v71, %v71
  %v270 = vsel %vm72, %v206, 0.0
  %v271 = vsel %vm72, %v207, 0.0
  %v272 = vadd.f32 %v270, %v271
  %v273 = vsel %vm72, %v208, 0.0
  %v274 = vadd.f32 %v272, %v273
  %v275 = vsel %vm72, %v209, 0.0
  %v276 = vadd.f32 %v274, %v275
  %v277 = vsel %vm72, %v210, 0.0
  %v278 = vadd.f32 %v276, %v277
  %v279 = vsel %vm72, %v211, 0.0
  %v280 = vadd.f32 %v278, %v279
  %v281 = vsel %vm72, %v212, 0.0
  %v282 = vadd.f32 %v280, %v281
  %v283 = vsel %vm72, %v213, 0.0
  %v284 = vadd.f32 %v282, %v283
  %v285 = vsel %vm72, %v214, 0.0
  %v286 = vadd.f32 %v284, %v285
  %v287 = vsel %vm72, %v215, 0.0
  %v288 = vadd.f32 %v286, %v287
  %v289 = vsel %vm72, %v216, 0.0
  %v290 = vadd.f32 %v288, %v289
  %v291 = vsel %vm72, %v217, 0.0
  %v292 = vadd.f32 %v290, %v291
  %v293 = vsel %vm72, %v218, 0.0
  %v294 = vadd.f32 %v292, %v293
  %v295 = vsel %vm72, %v219, 0.0
  %v296 = vadd.f32 %v294, %v295
  %v297 = vsel %vm72, %v220, 0.0
  %v298 = vadd.f32 %v296, %v297
  %v299 = vsel %vm72, %v221, 0.0
  %v300 = vadd.f32 %v298, %v299
  %v301 = vsel %vm72, %v222, 0.0
  %v302 = vadd.f32 %v300, %v301
  %v303 = vsel %vm72, %v223, 0.0
  %v304 = vadd.f32 %v302, %v303
  %v305 = vsel %vm72, %v224, 0.0
  %v306 = vadd.f32 %v304, %v305
  %v307 = vsel %vm72, %v225, 0.0
  %v308 = vadd.f32 %v306, %v307
  %v309 = vsel %vm72, %v226, 0.0
  %v310 = vadd.f32 %v308, %v309
  %v311 = vsel %vm72, %v227, 0.0
  %v312 = vadd.f32 %v310, %v311
  %v313 = vsel %vm72, %v228, 0.0
  %v314 = vadd.f32 %v312, %v313
  %v315 = vsel %vm72, %v229, 0.0
  %v316 = vadd.f32 %v314, %v315
  %v317 = vsel %vm72, %v230, 0.0
  %v318 = vadd.f32 %v316, %v317
  %v319 = vsel %vm72, %v231, 0.0
  %v320 = vadd.f32 %v318, %v319
  %v321 = vsel %vm72, %v232, 0.0
  %v322 = vadd.f32 %v320, %v321
  %v323 = vsel %vm72, %v233, 0.0
  %v324 = vadd.f32 %v322, %v323
  %v325 = vsel %vm72, %v234, 0.0
  %v326 = vadd.f32 %v324, %v325
  %v327 = vsel %vm72, %v235, 0.0
  %v328 = vadd.f32 %v326, %v327
  %v329 = vsel %vm72, %v236, 0.0
  %v330 = vadd.f32 %v328, %v329
  %v331 = vsel %vm72, %v237, 0.0
  %v332 = vadd.f32 %v330, %v331
  %v333 = vsel %vm72, %v238, 0.0
  %v334 = vadd.f32 %v332, %v333
  %v335 = vsel %vm72, %v239, 0.0
  %v336 = vadd.f32 %v334, %v335
  %v337 = vsel %vm72, %v240, 0.0
  %v338 = vadd.f32 %v336, %v337
  %v339 = vsel %vm72, %v241, 0.0
  %v340 = vadd.f32 %v338, %v339
  %v341 = vsel %vm72, %v242, 0.0
  %v342 = vadd.f32 %v340, %v341
  %v343 = vsel %vm72, %v243, 0.0
  %v344 = vadd.f32 %v342, %v343
  %v345 = vsel %vm72, %v244, 0.0
  %v346 = vadd.f32 %v344, %v345
  %v347 = vsel %vm72, %v245, 0.0
  %v348 = vadd.f32 %v346, %v347
  %v349 = vsel %vm72, %v246, 0.0
  %v350 = vadd.f32 %v348, %v349
  %v351 = vsel %vm72, %v247, 0.0
  %v352 = vadd.f32 %v350, %v351
  %v353 = vsel %vm72, %v248, 0.0
  %v354 = vadd.f32 %v352, %v353
  %v355 = vsel %vm72, %v249, 0.0
  %v356 = vadd.f32 %v354, %v355
  %v357 = vsel %vm72, %v250, 0.0
  %v358 = vadd.f32 %v356, %v357
  %v359 = vsel %vm72, %v251, 0.0
  %v360 = vadd.f32 %v358, %v359
  %v361 = vsel %vm72, %v252, 0.0
  %v362 = vadd.f32 %v360, %v361
  %v363 = vsel %vm72, %v253, 0.0
  %v364 = vadd.f32 %v362, %v363
  %v365 = vsel %vm72, %v254, 0.0
  %v366 = vadd.f32 %v364, %v365
  %v367 = vsel %vm72, %v255, 0.0
  %v368 = vadd.f32 %v366, %v367
  %v369 = vsel %vm72, %v256, 0.0
  %v370 = vadd.f32 %v368, %v369
  %v371 = vsel %vm72, %v257, 0.0
  %v372 = vadd.f32 %v370, %v371
  %v373 = vsel %vm72, %v258, 0.0
  %v374 = vadd.f32 %v372, %v373
  %v375 = vsel %vm72, %v259, 0.0
  %v376 = vadd.f32 %v374, %v375
  %v377 = vsel %vm72, %v260, 0.0
  %v378 = vadd.f32 %v376, %v377
  %v379 = vsel %vm72, %v261, 0.0
  %v380 = vadd.f32 %v378, %v379
  %v381 = vsel %vm72, %v262, 0.0
  %v382 = vadd.f32 %v380, %v381
  %v383 = vsel %vm72, %v263, 0.0
  %v384 = vadd.f32 %v382, %v383
  %v385 = vsel %vm72, %v264, 0.0
  %v386 = vadd.f32 %v384, %v385
  %v387 = vsel %vm72, %v265, 0.0
  %v388 = vadd.f32 %v386, %v387
  %v389 = vsel %vm72, %v266, 0.0
  %v390 = vadd.f32 %v388, %v389
  %v391 = vsel %vm72, %v267, 0.0
  %v392 = vadd.f32 %v390, %v391
  %v393 = vsel %vm72, %v268, 0.0
  %v394 = vadd.f32 %v392, %v393
  %v395 = vsel %vm72, %v269, 0.0
  %v396 = vadd.f32 %v394, %v395
  %v397 = vrot.slane %v396, 4
  %v398 = vadd.f32 %v396, %v397
  %v399 = vrot.slane %v398, 2
  %v400 = vadd.f32 %v398, %v399
  %v401 = vrot.slane %v400, 1
  %v402 = vadd.f32 %v400, %v401
  %vm403 = vcmask 1040384
  %v404 = vsel %vm403, %v205, %v402
  %vm405 = vcmask 58368
  %406 = vst.msk [vmem:[%s1] sm:$0x3] %vm405, %v404
  // Predicated region
  $region6: #{residual_block_forward.4} parent=0 // pred_check
    _
  $region7: #{residual_block_forward.4} parent=0 // pred_check_branch
    %408 = sbr.rel (0) target = $region9
  $region8: #{residual_block_forward.4} parent=0 // pred_region
    _
  $region9: #{residual_block_forward.4} parent=0 // pred_fallthru
    _
  // Predicated region
  $region10: #{residual_block_forward.4} parent=0 // pred_check
    _
  $region11: #{residual_block_forward.4} parent=0 // pred_check_branch
    %410 = sbr.rel (0) target = $region13
  $region12: #{residual_block_forward.4} parent=0 // pred_region
    _
  $region13: #{residual_block_forward.4} parent=0 // pred_fallthru
    _

// kernel: residual_block_forward.5
$region0: #{residual_block_forward.5}
  #allocation0 [shape = 'u32[]', space=smem, size = 0x4, offset = 0x4, fixed_abs, tag = 'smem constant byte address 0x4 - core index']
  #allocation1 [shape = 'u32[72,128]{1,0:T(1,128)}', space=vmem, size = 0x9000, scoped, tag = 'internal scratch']
  %s0 = inlined_call_operand.vmem [shape: f32[512,8], index: 0, kind: input, shape index: {}]
  %s1 = inlined_call_operand.vmem [shape: f32[2,8], index: 1, kind: input, shape index: {}]
  %s2 = inlined_call_operand.vmem [shape: bf16[8,4], index: 2, kind: input, shape index: {}]
  %s3 = inlined_call_operand.vmem [shape: bf16[512,4], index: 3, kind: output, shape index: {0}]
  %s4 = inlined_call_operand.vmem [shape: f32[1,2,4], index: 4, kind: output, shape index: {1}]
  %5 = xla_tuple %s3, %s4
  %s6 = sld [smem:[#allocation0]]
  $region30: #{residual_block_forward.5} parent=0
    _
  %s8 = ssub.s32 1, %s6
  %s9 = scalar_select 0, %s8, %s6
  // Predicated region
  $region2: #{residual_block_forward.5} parent=0 // pred_check
    _
  $region3: #{residual_block_forward.5} parent=0 // pred_check_branch
    %11 = sbr.rel (0) target = $region5
  $region4: #{residual_block_forward.5} parent=0 // pred_region
    _
  $region5: #{residual_block_forward.5} parent=0 // pred_fallthru
    _
  // Predicated region
  $region6: #{residual_block_forward.5} parent=0 // pred_check
    _
  $region7: #{residual_block_forward.5} parent=0 // pred_check_branch
    %13 = sbr.rel (0) target = $region9
  $region8: #{residual_block_forward.5} parent=0 // pred_region
    _
  $region9: #{residual_block_forward.5} parent=0 // pred_fallthru
    _
  // Predicated region
  $region10: #{residual_block_forward.5} parent=0 // pred_check
    _
  $region11: #{residual_block_forward.5} parent=0 // pred_check_branch
    %15 = sbr.rel (0) target = $region13
  $region12: #{residual_block_forward.5} parent=0 // pred_region
    _
  $region13: #{residual_block_forward.5} parent=0 // pred_fallthru
    _
  %v17 = vld [vmem:[%s0] sm:$0xff]
  %v18 = vld [vmem:[%s0 + $0x8] sm:$0xff]
  %v19 = vld [vmem:[%s0 + $0x10] sm:$0xff]
  %v20 = vld [vmem:[%s0 + $0x18] sm:$0xff]
  %v21 = vld [vmem:[%s0 + $0x20] sm:$0xff]
  %v22 = vld [vmem:[%s0 + $0x28] sm:$0xff]
  %v23 = vld [vmem:[%s0 + $0x30] sm:$0xff]
  %v24 = vld [vmem:[%s0 + $0x38] sm:$0xff]
  %v25 = vld [vmem:[%s0 + $0x40] sm:$0xff]
  %v26 = vld [vmem:[%s0 + $0x48] sm:$0xff]
  %v27 = vld [vmem:[%s0 + $0x50] sm:$0xff]
  %v28 = vld [vmem:[%s0 + $0x58] sm:$0xff]
  %v29 = vld [vmem:[%s0 + $0x60] sm:$0xff]
  %v30 = vld [vmem:[%s0 + $0x68] sm:$0xff]
  %v31 = vld [vmem:[%s0 + $0x70] sm:$0xff]
  %v32 = vld [vmem:[%s0 + $0x78] sm:$0xff]
  %v33 = vld [vmem:[%s0 + $0x80] sm:$0xff]
  %v34 = vld [vmem:[%s0 + $0x88] sm:$0xff]
  %v35 = vld [vmem:[%s0 + $0x90] sm:$0xff]
  %v36 = vld [vmem:[%s0 + $0x98] sm:$0xff]
  %v37 = vld [vmem:[%s0 + $0xa0] sm:$0xff]
  %v38 = vld [vmem:[%s0 + $0xa8] sm:$0xff]
  %v39 = vld [vmem:[%s0 + $0xb0] sm:$0xff]
  %v40 = vld [vmem:[%s0 + $0xb8] sm:$0xff]
  %v41 = vld [vmem:[%s0 + $0xc0] sm:$0xff]
  %v42 = vld [vmem:[%s0 + $0xc8] sm:$0xff]
  %v43 = vld [vmem:[%s0 + $0xd0] sm:$0xff]
  %v44 = vld [vmem:[%s0 + $0xd8] sm:$0xff]
  %v45 = vld [vmem:[%s0 + $0xe0] sm:$0xff]
  %v46 = vld [vmem:[%s0 + $0xe8] sm:$0xff]
  %v47 = vld [vmem:[%s0 + $0xf0] sm:$0xff]
  %v48 = vld [vmem:[%s0 + $0xf8] sm:$0xff]
  %v49 = vld [vmem:[%s0 + $0x100] sm:$0xff]
  %v50 = vld [vmem:[%s0 + $0x108] sm:$0xff]
  %v51 = vld [vmem:[%s0 + $0x110] sm:$0xff]
  %v52 = vld [vmem:[%s0 + $0x118] sm:$0xff]
  %v53 = vld [vmem:[%s0 + $0x120] sm:$0xff]
  %v54 = vld [vmem:[%s0 + $0x128] sm:$0xff]
  %v55 = vld [vmem:[%s0 + $0x130] sm:$0xff]
  %v56 = vld [vmem:[%s0 + $0x138] sm:$0xff]
  %v57 = vld [vmem:[%s0 + $0x140] sm:$0xff]
  %v58 = vld [vmem:[%s0 + $0x148] sm:$0xff]
  %v59 = vld [vmem:[%s0 + $0x150] sm:$0xff]
  %v60 = vld [vmem:[%s0 + $0x158] sm:$0xff]
  %v61 = vld [vmem:[%s0 + $0x160] sm:$0xff]
  %v62 = vld [vmem:[%s0 + $0x168] sm:$0xff]
  %v63 = vld [vmem:[%s0 + $0x170] sm:$0xff]
  %v64 = vld [vmem:[%s0 + $0x178] sm:$0xff]
  %v65 = vld [vmem:[%s0 + $0x180] sm:$0xff]
  %v66 = vld [vmem:[%s0 + $0x188] sm:$0xff]
  %v67 = vld [vmem:[%s0 + $0x190] sm:$0xff]
  %v68 = vld [vmem:[%s0 + $0x198] sm:$0xff]
  %v69 = vld [vmem:[%s0 + $0x1a0] sm:$0xff]
  %v70 = vld [vmem:[%s0 + $0x1a8] sm:$0xff]
  %v71 = vld [vmem:[%s0 + $0x1b0] sm:$0xff]
  %v72 = vld [vmem:[%s0 + $0x1b8] sm:$0xff]
  %v73 = vld [vmem:[%s0 + $0x1c0] sm:$0xff]
  %v74 = vld [vmem:[%s0 + $0x1c8] sm:$0xff]
  %v75 = vld [vmem:[%s0 + $0x1d0] sm:$0xff]
  %v76 = vld [vmem:[%s0 + $0x1d8] sm:$0xff]
  %v77 = vld [vmem:[%s0 + $0x1e0] sm:$0xff]
  %v78 = vld [vmem:[%s0 + $0x1e8] sm:$0xff]
  %v79 = vld [vmem:[%s0 + $0x1f0] sm:$0xff]
  %v80 = vld [vmem:[%s0 + $0x1f8] sm:$0xff]
  %v81 = vld [vmem:[%s1] sm:$0x1]
  %v82 = vperm.slane %v81, 0
  %v83 = vmul.f32 %v17, %v82
  %v84 = vmul.f32 %v18, %v82
  %v85 = vmul.f32 %v19, %v82
  %v86 = vmul.f32 %v20, %v82
  %v87 = vmul.f32 %v21, %v82
  %v88 = vmul.f32 %v22, %v82
  %v89 = vmul.f32 %v23, %v82
  %v90 = vmul.f32 %v24, %v82
  %v91 = vmul.f32 %v25, %v82
  %v92 = vmul.f32 %v26, %v82
  %v93 = vmul.f32 %v27, %v82
  %v94 = vmul.f32 %v28, %v82
  %v95 = vmul.f32 %v29, %v82
  %v96 = vmul.f32 %v30, %v82
  %v97 = vmul.f32 %v31, %v82
  %v98 = vmul.f32 %v32, %v82
  %v99 = vmul.f32 %v33, %v82
  %v100 = vmul.f32 %v34, %v82
  %v101 = vmul.f32 %v35, %v82
  %v102 = vmul.f32 %v36, %v82
  %v103 = vmul.f32 %v37, %v82
  %v104 = vmul.f32 %v38, %v82
  %v105 = vmul.f32 %v39, %v82
  %v106 = vmul.f32 %v40, %v82
  %v107 = vmul.f32 %v41, %v82
  %v108 = vmul.f32 %v42, %v82
  %v109 = vmul.f32 %v43, %v82
  %v110 = vmul.f32 %v44, %v82
  %v111 = vmul.f32 %v45, %v82
  %v112 = vmul.f32 %v46, %v82
  %v113 = vmul.f32 %v47, %v82
  %v114 = vmul.f32 %v48, %v82
  %v115 = vmul.f32 %v49, %v82
  %v116 = vmul.f32 %v50, %v82
  %v117 = vmul.f32 %v51, %v82
  %v118 = vmul.f32 %v52, %v82
  %v119 = vmul.f32 %v53, %v82
  %v120 = vmul.f32 %v54, %v82
  %v121 = vmul.f32 %v55, %v82
  %v122 = vmul.f32 %v56, %v82
  %v123 = vmul.f32 %v57, %v82
  %v124 = vmul.f32 %v58, %v82
  %v125 = vmul.f32 %v59, %v82
  %v126 = vmul.f32 %v60, %v82
  %v127 = vmul.f32 %v61, %v82
  %v128 = vmul.f32 %v62, %v82
  %v129 = vmul.f32 %v63, %v82
  %v130 = vmul.f32 %v64, %v82
  %v131 = vmul.f32 %v65, %v82
  %v132 = vmul.f32 %v66, %v82
  %v133 = vmul.f32 %v67, %v82
  %v134 = vmul.f32 %v68, %v82
  %v135 = vmul.f32 %v69, %v82
  %v136 = vmul.f32 %v70, %v82
  %v137 = vmul.f32 %v71, %v82
  %v138 = vmul.f32 %v72, %v82
  %v139 = vmul.f32 %v73, %v82
  %v140 = vmul.f32 %v74, %v82
  %v141 = vmul.f32 %v75, %v82
  %v142 = vmul.f32 %v76, %v82
  %v143 = vmul.f32 %v77, %v82
  %v144 = vmul.f32 %v78, %v82
  %v145 = vmul.f32 %v79, %v82
  %v146 = vmul.f32 %v80, %v82
  %v147 = vld [vmem:[%s1 + $0x1] sm:$0x1]
  %v148 = vperm.slane %v147, 0
  %v149 = vadd.f32 %v83, %v148
  %v150 = vadd.f32 %v84, %v148
  %v151 = vadd.f32 %v85, %v148
  %v152 = vadd.f32 %v86, %v148
  %v153 = vadd.f32 %v87, %v148
  %v154 = vadd.f32 %v88, %v148
  %v155 = vadd.f32 %v89, %v148
  %v156 = vadd.f32 %v90, %v148
  %v157 = vadd.f32 %v91, %v148
  %v158 = vadd.f32 %v92, %v148
  %v159 = vadd.f32 %v93, %v148
  %v160 = vadd.f32 %v94, %v148
  %v161 = vadd.f32 %v95, %v148
  %v162 = vadd.f32 %v96, %v148
  %v163 = vadd.f32 %v97, %v148
  %v164 = vadd.f32 %v98, %v148
  %v165 = vadd.f32 %v99, %v148
  %v166 = vadd.f32 %v100, %v148
  %v167 = vadd.f32 %v101, %v148
  %v168 = vadd.f32 %v102, %v148
  %v169 = vadd.f32 %v103, %v148
  %v170 = vadd.f32 %v104, %v148
  %v171 = vadd.f32 %v105, %v148
  %v172 = vadd.f32 %v106, %v148
  %v173 = vadd.f32 %v107, %v148
  %v174 = vadd.f32 %v108, %v148
  %v175 = vadd.f32 %v109, %v148
  %v176 = vadd.f32 %v110, %v148
  %v177 = vadd.f32 %v111, %v148
  %v178 = vadd.f32 %v112, %v148
  %v179 = vadd.f32 %v113, %v148
  %v180 = vadd.f32 %v114, %v148
  %v181 = vadd.f32 %v115, %v148
  %v182 = vadd.f32 %v116, %v148
  %v183 = vadd.f32 %v117, %v148
  %v184 = vadd.f32 %v118, %v148
  %v185 = vadd.f32 %v119, %v148
  %v186 = vadd.f32 %v120, %v148
  %v187 = vadd.f32 %v121, %v148
  %v188 = vadd.f32 %v122, %v148
  %v189 = vadd.f32 %v123, %v148
  %v190 = vadd.f32 %v124, %v148
  %v191 = vadd.f32 %v125, %v148
  %v192 = vadd.f32 %v126, %v148
  %v193 = vadd.f32 %v127, %v148
  %v194 = vadd.f32 %v128, %v148
  %v195 = vadd.f32 %v129, %v148
  %v196 = vadd.f32 %v130, %v148
  %v197 = vadd.f32 %v131, %v148
  %v198 = vadd.f32 %v132, %v148
  %v199 = vadd.f32 %v133, %v148
  %v200 = vadd.f32 %v134, %v148
  %v201 = vadd.f32 %v135, %v148
  %v202 = vadd.f32 %v136, %v148
  %v203 = vadd.f32 %v137, %v148
  %v204 = vadd.f32 %v138, %v148
  %v205 = vadd.f32 %v139, %v148
  %v206 = vadd.f32 %v140, %v148
  %v207 = vadd.f32 %v141, %v148
  %v208 = vadd.f32 %v142, %v148
  %v209 = vadd.f32 %v143, %v148
  %v210 = vadd.f32 %v144, %v148
  %v211 = vadd.f32 %v145, %v148
  %v212 = vadd.f32 %v146, %v148
  %v213 = vmax.f32 %v149, 0.0
  %v214 = vmax.f32 %v150, 0.0
  %v215 = vmax.f32 %v151, 0.0
  %v216 = vmax.f32 %v152, 0.0
  %v217 = vmax.f32 %v153, 0.0
  %v218 = vmax.f32 %v154, 0.0
  %v219 = vmax.f32 %v155, 0.0
  %v220 = vmax.f32 %v156, 0.0
  %v221 = vmax.f32 %v157, 0.0
  %v222 = vmax.f32 %v158, 0.0
  %v223 = vmax.f32 %v159, 0.0
  %v224 = vmax.f32 %v160, 0.0
  %v225 = vmax.f32 %v161, 0.0
  %v226 = vmax.f32 %v162, 0.0
  %v227 = vmax.f32 %v163, 0.0
  %v228 = vmax.f32 %v164, 0.0
  %v229 = vmax.f32 %v165, 0.0
  %v230 = vmax.f32 %v166, 0.0
  %v231 = vmax.f32 %v167, 0.0
  %v232 = vmax.f32 %v168, 0.0
  %v233 = vmax.f32 %v169, 0.0
  %v234 = vmax.f32 %v170, 0.0
  %v235 = vmax.f32 %v171, 0.0
  %v236 = vmax.f32 %v172, 0.0
  %v237 = vmax.f32 %v173, 0.0
  %v238 = vmax.f32 %v174, 0.0
  %v239 = vmax.f32 %v175, 0.0
  %v240 = vmax.f32 %v176, 0.0
  %v241 = vmax.f32 %v177, 0.0
  %v242 = vmax.f32 %v178, 0.0
  %v243 = vmax.f32 %v179, 0.0
  %v244 = vmax.f32 %v180, 0.0
  %v245 = vmax.f32 %v181, 0.0
  %v246 = vmax.f32 %v182, 0.0
  %v247 = vmax.f32 %v183, 0.0
  %v248 = vmax.f32 %v184, 0.0
  %v249 = vmax.f32 %v185, 0.0
  %v250 = vmax.f32 %v186, 0.0
  %v251 = vmax.f32 %v187, 0.0
  %v252 = vmax.f32 %v188, 0.0
  %v253 = vmax.f32 %v189, 0.0
  %v254 = vmax.f32 %v190, 0.0
  %v255 = vmax.f32 %v191, 0.0
  %v256 = vmax.f32 %v192, 0.0
  %v257 = vmax.f32 %v193, 0.0
  %v258 = vmax.f32 %v194, 0.0
  %v259 = vmax.f32 %v195, 0.0
  %v260 = vmax.f32 %v196, 0.0
  %v261 = vmax.f32 %v197, 0.0
  %v262 = vmax.f32 %v198, 0.0
  %v263 = vmax.f32 %v199, 0.0
  %v264 = vmax.f32 %v200, 0.0
  %v265 = vmax.f32 %v201, 0.0
  %v266 = vmax.f32 %v202, 0.0
  %v267 = vmax.f32 %v203, 0.0
  %v268 = vmax.f32 %v204, 0.0
  %v269 = vmax.f32 %v205, 0.0
  %v270 = vmax.f32 %v206, 0.0
  %v271 = vmax.f32 %v207, 0.0
  %v272 = vmax.f32 %v208, 0.0
  %v273 = vmax.f32 %v209, 0.0
  %v274 = vmax.f32 %v210, 0.0
  %v275 = vmax.f32 %v211, 0.0
  %v276 = vmax.f32 %v212, 0.0
  %v277 = vpack.c.bf16 %v214, %v213
  %v278 = vpack.c.bf16 %v216, %v215
  %v279 = vpack.c.bf16 %v218, %v217
  %v280 = vpack.c.bf16 %v220, %v219
  %v281 = vpack.c.bf16 %v222, %v221
  %v282 = vpack.c.bf16 %v224, %v223
  %v283 = vpack.c.bf16 %v226, %v225
  %v284 = vpack.c.bf16 %v228, %v227
  %v285 = vpack.c.bf16 %v230, %v229
  %v286 = vpack.c.bf16 %v232, %v231
  %v287 = vpack.c.bf16 %v234, %v233
  %v288 = vpack.c.bf16 %v236, %v235
  %v289 = vpack.c.bf16 %v238, %v237
  %v290 = vpack.c.bf16 %v240, %v239
  %v291 = vpack.c.bf16 %v242, %v241
  %v292 = vpack.c.bf16 %v244, %v243
  %v293 = vpack.c.bf16 %v246, %v245
  %v294 = vpack.c.bf16 %v248, %v247
  %v295 = vpack.c.bf16 %v250, %v249
  %v296 = vpack.c.bf16 %v252, %v251
  %v297 = vpack.c.bf16 %v254, %v253
  %v298 = vpack.c.bf16 %v256, %v255
  %v299 = vpack.c.bf16 %v258, %v257
  %v300 = vpack.c.bf16 %v260, %v259
  %v301 = vpack.c.bf16 %v262, %v261
  %v302 = vpack.c.bf16 %v264, %v263
  %v303 = vpack.c.bf16 %v266, %v265
  %v304 = vpack.c.bf16 %v268, %v267
  %v305 = vpack.c.bf16 %v270, %v269
  %v306 = vpack.c.bf16 %v272, %v271
  %v307 = vpack.c.bf16 %v274, %v273
  %v308 = vpack.c.bf16 %v276, %v275
  %v309 = vld [vmem:[%s2] sm:$0xf]
  %vm310 = vcmask 64512
  %v312 = vsel %vm310, %v277, 0
  %v315 = vsel %vm310, %v278, 0
  %v318 = vsel %vm310, %v279, 0
  %v321 = vsel %vm310, %v280, 0
  %v324 = vsel %vm310, %v281, 0
  %v327 = vsel %vm310, %v282, 0
  %v330 = vsel %vm310, %v283, 0
  %v333 = vsel %vm310, %v284, 0
  %v336 = vsel %vm310, %v285, 0
  %v339 = vsel %vm310, %v286, 0
  %v342 = vsel %vm310, %v287, 0
  %v345 = vsel %vm310, %v288, 0
  %v348 = vsel %vm310, %v289, 0
  %v351 = vsel %vm310, %v290, 0
  %v354 = vsel %vm310, %v291, 0
  %v357 = vsel %vm310, %v292, 0
  %v360 = vsel %vm310, %v293, 0
  %v363 = vsel %vm310, %v294, 0
  %v366 = vsel %vm310, %v295, 0
  %v369 = vsel %vm310, %v296, 0
  %v372 = vsel %vm310, %v297, 0
  %v375 = vsel %vm310, %v298, 0
  %v378 = vsel %vm310, %v299, 0
  %v381 = vsel %vm310, %v300, 0
  %v384 = vsel %vm310, %v301, 0
  %v387 = vsel %vm310, %v302, 0
  %v390 = vsel %vm310, %v303, 0
  %v393 = vsel %vm310, %v304, 0
  %v396 = vsel %vm310, %v305, 0
  %v399 = vsel %vm310, %v306, 0
  %v402 = vsel %vm310, %v307, 0
  %v405 = vsel %vm310, %v308, 0
  %vm407 = vcmask 1043456
  %v409 = vsel %vm407, %v309, 0
  %411 = vmatpush.bf16.msra.mxu0 0
  %412 = vmatpush.bf16.msra.mxu0 0
  %413 = vmatpush.bf16.msra.mxu0 0
  %414 = vmatpush.bf16.msra.mxu0 0
  %415 = vmatpush.bf16.msra.mxu0 0
  %416 = vmatpush.bf16.msra.mxu0 0
  %417 = vmatpush.bf16.msra.mxu0 0
  %418 = vmatpush.bf16.msra.mxu0 %v409
  %419 = vmatmul.bf16.gmra.mxu0 %v312
  %v420 = vpop.f32.mrf.mxu0
  %v421 = vadd.f32 0.0, %v420
  %v422 = vpop.f32.mrf.mxu0
  %v423 = vadd.f32 0.0, %v422
  %424 = vmatmul.bf16.gmra.mxu0 %v315
  %v425 = vpop.f32.mrf.mxu0
  %v426 = vadd.f32 0.0, %v425
  %v427 = vpop.f32.mrf.mxu0
  %v428 = vadd.f32 0.0, %v427
  %429 = vmatmul.bf16.gmra.mxu0 %v318
  %v430 = vpop.f32.mrf.mxu0
  %v431 = vadd.f32 0.0, %v430
  %v432 = vpop.f32.mrf.mxu0
  %v433 = vadd.f32 0.0, %v432
  %434 = vmatmul.bf16.gmra.mxu0 %v321
  %v435 = vpop.f32.mrf.mxu0
  %v436 = vadd.f32 0.0, %v435
  %v437 = vpop.f32.mrf.mxu0
  %v438 = vadd.f32 0.0, %v437
  %439 = vmatmul.bf16.gmra.mxu0 %v324
  %v440 = vpop.f32.mrf.mxu0
  %v441 = vadd.f32 0.0, %v440
  %v442 = vpop.f32.mrf.mxu0
  %v443 = vadd.f32 0.0, %v442
  %444 = vmatmul.bf16.gmra.mxu0 %v327
  %v445 = vpop.f32.mrf.mxu0
  %v446 = vadd.f32 0.0, %v445
  %v447 = vpop.f32.mrf.mxu0
  %v448 = vadd.f32 0.0, %v447
  %449 = vmatmul.bf16.gmra.mxu0 %v330
  %v450 = vpop.f32.mrf.mxu0
  %v451 = vadd.f32 0.0, %v450
  %v452 = vpop.f32.mrf.mxu0
  %v453 = vadd.f32 0.0, %v452
  %454 = vmatmul.bf16.gmra.mxu0 %v333
  %v455 = vpop.f32.mrf.mxu0
  %v456 = vadd.f32 0.0, %v455
  %v457 = vpop.f32.mrf.mxu0
  %v458 = vadd.f32 0.0, %v457
  %459 = vmatmul.bf16.gmra.mxu0 %v336
  %v460 = vpop.f32.mrf.mxu0
  %v461 = vadd.f32 0.0, %v460
  %v462 = vpop.f32.mrf.mxu0
  %v463 = vadd.f32 0.0, %v462
  %464 = vmatmul.bf16.gmra.mxu0 %v339
  %v465 = vpop.f32.mrf.mxu0
  %v466 = vadd.f32 0.0, %v465
  %v467 = vpop.f32.mrf.mxu0
  %v468 = vadd.f32 0.0, %v467
  %469 = vmatmul.bf16.gmra.mxu0 %v342
  %v470 = vpop.f32.mrf.mxu0
  %v471 = vadd.f32 0.0, %v470
  %v472 = vpop.f32.mrf.mxu0
  %v473 = vadd.f32 0.0, %v472
  %474 = vmatmul.bf16.gmra.mxu0 %v345
  %v475 = vpop.f32.mrf.mxu0
  %v476 = vadd.f32 0.0, %v475
  %v477 = vpop.f32.mrf.mxu0
  %v478 = vadd.f32 0.0, %v477
  %479 = vmatmul.bf16.gmra.mxu0 %v348
  %v480 = vpop.f32.mrf.mxu0
  %v481 = vadd.f32 0.0, %v480
  %v482 = vpop.f32.mrf.mxu0
  %v483 = vadd.f32 0.0, %v482
  %484 = vmatmul.bf16.gmra.mxu0 %v351
  %v485 = vpop.f32.mrf.mxu0
  %v486 = vadd.f32 0.0, %v485
  %v487 = vpop.f32.mrf.mxu0
  %v488 = vadd.f32 0.0, %v487
  %489 = vmatmul.bf16.gmra.mxu0 %v354
  %v490 = vpop.f32.mrf.mxu0
  %v491 = vadd.f32 0.0, %v490
  %v492 = vpop.f32.mrf.mxu0
  %v493 = vadd.f32 0.0, %v492
  %494 = vmatmul.bf16.gmra.mxu0 %v357
  %v495 = vpop.f32.mrf.mxu0
  %v496 = vadd.f32 0.0, %v495
  %v497 = vpop.f32.mrf.mxu0
  %v498 = vadd.f32 0.0, %v497
  %499 = vmatmul.bf16.gmra.mxu0 %v360
  %v500 = vpop.f32.mrf.mxu0
  %v501 = vadd.f32 0.0, %v500
  %v502 = vpop.f32.mrf.mxu0
  %v503 = vadd.f32 0.0, %v502
  %504 = vmatmul.bf16.gmra.mxu0 %v363
  %v505 = vpop.f32.mrf.mxu0
  %v506 = vadd.f32 0.0, %v505
  %v507 = vpop.f32.mrf.mxu0
  %v508 = vadd.f32 0.0, %v507
  %509 = vmatmul.bf16.gmra.mxu0 %v366
  %v510 = vpop.f32.mrf.mxu0
  %v511 = vadd.f32 0.0, %v510
  %v512 = vpop.f32.mrf.mxu0
  %v513 = vadd.f32 0.0, %v512
  %514 = vmatmul.bf16.gmra.mxu0 %v369
  %v515 = vpop.f32.mrf.mxu0
  %v516 = vadd.f32 0.0, %v515
  %v517 = vpop.f32.mrf.mxu0
  %v518 = vadd.f32 0.0, %v517
  %519 = vmatmul.bf16.gmra.mxu0 %v372
  %v520 = vpop.f32.mrf.mxu0
  %v521 = vadd.f32 0.0, %v520
  %v522 = vpop.f32.mrf.mxu0
  %v523 = vadd.f32 0.0, %v522
  %524 = vmatmul.bf16.gmra.mxu0 %v375
  %v525 = vpop.f32.mrf.mxu0
  %v526 = vadd.f32 0.0, %v525
  %v527 = vpop.f32.mrf.mxu0
  %v528 = vadd.f32 0.0, %v527
  %529 = vmatmul.bf16.gmra.mxu0 %v378
  %v530 = vpop.f32.mrf.mxu0
  %v531 = vadd.f32 0.0, %v530
  %v532 = vpop.f32.mrf.mxu0
  %v533 = vadd.f32 0.0, %v532
  %534 = vmatmul.bf16.gmra.mxu0 %v381
  %v535 = vpop.f32.mrf.mxu0
  %v536 = vadd.f32 0.0, %v535
  %v537 = vpop.f32.mrf.mxu0
  %v538 = vadd.f32 0.0, %v537
  %539 = vmatmul.bf16.gmra.mxu0 %v384
  %v540 = vpop.f32.mrf.mxu0
  %v541 = vadd.f32 0.0, %v540
  %v542 = vpop.f32.mrf.mxu0
  %v543 = vadd.f32 0.0, %v542
  %544 = vmatmul.bf16.gmra.mxu0 %v387
  %v545 = vpop.f32.mrf.mxu0
  %v546 = vadd.f32 0.0, %v545
  %v547 = vpop.f32.mrf.mxu0
  %v548 = vadd.f32 0.0, %v547
  %549 = vmatmul.bf16.gmra.mxu0 %v390
  %v550 = vpop.f32.mrf.mxu0
  %v551 = vadd.f32 0.0, %v550
  %v552 = vpop.f32.mrf.mxu0
  %v553 = vadd.f32 0.0, %v552
  %554 = vmatmul.bf16.gmra.mxu0 %v393
  %v555 = vpop.f32.mrf.mxu0
  %v556 = vadd.f32 0.0, %v555
  %v557 = vpop.f32.mrf.mxu0
  %v558 = vadd.f32 0.0, %v557
  %559 = vmatmul.bf16.gmra.mxu0 %v396
  %v560 = vpop.f32.mrf.mxu0
  %v561 = vadd.f32 0.0, %v560
  %v562 = vpop.f32.mrf.mxu0
  %v563 = vadd.f32 0.0, %v562
  %564 = vmatmul.bf16.gmra.mxu0 %v399
  %v565 = vpop.f32.mrf.mxu0
  %v566 = vadd.f32 0.0, %v565
  %v567 = vpop.f32.mrf.mxu0
  %v568 = vadd.f32 0.0, %v567
  %569 = vmatmul.bf16.gmra.mxu0 %v402
  %v570 = vpop.f32.mrf.mxu0
  %v571 = vadd.f32 0.0, %v570
  %v572 = vpop.f32.mrf.mxu0
  %v573 = vadd.f32 0.0, %v572
  %574 = vmatmul.bf16.gmra.mxu0 %v405
  %v575 = vpop.f32.mrf.mxu0
  %v576 = vadd.f32 0.0, %v575
  %v577 = vpop.f32.mrf.mxu0
  %v578 = vadd.f32 0.0, %v577
  %579 = vdwg.mxu0
  %v580 = vpack.c.bf16 %v421, %v421
  %v581 = vpack.c.bf16 %v423, %v423
  %v582 = vpack.c.bf16 %v426, %v426
  %v583 = vpack.c.bf16 %v428, %v428
  %v584 = vpack.c.bf16 %v431, %v431
  %v585 = vpack.c.bf16 %v433, %v433
  %v586 = vpack.c.bf16 %v436, %v436
  %v587 = vpack.c.bf16 %v438, %v438
  %v588 = vpack.c.bf16 %v441, %v441
  %v589 = vpack.c.bf16 %v443, %v443
  %v590 = vpack.c.bf16 %v446, %v446
  %v591 = vpack.c.bf16 %v448, %v448
  %v592 = vpack.c.bf16 %v451, %v451
  %v593 = vpack.c.bf16 %v453, %v453
  %v594 = vpack.c.bf16 %v456, %v456
  %v595 = vpack.c.bf16 %v458, %v458
  %v596 = vpack.c.bf16 %v461, %v461
  %v597 = vpack.c.bf16 %v463, %v463
  %v598 = vpack.c.bf16 %v466, %v466
  %v599 = vpack.c.bf16 %v468, %v468
  %v600 = vpack.c.bf16 %v471, %v471
  %v601 = vpack.c.bf16 %v473, %v473
  %v602 = vpack.c.bf16 %v476, %v476
  %v603 = vpack.c.bf16 %v478, %v478
  %v604 = vpack.c.bf16 %v481, %v481
  %v605 = vpack.c.bf16 %v483, %v483
  %v606 = vpack.c.bf16 %v486, %v486
  %v607 = vpack.c.bf16 %v488, %v488
  %v608 = vpack.c.bf16 %v491, %v491
  %v609 = vpack.c.bf16 %v493, %v493
  %v610 = vpack.c.bf16 %v496, %v496
  %v611 = vpack.c.bf16 %v498, %v498
  %v612 = vpack.c.bf16 %v501, %v501
  %v613 = vpack.c.bf16 %v503, %v503
  %v614 = vpack.c.bf16 %v506, %v506
  %v615 = vpack.c.bf16 %v508, %v508
  %v616 = vpack.c.bf16 %v511, %v511
  %v617 = vpack.c.bf16 %v513, %v513
  %v618 = vpack.c.bf16 %v516, %v516
  %v619 = vpack.c.bf16 %v518, %v518
  %v620 = vpack.c.bf16 %v521, %v521
  %v621 = vpack.c.bf16 %v523, %v523
  %v622 = vpack.c.bf16 %v526, %v526
  %v623 = vpack.c.bf16 %v528, %v528
  %v624 = vpack.c.bf16 %v531, %v531
  %v625 = vpack.c.bf16 %v533, %v533
  %v626 = vpack.c.bf16 %v536, %v536
  %v627 = vpack.c.bf16 %v538, %v538
  %v628 = vpack.c.bf16 %v541, %v541
  %v629 = vpack.c.bf16 %v543, %v543
  %v630 = vpack.c.bf16 %v546, %v546
  %v631 = vpack.c.bf16 %v548, %v548
  %v632 = vpack.c.bf16 %v551, %v551
  %v633 = vpack.c.bf16 %v553, %v553
  %v634 = vpack.c.bf16 %v556, %v556
  %v635 = vpack.c.bf16 %v558, %v558
  %v636 = vpack.c.bf16 %v561, %v561
  %v637 = vpack.c.bf16 %v563, %v563
  %v638 = vpack.c.bf16 %v566, %v566
  %v639 = vpack.c.bf16 %v568, %v568
  %v640 = vpack.c.bf16 %v571, %v571
  %v641 = vpack.c.bf16 %v573, %v573
  %v642 = vpack.c.bf16 %v576, %v576
  %v643 = vpack.c.bf16 %v578, %v578
  %vm644 = vcmask 27648
  %645 = vst.msk [vmem:[%s3] sm:$0xf] %vm644, %v580
  %646 = vst.msk [vmem:[%s3 + $0x4] sm:$0xf] %vm644, %v581
  %647 = vst.msk [vmem:[%s3 + $0x8] sm:$0xf] %vm644, %v582
  %648 = vst.msk [vmem:[%s3 + $0xc] sm:$0xf] %vm644, %v583
  %649 = vst.msk [vmem:[%s3 + $0x10] sm:$0xf] %vm644, %v584
  %650 = vst.msk [vmem:[%s3 + $0x14] sm:$0xf] %vm644, %v585
  %651 = vst.msk [vmem:[%s3 + $0x18] sm:$0xf] %vm644, %v586
  %652 = vst.msk [vmem:[%s3 + $0x1c] sm:$0xf] %vm644, %v587
  %653 = vst.msk [vmem:[%s3 + $0x20] sm:$0xf] %vm644, %v588
  %654 = vst.msk [vmem:[%s3 + $0x24] sm:$0xf] %vm644, %v589
  %655 = vst.msk [vmem:[%s3 + $0x28] sm:$0xf] %vm644, %v590
  %656 = vst.msk [vmem:[%s3 + $0x2c] sm:$0xf] %vm644, %v591
  %657 = vst.msk [vmem:[%s3 + $0x30] sm:$0xf] %vm644, %v592
  %658 = vst.msk [vmem:[%s3 + $0x34] sm:$0xf] %vm644, %v593
  %659 = vst.msk [vmem:[%s3 + $0x38] sm:$0xf] %vm644, %v594
  %660 = vst.msk [vmem:[%s3 + $0x3c] sm:$0xf] %vm644, %v595
  %661 = vst.msk [vmem:[%s3 + $0x40] sm:$0xf] %vm644, %v596
  %662 = vst.msk [vmem:[%s3 + $0x44] sm:$0xf] %vm644, %v597
  %663 = vst.msk [vmem:[%s3 + $0x48] sm:$0xf] %vm644, %v598
  %664 = vst.msk [vmem:[%s3 + $0x4c] sm:$0xf] %vm644, %v599
  %665 = vst.msk [vmem:[%s3 + $0x50] sm:$0xf] %vm644, %v600
  %666 = vst.msk [vmem:[%s3 + $0x54] sm:$0xf] %vm644, %v601
  %667 = vst.msk [vmem:[%s3 + $0x58] sm:$0xf] %vm644, %v602
  %668 = vst.msk [vmem:[%s3 + $0x5c] sm:$0xf] %vm644, %v603
  %669 = vst.msk [vmem:[%s3 + $0x60] sm:$0xf] %vm644, %v604
  %670 = vst.msk [vmem:[%s3 + $0x64] sm:$0xf] %vm644, %v605
  %671 = vst.msk [vmem:[%s3 + $0x68] sm:$0xf] %vm644, %v606
  %672 = vst.msk [vmem:[%s3 + $0x6c] sm:$0xf] %vm644, %v607
  %673 = vst.msk [vmem:[%s3 + $0x70] sm:$0xf] %vm644, %v608
  %674 = vst.msk [vmem:[%s3 + $0x74] sm:$0xf] %vm644, %v609
  %675 = vst.msk [vmem:[%s3 + $0x78] sm:$0xf] %vm644, %v610
  %676 = vst.msk [vmem:[%s3 + $0x7c] sm:$0xf] %vm644, %v611
  %677 = vst.msk [vmem:[%s3 + $0x80] sm:$0xf] %vm644, %v612
  %678 = vst.msk [vmem:[%s3 + $0x84] sm:$0xf] %vm644, %v613
  %679 = vst.msk [vmem:[%s3 + $0x88] sm:$0xf] %vm644, %v614
  %680 = vst.msk [vmem:[%s3 + $0x8c] sm:$0xf] %vm644, %v615
  %681 = vst.msk [vmem:[%s3 + $0x90] sm:$0xf] %vm644, %v616
  %682 = vst.msk [vmem:[%s3 + $0x94] sm:$0xf] %vm644, %v617
  %683 = vst.msk [vmem:[%s3 + $0x98] sm:$0xf] %vm644, %v618
  %684 = vst.msk [vmem:[%s3 + $0x9c] sm:$0xf] %vm644, %v619
  %685 = vst.msk [vmem:[%s3 + $0xa0] sm:$0xf] %vm644, %v620
  %686 = vst.msk [vmem:[%s3 + $0xa4] sm:$0xf] %vm644, %v621
  %687 = vst.msk [vmem:[%s3 + $0xa8] sm:$0xf] %vm644, %v622
  %688 = vst.msk [vmem:[%s3 + $0xac] sm:$0xf] %vm644, %v623
  %689 = vst.msk [vmem:[%s3 + $0xb0] sm:$0xf] %vm644, %v624
  %690 = vst.msk [vmem:[%s3 + $0xb4] sm:$0xf] %vm644, %v625
  %691 = vst.msk [vmem:[%s3 + $0xb8] sm:$0xf] %vm644, %v626
  %692 = vst.msk [vmem:[%s3 + $0xbc] sm:$0xf] %vm644, %v627
  %693 = vst.msk [vmem:[%s3 + $0xc0] sm:$0xf] %vm644, %v628
  %694 = vst.msk [vmem:[%s3 + $0xc4] sm:$0xf] %vm644, %v629
  %695 = vst.msk [vmem:[%s3 + $0xc8] sm:$0xf] %vm644, %v630
  %696 = vst.msk [vmem:[%s3 + $0xcc] sm:$0xf] %vm644, %v631
  %697 = vst.msk [vmem:[%s3 + $0xd0] sm:$0xf] %vm644, %v632
  %698 = vst.msk [vmem:[%s3 + $0xd4] sm:$0xf] %vm644, %v633
  %699 = vst.msk [vmem:[%s3 + $0xd8] sm:$0xf] %vm644, %v634
  %700 = vst.msk [vmem:[%s3 + $0xdc] sm:$0xf] %vm644, %v635
  %701 = vst.msk [vmem:[%s3 + $0xe0] sm:$0xf] %vm644, %v636
  %702 = vst.msk [vmem:[%s3 + $0xe4] sm:$0xf] %vm644, %v637
  %703 = vst.msk [vmem:[%s3 + $0xe8] sm:$0xf] %vm644, %v638
  %704 = vst.msk [vmem:[%s3 + $0xec] sm:$0xf] %vm644, %v639
  %705 = vst.msk [vmem:[%s3 + $0xf0] sm:$0xf] %vm644, %v640
  %706 = vst.msk [vmem:[%s3 + $0xf4] sm:$0xf] %vm644, %v641
  %707 = vst.msk [vmem:[%s3 + $0xf8] sm:$0xf] %vm644, %v642
  %708 = vst.msk [vmem:[%s3 + $0xfc] sm:$0xf] %vm644, %v643
  %vm709 = vcmask 31744
  %v710 = vsel %vm709, %v421, 0.0
  %v711 = vsel %vm709, %v423, 0.0
  %v712 = vadd.f32 %v710, %v711
  %v713 = vsel %vm709, %v426, 0.0
  %v714 = vadd.f32 %v712, %v713
  %v715 = vsel %vm709, %v428, 0.0
  %v716 = vadd.f32 %v714, %v715
  %v717 = vsel %vm709, %v431, 0.0
  %v718 = vadd.f32 %v716, %v717
  %v719 = vsel %vm709, %v433, 0.0
  %v720 = vadd.f32 %v718, %v719
  %v721 = vsel %vm709, %v436, 0.0
  %v722 = vadd.f32 %v720, %v721
  %v723 = vsel %vm709, %v438, 0.0
  %v724 = vadd.f32 %v722, %v723
  %v725 = vsel %vm709, %v441, 0.0
  %v726 = vadd.f32 %v724, %v725
  %v727 = vsel %vm709, %v443, 0.0
  %v728 = vadd.f32 %v726, %v727
  %v729 = vsel %vm709, %v446, 0.0
  %v730 = vadd.f32 %v728, %v729
  %v731 = vsel %vm709, %v448, 0.0
  %v732 = vadd.f32 %v730, %v731
  %v733 = vsel %vm709, %v451, 0.0
  %v734 = vadd.f32 %v732, %v733
  %v735 = vsel %vm709, %v453, 0.0
  %v736 = vadd.f32 %v734, %v735
  %v737 = vsel %vm709, %v456, 0.0
  %v738 = vadd.f32 %v736, %v737
  %v739 = vsel %vm709, %v458, 0.0
  %v740 = vadd.f32 %v738, %v739
  %v741 = vsel %vm709, %v461, 0.0
  %v742 = vadd.f32 %v740, %v741
  %v743 = vsel %vm709, %v463, 0.0
  %v744 = vadd.f32 %v742, %v743
  %v745 = vsel %vm709, %v466, 0.0
  %v746 = vadd.f32 %v744, %v745
  %v747 = vsel %vm709, %v468, 0.0
  %v748 = vadd.f32 %v746, %v747
  %v749 = vsel %vm709, %v471, 0.0
  %v750 = vadd.f32 %v748, %v749
  %v751 = vsel %vm709, %v473, 0.0
  %v752 = vadd.f32 %v750, %v751
  %v753 = vsel %vm709, %v476, 0.0
  %v754 = vadd.f32 %v752, %v753
  %v755 = vsel %vm709, %v478, 0.0
  %v756 = vadd.f32 %v754, %v755
  %v757 = vsel %vm709, %v481, 0.0
  %v758 = vadd.f32 %v756, %v757
  %v759 = vsel %vm709, %v483, 0.0
  %v760 = vadd.f32 %v758, %v759
  %v761 = vsel %vm709, %v486, 0.0
  %v762 = vadd.f32 %v760, %v761
  %v763 = vsel %vm709, %v488, 0.0
  %v764 = vadd.f32 %v762, %v763
  %v765 = vsel %vm709, %v491, 0.0
  %v766 = vadd.f32 %v764, %v765
  %v767 = vsel %vm709, %v493, 0.0
  %v768 = vadd.f32 %v766, %v767
  %v769 = vsel %vm709, %v496, 0.0
  %v770 = vadd.f32 %v768, %v769
  %v771 = vsel %vm709, %v498, 0.0
  %v772 = vadd.f32 %v770, %v771
  %v773 = vsel %vm709, %v501, 0.0
  %v774 = vadd.f32 %v772, %v773
  %v775 = vsel %vm709, %v503, 0.0
  %v776 = vadd.f32 %v774, %v775
  %v777 = vsel %vm709, %v506, 0.0
  %v778 = vadd.f32 %v776, %v777
  %v779 = vsel %vm709, %v508, 0.0
  %v780 = vadd.f32 %v778, %v779
  %v781 = vsel %vm709, %v511, 0.0
  %v782 = vadd.f32 %v780, %v781
  %v783 = vsel %vm709, %v513, 0.0
  %v784 = vadd.f32 %v782, %v783
  %v785 = vsel %vm709, %v516, 0.0
  %v786 = vadd.f32 %v784, %v785
  %v787 = vsel %vm709, %v518, 0.0
  %v788 = vadd.f32 %v786, %v787
  %v789 = vsel %vm709, %v521, 0.0
  %v790 = vadd.f32 %v788, %v789
  %v791 = vsel %vm709, %v523, 0.0
  %v792 = vadd.f32 %v790, %v791
  %v793 = vsel %vm709, %v526, 0.0
  %v794 = vadd.f32 %v792, %v793
  %v795 = vsel %vm709, %v528, 0.0
  %v796 = vadd.f32 %v794, %v795
  %v797 = vsel %vm709, %v531, 0.0
  %v798 = vadd.f32 %v796, %v797
  %v799 = vsel %vm709, %v533, 0.0
  %v800 = vadd.f32 %v798, %v799
  %v801 = vsel %vm709, %v536, 0.0
  %v802 = vadd.f32 %v800, %v801
  %v803 = vsel %vm709, %v538, 0.0
  %v804 = vadd.f32 %v802, %v803
  %v805 = vsel %vm709, %v541, 0.0
  %v806 = vadd.f32 %v804, %v805
  %v807 = vsel %vm709, %v543, 0.0
  %v808 = vadd.f32 %v806, %v807
  %v809 = vsel %vm709, %v546, 0.0
  %v810 = vadd.f32 %v808, %v809
  %v811 = vsel %vm709, %v548, 0.0
  %v812 = vadd.f32 %v810, %v811
  %v813 = vsel %vm709, %v551, 0.0
  %v814 = vadd.f32 %v812, %v813
  %v815 = vsel %vm709, %v553, 0.0
  %v816 = vadd.f32 %v814, %v815
  %v817 = vsel %vm709, %v556, 0.0
  %v818 = vadd.f32 %v816, %v817
  %v819 = vsel %vm709, %v558, 0.0
  %v820 = vadd.f32 %v818, %v819
  %v821 = vsel %vm709, %v561, 0.0
  %v822 = vadd.f32 %v820, %v821
  %v823 = vsel %vm709, %v563, 0.0
  %v824 = vadd.f32 %v822, %v823
  %v825 = vsel %vm709, %v566, 0.0
  %v826 = vadd.f32 %v824, %v825
  %v827 = vsel %vm709, %v568, 0.0
  %v828 = vadd.f32 %v826, %v827
  %v829 = vsel %vm709, %v571, 0.0
  %v830 = vadd.f32 %v828, %v829
  %v831 = vsel %vm709, %v573, 0.0
  %v832 = vadd.f32 %v830, %v831
  %v833 = vsel %vm709, %v576, 0.0
  %v834 = vadd.f32 %v832, %v833
  %v835 = vsel %vm709, %v578, 0.0
  %v836 = vadd.f32 %v834, %v835
  %v837 = vrot.slane %v836, 4
  %v838 = vadd.f32 %v836, %v837
  %v839 = vrot.slane %v838, 2
  %v840 = vadd.f32 %v838, %v839
  %v841 = vrot.slane %v840, 1
  %v842 = vadd.f32 %v840, %v841
  %v843 = vmul.f32 %v421, %v421
  %v844 = vmul.f32 %v423, %v423
  %v845 = vmul.f32 %v426, %v426
  %v846 = vmul.f32 %v428, %v428
  %v847 = vmul.f32 %v431, %v431
  %v848 = vmul.f32 %v433, %v433
  %v849 = vmul.f32 %v436, %v436
  %v850 = vmul.f32 %v438, %v438
  %v851 = vmul.f32 %v441, %v441
  %v852 = vmul.f32 %v443, %v443
  %v853 = vmul.f32 %v446, %v446
  %v854 = vmul.f32 %v448, %v448
  %v855 = vmul.f32 %v451, %v451
  %v856 = vmul.f32 %v453, %v453
  %v857 = vmul.f32 %v456, %v456
  %v858 = vmul.f32 %v458, %v458
  %v859 = vmul.f32 %v461, %v461
  %v860 = vmul.f32 %v463, %v463
  %v861 = vmul.f32 %v466, %v466
  %v862 = vmul.f32 %v468, %v468
  %v863 = vmul.f32 %v471, %v471
  %v864 = vmul.f32 %v473, %v473
  %v865 = vmul.f32 %v476, %v476
  %v866 = vmul.f32 %v478, %v478
  %v867 = vmul.f32 %v481, %v481
  %v868 = vmul.f32 %v483, %v483
  %v869 = vmul.f32 %v486, %v486
  %v870 = vmul.f32 %v488, %v488
  %v871 = vmul.f32 %v491, %v491
  %v872 = vmul.f32 %v493, %v493
  %v873 = vmul.f32 %v496, %v496
  %v874 = vmul.f32 %v498, %v498
  %v875 = vmul.f32 %v501, %v501
  %v876 = vmul.f32 %v503, %v503
  %v877 = vmul.f32 %v506, %v506
  %v878 = vmul.f32 %v508, %v508
  %v879 = vmul.f32 %v511, %v511
  %v880 = vmul.f32 %v513, %v513
  %v881 = vmul.f32 %v516, %v516
  %v882 = vmul.f32 %v518, %v518
  %v883 = vmul.f32 %v521, %v521
  %v884 = vmul.f32 %v523, %v523
  %v885 = vmul.f32 %v526, %v526
  %v886 = vmul.f32 %v528, %v528
  %v887 = vmul.f32 %v531, %v531
  %v888 = vmul.f32 %v533, %v533
  %v889 = vmul.f32 %v536, %v536
  %v890 = vmul.f32 %v538, %v538
  %v891 = vmul.f32 %v541, %v541
  %v892 = vmul.f32 %v543, %v543
  %v893 = vmul.f32 %v546, %v546
  %v894 = vmul.f32 %v548, %v548
  %v895 = vmul.f32 %v551, %v551
  %v896 = vmul.f32 %v553, %v553
  %v897 = vmul.f32 %v556, %v556
  %v898 = vmul.f32 %v558, %v558
  %v899 = vmul.f32 %v561, %v561
  %v900 = vmul.f32 %v563, %v563
  %v901 = vmul.f32 %v566, %v566
  %v902 = vmul.f32 %v568, %v568
  %v903 = vmul.f32 %v571, %v571
  %v904 = vmul.f32 %v573, %v573
  %v905 = vmul.f32 %v576, %v576
  %v906 = vmul.f32 %v578, %v578
  %v907 = vsel %vm709, %v843, 0.0
  %v908 = vsel %vm709, %v844, 0.0
  %v909 = vadd.f32 %v907, %v908
  %v910 = vsel %vm709, %v845, 0.0
  %v911 = vadd.f32 %v909, %v910
  %v912 = vsel %vm709, %v846, 0.0
  %v913 = vadd.f32 %v911, %v912
  %v914 = vsel %vm709, %v847, 0.0
  %v915 = vadd.f32 %v913, %v914
  %v916 = vsel %vm709, %v848, 0.0
  %v917 = vadd.f32 %v915, %v916
  %v918 = vsel %vm709, %v849, 0.0
  %v919 = vadd.f32 %v917, %v918
  %v920 = vsel %vm709, %v850, 0.0
  %v921 = vadd.f32 %v919, %v920
  %v922 = vsel %vm709, %v851, 0.0
  %v923 = vadd.f32 %v921, %v922
  %v924 = vsel %vm709, %v852, 0.0
  %v925 = vadd.f32 %v923, %v924
  %v926 = vsel %vm709, %v853, 0.0
  %v927 = vadd.f32 %v925, %v926
  %v928 = vsel %vm709, %v854, 0.0
  %v929 = vadd.f32 %v927, %v928
  %v930 = vsel %vm709, %v855, 0.0
  %v931 = vadd.f32 %v929, %v930
  %v932 = vsel %vm709, %v856, 0.0
  %v933 = vadd.f32 %v931, %v932
  %v934 = vsel %vm709, %v857, 0.0
  %v935 = vadd.f32 %v933, %v934
  %v936 = vsel %vm709, %v858, 0.0
  %v937 = vadd.f32 %v935, %v936
  %v938 = vsel %vm709, %v859, 0.0
  %v939 = vadd.f32 %v937, %v938
  %v940 = vsel %vm709, %v860, 0.0
  %v941 = vadd.f32 %v939, %v940
  %v942 = vsel %vm709, %v861, 0.0
  %v943 = vadd.f32 %v941, %v942
  %v944 = vsel %vm709, %v862, 0.0
  %v945 = vadd.f32 %v943, %v944
  %v946 = vsel %vm709, %v863, 0.0
  %v947 = vadd.f32 %v945, %v946
  %v948 = vsel %vm709, %v864, 0.0
  %v949 = vadd.f32 %v947, %v948
  %v950 = vsel %vm709, %v865, 0.0
  %v951 = vadd.f32 %v949, %v950
  %v952 = vsel %vm709, %v866, 0.0
  %v953 = vadd.f32 %v951, %v952
  %v954 = vsel %vm709, %v867, 0.0
  %v955 = vadd.f32 %v953, %v954
  %v956 = vsel %vm709, %v868, 0.0
  %v957 = vadd.f32 %v955, %v956
  %v958 = vsel %vm709, %v869, 0.0
  %v959 = vadd.f32 %v957, %v958
  %v960 = vsel %vm709, %v870, 0.0
  %v961 = vadd.f32 %v959, %v960
  %v962 = vsel %vm709, %v871, 0.0
  %v963 = vadd.f32 %v961, %v962
  %v964 = vsel %vm709, %v872, 0.0
  %v965 = vadd.f32 %v963, %v964
  %v966 = vsel %vm709, %v873, 0.0
  %v967 = vadd.f32 %v965, %v966
  %v968 = vsel %vm709, %v874, 0.0
  %v969 = vadd.f32 %v967, %v968
  %v970 = vsel %vm709, %v875, 0.0
  %v971 = vadd.f32 %v969, %v970
  %v972 = vsel %vm709, %v876, 0.0
  %v973 = vadd.f32 %v971, %v972
  %v974 = vsel %vm709, %v877, 0.0
  %v975 = vadd.f32 %v973, %v974
  %v976 = vsel %vm709, %v878, 0.0
  %v977 = vadd.f32 %v975, %v976
  %v978 = vsel %vm709, %v879, 0.0
  %v979 = vadd.f32 %v977, %v978
  %v980 = vsel %vm709, %v880, 0.0
  %v981 = vadd.f32 %v979, %v980
  %v982 = vsel %vm709, %v881, 0.0
  %v983 = vadd.f32 %v981, %v982
  %v984 = vsel %vm709, %v882, 0.0
  %v985 = vadd.f32 %v983, %v984
  %v986 = vsel %vm709, %v883, 0.0
  %v987 = vadd.f32 %v985, %v986
  %v988 = vsel %vm709, %v884, 0.0
  %v989 = vadd.f32 %v987, %v988
  %v990 = vsel %vm709, %v885, 0.0
  %v991 = vadd.f32 %v989, %v990
  %v992 = vsel %vm709, %v886, 0.0
  %v993 = vadd.f32 %v991, %v992
  %v994 = vsel %vm709, %v887, 0.0
  %v995 = vadd.f32 %v993, %v994
  %v996 = vsel %vm709, %v888, 0.0
  %v997 = vadd.f32 %v995, %v996
  %v998 = vsel %vm709, %v889, 0.0
  %v999 = vadd.f32 %v997, %v998
  %v1000 = vsel %vm709, %v890, 0.0
  %v1001 = vadd.f32 %v999, %v1000
  %v1002 = vsel %vm709, %v891, 0.0
  %v1003 = vadd.f32 %v1001, %v1002
  %v1004 = vsel %vm709, %v892, 0.0
  %v1005 = vadd.f32 %v1003, %v1004
  %v1006 = vsel %vm709, %v893, 0.0
  %v1007 = vadd.f32 %v1005, %v1006
  %v1008 = vsel %vm709, %v894, 0.0
  %v1009 = vadd.f32 %v1007, %v1008
  %v1010 = vsel %vm709, %v895, 0.0
  %v1011 = vadd.f32 %v1009, %v1010
  %v1012 = vsel %vm709, %v896, 0.0
  %v1013 = vadd.f32 %v1011, %v1012
  %v1014 = vsel %vm709, %v897, 0.0
  %v1015 = vadd.f32 %v1013, %v1014
  %v1016 = vsel %vm709, %v898, 0.0
  %v1017 = vadd.f32 %v1015, %v1016
  %v1018 = vsel %vm709, %v899, 0.0
  %v1019 = vadd.f32 %v1017, %v1018
  %v1020 = vsel %vm709, %v900, 0.0
  %v1021 = vadd.f32 %v1019, %v1020
  %v1022 = vsel %vm709, %v901, 0.0
  %v1023 = vadd.f32 %v1021, %v1022
  %v1024 = vsel %vm709, %v902, 0.0
  %v1025 = vadd.f32 %v1023, %v1024
  %v1026 = vsel %vm709, %v903, 0.0
  %v1027 = vadd.f32 %v1025, %v1026
  %v1028 = vsel %vm709, %v904, 0.0
  %v1029 = vadd.f32 %v1027, %v1028
  %v1030 = vsel %vm709, %v905, 0.0
  %v1031 = vadd.f32 %v1029, %v1030
  %v1032 = vsel %vm709, %v906, 0.0
  %v1033 = vadd.f32 %v1031, %v1032
  %v1034 = vrot.slane %v1033, 4
  %v1035 = vadd.f32 %v1033, %v1034
  %v1036 = vrot.slane %v1035, 2
  %v1037 = vadd.f32 %v1035, %v1036
  %v1038 = vrot.slane %v1037, 1
  %v1039 = vadd.f32 %v1037, %v1038
  %vm1040 = vcmask 1040384
  %v1041 = vsel %vm1040, %v842, %v1039
  %vm1042 = vcmask 25600
  %1043 = vst.msk [vmem:[%s4] sm:$0x3] %vm1042, %v1041
  // Predicated region
  $region14: #{residual_block_forward.5} parent=0 // pred_check
    _
  $region15: #{residual_block_forward.5} parent=0 // pred_check_branch
    %1045 = sbr.rel (0) target = $region17
  $region16: #{residual_block_forward.5} parent=0 // pred_region
    _
  $region17: #{residual_block_forward.5} parent=0 // pred_fallthru
    _
  // Predicated region
  $region18: #{residual_block_forward.5} parent=0 // pred_check
    _
  $region19: #{residual_block_forward.5} parent=0 // pred_check_branch
    %1047 = sbr.rel (0) target = $region21
  $region20: #{residual_block_forward.5} parent=0 // pred_region
    _
  $region21: #{residual_block_forward.5} parent=0 // pred_fallthru
    _
  // Predicated region
  $region22: #{residual_block_forward.5} parent=0 // pred_check
    _
  $region23: #{residual_block_forward.5} parent=0 // pred_check_branch
    %1049 = sbr.rel (0) target = $region25
  $region24: #{residual_block_forward.5} parent=0 // pred_region
    _
  $region25: #{residual_block_forward.5} parent=0 // pred_fallthru
    _
  // Predicated region
  $region26: #{residual_block_forward.5} parent=0 // pred_check
    _
  $region27: #{residual_block_forward.5} parent=0 // pred_check_branch
    %1051 = sbr.rel (0) target = $region29
  $region28: #{residual_block_forward.5} parent=0 // pred_region
    _
  $region29: #{residual_block_forward.5} parent=0 // pred_fallthru
    _

// kernel: residual_block_forward.7
$region0: #{residual_block_forward.7}
  #allocation0 [shape = 'u32[]', space=smem, size = 0x4, offset = 0x4, fixed_abs, tag = 'smem constant byte address 0x4 - core index']
  #allocation1 [shape = 'u32[72,128]{1,0:T(1,128)}', space=vmem, size = 0x9000, scoped, tag = 'internal scratch']
  %s0 = inlined_call_operand.vmem [shape: bf16[512,4], index: 0, kind: input, shape index: {}]
  %s1 = inlined_call_operand.vmem [shape: f32[512,8], index: 1, kind: input, shape index: {}]
  %s2 = inlined_call_operand.vmem [shape: f32[2,4], index: 2, kind: input, shape index: {}]
  %s3 = inlined_call_operand.vmem [shape: f32[2,8], index: 3, kind: input, shape index: {}]
  %s4 = inlined_call_operand.vmem [shape: bf16[4,16], index: 4, kind: input, shape index: {}]
  %s5 = inlined_call_operand.vmem [shape: bf16[8,16], index: 5, kind: input, shape index: {}]
  %s6 = inlined_call_operand.vmem [shape: f32[512,16], index: 6, kind: output, shape index: {}]
  %s7 = sld [smem:[#allocation0]]
  $region34: #{residual_block_forward.7} parent=0
    _
  %s9 = ssub.s32 1, %s7
  %s10 = scalar_select 0, %s9, %s7
  // Predicated region
  $region2: #{residual_block_forward.7} parent=0 // pred_check
    _
  $region3: #{residual_block_forward.7} parent=0 // pred_check_branch
    %12 = sbr.rel (0) target = $region5
  $region4: #{residual_block_forward.7} parent=0 // pred_region
    _
  $region5: #{residual_block_forward.7} parent=0 // pred_fallthru
    _
  // Predicated region
  $region6: #{residual_block_forward.7} parent=0 // pred_check
    _
  $region7: #{residual_block_forward.7} parent=0 // pred_check_branch
    %14 = sbr.rel (0) target = $region9
  $region8: #{residual_block_forward.7} parent=0 // pred_region
    _
  $region9: #{residual_block_forward.7} parent=0 // pred_fallthru
    _
  // Predicated region
  $region10: #{residual_block_forward.7} parent=0 // pred_check
    _
  $region11: #{residual_block_forward.7} parent=0 // pred_check_branch
    %16 = sbr.rel (0) target = $region13
  $region12: #{residual_block_forward.7} parent=0 // pred_region
    _
  $region13: #{residual_block_forward.7} parent=0 // pred_fallthru
    _
  // Predicated region
  $region14: #{residual_block_forward.7} parent=0 // pred_check
    _
  $region15: #{residual_block_forward.7} parent=0 // pred_check_branch
    %18 = sbr.rel (0) target = $region17
  $region16: #{residual_block_forward.7} parent=0 // pred_region
    _
  $region17: #{residual_block_forward.7} parent=0 // pred_fallthru
    _
  // Predicated region
  $region18: #{residual_block_forward.7} parent=0 // pred_check
    _
  $region19: #{residual_block_forward.7} parent=0 // pred_check_branch
    %20 = sbr.rel (0) target = $region21
  $region20: #{residual_block_forward.7} parent=0 // pred_region
    _
  $region21: #{residual_block_forward.7} parent=0 // pred_fallthru
    _
  // Predicated region
  $region22: #{residual_block_forward.7} parent=0 // pred_check
    _
  $region23: #{residual_block_forward.7} parent=0 // pred_check_branch
    %22 = sbr.rel (0) target = $region25
  $region24: #{residual_block_forward.7} parent=0 // pred_region
    _
  $region25: #{residual_block_forward.7} parent=0 // pred_fallthru
    _
  %v24 = vld [vmem:[%s0] sm:$0xf]
  %v25 = vld [vmem:[%s0 + $0x4] sm:$0xf]
  %v26 = vld [vmem:[%s0 + $0x8] sm:$0xf]
  %v27 = vld [vmem:[%s0 + $0xc] sm:$0xf]
  %v28 = vld [vmem:[%s0 + $0x10] sm:$0xf]
  %v29 = vld [vmem:[%s0 + $0x14] sm:$0xf]
  %v30 = vld [vmem:[%s0 + $0x18] sm:$0xf]
  %v31 = vld [vmem:[%s0 + $0x1c] sm:$0xf]
  %v32 = vld [vmem:[%s0 + $0x20] sm:$0xf]
  %v33 = vld [vmem:[%s0 + $0x24] sm:$0xf]
  %v34 = vld [vmem:[%s0 + $0x28] sm:$0xf]
  %v35 = vld [vmem:[%s0 + $0x2c] sm:$0xf]
  %v36 = vld [vmem:[%s0 + $0x30] sm:$0xf]
  %v37 = vld [vmem:[%s0 + $0x34] sm:$0xf]
  %v38 = vld [vmem:[%s0 + $0x38] sm:$0xf]
  %v39 = vld [vmem:[%s0 + $0x3c] sm:$0xf]
  %v40 = vld [vmem:[%s0 + $0x40] sm:$0xf]
  %v41 = vld [vmem:[%s0 + $0x44] sm:$0xf]
  %v42 = vld [vmem:[%s0 + $0x48] sm:$0xf]
  %v43 = vld [vmem:[%s0 + $0x4c] sm:$0xf]
  %v44 = vld [vmem:[%s0 + $0x50] sm:$0xf]
  %v45 = vld [vmem:[%s0 + $0x54] sm:$0xf]
  %v46 = vld [vmem:[%s0 + $0x58] sm:$0xf]
  %v47 = vld [vmem:[%s0 + $0x5c] sm:$0xf]
  %v48 = vld [vmem:[%s0 + $0x60] sm:$0xf]
  %v49 = vld [vmem:[%s0 + $0x64] sm:$0xf]
  %v50 = vld [vmem:[%s0 + $0x68] sm:$0xf]
  %v51 = vld [vmem:[%s0 + $0x6c] sm:$0xf]
  %v52 = vld [vmem:[%s0 + $0x70] sm:$0xf]
  %v53 = vld [vmem:[%s0 + $0x74] sm:$0xf]
  %v54 = vld [vmem:[%s0 + $0x78] sm:$0xf]
  %v55 = vld [vmem:[%s0 + $0x7c] sm:$0xf]
  %v56 = vld [vmem:[%s0 + $0x80] sm:$0xf]
  %v57 = vld [vmem:[%s0 + $0x84] sm:$0xf]
  %v58 = vld [vmem:[%s0 + $0x88] sm:$0xf]
  %v59 = vld [vmem:[%s0 + $0x8c] sm:$0xf]
  %v60 = vld [vmem:[%s0 + $0x90] sm:$0xf]
  %v61 = vld [vmem:[%s0 + $0x94] sm:$0xf]
  %v62 = vld [vmem:[%s0 + $0x98] sm:$0xf]
  %v63 = vld [vmem:[%s0 + $0x9c] sm:$0xf]
  %v64 = vld [vmem:[%s0 + $0xa0] sm:$0xf]
  %v65 = vld [vmem:[%s0 + $0xa4] sm:$0xf]
  %v66 = vld [vmem:[%s0 + $0xa8] sm:$0xf]
  %v67 = vld [vmem:[%s0 + $0xac] sm:$0xf]
  %v68 = vld [vmem:[%s0 + $0xb0] sm:$0xf]
  %v69 = vld [vmem:[%s0 + $0xb4] sm:$0xf]
  %v70 = vld [vmem:[%s0 + $0xb8] sm:$0xf]
  %v71 = vld [vmem:[%s0 + $0xbc] sm:$0xf]
  %v72 = vld [vmem:[%s0 + $0xc0] sm:$0xf]
  %v73 = vld [vmem:[%s0 + $0xc4] sm:$0xf]
  %v74 = vld [vmem:[%s0 + $0xc8] sm:$0xf]
  %v75 = vld [vmem:[%s0 + $0xcc] sm:$0xf]
  %v76 = vld [vmem:[%s0 + $0xd0] sm:$0xf]
  %v77 = vld [vmem:[%s0 + $0xd4] sm:$0xf]
  %v78 = vld [vmem:[%s0 + $0xd8] sm:$0xf]
  %v79 = vld [vmem:[%s0 + $0xdc] sm:$0xf]
  %v80 = vld [vmem:[%s0 + $0xe0] sm:$0xf]
  %v81 = vld [vmem:[%s0 + $0xe4] sm:$0xf]
  %v82 = vld [vmem:[%s0 + $0xe8] sm:$0xf]
  %v83 = vld [vmem:[%s0 + $0xec] sm:$0xf]
  %v84 = vld [vmem:[%s0 + $0xf0] sm:$0xf]
  %v85 = vld [vmem:[%s0 + $0xf4] sm:$0xf]
  %v86 = vld [vmem:[%s0 + $0xf8] sm:$0xf]
  %v87 = vld [vmem:[%s0 + $0xfc] sm:$0xf]
  %v88 = vunpack.c.l.bf16 %v24
  %v89 = vunpack.c.l.bf16 %v25
  %v90 = vunpack.c.l.bf16 %v26
  %v91 = vunpack.c.l.bf16 %v27
  %v92 = vunpack.c.l.bf16 %v28
  %v93 = vunpack.c.l.bf16 %v29
  %v94 = vunpack.c.l.bf16 %v30
  %v95 = vunpack.c.l.bf16 %v31
  %v96 = vunpack.c.l.bf16 %v32
  %v97 = vunpack.c.l.bf16 %v33
  %v98 = vunpack.c.l.bf16 %v34
  %v99 = vunpack.c.l.bf16 %v35
  %v100 = vunpack.c.l.bf16 %v36
  %v101 = vunpack.c.l.bf16 %v37
  %v102 = vunpack.c.l.bf16 %v38
  %v103 = vunpack.c.l.bf16 %v39
  %v104 = vunpack.c.l.bf16 %v40
  %v105 = vunpack.c.l.bf16 %v41
  %v106 = vunpack.c.l.bf16 %v42
  %v107 = vunpack.c.l.bf16 %v43
  %v108 = vunpack.c.l.bf16 %v44
  %v109 = vunpack.c.l.bf16 %v45
  %v110 = vunpack.c.l.bf16 %v46
  %v111 = vunpack.c.l.bf16 %v47
  %v112 = vunpack.c.l.bf16 %v48
  %v113 = vunpack.c.l.bf16 %v49
  %v114 = vunpack.c.l.bf16 %v50
  %v115 = vunpack.c.l.bf16 %v51
  %v116 = vunpack.c.l.bf16 %v52
  %v117 = vunpack.c.l.bf16 %v53
  %v118 = vunpack.c.l.bf16 %v54
  %v119 = vunpack.c.l.bf16 %v55
  %v120 = vunpack.c.l.bf16 %v56
  %v121 = vunpack.c.l.bf16 %v57
  %v122 = vunpack.c.l.bf16 %v58
  %v123 = vunpack.c.l.bf16 %v59
  %v124 = vunpack.c.l.bf16 %v60
  %v125 = vunpack.c.l.bf16 %v61
  %v126 = vunpack.c.l.bf16 %v62
  %v127 = vunpack.c.l.bf16 %v63
  %v128 = vunpack.c.l.bf16 %v64
  %v129 = vunpack.c.l.bf16 %v65
  %v130 = vunpack.c.l.bf16 %v66
  %v131 = vunpack.c.l.bf16 %v67
  %v132 = vunpack.c.l.bf16 %v68
  %v133 = vunpack.c.l.bf16 %v69
  %v134 = vunpack.c.l.bf16 %v70
  %v135 = vunpack.c.l.bf16 %v71
  %v136 = vunpack.c.l.bf16 %v72
  %v137 = vunpack.c.l.bf16 %v73
  %v138 = vunpack.c.l.bf16 %v74
  %v139 = vunpack.c.l.bf16 %v75
  %v140 = vunpack.c.l.bf16 %v76
  %v141 = vunpack.c.l.bf16 %v77
  %v142 = vunpack.c.l.bf16 %v78
  %v143 = vunpack.c.l.bf16 %v79
  %v144 = vunpack.c.l.bf16 %v80
  %v145 = vunpack.c.l.bf16 %v81
  %v146 = vunpack.c.l.bf16 %v82
  %v147 = vunpack.c.l.bf16 %v83
  %v148 = vunpack.c.l.bf16 %v84
  %v149 = vunpack.c.l.bf16 %v85
  %v150 = vunpack.c.l.bf16 %v86
  %v151 = vunpack.c.l.bf16 %v87
  %v152 = vld [vmem:[%s2] sm:$0x1]
  %v153 = vperm.slane %v152, 0
  %v154 = vmul.f32 %v88, %v153
  %v155 = vmul.f32 %v89, %v153
  %v156 = vmul.f32 %v90, %v153
  %v157 = vmul.f32 %v91, %v153
  %v158 = vmul.f32 %v92, %v153
  %v159 = vmul.f32 %v93, %v153
  %v160 = vmul.f32 %v94, %v153
  %v161 = vmul.f32 %v95, %v153
  %v162 = vmul.f32 %v96, %v153
  %v163 = vmul.f32 %v97, %v153
  %v164 = vmul.f32 %v98, %v153
  %v165 = vmul.f32 %v99, %v153
  %v166 = vmul.f32 %v100, %v153
  %v167 = vmul.f32 %v101, %v153
  %v168 = vmul.f32 %v102, %v153
  %v169 = vmul.f32 %v103, %v153
  %v170 = vmul.f32 %v104, %v153
  %v171 = vmul.f32 %v105, %v153
  %v172 = vmul.f32 %v106, %v153
  %v173 = vmul.f32 %v107, %v153
  %v174 = vmul.f32 %v108, %v153
  %v175 = vmul.f32 %v109, %v153
  %v176 = vmul.f32 %v110, %v153
  %v177 = vmul.f32 %v111, %v153
  %v178 = vmul.f32 %v112, %v153
  %v179 = vmul.f32 %v113, %v153
  %v180 = vmul.f32 %v114, %v153
  %v181 = vmul.f32 %v115, %v153
  %v182 = vmul.f32 %v116, %v153
  %v183 = vmul.f32 %v117, %v153
  %v184 = vmul.f32 %v118, %v153
  %v185 = vmul.f32 %v119, %v153
  %v186 = vmul.f32 %v120, %v153
  %v187 = vmul.f32 %v121, %v153
  %v188 = vmul.f32 %v122, %v153
  %v189 = vmul.f32 %v123, %v153
  %v190 = vmul.f32 %v124, %v153
  %v191 = vmul.f32 %v125, %v153
  %v192 = vmul.f32 %v126, %v153
  %v193 = vmul.f32 %v127, %v153
  %v194 = vmul.f32 %v128, %v153
  %v195 = vmul.f32 %v129, %v153
  %v196 = vmul.f32 %v130, %v153
  %v197 = vmul.f32 %v131, %v153
  %v198 = vmul.f32 %v132, %v153
  %v199 = vmul.f32 %v133, %v153
  %v200 = vmul.f32 %v134, %v153
  %v201 = vmul.f32 %v135, %v153
  %v202 = vmul.f32 %v136, %v153
  %v203 = vmul.f32 %v137, %v153
  %v204 = vmul.f32 %v138, %v153
  %v205 = vmul.f32 %v139, %v153
  %v206 = vmul.f32 %v140, %v153
  %v207 = vmul.f32 %v141, %v153
  %v208 = vmul.f32 %v142, %v153
  %v209 = vmul.f32 %v143, %v153
  %v210 = vmul.f32 %v144, %v153
  %v211 = vmul.f32 %v145, %v153
  %v212 = vmul.f32 %v146, %v153
  %v213 = vmul.f32 %v147, %v153
  %v214 = vmul.f32 %v148, %v153
  %v215 = vmul.f32 %v149, %v153
  %v216 = vmul.f32 %v150, %v153
  %v217 = vmul.f32 %v151, %v153
  %v218 = vld [vmem:[%s2 + $0x1] sm:$0x1]
  %v219 = vperm.slane %v218, 0
  %v220 = vadd.f32 %v154, %v219
  %v221 = vadd.f32 %v155, %v219
  %v222 = vadd.f32 %v156, %v219
  %v223 = vadd.f32 %v157, %v219
  %v224 = vadd.f32 %v158, %v219
  %v225 = vadd.f32 %v159, %v219
  %v226 = vadd.f32 %v160, %v219
  %v227 = vadd.f32 %v161, %v219
  %v228 = vadd.f32 %v162, %v219
  %v229 = vadd.f32 %v163, %v219
  %v230 = vadd.f32 %v164, %v219
  %v231 = vadd.f32 %v165, %v219
  %v232 = vadd.f32 %v166, %v219
  %v233 = vadd.f32 %v167, %v219
  %v234 = vadd.f32 %v168, %v219
  %v235 = vadd.f32 %v169, %v219
  %v236 = vadd.f32 %v170, %v219
  %v237 = vadd.f32 %v171, %v219
  %v238 = vadd.f32 %v172, %v219
  %v239 = vadd.f32 %v173, %v219
  %v240 = vadd.f32 %v174, %v219
  %v241 = vadd.f32 %v175, %v219
  %v242 = vadd.f32 %v176, %v219
  %v243 = vadd.f32 %v177, %v219
  %v244 = vadd.f32 %v178, %v219
  %v245 = vadd.f32 %v179, %v219
  %v246 = vadd.f32 %v180, %v219
  %v247 = vadd.f32 %v181, %v219
  %v248 = vadd.f32 %v182, %v219
  %v249 = vadd.f32 %v183, %v219
  %v250 = vadd.f32 %v184, %v219
  %v251 = vadd.f32 %v185, %v219
  %v252 = vadd.f32 %v186, %v219
  %v253 = vadd.f32 %v187, %v219
  %v254 = vadd.f32 %v188, %v219
  %v255 = vadd.f32 %v189, %v219
  %v256 = vadd.f32 %v190, %v219
  %v257 = vadd.f32 %v191, %v219
  %v258 = vadd.f32 %v192, %v219
  %v259 = vadd.f32 %v193, %v219
  %v260 = vadd.f32 %v194, %v219
  %v261 = vadd.f32 %v195, %v219
  %v262 = vadd.f32 %v196, %v219
  %v263 = vadd.f32 %v197, %v219
  %v264 = vadd.f32 %v198, %v219
  %v265 = vadd.f32 %v199, %v219
  %v266 = vadd.f32 %v200, %v219
  %v267 = vadd.f32 %v201, %v219
  %v268 = vadd.f32 %v202, %v219
  %v269 = vadd.f32 %v203, %v219
  %v270 = vadd.f32 %v204, %v219
  %v271 = vadd.f32 %v205, %v219
  %v272 = vadd.f32 %v206, %v219
  %v273 = vadd.f32 %v207, %v219
  %v274 = vadd.f32 %v208, %v219
  %v275 = vadd.f32 %v209, %v219
  %v276 = vadd.f32 %v210, %v219
  %v277 = vadd.f32 %v211, %v219
  %v278 = vadd.f32 %v212, %v219
  %v279 = vadd.f32 %v213, %v219
  %v280 = vadd.f32 %v214, %v219
  %v281 = vadd.f32 %v215, %v219
  %v282 = vadd.f32 %v216, %v219
  %v283 = vadd.f32 %v217, %v219
  %v284 = vmax.f32 %v220, 0.0
  %v285 = vmax.f32 %v221, 0.0
  %v286 = vmax.f32 %v222, 0.0
  %v287 = vmax.f32 %v223, 0.0
  %v288 = vmax.f32 %v224, 0.0
  %v289 = vmax.f32 %v225, 0.0
  %v290 = vmax.f32 %v226, 0.0
  %v291 = vmax.f32 %v227, 0.0
  %v292 = vmax.f32 %v228, 0.0
  %v293 = vmax.f32 %v229, 0.0
  %v294 = vmax.f32 %v230, 0.0
  %v295 = vmax.f32 %v231, 0.0
  %v296 = vmax.f32 %v232, 0.0
  %v297 = vmax.f32 %v233, 0.0
  %v298 = vmax.f32 %v234, 0.0
  %v299 = vmax.f32 %v235, 0.0
  %v300 = vmax.f32 %v236, 0.0
  %v301 = vmax.f32 %v237, 0.0
  %v302 = vmax.f32 %v238, 0.0
  %v303 = vmax.f32 %v239, 0.0
  %v304 = vmax.f32 %v240, 0.0
  %v305 = vmax.f32 %v241, 0.0
  %v306 = vmax.f32 %v242, 0.0
  %v307 = vmax.f32 %v243, 0.0
  %v308 = vmax.f32 %v244, 0.0
  %v309 = vmax.f32 %v245, 0.0
  %v310 = vmax.f32 %v246, 0.0
  %v311 = vmax.f32 %v247, 0.0
  %v312 = vmax.f32 %v248, 0.0
  %v313 = vmax.f32 %v249, 0.0
  %v314 = vmax.f32 %v250, 0.0
  %v315 = vmax.f32 %v251, 0.0
  %v316 = vmax.f32 %v252, 0.0
  %v317 = vmax.f32 %v253, 0.0
  %v318 = vmax.f32 %v254, 0.0
  %v319 = vmax.f32 %v255, 0.0
  %v320 = vmax.f32 %v256, 0.0
  %v321 = vmax.f32 %v257, 0.0
  %v322 = vmax.f32 %v258, 0.0
  %v323 = vmax.f32 %v259, 0.0
  %v324 = vmax.f32 %v260, 0.0
  %v325 = vmax.f32 %v261, 0.0
  %v326 = vmax.f32 %v262, 0.0
  %v327 = vmax.f32 %v263, 0.0
  %v328 = vmax.f32 %v264, 0.0
  %v329 = vmax.f32 %v265, 0.0
  %v330 = vmax.f32 %v266, 0.0
  %v331 = vmax.f32 %v267, 0.0
  %v332 = vmax.f32 %v268, 0.0
  %v333 = vmax.f32 %v269, 0.0
  %v334 = vmax.f32 %v270, 0.0
  %v335 = vmax.f32 %v271, 0.0
  %v336 = vmax.f32 %v272, 0.0
  %v337 = vmax.f32 %v273, 0.0
  %v338 = vmax.f32 %v274, 0.0
  %v339 = vmax.f32 %v275, 0.0
  %v340 = vmax.f32 %v276, 0.0
  %v341 = vmax.f32 %v277, 0.0
  %v342 = vmax.f32 %v278, 0.0
  %v343 = vmax.f32 %v279, 0.0
  %v344 = vmax.f32 %v280, 0.0
  %v345 = vmax.f32 %v281, 0.0
  %v346 = vmax.f32 %v282, 0.0
  %v347 = vmax.f32 %v283, 0.0
  %v348 = vld [vmem:[%s1] sm:$0xff]
  %v349 = vld [vmem:[%s1 + $0x8] sm:$0xff]
  %v350 = vld [vmem:[%s1 + $0x10] sm:$0xff]
  %v351 = vld [vmem:[%s1 + $0x18] sm:$0xff]
  %v352 = vld [vmem:[%s1 + $0x20] sm:$0xff]
  %v353 = vld [vmem:[%s1 + $0x28] sm:$0xff]
  %v354 = vld [vmem:[%s1 + $0x30] sm:$0xff]
  %v355 = vld [vmem:[%s1 + $0x38] sm:$0xff]
  %v356 = vld [vmem:[%s1 + $0x40] sm:$0xff]
  %v357 = vld [vmem:[%s1 + $0x48] sm:$0xff]
  %v358 = vld [vmem:[%s1 + $0x50] sm:$0xff]
  %v359 = vld [vmem:[%s1 + $0x58] sm:$0xff]
  %v360 = vld [vmem:[%s1 + $0x60] sm:$0xff]
  %v361 = vld [vmem:[%s1 + $0x68] sm:$0xff]
  %v362 = vld [vmem:[%s1 + $0x70] sm:$0xff]
  %v363 = vld [vmem:[%s1 + $0x78] sm:$0xff]
  %v364 = vld [vmem:[%s1 + $0x80] sm:$0xff]
  %v365 = vld [vmem:[%s1 + $0x88] sm:$0xff]
  %v366 = vld [vmem:[%s1 + $0x90] sm:$0xff]
  %v367 = vld [vmem:[%s1 + $0x98] sm:$0xff]
  %v368 = vld [vmem:[%s1 + $0xa0] sm:$0xff]
  %v369 = vld [vmem:[%s1 + $0xa8] sm:$0xff]
  %v370 = vld [vmem:[%s1 + $0xb0] sm:$0xff]
  %v371 = vld [vmem:[%s1 + $0xb8] sm:$0xff]
  %v372 = vld [vmem:[%s1 + $0xc0] sm:$0xff]
  %v373 = vld [vmem:[%s1 + $0xc8] sm:$0xff]
  %v374 = vld [vmem:[%s1 + $0xd0] sm:$0xff]
  %v375 = vld [vmem:[%s1 + $0xd8] sm:$0xff]
  %v376 = vld [vmem:[%s1 + $0xe0] sm:$0xff]
  %v377 = vld [vmem:[%s1 + $0xe8] sm:$0xff]
  %v378 = vld [vmem:[%s1 + $0xf0] sm:$0xff]
  %v379 = vld [vmem:[%s1 + $0xf8] sm:$0xff]
  %v380 = vld [vmem:[%s1 + $0x100] sm:$0xff]
  %v381 = vld [vmem:[%s1 + $0x108] sm:$0xff]
  %v382 = vld [vmem:[%s1 + $0x110] sm:$0xff]
  %v383 = vld [vmem:[%s1 + $0x118] sm:$0xff]
  %v384 = vld [vmem:[%s1 + $0x120] sm:$0xff]
  %v385 = vld [vmem:[%s1 + $0x128] sm:$0xff]
  %v386 = vld [vmem:[%s1 + $0x130] sm:$0xff]
  %v387 = vld [vmem:[%s1 + $0x138] sm:$0xff]
  %v388 = vld [vmem:[%s1 + $0x140] sm:$0xff]
  %v389 = vld [vmem:[%s1 + $0x148] sm:$0xff]
  %v390 = vld [vmem:[%s1 + $0x150] sm:$0xff]
  %v391 = vld [vmem:[%s1 + $0x158] sm:$0xff]
  %v392 = vld [vmem:[%s1 + $0x160] sm:$0xff]
  %v393 = vld [vmem:[%s1 + $0x168] sm:$0xff]
  %v394 = vld [vmem:[%s1 + $0x170] sm:$0xff]
  %v395 = vld [vmem:[%s1 + $0x178] sm:$0xff]
  %v396 = vld [vmem:[%s1 + $0x180] sm:$0xff]
  %v397 = vld [vmem:[%s1 + $0x188] sm:$0xff]
  %v398 = vld [vmem:[%s1 + $0x190] sm:$0xff]
  %v399 = vld [vmem:[%s1 + $0x198] sm:$0xff]
  %v400 = vld [vmem:[%s1 + $0x1a0] sm:$0xff]
  %v401 = vld [vmem:[%s1 + $0x1a8] sm:$0xff]
  %v402 = vld [vmem:[%s1 + $0x1b0] sm:$0xff]
  %v403 = vld [vmem:[%s1 + $0x1b8] sm:$0xff]
  %v404 = vld [vmem:[%s1 + $0x1c0] sm:$0xff]
  %v405 = vld [vmem:[%s1 + $0x1c8] sm:$0xff]
  %v406 = vld [vmem:[%s1 + $0x1d0] sm:$0xff]
  %v407 = vld [vmem:[%s1 + $0x1d8] sm:$0xff]
  %v408 = vld [vmem:[%s1 + $0x1e0] sm:$0xff]
  %v409 = vld [vmem:[%s1 + $0x1e8] sm:$0xff]
  %v410 = vld [vmem:[%s1 + $0x1f0] sm:$0xff]
  %v411 = vld [vmem:[%s1 + $0x1f8] sm:$0xff]
  %v412 = vld [vmem:[%s3] sm:$0x1]
  %v413 = vperm.slane %v412, 0
  %v414 = vmul.f32 %v348, %v413
  %v415 = vmul.f32 %v349, %v413
  %v416 = vmul.f32 %v350, %v413
  %v417 = vmul.f32 %v351, %v413
  %v418 = vmul.f32 %v352, %v413
  %v419 = vmul.f32 %v353, %v413
  %v420 = vmul.f32 %v354, %v413
  %v421 = vmul.f32 %v355, %v413
  %v422 = vmul.f32 %v356, %v413
  %v423 = vmul.f32 %v357, %v413
  %v424 = vmul.f32 %v358, %v413
  %v425 = vmul.f32 %v359, %v413
  %v426 = vmul.f32 %v360, %v413
  %v427 = vmul.f32 %v361, %v413
  %v428 = vmul.f32 %v362, %v413
  %v429 = vmul.f32 %v363, %v413
  %v430 = vmul.f32 %v364, %v413
  %v431 = vmul.f32 %v365, %v413
  %v432 = vmul.f32 %v366, %v413
  %v433 = vmul.f32 %v367, %v413
  %v434 = vmul.f32 %v368, %v413
  %v435 = vmul.f32 %v369, %v413
  %v436 = vmul.f32 %v370, %v413
  %v437 = vmul.f32 %v371, %v413
  %v438 = vmul.f32 %v372, %v413
  %v439 = vmul.f32 %v373, %v413
  %v440 = vmul.f32 %v374, %v413
  %v441 = vmul.f32 %v375, %v413
  %v442 = vmul.f32 %v376, %v413
  %v443 = vmul.f32 %v377, %v413
  %v444 = vmul.f32 %v378, %v413
  %v445 = vmul.f32 %v379, %v413
  %v446 = vmul.f32 %v380, %v413
  %v447 = vmul.f32 %v381, %v413
  %v448 = vmul.f32 %v382, %v413
  %v449 = vmul.f32 %v383, %v413
  %v450 = vmul.f32 %v384, %v413
  %v451 = vmul.f32 %v385, %v413
  %v452 = vmul.f32 %v386, %v413
  %v453 = vmul.f32 %v387, %v413
  %v454 = vmul.f32 %v388, %v413
  %v455 = vmul.f32 %v389, %v413
  %v456 = vmul.f32 %v390, %v413
  %v457 = vmul.f32 %v391, %v413
  %v458 = vmul.f32 %v392, %v413
  %v459 = vmul.f32 %v393, %v413
  %v460 = vmul.f32 %v394, %v413
  %v461 = vmul.f32 %v395, %v413
  %v462 = vmul.f32 %v396, %v413
  %v463 = vmul.f32 %v397, %v413
  %v464 = vmul.f32 %v398, %v413
  %v465 = vmul.f32 %v399, %v413
  %v466 = vmul.f32 %v400, %v413
  %v467 = vmul.f32 %v401, %v413
  %v468 = vmul.f32 %v402, %v413
  %v469 = vmul.f32 %v403, %v413
  %v470 = vmul.f32 %v404, %v413
  %v471 = vmul.f32 %v405, %v413
  %v472 = vmul.f32 %v406, %v413
  %v473 = vmul.f32 %v407, %v413
  %v474 = vmul.f32 %v408, %v413
  %v475 = vmul.f32 %v409, %v413
  %v476 = vmul.f32 %v410, %v413
  %v477 = vmul.f32 %v411, %v413
  %v478 = vld [vmem:[%s3 + $0x1] sm:$0x1]
  %v479 = vperm.slane %v478, 0
  %v480 = vadd.f32 %v414, %v479
  %v481 = vadd.f32 %v415, %v479
  %v482 = vadd.f32 %v416, %v479
  %v483 = vadd.f32 %v417, %v479
  %v484 = vadd.f32 %v418, %v479
  %v485 = vadd.f32 %v419, %v479
  %v486 = vadd.f32 %v420, %v479
  %v487 = vadd.f32 %v421, %v479
  %v488 = vadd.f32 %v422, %v479
  %v489 = vadd.f32 %v423, %v479
  %v490 = vadd.f32 %v424, %v479
  %v491 = vadd.f32 %v425, %v479
  %v492 = vadd.f32 %v426, %v479
  %v493 = vadd.f32 %v427, %v479
  %v494 = vadd.f32 %v428, %v479
  %v495 = vadd.f32 %v429, %v479
  %v496 = vadd.f32 %v430, %v479
  %v497 = vadd.f32 %v431, %v479
  %v498 = vadd.f32 %v432, %v479
  %v499 = vadd.f32 %v433, %v479
  %v500 = vadd.f32 %v434, %v479
  %v501 = vadd.f32 %v435, %v479
  %v502 = vadd.f32 %v436, %v479
  %v503 = vadd.f32 %v437, %v479
  %v504 = vadd.f32 %v438, %v479
  %v505 = vadd.f32 %v439, %v479
  %v506 = vadd.f32 %v440, %v479
  %v507 = vadd.f32 %v441, %v479
  %v508 = vadd.f32 %v442, %v479
  %v509 = vadd.f32 %v443, %v479
  %v510 = vadd.f32 %v444, %v479
  %v511 = vadd.f32 %v445, %v479
  %v512 = vadd.f32 %v446, %v479
  %v513 = vadd.f32 %v447, %v479
  %v514 = vadd.f32 %v448, %v479
  %v515 = vadd.f32 %v449, %v479
  %v516 = vadd.f32 %v450, %v479
  %v517 = vadd.f32 %v451, %v479
  %v518 = vadd.f32 %v452, %v479
  %v519 = vadd.f32 %v453, %v479
  %v520 = vadd.f32 %v454, %v479
  %v521 = vadd.f32 %v455, %v479
  %v522 = vadd.f32 %v456, %v479
  %v523 = vadd.f32 %v457, %v479
  %v524 = vadd.f32 %v458, %v479
  %v525 = vadd.f32 %v459, %v479
  %v526 = vadd.f32 %v460, %v479
  %v527 = vadd.f32 %v461, %v479
  %v528 = vadd.f32 %v462, %v479
  %v529 = vadd.f32 %v463, %v479
  %v530 = vadd.f32 %v464, %v479
  %v531 = vadd.f32 %v465, %v479
  %v532 = vadd.f32 %v466, %v479
  %v533 = vadd.f32 %v467, %v479
  %v534 = vadd.f32 %v468, %v479
  %v535 = vadd.f32 %v469, %v479
  %v536 = vadd.f32 %v470, %v479
  %v537 = vadd.f32 %v471, %v479
  %v538 = vadd.f32 %v472, %v479
  %v539 = vadd.f32 %v473, %v479
  %v540 = vadd.f32 %v474, %v479
  %v541 = vadd.f32 %v475, %v479
  %v542 = vadd.f32 %v476, %v479
  %v543 = vadd.f32 %v477, %v479
  %v544 = vmax.f32 %v480, 0.0
  %v545 = vmax.f32 %v481, 0.0
  %v546 = vmax.f32 %v482, 0.0
  %v547 = vmax.f32 %v483, 0.0
  %v548 = vmax.f32 %v484, 0.0
  %v549 = vmax.f32 %v485, 0.0
  %v550 = vmax.f32 %v486, 0.0
  %v551 = vmax.f32 %v487, 0.0
  %v552 = vmax.f32 %v488, 0.0
  %v553 = vmax.f32 %v489, 0.0
  %v554 = vmax.f32 %v490, 0.0
  %v555 = vmax.f32 %v491, 0.0
  %v556 = vmax.f32 %v492, 0.0
  %v557 = vmax.f32 %v493, 0.0
  %v558 = vmax.f32 %v494, 0.0
  %v559 = vmax.f32 %v495, 0.0
  %v560 = vmax.f32 %v496, 0.0
  %v561 = vmax.f32 %v497, 0.0
  %v562 = vmax.f32 %v498, 0.0
  %v563 = vmax.f32 %v499, 0.0
  %v564 = vmax.f32 %v500, 0.0
  %v565 = vmax.f32 %v501, 0.0
  %v566 = vmax.f32 %v502, 0.0
  %v567 = vmax.f32 %v503, 0.0
  %v568 = vmax.f32 %v504, 0.0
  %v569 = vmax.f32 %v505, 0.0
  %v570 = vmax.f32 %v506, 0.0
  %v571 = vmax.f32 %v507, 0.0
  %v572 = vmax.f32 %v508, 0.0
  %v573 = vmax.f32 %v509, 0.0
  %v574 = vmax.f32 %v510, 0.0
  %v575 = vmax.f32 %v511, 0.0
  %v576 = vmax.f32 %v512, 0.0
  %v577 = vmax.f32 %v513, 0.0
  %v578 = vmax.f32 %v514, 0.0
  %v579 = vmax.f32 %v515, 0.0
  %v580 = vmax.f32 %v516, 0.0
  %v581 = vmax.f32 %v517, 0.0
  %v582 = vmax.f32 %v518, 0.0
  %v583 = vmax.f32 %v519, 0.0
  %v584 = vmax.f32 %v520, 0.0
  %v585 = vmax.f32 %v521, 0.0
  %v586 = vmax.f32 %v522, 0.0
  %v587 = vmax.f32 %v523, 0.0
  %v588 = vmax.f32 %v524, 0.0
  %v589 = vmax.f32 %v525, 0.0
  %v590 = vmax.f32 %v526, 0.0
  %v591 = vmax.f32 %v527, 0.0
  %v592 = vmax.f32 %v528, 0.0
  %v593 = vmax.f32 %v529, 0.0
  %v594 = vmax.f32 %v530, 0.0
  %v595 = vmax.f32 %v531, 0.0
  %v596 = vmax.f32 %v532, 0.0
  %v597 = vmax.f32 %v533, 0.0
  %v598 = vmax.f32 %v534, 0.0
  %v599 = vmax.f32 %v535, 0.0
  %v600 = vmax.f32 %v536, 0.0
  %v601 = vmax.f32 %v537, 0.0
  %v602 = vmax.f32 %v538, 0.0
  %v603 = vmax.f32 %v539, 0.0
  %v604 = vmax.f32 %v540, 0.0
  %v605 = vmax.f32 %v541, 0.0
  %v606 = vmax.f32 %v542, 0.0
  %v607 = vmax.f32 %v543, 0.0
  %v608 = vpack.c.bf16 %v285, %v284
  %v609 = vpack.c.bf16 %v287, %v286
  %v610 = vpack.c.bf16 %v289, %v288
  %v611 = vpack.c.bf16 %v291, %v290
  %v612 = vpack.c.bf16 %v293, %v292
  %v613 = vpack.c.bf16 %v295, %v294
  %v614 = vpack.c.bf16 %v297, %v296
  %v615 = vpack.c.bf16 %v299, %v298
  %v616 = vpack.c.bf16 %v301, %v300
  %v617 = vpack.c.bf16 %v303, %v302
  %v618 = vpack.c.bf16 %v305, %v304
  %v619 = vpack.c.bf16 %v307, %v306
  %v620 = vpack.c.bf16 %v309, %v308
  %v621 = vpack.c.bf16 %v311, %v310
  %v622 = vpack.c.bf16 %v313, %v312
  %v623 = vpack.c.bf16 %v315, %v314
  %v624 = vpack.c.bf16 %v317, %v316
  %v625 = vpack.c.bf16 %v319, %v318
  %v626 = vpack.c.bf16 %v321, %v320
  %v627 = vpack.c.bf16 %v323, %v322
  %v628 = vpack.c.bf16 %v325, %v324
  %v629 = vpack.c.bf16 %v327, %v326
  %v630 = vpack.c.bf16 %v329, %v328
  %v631 = vpack.c.bf16 %v331, %v330
  %v632 = vpack.c.bf16 %v333, %v332
  %v633 = vpack.c.bf16 %v335, %v334
  %v634 = vpack.c.bf16 %v337, %v336
  %v635 = vpack.c.bf16 %v339, %v338
  %v636 = vpack.c.bf16 %v341, %v340
  %v637 = vpack.c.bf16 %v343, %v342
  %v638 = vpack.c.bf16 %v345, %v344
  %v639 = vpack.c.bf16 %v347, %v346
  %v640 = vld [vmem:[%s4] sm:$0x3]
  %v641 = vpack.c.bf16 %v545, %v544
  %v642 = vpack.c.bf16 %v547, %v546
  %v643 = vpack.c.bf16 %v549, %v548
  %v644 = vpack.c.bf16 %v551, %v550
  %v645 = vpack.c.bf16 %v553, %v552
  %v646 = vpack.c.bf16 %v555, %v554
  %v647 = vpack.c.bf16 %v557, %v556
  %v648 = vpack.c.bf16 %v559, %v558
  %v649 = vpack.c.bf16 %v561, %v560
  %v650 = vpack.c.bf16 %v563, %v562
  %v651 = vpack.c.bf16 %v565, %v564
  %v652 = vpack.c.bf16 %v567, %v566
  %v653 = vpack.c.bf16 %v569, %v568
  %v654 = vpack.c.bf16 %v571, %v570
  %v655 = vpack.c.bf16 %v573, %v572
  %v656 = vpack.c.bf16 %v575, %v574
  %v657 = vpack.c.bf16 %v577, %v576
  %v658 = vpack.c.bf16 %v579, %v578
  %v659 = vpack.c.bf16 %v581, %v580
  %v660 = vpack.c.bf16 %v583, %v582
  %v661 = vpack.c.bf16 %v585, %v584
  %v662 = vpack.c.bf16 %v587, %v586
  %v663 = vpack.c.bf16 %v589, %v588
  %v664 = vpack.c.bf16 %v591, %v590
  %v665 = vpack.c.bf16 %v593, %v592
  %v666 = vpack.c.bf16 %v595, %v594
  %v667 = vpack.c.bf16 %v597, %v596
  %v668 = vpack.c.bf16 %v599, %v598
  %v669 = vpack.c.bf16 %v601, %v600
  %v670 = vpack.c.bf16 %v603, %v602
  %v671 = vpack.c.bf16 %v605, %v604
  %v672 = vpack.c.bf16 %v607, %v606
  %v673 = vld [vmem:[%s5] sm:$0xf]
  %vm674 = vcmask 64512
  %v676 = vsel %vm674, %v641, 0
  %v679 = vsel %vm674, %v642, 0
  %v682 = vsel %vm674, %v643, 0
  %v685 = vsel %vm674, %v644, 0
  %v688 = vsel %vm674, %v645, 0
  %v691 = vsel %vm674, %v646, 0
  %v694 = vsel %vm674, %v647, 0
  %v697 = vsel %vm674, %v648, 0
  %v700 = vsel %vm674, %v649, 0
  %v703 = vsel %vm674, %v650, 0
  %v706 = vsel %vm674, %v651, 0
  %v709 = vsel %vm674, %v652, 0
  %v712 = vsel %vm674, %v653, 0
  %v715 = vsel %vm674, %v654, 0
  %v718 = vsel %vm674, %v655, 0
  %v721 = vsel %vm674, %v656, 0
  %v724 = vsel %vm674, %v657, 0
  %v727 = vsel %vm674, %v658, 0
  %v730 = vsel %vm674, %v659, 0
  %v733 = vsel %vm674, %v660, 0
  %v736 = vsel %vm674, %v661, 0
  %v739 = vsel %vm674, %v662, 0
  %v742 = vsel %vm674, %v663, 0
  %v745 = vsel %vm674, %v664, 0
  %v748 = vsel %vm674, %v665, 0
  %v751 = vsel %vm674, %v666, 0
  %v754 = vsel %vm674, %v667, 0
  %v757 = vsel %vm674, %v668, 0
  %v760 = vsel %vm674, %v669, 0
  %v763 = vsel %vm674, %v670, 0
  %v766 = vsel %vm674, %v671, 0
  %v769 = vsel %vm674, %v672, 0
  %vm771 = vcmask 1043456
  %v773 = vsel %vm771, %v673, 0
  %775 = vmatpush.bf16.msra.mxu0 0
  %776 = vmatpush.bf16.msra.mxu0 0
  %777 = vmatpush.bf16.msra.mxu0 0
  %778 = vmatpush.bf16.msra.mxu0 0
  %779 = vmatpush.bf16.msra.mxu0 0
  %780 = vmatpush.bf16.msra.mxu0 0
  %781 = vmatpush.bf16.msra.mxu0 0
  %782 = vmatpush.bf16.msra.mxu0 %v773
  %783 = vmatmul.bf16.gmra.mxu0 %v676
  %v784 = vpop.f32.mrf.mxu0
  %v785 = vadd.f32 0.0, %v784
  %v786 = vpop.f32.mrf.mxu0
  %v787 = vadd.f32 0.0, %v786
  %788 = vmatmul.bf16.gmra.mxu0 %v679
  %v789 = vpop.f32.mrf.mxu0
  %v790 = vadd.f32 0.0, %v789
  %v791 = vpop.f32.mrf.mxu0
  %v792 = vadd.f32 0.0, %v791
  %793 = vmatmul.bf16.gmra.mxu0 %v682
  %v794 = vpop.f32.mrf.mxu0
  %v795 = vadd.f32 0.0, %v794
  %v796 = vpop.f32.mrf.mxu0
  %v797 = vadd.f32 0.0, %v796
  %798 = vmatmul.bf16.gmra.mxu0 %v685
  %v799 = vpop.f32.mrf.mxu0
  %v800 = vadd.f32 0.0, %v799
  %v801 = vpop.f32.mrf.mxu0
  %v802 = vadd.f32 0.0, %v801
  %803 = vmatmul.bf16.gmra.mxu0 %v688
  %v804 = vpop.f32.mrf.mxu0
  %v805 = vadd.f32 0.0, %v804
  %v806 = vpop.f32.mrf.mxu0
  %v807 = vadd.f32 0.0, %v806
  %808 = vmatmul.bf16.gmra.mxu0 %v691
  %v809 = vpop.f32.mrf.mxu0
  %v810 = vadd.f32 0.0, %v809
  %v811 = vpop.f32.mrf.mxu0
  %v812 = vadd.f32 0.0, %v811
  %813 = vmatmul.bf16.gmra.mxu0 %v694
  %v814 = vpop.f32.mrf.mxu0
  %v815 = vadd.f32 0.0, %v814
  %v816 = vpop.f32.mrf.mxu0
  %v817 = vadd.f32 0.0, %v816
  %818 = vmatmul.bf16.gmra.mxu0 %v697
  %v819 = vpop.f32.mrf.mxu0
  %v820 = vadd.f32 0.0, %v819
  %v821 = vpop.f32.mrf.mxu0
  %v822 = vadd.f32 0.0, %v821
  %823 = vmatmul.bf16.gmra.mxu0 %v700
  %v824 = vpop.f32.mrf.mxu0
  %v825 = vadd.f32 0.0, %v824
  %v826 = vpop.f32.mrf.mxu0
  %v827 = vadd.f32 0.0, %v826
  %828 = vmatmul.bf16.gmra.mxu0 %v703
  %v829 = vpop.f32.mrf.mxu0
  %v830 = vadd.f32 0.0, %v829
  %v831 = vpop.f32.mrf.mxu0
  %v832 = vadd.f32 0.0, %v831
  %833 = vmatmul.bf16.gmra.mxu0 %v706
  %v834 = vpop.f32.mrf.mxu0
  %v835 = vadd.f32 0.0, %v834
  %v836 = vpop.f32.mrf.mxu0
  %v837 = vadd.f32 0.0, %v836
  %838 = vmatmul.bf16.gmra.mxu0 %v709
  %v839 = vpop.f32.mrf.mxu0
  %v840 = vadd.f32 0.0, %v839
  %v841 = vpop.f32.mrf.mxu0
  %v842 = vadd.f32 0.0, %v841
  %843 = vmatmul.bf16.gmra.mxu0 %v712
  %v844 = vpop.f32.mrf.mxu0
  %v845 = vadd.f32 0.0, %v844
  %v846 = vpop.f32.mrf.mxu0
  %v847 = vadd.f32 0.0, %v846
  %848 = vmatmul.bf16.gmra.mxu0 %v715
  %v849 = vpop.f32.mrf.mxu0
  %v850 = vadd.f32 0.0, %v849
  %v851 = vpop.f32.mrf.mxu0
  %v852 = vadd.f32 0.0, %v851
  %853 = vmatmul.bf16.gmra.mxu0 %v718
  %v854 = vpop.f32.mrf.mxu0
  %v855 = vadd.f32 0.0, %v854
  %v856 = vpop.f32.mrf.mxu0
  %v857 = vadd.f32 0.0, %v856
  %858 = vmatmul.bf16.gmra.mxu0 %v721
  %v859 = vpop.f32.mrf.mxu0
  %v860 = vadd.f32 0.0, %v859
  %v861 = vpop.f32.mrf.mxu0
  %v862 = vadd.f32 0.0, %v861
  %863 = vmatmul.bf16.gmra.mxu0 %v724
  %v864 = vpop.f32.mrf.mxu0
  %v865 = vadd.f32 0.0, %v864
  %v866 = vpop.f32.mrf.mxu0
  %v867 = vadd.f32 0.0, %v866
  %868 = vmatmul.bf16.gmra.mxu0 %v727
  %v869 = vpop.f32.mrf.mxu0
  %v870 = vadd.f32 0.0, %v869
  %v871 = vpop.f32.mrf.mxu0
  %v872 = vadd.f32 0.0, %v871
  %873 = vmatmul.bf16.gmra.mxu0 %v730
  %v874 = vpop.f32.mrf.mxu0
  %v875 = vadd.f32 0.0, %v874
  %v876 = vpop.f32.mrf.mxu0
  %v877 = vadd.f32 0.0, %v876
  %878 = vmatmul.bf16.gmra.mxu0 %v733
  %v879 = vpop.f32.mrf.mxu0
  %v880 = vadd.f32 0.0, %v879
  %v881 = vpop.f32.mrf.mxu0
  %v882 = vadd.f32 0.0, %v881
  %883 = vmatmul.bf16.gmra.mxu0 %v736
  %v884 = vpop.f32.mrf.mxu0
  %v885 = vadd.f32 0.0, %v884
  %v886 = vpop.f32.mrf.mxu0
  %v887 = vadd.f32 0.0, %v886
  %888 = vmatmul.bf16.gmra.mxu0 %v739
  %v889 = vpop.f32.mrf.mxu0
  %v890 = vadd.f32 0.0, %v889
  %v891 = vpop.f32.mrf.mxu0
  %v892 = vadd.f32 0.0, %v891
  %893 = vmatmul.bf16.gmra.mxu0 %v742
  %v894 = vpop.f32.mrf.mxu0
  %v895 = vadd.f32 0.0, %v894
  %v896 = vpop.f32.mrf.mxu0
  %v897 = vadd.f32 0.0, %v896
  %898 = vmatmul.bf16.gmra.mxu0 %v745
  %v899 = vpop.f32.mrf.mxu0
  %v900 = vadd.f32 0.0, %v899
  %v901 = vpop.f32.mrf.mxu0
  %v902 = vadd.f32 0.0, %v901
  %903 = vmatmul.bf16.gmra.mxu0 %v748
  %v904 = vpop.f32.mrf.mxu0
  %v905 = vadd.f32 0.0, %v904
  %v906 = vpop.f32.mrf.mxu0
  %v907 = vadd.f32 0.0, %v906
  %908 = vmatmul.bf16.gmra.mxu0 %v751
  %v909 = vpop.f32.mrf.mxu0
  %v910 = vadd.f32 0.0, %v909
  %v911 = vpop.f32.mrf.mxu0
  %v912 = vadd.f32 0.0, %v911
  %913 = vmatmul.bf16.gmra.mxu0 %v754
  %v914 = vpop.f32.mrf.mxu0
  %v915 = vadd.f32 0.0, %v914
  %v916 = vpop.f32.mrf.mxu0
  %v917 = vadd.f32 0.0, %v916
  %918 = vmatmul.bf16.gmra.mxu0 %v757
  %v919 = vpop.f32.mrf.mxu0
  %v920 = vadd.f32 0.0, %v919
  %v921 = vpop.f32.mrf.mxu0
  %v922 = vadd.f32 0.0, %v921
  %923 = vmatmul.bf16.gmra.mxu0 %v760
  %v924 = vpop.f32.mrf.mxu0
  %v925 = vadd.f32 0.0, %v924
  %v926 = vpop.f32.mrf.mxu0
  %v927 = vadd.f32 0.0, %v926
  %928 = vmatmul.bf16.gmra.mxu0 %v763
  %v929 = vpop.f32.mrf.mxu0
  %v930 = vadd.f32 0.0, %v929
  %v931 = vpop.f32.mrf.mxu0
  %v932 = vadd.f32 0.0, %v931
  %933 = vmatmul.bf16.gmra.mxu0 %v766
  %v934 = vpop.f32.mrf.mxu0
  %v935 = vadd.f32 0.0, %v934
  %v936 = vpop.f32.mrf.mxu0
  %v937 = vadd.f32 0.0, %v936
  %938 = vmatmul.bf16.gmra.mxu0 %v769
  %v939 = vpop.f32.mrf.mxu0
  %v940 = vadd.f32 0.0, %v939
  %v941 = vpop.f32.mrf.mxu0
  %v942 = vadd.f32 0.0, %v941
  %943 = vdwg.mxu0
  %vm944 = vcmask 31744
  %v946 = vsel %vm944, %v608, 0
  %v949 = vsel %vm944, %v609, 0
  %v952 = vsel %vm944, %v610, 0
  %v955 = vsel %vm944, %v611, 0
  %v958 = vsel %vm944, %v612, 0
  %v961 = vsel %vm944, %v613, 0
  %v964 = vsel %vm944, %v614, 0
  %v967 = vsel %vm944, %v615, 0
  %v970 = vsel %vm944, %v616, 0
  %v973 = vsel %vm944, %v617, 0
  %v976 = vsel %vm944, %v618, 0
  %v979 = vsel %vm944, %v619, 0
  %v982 = vsel %vm944, %v620, 0
  %v985 = vsel %vm944, %v621, 0
  %v988 = vsel %vm944, %v622, 0
  %v991 = vsel %vm944, %v623, 0
  %v994 = vsel %vm944, %v624, 0
  %v997 = vsel %vm944, %v625, 0
  %v1000 = vsel %vm944, %v626, 0
  %v1003 = vsel %vm944, %v627, 0
  %v1006 = vsel %vm944, %v628, 0
  %v1009 = vsel %vm944, %v629, 0
  %v1012 = vsel %vm944, %v630, 0
  %v1015 = vsel %vm944, %v631, 0
  %v1018 = vsel %vm944, %v632, 0
  %v1021 = vsel %vm944, %v633, 0
  %v1024 = vsel %vm944, %v634, 0
  %v1027 = vsel %vm944, %v635, 0
  %v1030 = vsel %vm944, %v636, 0
  %v1033 = vsel %vm944, %v637, 0
  %v1036 = vsel %vm944, %v638, 0
  %v1039 = vsel %vm944, %v639, 0
  %vm1041 = vcmask 1041408
  %v1043 = vsel %vm1041, %v640, 0
  %1045 = vmatpush.bf16.msra.mxu0 0
  %1046 = vmatpush.bf16.msra.mxu0 0
  %1047 = vmatpush.bf16.msra.mxu0 0
  %1048 = vmatpush.bf16.msra.mxu0 0
  %1049 = vmatpush.bf16.msra.mxu0 0
  %1050 = vmatpush.bf16.msra.mxu0 0
  %1051 = vmatpush.bf16.msra.mxu0 0
  %1052 = vmatpush.bf16.msra.mxu0 %v1043
  %1053 = vmatmul.bf16.gmra.mxu0 %v946
  %v1054 = vpop.f32.mrf.mxu0
  %v1055 = vadd.f32 %v785, %v1054
  %v1056 = vpop.f32.mrf.mxu0
  %v1057 = vadd.f32 %v787, %v1056
  %1058 = vmatmul.bf16.gmra.mxu0 %v949
  %v1059 = vpop.f32.mrf.mxu0
  %v1060 = vadd.f32 %v790, %v1059
  %v1061 = vpop.f32.mrf.mxu0
  %v1062 = vadd.f32 %v792, %v1061
  %1063 = vmatmul.bf16.gmra.mxu0 %v952
  %v1064 = vpop.f32.mrf.mxu0
  %v1065 = vadd.f32 %v795, %v1064
  %v1066 = vpop.f32.mrf.mxu0
  %v1067 = vadd.f32 %v797, %v1066
  %1068 = vmatmul.bf16.gmra.mxu0 %v955
  %v1069 = vpop.f32.mrf.mxu0
  %v1070 = vadd.f32 %v800, %v1069
  %v1071 = vpop.f32.mrf.mxu0
  %v1072 = vadd.f32 %v802, %v1071
  %1073 = vmatmul.bf16.gmra.mxu0 %v958
  %v1074 = vpop.f32.mrf.mxu0
  %v1075 = vadd.f32 %v805, %v1074
  %v1076 = vpop.f32.mrf.mxu0
  %v1077 = vadd.f32 %v807, %v1076
  %1078 = vmatmul.bf16.gmra.mxu0 %v961
  %v1079 = vpop.f32.mrf.mxu0
  %v1080 = vadd.f32 %v810, %v1079
  %v1081 = vpop.f32.mrf.mxu0
  %v1082 = vadd.f32 %v812, %v1081
  %1083 = vmatmul.bf16.gmra.mxu0 %v964
  %v1084 = vpop.f32.mrf.mxu0
  %v1085 = vadd.f32 %v815, %v1084
  %v1086 = vpop.f32.mrf.mxu0
  %v1087 = vadd.f32 %v817, %v1086
  %1088 = vmatmul.bf16.gmra.mxu0 %v967
  %v1089 = vpop.f32.mrf.mxu0
  %v1090 = vadd.f32 %v820, %v1089
  %v1091 = vpop.f32.mrf.mxu0
  %v1092 = vadd.f32 %v822, %v1091
  %1093 = vmatmul.bf16.gmra.mxu0 %v970
  %v1094 = vpop.f32.mrf.mxu0
  %v1095 = vadd.f32 %v825, %v1094
  %v1096 = vpop.f32.mrf.mxu0
  %v1097 = vadd.f32 %v827, %v1096
  %1098 = vmatmul.bf16.gmra.mxu0 %v973
  %v1099 = vpop.f32.mrf.mxu0
  %v1100 = vadd.f32 %v830, %v1099
  %v1101 = vpop.f32.mrf.mxu0
  %v1102 = vadd.f32 %v832, %v1101
  %1103 = vmatmul.bf16.gmra.mxu0 %v976
  %v1104 = vpop.f32.mrf.mxu0
  %v1105 = vadd.f32 %v835, %v1104
  %v1106 = vpop.f32.mrf.mxu0
  %v1107 = vadd.f32 %v837, %v1106
  %1108 = vmatmul.bf16.gmra.mxu0 %v979
  %v1109 = vpop.f32.mrf.mxu0
  %v1110 = vadd.f32 %v840, %v1109
  %v1111 = vpop.f32.mrf.mxu0
  %v1112 = vadd.f32 %v842, %v1111
  %1113 = vmatmul.bf16.gmra.mxu0 %v982
  %v1114 = vpop.f32.mrf.mxu0
  %v1115 = vadd.f32 %v845, %v1114
  %v1116 = vpop.f32.mrf.mxu0
  %v1117 = vadd.f32 %v847, %v1116
  %1118 = vmatmul.bf16.gmra.mxu0 %v985
  %v1119 = vpop.f32.mrf.mxu0
  %v1120 = vadd.f32 %v850, %v1119
  %v1121 = vpop.f32.mrf.mxu0
  %v1122 = vadd.f32 %v852, %v1121
  %1123 = vmatmul.bf16.gmra.mxu0 %v988
  %v1124 = vpop.f32.mrf.mxu0
  %v1125 = vadd.f32 %v855, %v1124
  %v1126 = vpop.f32.mrf.mxu0
  %v1127 = vadd.f32 %v857, %v1126
  %1128 = vmatmul.bf16.gmra.mxu0 %v991
  %v1129 = vpop.f32.mrf.mxu0
  %v1130 = vadd.f32 %v860, %v1129
  %v1131 = vpop.f32.mrf.mxu0
  %v1132 = vadd.f32 %v862, %v1131
  %1133 = vmatmul.bf16.gmra.mxu0 %v994
  %v1134 = vpop.f32.mrf.mxu0
  %v1135 = vadd.f32 %v865, %v1134
  %v1136 = vpop.f32.mrf.mxu0
  %v1137 = vadd.f32 %v867, %v1136
  %1138 = vmatmul.bf16.gmra.mxu0 %v997
  %v1139 = vpop.f32.mrf.mxu0
  %v1140 = vadd.f32 %v870, %v1139
  %v1141 = vpop.f32.mrf.mxu0
  %v1142 = vadd.f32 %v872, %v1141
  %1143 = vmatmul.bf16.gmra.mxu0 %v1000
  %v1144 = vpop.f32.mrf.mxu0
  %v1145 = vadd.f32 %v875, %v1144
  %v1146 = vpop.f32.mrf.mxu0
  %v1147 = vadd.f32 %v877, %v1146
  %1148 = vmatmul.bf16.gmra.mxu0 %v1003
  %v1149 = vpop.f32.mrf.mxu0
  %v1150 = vadd.f32 %v880, %v1149
  %v1151 = vpop.f32.mrf.mxu0
  %v1152 = vadd.f32 %v882, %v1151
  %1153 = vmatmul.bf16.gmra.mxu0 %v1006
  %v1154 = vpop.f32.mrf.mxu0
  %v1155 = vadd.f32 %v885, %v1154
  %v1156 = vpop.f32.mrf.mxu0
  %v1157 = vadd.f32 %v887, %v1156
  %1158 = vmatmul.bf16.gmra.mxu0 %v1009
  %v1159 = vpop.f32.mrf.mxu0
  %v1160 = vadd.f32 %v890, %v1159
  %v1161 = vpop.f32.mrf.mxu0
  %v1162 = vadd.f32 %v892, %v1161
  %1163 = vmatmul.bf16.gmra.mxu0 %v1012
  %v1164 = vpop.f32.mrf.mxu0
  %v1165 = vadd.f32 %v895, %v1164
  %v1166 = vpop.f32.mrf.mxu0
  %v1167 = vadd.f32 %v897, %v1166
  %1168 = vmatmul.bf16.gmra.mxu0 %v1015
  %v1169 = vpop.f32.mrf.mxu0
  %v1170 = vadd.f32 %v900, %v1169
  %v1171 = vpop.f32.mrf.mxu0
  %v1172 = vadd.f32 %v902, %v1171
  %1173 = vmatmul.bf16.gmra.mxu0 %v1018
  %v1174 = vpop.f32.mrf.mxu0
  %v1175 = vadd.f32 %v905, %v1174
  %v1176 = vpop.f32.mrf.mxu0
  %v1177 = vadd.f32 %v907, %v1176
  %1178 = vmatmul.bf16.gmra.mxu0 %v1021
  %v1179 = vpop.f32.mrf.mxu0
  %v1180 = vadd.f32 %v910, %v1179
  %v1181 = vpop.f32.mrf.mxu0
  %v1182 = vadd.f32 %v912, %v1181
  %1183 = vmatmul.bf16.gmra.mxu0 %v1024
  %v1184 = vpop.f32.mrf.mxu0
  %v1185 = vadd.f32 %v915, %v1184
  %v1186 = vpop.f32.mrf.mxu0
  %v1187 = vadd.f32 %v917, %v1186
  %1188 = vmatmul.bf16.gmra.mxu0 %v1027
  %v1189 = vpop.f32.mrf.mxu0
  %v1190 = vadd.f32 %v920, %v1189
  %v1191 = vpop.f32.mrf.mxu0
  %v1192 = vadd.f32 %v922, %v1191
  %1193 = vmatmul.bf16.gmra.mxu0 %v1030
  %v1194 = vpop.f32.mrf.mxu0
  %v1195 = vadd.f32 %v925, %v1194
  %v1196 = vpop.f32.mrf.mxu0
  %v1197 = vadd.f32 %v927, %v1196
  %1198 = vmatmul.bf16.gmra.mxu0 %v1033
  %v1199 = vpop.f32.mrf.mxu0
  %v1200 = vadd.f32 %v930, %v1199
  %v1201 = vpop.f32.mrf.mxu0
  %v1202 = vadd.f32 %v932, %v1201
  %1203 = vmatmul.bf16.gmra.mxu0 %v1036
  %v1204 = vpop.f32.mrf.mxu0
  %v1205 = vadd.f32 %v935, %v1204
  %v1206 = vpop.f32.mrf.mxu0
  %v1207 = vadd.f32 %v937, %v1206
  %1208 = vmatmul.bf16.gmra.mxu0 %v1039
  %v1209 = vpop.f32.mrf.mxu0
  %v1210 = vadd.f32 %v940, %v1209
  %v1211 = vpop.f32.mrf.mxu0
  %v1212 = vadd.f32 %v942, %v1211
  %1213 = vdwg.mxu0
  %vm1214 = vcmask 130048
  %1215 = vst.msk [vmem:[%s6] sm:$0xff] %vm1214, %v1055
  %1216 = vst.msk [vmem:[%s6 + $0x8] sm:$0xff] %vm1214, %v1057
  %1217 = vst.msk [vmem:[%s6 + $0x10] sm:$0xff] %vm1214, %v1060
  %1218 = vst.msk [vmem:[%s6 + $0x18] sm:$0xff] %vm1214, %v1062
  %1219 = vst.msk [vmem:[%s6 + $0x20] sm:$0xff] %vm1214, %v1065
  %1220 = vst.msk [vmem:[%s6 + $0x28] sm:$0xff] %vm1214, %v1067
  %1221 = vst.msk [vmem:[%s6 + $0x30] sm:$0xff] %vm1214, %v1070
  %1222 = vst.msk [vmem:[%s6 + $0x38] sm:$0xff] %vm1214, %v1072
  %1223 = vst.msk [vmem:[%s6 + $0x40] sm:$0xff] %vm1214, %v1075
  %1224 = vst.msk [vmem:[%s6 + $0x48] sm:$0xff] %vm1214, %v1077
  %1225 = vst.msk [vmem:[%s6 + $0x50] sm:$0xff] %vm1214, %v1080
  %1226 = vst.msk [vmem:[%s6 + $0x58] sm:$0xff] %vm1214, %v1082
  %1227 = vst.msk [vmem:[%s6 + $0x60] sm:$0xff] %vm1214, %v1085
  %1228 = vst.msk [vmem:[%s6 + $0x68] sm:$0xff] %vm1214, %v1087
  %1229 = vst.msk [vmem:[%s6 + $0x70] sm:$0xff] %vm1214, %v1090
  %1230 = vst.msk [vmem:[%s6 + $0x78] sm:$0xff] %vm1214, %v1092
  %1231 = vst.msk [vmem:[%s6 + $0x80] sm:$0xff] %vm1214, %v1095
  %1232 = vst.msk [vmem:[%s6 + $0x88] sm:$0xff] %vm1214, %v1097
  %1233 = vst.msk [vmem:[%s6 + $0x90] sm:$0xff] %vm1214, %v1100
  %1234 = vst.msk [vmem:[%s6 + $0x98] sm:$0xff] %vm1214, %v1102
  %1235 = vst.msk [vmem:[%s6 + $0xa0] sm:$0xff] %vm1214, %v1105
  %1236 = vst.msk [vmem:[%s6 + $0xa8] sm:$0xff] %vm1214, %v1107
  %1237 = vst.msk [vmem:[%s6 + $0xb0] sm:$0xff] %vm1214, %v1110
  %1238 = vst.msk [vmem:[%s6 + $0xb8] sm:$0xff] %vm1214, %v1112
  %1239 = vst.msk [vmem:[%s6 + $0xc0] sm:$0xff] %vm1214, %v1115
  %1240 = vst.msk [vmem:[%s6 + $0xc8] sm:$0xff] %vm1214, %v1117
  %1241 = vst.msk [vmem:[%s6 + $0xd0] sm:$0xff] %vm1214, %v1120
  %1242 = vst.msk [vmem:[%s6 + $0xd8] sm:$0xff] %vm1214, %v1122
  %1243 = vst.msk [vmem:[%s6 + $0xe0] sm:$0xff] %vm1214, %v1125
  %1244 = vst.msk [vmem:[%s6 + $0xe8] sm:$0xff] %vm1214, %v1127
  %1245 = vst.msk [vmem:[%s6 + $0xf0] sm:$0xff] %vm1214, %v1130
  %1246 = vst.msk [vmem:[%s6 + $0xf8] sm:$0xff] %vm1214, %v1132
  %1247 = vst.msk [vmem:[%s6 + $0x100] sm:$0xff] %vm1214, %v1135
  %1248 = vst.msk [vmem:[%s6 + $0x108] sm:$0xff] %vm1214, %v1137
  %1249 = vst.msk [vmem:[%s6 + $0x110] sm:$0xff] %vm1214, %v1140
  %1250 = vst.msk [vmem:[%s6 + $0x118] sm:$0xff] %vm1214, %v1142
  %1251 = vst.msk [vmem:[%s6 + $0x120] sm:$0xff] %vm1214, %v1145
  %1252 = vst.msk [vmem:[%s6 + $0x128] sm:$0xff] %vm1214, %v1147
  %1253 = vst.msk [vmem:[%s6 + $0x130] sm:$0xff] %vm1214, %v1150
  %1254 = vst.msk [vmem:[%s6 + $0x138] sm:$0xff] %vm1214, %v1152
  %1255 = vst.msk [vmem:[%s6 + $0x140] sm:$0xff] %vm1214, %v1155
  %1256 = vst.msk [vmem:[%s6 + $0x148] sm:$0xff] %vm1214, %v1157
  %1257 = vst.msk [vmem:[%s6 + $0x150] sm:$0xff] %vm1214, %v1160
  %1258 = vst.msk [vmem:[%s6 + $0x158] sm:$0xff] %vm1214, %v1162
  %1259 = vst.msk [vmem:[%s6 + $0x160] sm:$0xff] %vm1214, %v1165
  %1260 = vst.msk [vmem:[%s6 + $0x168] sm:$0xff] %vm1214, %v1167
  %1261 = vst.msk [vmem:[%s6 + $0x170] sm:$0xff] %vm1214, %v1170
  %1262 = vst.msk [vmem:[%s6 + $0x178] sm:$0xff] %vm1214, %v1172
  %1263 = vst.msk [vmem:[%s6 + $0x180] sm:$0xff] %vm1214, %v1175
  %1264 = vst.msk [vmem:[%s6 + $0x188] sm:$0xff] %vm1214, %v1177
  %1265 = vst.msk [vmem:[%s6 + $0x190] sm:$0xff] %vm1214, %v1180
  %1266 = vst.msk [vmem:[%s6 + $0x198] sm:$0xff] %vm1214, %v1182
  %1267 = vst.msk [vmem:[%s6 + $0x1a0] sm:$0xff] %vm1214, %v1185
  %1268 = vst.msk [vmem:[%s6 + $0x1a8] sm:$0xff] %vm1214, %v1187
  %1269 = vst.msk [vmem:[%s6 + $0x1b0] sm:$0xff] %vm1214, %v1190
  %1270 = vst.msk [vmem:[%s6 + $0x1b8] sm:$0xff] %vm1214, %v1192
  %1271 = vst.msk [vmem:[%s6 + $0x1c0] sm:$0xff] %vm1214, %v1195
  %1272 = vst.msk [vmem:[%s6 + $0x1c8] sm:$0xff] %vm1214, %v1197
  %1273 = vst.msk [vmem:[%s6 + $0x1d0] sm:$0xff] %vm1214, %v1200
  %1274 = vst.msk [vmem:[%s6 + $0x1d8] sm:$0xff] %vm1214, %v1202
  %1275 = vst.msk [vmem:[%s6 + $0x1e0] sm:$0xff] %vm1214, %v1205
  %1276 = vst.msk [vmem:[%s6 + $0x1e8] sm:$0xff] %vm1214, %v1207
  %1277 = vst.msk [vmem:[%s6 + $0x1f0] sm:$0xff] %vm1214, %v1210
  %1278 = vst.msk [vmem:[%s6 + $0x1f8] sm:$0xff] %vm1214, %v1212
  // Predicated region
  $region26: #{residual_block_forward.7} parent=0 // pred_check
    _
  $region27: #{residual_block_forward.7} parent=0 // pred_check_branch
    %1280 = sbr.rel (0) target = $region29
  $region28: #{residual_block_forward.7} parent=0 // pred_region
    _
  $region29: #{residual_block_forward.7} parent=0 // pred_fallthru
    _
  // Predicated region
  $region30: #{residual_block_forward.7} parent=0 // pred_check
    _
  $region31: #{residual_block_forward.7} parent=0 // pred_check_branch
    %1282 = sbr.rel (0) target = $region33
  $region32: #{residual_block_forward.7} parent=0 // pred_region
    _
  $region33: #{residual_block_forward.7} parent=0 // pred_fallthru
    _

// kernel: residual_block_forward.6
$region0: #{residual_block_forward.6}
  #allocation0 [shape = 'u32[]', space=smem, size = 0x4, offset = 0x4, fixed_abs, tag = 'smem constant byte address 0x4 - core index']
  #allocation1 [shape = 'u32[72,128]{1,0:T(1,128)}', space=vmem, size = 0x9000, scoped, tag = 'internal scratch']
  #allocation2 [shape = 'bf16[18,18,4]{2,1,0:T(8,128)(2,1)}', space=vmem, size = 0x1b000, scoped, tag = 'scratch operand']
  %s0 = inlined_call_operand.vmem [shape: bf16[2,16,16,4], index: 0, kind: input, shape index: {}]
  %s1 = inlined_call_operand.vmem [shape: f32[2,4], index: 1, kind: input, shape index: {}]
  %s2 = inlined_call_operand.vmem [shape: bf16[9,4,4], index: 2, kind: input, shape index: {}]
  %s3 = inlined_call_operand.vmem [shape: bf16[2,256,4], index: 3, kind: output, shape index: {0}]
  %s4 = inlined_call_operand.vmem [shape: f32[2,2,4], index: 4, kind: output, shape index: {1}]
  %5 = xla_tuple %s3, %s4
  %s6 = sld [smem:[#allocation0]]
  $region57: #{residual_block_forward.6} parent=0
    _
  %s8 = ssub.s32 1, %s6
  %s9 = scalar_select 0, %s8, %s6
  loop: start=0, step=1, limit=4
  $region2: #{residual_block_forward.6} parent=0 // loop_pre_header
    _
  $region3: #{residual_block_forward.6} parent=0 // loop_header
    %s11 = sphi 0, %s15
    %p12 = scmp.ge.s32.totalorder %s11, 4
    %s21 = sphi 0, %s23
    %s24 = sphi 0, %s21
    %s25 = sphi 0, %s24
    %s41 = sphi 0, %s25
    %s45 = sphi 0, %s45
    %s47 = sphi 0, %s45
    %s48 = sphi 0, %s47
    %s62 = sphi 0, %s48
    %s66 = sphi 0, %s66
    %s68 = sphi 0, %s66
    %s69 = sphi 0, %s68
    %s83 = sphi 0, %s69
    %s89 = sphi 0, %s91
    %s92 = sphi 0, %s89
    %s93 = sphi 0, %s92
    %s109 = sphi 0, %s93
    %s115 = sphi 0, %s117
    %s118 = sphi 0, %s115
    %s119 = sphi 0, %s118
    %s135 = sphi 0, %s119
  $region4: #{residual_block_forward.6} parent=0 // loop_header_branch
    %14 = sbr.rel (%p12) target = $region8
  $region5: #{residual_block_forward.6} parent=0 // loop_body
    %s16 = ssub.s32 %s11, 1
    %s17 = ssub.s32 %s11, 2
    %s18 = sadd.s32 %s11, 1
    %s19 = ssub.s32 %s11, %s18
    %p20 = scmp.eq.s32.totalorder %s19, 0
    %s22 = sadd.s32 %s21, 1
    %s23 = scalar_select %p20, %s21, %s22
    %p26 = pneg %p20
    %p27 = scmp.eq.s32.totalorder %s11, 1
    %p28 = por %p26, %p27
    %p29 = scmp.ne.s32.totalorder %s21, %s24
    %p30 = scmp.eq.s32.totalorder %s11, 0
    %p31 = por %p29, %p30
    %p32 = scmp.ne.s32.totalorder %s21, %s24
    %p33 = scmp.eq.s32.totalorder %s16, 1
    %p34 = por %p32, %p33
    %p35 = scmp.ne.s32.totalorder %s24, %s25
    %p36 = scmp.eq.s32.totalorder %s16, 0
    %p37 = por %p35, %p36
    %p38 = scmp.ne.s32.totalorder %s24, %s25
    %p39 = scmp.eq.s32.totalorder %s17, 1
    %p40 = por %p38, %p39
    %p42 = scmp.ne.s32.totalorder %s25, %s41
    %p43 = scmp.eq.s32.totalorder %s17, 0
    %p44 = por %p42, %p43
    %s46 = sadd.s32 %s45, 1
    %p49 = scmp.eq.s32.totalorder %s11, 1
    %p50 = scmp.ne.s32.totalorder %s45, %s47
    %p51 = scmp.eq.s32.totalorder %s11, 0
    %p52 = por %p50, %p51
    %p53 = scmp.ne.s32.totalorder %s45, %s47
    %p54 = scmp.eq.s32.totalorder %s16, 1
    %p55 = por %p53, %p54
    %p56 = scmp.ne.s32.totalorder %s47, %s48
    %p57 = scmp.eq.s32.totalorder %s16, 0
    %p58 = por %p56, %p57
    %p59 = scmp.ne.s32.totalorder %s47, %s48
    %p60 = scmp.eq.s32.totalorder %s17, 1
    %p61 = por %p59, %p60
    %p63 = scmp.ne.s32.totalorder %s48, %s62
    %p64 = scmp.eq.s32.totalorder %s17, 0
    %p65 = por %p63, %p64
    %s67 = sadd.s32 %s66, 1
    %p70 = scmp.eq.s32.totalorder %s11, 1
    %p71 = scmp.ne.s32.totalorder %s66, %s68
    %p72 = scmp.eq.s32.totalorder %s11, 0
    %p73 = por %p71, %p72
    %p74 = scmp.ne.s32.totalorder %s66, %s68
    %p75 = scmp.eq.s32.totalorder %s16, 1
    %p76 = por %p74, %p75
    %p77 = scmp.ne.s32.totalorder %s68, %s69
    %p78 = scmp.eq.s32.totalorder %s16, 0
    %p79 = por %p77, %p78
    %p80 = scmp.ne.s32.totalorder %s68, %s69
    %p81 = scmp.eq.s32.totalorder %s17, 1
    %p82 = por %p80, %p81
    %p84 = scmp.ne.s32.totalorder %s69, %s83
    %p85 = scmp.eq.s32.totalorder %s17, 0
    %p86 = por %p84, %p85
    %s87 = ssub.s32 %s11, %s18
    %p88 = scmp.eq.s32.totalorder %s87, 0
    %s90 = sadd.s32 %s89, 1
    %s91 = scalar_select %p88, %s89, %s90
    %p94 = pneg %p88
    %p95 = scmp.eq.s32.totalorder %s11, 1
    %p96 = por %p94, %p95
    %p97 = scmp.ne.s32.totalorder %s89, %s92
    %p98 = scmp.eq.s32.totalorder %s11, 0
    %p99 = por %p97, %p98
    %p100 = scmp.ne.s32.totalorder %s89, %s92
    %p101 = scmp.eq.s32.totalorder %s16, 1
    %p102 = por %p100, %p101
    %p103 = scmp.ne.s32.totalorder %s92, %s93
    %p104 = scmp.eq.s32.totalorder %s16, 0
    %p105 = por %p103, %p104
    %p106 = scmp.ne.s32.totalorder %s92, %s93
    %p107 = scmp.eq.s32.totalorder %s17, 1
    %p108 = por %p106, %p107
    %p110 = scmp.ne.s32.totalorder %s93, %s109
    %p111 = scmp.eq.s32.totalorder %s17, 0
    %p112 = por %p110, %p111
    %s113 = ssub.s32 %s11, %s18
    %p114 = scmp.eq.s32.totalorder %s113, 0
    %s116 = sadd.s32 %s115, 1
    %s117 = scalar_select %p114, %s115, %s116
    %p120 = pneg %p114
    %p121 = scmp.eq.s32.totalorder %s11, 1
    %p122 = por %p120, %p121
    %p123 = scmp.ne.s32.totalorder %s115, %s118
    %p124 = scmp.eq.s32.totalorder %s11, 0
    %p125 = por %p123, %p124
    %p126 = scmp.ne.s32.totalorder %s115, %s118
    %p127 = scmp.eq.s32.totalorder %s16, 1
    %p128 = por %p126, %p127
    %p129 = scmp.ne.s32.totalorder %s118, %s119
    %p130 = scmp.eq.s32.totalorder %s16, 0
    %p131 = por %p129, %p130
    %p132 = scmp.ne.s32.totalorder %s118, %s119
    %p133 = scmp.eq.s32.totalorder %s17, 1
    %p134 = por %p132, %p133
    %p136 = scmp.ne.s32.totalorder %s119, %s135
    %p137 = scmp.eq.s32.totalorder %s17, 0
    %p138 = por %p136, %p137
    %p139 = scmp.le.s32.totalorder 1, %s11
    %p140 = scmp.lt.s32.totalorder %s11, 3
    %p141 = pnand %p139, %p140
    %p142 = pneg %p141
    // Predicated region
    $region9: #{residual_block_forward.6} parent=5 // pred_check
      _
    $region10: #{residual_block_forward.6} parent=5 // pred_check_branch
      %144 = sbr.rel (%p141) target = $region12
    $region11: #{residual_block_forward.6} parent=5 // pred_region
      %s145 = ssub.s32 %s11, 1
      // Predicated region
      $region13: #{residual_block_forward.6} parent=11 // pred_check
        %p146 = pneg %p58
      $region14: #{residual_block_forward.6} parent=11 // pred_check_branch
        %148 = sbr.rel (%p146) target = $region16
      $region15: #{residual_block_forward.6} parent=11 // pred_region
        _
      $region16: #{residual_block_forward.6} parent=11 // pred_fallthru
        _
      // Predicated region
      $region17: #{residual_block_forward.6} parent=11 // pred_check
        %p149 = pneg %p79
      $region18: #{residual_block_forward.6} parent=11 // pred_check_branch
        %151 = sbr.rel (%p149) target = $region20
      $region19: #{residual_block_forward.6} parent=11 // pred_region
        _
      $region20: #{residual_block_forward.6} parent=11 // pred_fallthru
        _
    $region12: #{residual_block_forward.6} parent=5 // pred_fallthru
      _
    %p152 = scmp.lt.s32.totalorder %s11, 2
    // Predicated region
    $region21: #{residual_block_forward.6} parent=5 // pred_check
      %p153 = pneg %p152
    $region22: #{residual_block_forward.6} parent=5 // pred_check_branch
      %155 = sbr.rel (%p153) target = $region24
    $region23: #{residual_block_forward.6} parent=5 // pred_region
      // Predicated region
      $region25: #{residual_block_forward.6} parent=23 // pred_check
        %p156 = pneg %p31
      $region26: #{residual_block_forward.6} parent=23 // pred_check_branch
        %158 = sbr.rel (%p156) target = $region28
      $region27: #{residual_block_forward.6} parent=23 // pred_region
        %p159 = scmp.lt.s32.totalorder %s11, 1
        %s160 = scalar_select %p159, %s11, 1
        %s161 = smul.addr %s160, 32
        %s162 = smul.addr %s161, 4
        %s163 = scalar_lea.vmem %s0, %s162
      $region28: #{residual_block_forward.6} parent=23 // pred_fallthru
        _
    $region24: #{residual_block_forward.6} parent=5 // pred_fallthru
      _
    %p164 = scmp.le.s32.totalorder 1, %s11
    %p165 = scmp.lt.s32.totalorder %s11, 3
    %p166 = pnand %p164, %p165
    %p167 = pneg %p166
    // Predicated region
    $region29: #{residual_block_forward.6} parent=5 // pred_check
      _
    $region30: #{residual_block_forward.6} parent=5 // pred_check_branch
      %169 = sbr.rel (%p166) target = $region32
    $region31: #{residual_block_forward.6} parent=5 // pred_region
      %s170 = ssub.s32 %s11, 1
      %p171 = scmp.lt.s32.totalorder %s16, 1
      %s172 = scalar_select %p171, %s16, 1
      %s173 = smul.addr %s172, 32
      %s174 = smul.addr %s173, 4
      %s175 = scalar_lea.vmem %s0, %s174
      %p176 = pneg %p37
      %p177 = pneg %p34
      %p178 = pneg %p58
      %p179 = pneg %p55
      %p180 = pneg %p79
      %p181 = pneg %p76
      %p182 = pneg %p105
      %p183 = pneg %p102
      %p184 = scmp.lt.s32.totalorder %s16, 1
      %s185 = scalar_select %p184, %s16, 1
      %s186 = smul.addr %s185, 32
      %s187 = smul.addr %s186, 4
      %s188 = scalar_lea.vmem %s3, %s187
      %p189 = pneg %p131
      %p190 = pneg %p128
      %p191 = scmp.lt.s32.totalorder %s16, 1
      %s192 = scalar_select %p191, %s16, 1
      %s193 = smul.addr %s192, 2
      %s194 = scalar_lea.vmem %s4, %s193
      %p195 = scmp.lt.s32.totalorder %s16, 1
      %s196 = scalar_select %p195, %s16, 1
      %s197 = smul.addr %s196, 32
      %s198 = smul.addr %s197, 4
      %s199 = scalar_lea.vmem %s0, %s198
      %p200 = scmp.lt.s32.totalorder %s16, 1
      %s201 = scalar_select %p200, %s16, 1
      %s202 = smul.addr %s201, 32
      %s203 = smul.addr %s202, 4
      %s204 = scalar_lea.vmem %s3, %s203
      %p205 = scmp.lt.s32.totalorder %s16, 1
      %s206 = scalar_select %p205, %s16, 1
      %s207 = smul.addr %s206, 2
      %s208 = scalar_lea.vmem %s4, %s207
      %p210 = scmp.eq.s32.totalorder %s16, 0
      // Predicated region
      $region33: #{residual_block_forward.6} parent=31 // pred_check
        %p211 = pneg %p210
      $region34: #{residual_block_forward.6} parent=31 // pred_check_branch
        %213 = sbr.rel (%p211) target = $region36
      $region35: #{residual_block_forward.6} parent=31 // pred_region
        %vm214 = vcmask 27648
        %215 = vst.msk [vmem:[#allocation2] sm:$0xf] %vm214, 0
        %216 = vst.msk [vmem:[#allocation2 + $0x4] sm:$0xf] %vm214, 0
        %vm217 = vcmask 24576
        %218 = vst.msk [vmem:[#allocation2 + $0x8] sm:$0x1] %vm217, 0
        %219 = vst.msk [vmem:[#allocation2 + $0xc] sm:$0xf] %vm214, 0
        %220 = vst.msk [vmem:[#allocation2 + $0x10] sm:$0xf] %vm214, 0
        %221 = vst.msk [vmem:[#allocation2 + $0x14] sm:$0x1] %vm217, 0
        %222 = vst.msk [vmem:[#allocation2 + $0x18] sm:$0xf] %vm214, 0
        %223 = vst.msk [vmem:[#allocation2 + $0x1c] sm:$0xf] %vm214, 0
        %224 = vst.msk [vmem:[#allocation2 + $0x20] sm:$0x1] %vm217, 0
        %225 = vst.msk [vmem:[#allocation2 + $0x24] sm:$0xf] %vm214, 0
        %226 = vst.msk [vmem:[#allocation2 + $0x28] sm:$0xf] %vm214, 0
        %227 = vst.msk [vmem:[#allocation2 + $0x2c] sm:$0x1] %vm217, 0
        %228 = vst.msk [vmem:[#allocation2 + $0x30] sm:$0xf] %vm214, 0
        %229 = vst.msk [vmem:[#allocation2 + $0x34] sm:$0xf] %vm214, 0
        %230 = vst.msk [vmem:[#allocation2 + $0x38] sm:$0x1] %vm217, 0
        %231 = vst.msk [vmem:[#allocation2 + $0x3c] sm:$0xf] %vm214, 0
        %232 = vst.msk [vmem:[#allocation2 + $0x40] sm:$0xf] %vm214, 0
        %233 = vst.msk [vmem:[#allocation2 + $0x44] sm:$0x1] %vm217, 0
        %234 = vst.msk [vmem:[#allocation2 + $0x48] sm:$0xf] %vm214, 0
        %235 = vst.msk [vmem:[#allocation2 + $0x4c] sm:$0xf] %vm214, 0
        %236 = vst.msk [vmem:[#allocation2 + $0x50] sm:$0x1] %vm217, 0
        %237 = vst.msk [vmem:[#allocation2 + $0x54] sm:$0xf] %vm214, 0
        %238 = vst.msk [vmem:[#allocation2 + $0x58] sm:$0xf] %vm214, 0
        %239 = vst.msk [vmem:[#allocation2 + $0x5c] sm:$0x1] %vm217, 0
        %240 = vst.msk [vmem:[#allocation2 + $0x60] sm:$0xf] %vm214, 0
        %241 = vst.msk [vmem:[#allocation2 + $0x64] sm:$0xf] %vm214, 0
        %242 = vst.msk [vmem:[#allocation2 + $0x68] sm:$0x1] %vm217, 0
        %243 = vst.msk [vmem:[#allocation2 + $0x6c] sm:$0xf] %vm214, 0
        %244 = vst.msk [vmem:[#allocation2 + $0x70] sm:$0xf] %vm214, 0
        %245 = vst.msk [vmem:[#allocation2 + $0x74] sm:$0x1] %vm217, 0
        %246 = vst.msk [vmem:[#allocation2 + $0x78] sm:$0xf] %vm214, 0
        %247 = vst.msk [vmem:[#allocation2 + $0x7c] sm:$0xf] %vm214, 0
        %248 = vst.msk [vmem:[#allocation2 + $0x80] sm:$0x1] %vm217, 0
        %249 = vst.msk [vmem:[#allocation2 + $0x84] sm:$0xf] %vm214, 0
        %250 = vst.msk [vmem:[#allocation2 + $0x88] sm:$0xf] %vm214, 0
        %251 = vst.msk [vmem:[#allocation2 + $0x8c] sm:$0x1] %vm217, 0
        %252 = vst.msk [vmem:[#allocation2 + $0x90] sm:$0xf] %vm214, 0
        %253 = vst.msk [vmem:[#allocation2 + $0x94] sm:$0xf] %vm214, 0
        %254 = vst.msk [vmem:[#allocation2 + $0x98] sm:$0x1] %vm217, 0
        %255 = vst.msk [vmem:[#allocation2 + $0x9c] sm:$0xf] %vm214, 0
        %256 = vst.msk [vmem:[#allocation2 + $0xa0] sm:$0xf] %vm214, 0
        %257 = vst.msk [vmem:[#allocation2 + $0xa4] sm:$0x1] %vm217, 0
        %258 = vst.msk [vmem:[#allocation2 + $0xa8] sm:$0xf] %vm214, 0
        %259 = vst.msk [vmem:[#allocation2 + $0xac] sm:$0xf] %vm214, 0
        %260 = vst.msk [vmem:[#allocation2 + $0xb0] sm:$0x1] %vm217, 0
        %261 = vst.msk [vmem:[#allocation2 + $0xb4] sm:$0xf] %vm214, 0
        %262 = vst.msk [vmem:[#allocation2 + $0xb8] sm:$0xf] %vm214, 0
        %263 = vst.msk [vmem:[#allocation2 + $0xbc] sm:$0x1] %vm217, 0
        %264 = vst.msk [vmem:[#allocation2 + $0xc0] sm:$0xf] %vm214, 0
        %265 = vst.msk [vmem:[#allocation2 + $0xc4] sm:$0xf] %vm214, 0
        %266 = vst.msk [vmem:[#allocation2 + $0xc8] sm:$0x1] %vm217, 0
        %267 = vst.msk [vmem:[#allocation2 + $0xcc] sm:$0xf] %vm214, 0
        %268 = vst.msk [vmem:[#allocation2 + $0xd0] sm:$0xf] %vm214, 0
        %269 = vst.msk [vmem:[#allocation2 + $0xd4] sm:$0x1] %vm217, 0
      $region36: #{residual_block_forward.6} parent=31 // pred_fallthru
        _
      %v270 = vld [vmem:[%s1] sm:$0x3]
      %v271 = vld [vmem:[%s199] sm:$0xf]
      %v272 = vld [vmem:[%s199 + $0x4] sm:$0xf]
      %v273 = vld [vmem:[%s199 + $0x8] sm:$0xf]
      %v274 = vld [vmem:[%s199 + $0xc] sm:$0xf]
      %v275 = vld [vmem:[%s199 + $0x10] sm:$0xf]
      %v276 = vld [vmem:[%s199 + $0x14] sm:$0xf]
      %v277 = vld [vmem:[%s199 + $0x18] sm:$0xf]
      %v278 = vld [vmem:[%s199 + $0x1c] sm:$0xf]
      %v279 = vld [vmem:[%s199 + $0x20] sm:$0xf]
      %v280 = vld [vmem:[%s199 + $0x24] sm:$0xf]
      %v281 = vld [vmem:[%s199 + $0x28] sm:$0xf]
      %v282 = vld [vmem:[%s199 + $0x2c] sm:$0xf]
      %v283 = vld [vmem:[%s199 + $0x30] sm:$0xf]
      %v284 = vld [vmem:[%s199 + $0x34] sm:$0xf]
      %v285 = vld [vmem:[%s199 + $0x38] sm:$0xf]
      %v286 = vld [vmem:[%s199 + $0x3c] sm:$0xf]
      %v287 = vld [vmem:[%s199 + $0x40] sm:$0xf]
      %v288 = vld [vmem:[%s199 + $0x44] sm:$0xf]
      %v289 = vld [vmem:[%s199 + $0x48] sm:$0xf]
      %v290 = vld [vmem:[%s199 + $0x4c] sm:$0xf]
      %v291 = vld [vmem:[%s199 + $0x50] sm:$0xf]
      %v292 = vld [vmem:[%s199 + $0x54] sm:$0xf]
      %v293 = vld [vmem:[%s199 + $0x58] sm:$0xf]
      %v294 = vld [vmem:[%s199 + $0x5c] sm:$0xf]
      %v295 = vld [vmem:[%s199 + $0x60] sm:$0xf]
      %v296 = vld [vmem:[%s199 + $0x64] sm:$0xf]
      %v297 = vld [vmem:[%s199 + $0x68] sm:$0xf]
      %v298 = vld [vmem:[%s199 + $0x6c] sm:$0xf]
      %v299 = vld [vmem:[%s199 + $0x70] sm:$0xf]
      %v300 = vld [vmem:[%s199 + $0x74] sm:$0xf]
      %v301 = vld [vmem:[%s199 + $0x78] sm:$0xf]
      %v302 = vld [vmem:[%s199 + $0x7c] sm:$0xf]
      %v303 = vunpack.c.l.bf16 %v271
      %v304 = vunpack.c.l.bf16 %v272
      %v305 = vunpack.c.l.bf16 %v273
      %v306 = vunpack.c.l.bf16 %v274
      %v307 = vunpack.c.l.bf16 %v275
      %v308 = vunpack.c.l.bf16 %v276
      %v309 = vunpack.c.l.bf16 %v277
      %v310 = vunpack.c.l.bf16 %v278
      %v311 = vunpack.c.l.bf16 %v279
      %v312 = vunpack.c.l.bf16 %v280
      %v313 = vunpack.c.l.bf16 %v281
      %v314 = vunpack.c.l.bf16 %v282
      %v315 = vunpack.c.l.bf16 %v283
      %v316 = vunpack.c.l.bf16 %v284
      %v317 = vunpack.c.l.bf16 %v285
      %v318 = vunpack.c.l.bf16 %v286
      %v319 = vunpack.c.l.bf16 %v287
      %v320 = vunpack.c.l.bf16 %v288
      %v321 = vunpack.c.l.bf16 %v289
      %v322 = vunpack.c.l.bf16 %v290
      %v323 = vunpack.c.l.bf16 %v291
      %v324 = vunpack.c.l.bf16 %v292
      %v325 = vunpack.c.l.bf16 %v293
      %v326 = vunpack.c.l.bf16 %v294
      %v327 = vunpack.c.l.bf16 %v295
      %v328 = vunpack.c.l.bf16 %v296
      %v329 = vunpack.c.l.bf16 %v297
      %v330 = vunpack.c.l.bf16 %v298
      %v331 = vunpack.c.l.bf16 %v299
      %v332 = vunpack.c.l.bf16 %v300
      %v333 = vunpack.c.l.bf16 %v301
      %v334 = vunpack.c.l.bf16 %v302
      %v335 = vperm.slane %v270, 0
      %v336 = vmul.f32 %v303, %v335
      %v337 = vmul.f32 %v304, %v335
      %v338 = vmul.f32 %v305, %v335
      %v339 = vmul.f32 %v306, %v335
      %v340 = vmul.f32 %v307, %v335
      %v341 = vmul.f32 %v308, %v335
      %v342 = vmul.f32 %v309, %v335
      %v343 = vmul.f32 %v310, %v335
      %v344 = vmul.f32 %v311, %v335
      %v345 = vmul.f32 %v312, %v335
      %v346 = vmul.f32 %v313, %v335
      %v347 = vmul.f32 %v314, %v335
      %v348 = vmul.f32 %v315, %v335
      %v349 = vmul.f32 %v316, %v335
      %v350 = vmul.f32 %v317, %v335
      %v351 = vmul.f32 %v318, %v335
      %v352 = vmul.f32 %v319, %v335
      %v353 = vmul.f32 %v320, %v335
      %v354 = vmul.f32 %v321, %v335
      %v355 = vmul.f32 %v322, %v335
      %v356 = vmul.f32 %v323, %v335
      %v357 = vmul.f32 %v324, %v335
      %v358 = vmul.f32 %v325, %v335
      %v359 = vmul.f32 %v326, %v335
      %v360 = vmul.f32 %v327, %v335
      %v361 = vmul.f32 %v328, %v335
      %v362 = vmul.f32 %v329, %v335
      %v363 = vmul.f32 %v330, %v335
      %v364 = vmul.f32 %v331, %v335
      %v365 = vmul.f32 %v332, %v335
      %v366 = vmul.f32 %v333, %v335
      %v367 = vmul.f32 %v334, %v335
      %v368 = vperm.slane %v270, 1
      %v369 = vadd.f32 %v336, %v368
      %v370 = vadd.f32 %v337, %v368
      %v371 = vadd.f32 %v338, %v368
      %v372 = vadd.f32 %v339, %v368
      %v373 = vadd.f32 %v340, %v368
      %v374 = vadd.f32 %v341, %v368
      %v375 = vadd.f32 %v342, %v368
      %v376 = vadd.f32 %v343, %v368
      %v377 = vadd.f32 %v344, %v368
      %v378 = vadd.f32 %v345, %v368
      %v379 = vadd.f32 %v346, %v368
      %v380 = vadd.f32 %v347, %v368
      %v381 = vadd.f32 %v348, %v368
      %v382 = vadd.f32 %v349, %v368
      %v383 = vadd.f32 %v350, %v368
      %v384 = vadd.f32 %v351, %v368
      %v385 = vadd.f32 %v352, %v368
      %v386 = vadd.f32 %v353, %v368
      %v387 = vadd.f32 %v354, %v368
      %v388 = vadd.f32 %v355, %v368
      %v389 = vadd.f32 %v356, %v368
      %v390 = vadd.f32 %v357, %v368
      %v391 = vadd.f32 %v358, %v368
      %v392 = vadd.f32 %v359, %v368
      %v393 = vadd.f32 %v360, %v368
      %v394 = vadd.f32 %v361, %v368
      %v395 = vadd.f32 %v362, %v368
      %v396 = vadd.f32 %v363, %v368
      %v397 = vadd.f32 %v364, %v368
      %v398 = vadd.f32 %v365, %v368
      %v399 = vadd.f32 %v366, %v368
      %v400 = vadd.f32 %v367, %v368
      %v401 = vmax.f32 %v369, 0.0
      %v402 = vmax.f32 %v370, 0.0
      %v403 = vmax.f32 %v371, 0.0
      %v404 = vmax.f32 %v372, 0.0
      %v405 = vmax.f32 %v373, 0.0
      %v406 = vmax.f32 %v374, 0.0
      %v407 = vmax.f32 %v375, 0.0
      %v408 = vmax.f32 %v376, 0.0
      %v409 = vmax.f32 %v377, 0.0
      %v410 = vmax.f32 %v378, 0.0
      %v411 = vmax.f32 %v379, 0.0
      %v412 = vmax.f32 %v380, 0.0
      %v413 = vmax.f32 %v381, 0.0
      %v414 = vmax.f32 %v382, 0.0
      %v415 = vmax.f32 %v383, 0.0
      %v416 = vmax.f32 %v384, 0.0
      %v417 = vmax.f32 %v385, 0.0
      %v418 = vmax.f32 %v386, 0.0
      %v419 = vmax.f32 %v387, 0.0
      %v420 = vmax.f32 %v388, 0.0
      %v421 = vmax.f32 %v389, 0.0
      %v422 = vmax.f32 %v390, 0.0
      %v423 = vmax.f32 %v391, 0.0
      %v424 = vmax.f32 %v392, 0.0
      %v425 = vmax.f32 %v393, 0.0
      %v426 = vmax.f32 %v394, 0.0
      %v427 = vmax.f32 %v395, 0.0
      %v428 = vmax.f32 %v396, 0.0
      %v429 = vmax.f32 %v397, 0.0
      %v430 = vmax.f32 %v398, 0.0
      %v431 = vmax.f32 %v399, 0.0
      %v432 = vmax.f32 %v400, 0.0
      %v433 = vpack.c.bf16 %v401, %v401
      %v434 = vpack.c.bf16 %v402, %v402
      %v435 = vpack.c.bf16 %v403, %v403
      %v436 = vpack.c.bf16 %v404, %v404
      %v437 = vpack.c.bf16 %v405, %v405
      %v438 = vpack.c.bf16 %v406, %v406
      %v439 = vpack.c.bf16 %v407, %v407
      %v440 = vpack.c.bf16 %v408, %v408
      %v441 = vpack.c.bf16 %v409, %v409
      %v442 = vpack.c.bf16 %v410, %v410
      %v443 = vpack.c.bf16 %v411, %v411
      %v444 = vpack.c.bf16 %v412, %v412
      %v445 = vpack.c.bf16 %v413, %v413
      %v446 = vpack.c.bf16 %v414, %v414
      %v447 = vpack.c.bf16 %v415, %v415
      %v448 = vpack.c.bf16 %v416, %v416
      %v449 = vpack.c.bf16 %v417, %v417
      %v450 = vpack.c.bf16 %v418, %v418
      %v451 = vpack.c.bf16 %v419, %v419
      %v452 = vpack.c.bf16 %v420, %v420
      %v453 = vpack.c.bf16 %v421, %v421
      %v454 = vpack.c.bf16 %v422, %v422
      %v455 = vpack.c.bf16 %v423, %v423
      %v456 = vpack.c.bf16 %v424, %v424
      %v457 = vpack.c.bf16 %v425, %v425
      %v458 = vpack.c.bf16 %v426, %v426
      %v459 = vpack.c.bf16 %v427, %v427
      %v460 = vpack.c.bf16 %v428, %v428
      %v461 = vpack.c.bf16 %v429, %v429
      %v462 = vpack.c.bf16 %v430, %v430
      %v463 = vpack.c.bf16 %v431, %v431
      %v464 = vpack.c.bf16 %v432, %v432
      %vm465 = vsmask.f32 256
      %vm466 = vsmask.f32 4368
      %vm467 = vmor %vm465, %vm466
      %v469 = vshrl.u32 %v433, 16
      %v471 = vrot.slane %v469, 7
      %v472 = vshll.u32 %v433, 16
      %v474 = vor.u32 %v471, %v472
      %v475 = vrot.slane %v471, 4
      %v477 = vshrl.u32 %v434, 16
      %v479 = vrot.slane %v477, 7
      %v480 = vshll.u32 %v434, 16
      %v482 = vor.u32 %v479, %v480
      %v483 = vsel %vm467, %v475, %v482
      %v484 = vrot.slane %v479, 4
      %v486 = vshrl.u32 %v435, 16
      %v488 = vrot.slane %v486, 7
      %v489 = vshll.u32 %v435, 16
      %v491 = vor.u32 %v488, %v489
      %v492 = vrot.slane %v488, 4
      %v494 = vshrl.u32 %v436, 16
      %v496 = vrot.slane %v494, 7
      %v497 = vshll.u32 %v436, 16
      %v499 = vor.u32 %v496, %v497
      %v500 = vsel %vm467, %v492, %v499
      %v501 = vrot.slane %v496, 4
      %v503 = vshrl.u32 %v437, 16
      %v505 = vrot.slane %v503, 7
      %v506 = vshll.u32 %v437, 16
      %v508 = vor.u32 %v505, %v506
      %v509 = vrot.slane %v505, 4
      %v511 = vshrl.u32 %v438, 16
      %v513 = vrot.slane %v511, 7
      %v514 = vshll.u32 %v438, 16
      %v516 = vor.u32 %v513, %v514
      %v517 = vsel %vm467, %v509, %v516
      %v518 = vrot.slane %v513, 4
      %v520 = vshrl.u32 %v439, 16
      %v522 = vrot.slane %v520, 7
      %v523 = vshll.u32 %v439, 16
      %v525 = vor.u32 %v522, %v523
      %v526 = vrot.slane %v522, 4
      %v528 = vshrl.u32 %v440, 16
      %v530 = vrot.slane %v528, 7
      %v531 = vshll.u32 %v440, 16
      %v533 = vor.u32 %v530, %v531
      %v534 = vsel %vm467, %v526, %v533
      %v535 = vrot.slane %v530, 4
      %v537 = vshrl.u32 %v441, 16
      %v539 = vrot.slane %v537, 7
      %v540 = vshll.u32 %v441, 16
      %v542 = vor.u32 %v539, %v540
      %v543 = vrot.slane %v539, 4
      %v545 = vshrl.u32 %v442, 16
      %v547 = vrot.slane %v545, 7
      %v548 = vshll.u32 %v442, 16
      %v550 = vor.u32 %v547, %v548
      %v551 = vsel %vm467, %v543, %v550
      %v552 = vrot.slane %v547, 4
      %v554 = vshrl.u32 %v443, 16
      %v556 = vrot.slane %v554, 7
      %v557 = vshll.u32 %v443, 16
      %v559 = vor.u32 %v556, %v557
      %v560 = vrot.slane %v556, 4
      %v562 = vshrl.u32 %v444, 16
      %v564 = vrot.slane %v562, 7
      %v565 = vshll.u32 %v444, 16
      %v567 = vor.u32 %v564, %v565
      %v568 = vsel %vm467, %v560, %v567
      %v569 = vrot.slane %v564, 4
      %v571 = vshrl.u32 %v445, 16
      %v573 = vrot.slane %v571, 7
      %v574 = vshll.u32 %v445, 16
      %v576 = vor.u32 %v573, %v574
      %v577 = vrot.slane %v573, 4
      %v579 = vshrl.u32 %v446, 16
      %v581 = vrot.slane %v579, 7
      %v582 = vshll.u32 %v446, 16
      %v584 = vor.u32 %v581, %v582
      %v585 = vsel %vm467, %v577, %v584
      %v586 = vrot.slane %v581, 4
      %v588 = vshrl.u32 %v447, 16
      %v590 = vrot.slane %v588, 7
      %v591 = vshll.u32 %v447, 16
      %v593 = vor.u32 %v590, %v591
      %v594 = vrot.slane %v590, 4
      %v596 = vshrl.u32 %v448, 16
      %v598 = vrot.slane %v596, 7
      %v599 = vshll.u32 %v448, 16
      %v601 = vor.u32 %v598, %v599
      %v602 = vsel %vm467, %v594, %v601
      %v603 = vrot.slane %v598, 4
      %v605 = vshrl.u32 %v449, 16
      %v607 = vrot.slane %v605, 7
      %v608 = vshll.u32 %v449, 16
      %v610 = vor.u32 %v607, %v608
      %v611 = vrot.slane %v607, 4
      %v613 = vshrl.u32 %v450, 16
      %v615 = vrot.slane %v613, 7
      %v616 = vshll.u32 %v450, 16
      %v618 = vor.u32 %v615, %v616
      %v619 = vsel %vm467, %v611, %v618
      %v620 = vrot.slane %v615, 4
      %v622 = vshrl.u32 %v451, 16
      %v624 = vrot.slane %v622, 7
      %v625 = vshll.u32 %v451, 16
      %v627 = vor.u32 %v624, %v625
      %v628 = vrot.slane %v624, 4
      %v630 = vshrl.u32 %v452, 16
      %v632 = vrot.slane %v630, 7
      %v633 = vshll.u32 %v452, 16
      %v635 = vor.u32 %v632, %v633
      %v636 = vsel %vm467, %v628, %v635
      %v637 = vrot.slane %v632, 4
      %v639 = vshrl.u32 %v453, 16
      %v641 = vrot.slane %v639, 7
      %v642 = vshll.u32 %v453, 16
      %v644 = vor.u32 %v641, %v642
      %v645 = vrot.slane %v641, 4
      %v647 = vshrl.u32 %v454, 16
      %v649 = vrot.slane %v647, 7
      %v650 = vshll.u32 %v454, 16
      %v652 = vor.u32 %v649, %v650
      %v653 = vsel %vm467, %v645, %v652
      %v654 = vrot.slane %v649, 4
      %v656 = vshrl.u32 %v455, 16
      %v658 = vrot.slane %v656, 7
      %v659 = vshll.u32 %v455, 16
      %v661 = vor.u32 %v658, %v659
      %v662 = vrot.slane %v658, 4
      %v664 = vshrl.u32 %v456, 16
      %v666 = vrot.slane %v664, 7
      %v667 = vshll.u32 %v456, 16
      %v669 = vor.u32 %v666, %v667
      %v670 = vsel %vm467, %v662, %v669
      %v671 = vrot.slane %v666, 4
      %v673 = vshrl.u32 %v457, 16
      %v675 = vrot.slane %v673, 7
      %v676 = vshll.u32 %v457, 16
      %v678 = vor.u32 %v675, %v676
      %v679 = vrot.slane %v675, 4
      %v681 = vshrl.u32 %v458, 16
      %v683 = vrot.slane %v681, 7
      %v684 = vshll.u32 %v458, 16
      %v686 = vor.u32 %v683, %v684
      %v687 = vsel %vm467, %v679, %v686
      %v688 = vrot.slane %v683, 4
      %v690 = vshrl.u32 %v459, 16
      %v692 = vrot.slane %v690, 7
      %v693 = vshll.u32 %v459, 16
      %v695 = vor.u32 %v692, %v693
      %v696 = vrot.slane %v692, 4
      %v698 = vshrl.u32 %v460, 16
      %v700 = vrot.slane %v698, 7
      %v701 = vshll.u32 %v460, 16
      %v703 = vor.u32 %v700, %v701
      %v704 = vsel %vm467, %v696, %v703
      %v705 = vrot.slane %v700, 4
      %v707 = vshrl.u32 %v461, 16
      %v709 = vrot.slane %v707, 7
      %v710 = vshll.u32 %v461, 16
      %v712 = vor.u32 %v709, %v710
      %v713 = vrot.slane %v709, 4
      %v715 = vshrl.u32 %v462, 16
      %v717 = vrot.slane %v715, 7
      %v718 = vshll.u32 %v462, 16
      %v720 = vor.u32 %v717, %v718
      %v721 = vsel %vm467, %v713, %v720
      %v722 = vrot.slane %v717, 4
      %v724 = vshrl.u32 %v463, 16
      %v726 = vrot.slane %v724, 7
      %v727 = vshll.u32 %v463, 16
      %v729 = vor.u32 %v726, %v727
      %v730 = vrot.slane %v726, 4
      %v732 = vshrl.u32 %v464, 16
      %v734 = vrot.slane %v732, 7
      %v735 = vshll.u32 %v464, 16
      %v737 = vor.u32 %v734, %v735
      %v738 = vsel %vm467, %v730, %v737
      %v739 = vrot.slane %v734, 4
      %s788 = scalar_lea.vmem [#allocation2], 12
      %vm789 = vcmask 27648
      %vm790 = vsmask.f32 7938
      %vm791 = vmand %vm789, %vm790
      %v792 = vld [vmem:[%s788] sm:$0xf]
      %v793 = vsel %vm791, %v474, %v792
      %794 = vst [vmem:[%s788] sm:$0xf] %v793
      %vm795 = vcmask 27648
      %796 = vst.msk [vmem:[%s788 + $0x4] sm:$0xf] %vm795, %v483
      %vm797 = vcmask 24576
      %vm798 = vmand %vm797, %vm465
      %v799 = vld [vmem:[%s788 + $0x8] sm:$0x1]
      %v800 = vsel %vm798, %v484, %v799
      %801 = vst [vmem:[%s788 + $0x8] sm:$0x1] %v800
      %v802 = vld [vmem:[%s788 + $0xc] sm:$0xf]
      %v803 = vsel %vm791, %v491, %v802
      %804 = vst [vmem:[%s788 + $0xc] sm:$0xf] %v803
      %805 = vst.msk [vmem:[%s788 + $0x10] sm:$0xf] %vm795, %v500
      %v806 = vld [vmem:[%s788 + $0x14] sm:$0x1]
      %v807 = vsel %vm798, %v501, %v806
      %808 = vst [vmem:[%s788 + $0x14] sm:$0x1] %v807
      %v809 = vld [vmem:[%s788 + $0x18] sm:$0xf]
      %v810 = vsel %vm791, %v508, %v809
      %811 = vst [vmem:[%s788 + $0x18] sm:$0xf] %v810
      %812 = vst.msk [vmem:[%s788 + $0x1c] sm:$0xf] %vm795, %v517
      %v813 = vld [vmem:[%s788 + $0x20] sm:$0x1]
      %v814 = vsel %vm798, %v518, %v813
      %815 = vst [vmem:[%s788 + $0x20] sm:$0x1] %v814
      %v816 = vld [vmem:[%s788 + $0x24] sm:$0xf]
      %v817 = vsel %vm791, %v525, %v816
      %818 = vst [vmem:[%s788 + $0x24] sm:$0xf] %v817
      %819 = vst.msk [vmem:[%s788 + $0x28] sm:$0xf] %vm795, %v534
      %v820 = vld [vmem:[%s788 + $0x2c] sm:$0x1]
      %v821 = vsel %vm798, %v535, %v820
      %822 = vst [vmem:[%s788 + $0x2c] sm:$0x1] %v821
      %v823 = vld [vmem:[%s788 + $0x30] sm:$0xf]
      %v824 = vsel %vm791, %v542, %v823
      %825 = vst [vmem:[%s788 + $0x30] sm:$0xf] %v824
      %826 = vst.msk [vmem:[%s788 + $0x34] sm:$0xf] %vm795, %v551
      %v827 = vld [vmem:[%s788 + $0x38] sm:$0x1]
      %v828 = vsel %vm798, %v552, %v827
      %829 = vst [vmem:[%s788 + $0x38] sm:$0x1] %v828
      %v830 = vld [vmem:[%s788 + $0x3c] sm:$0xf]
      %v831 = vsel %vm791, %v559, %v830
      %832 = vst [vmem:[%s788 + $0x3c] sm:$0xf] %v831
      %833 = vst.msk [vmem:[%s788 + $0x40] sm:$0xf] %vm795, %v568
      %v834 = vld [vmem:[%s788 + $0x44] sm:$0x1]
      %v835 = vsel %vm798, %v569, %v834
      %836 = vst [vmem:[%s788 + $0x44] sm:$0x1] %v835
      %v837 = vld [vmem:[%s788 + $0x48] sm:$0xf]
      %v838 = vsel %vm791, %v576, %v837
      %839 = vst [vmem:[%s788 + $0x48] sm:$0xf] %v838
      %840 = vst.msk [vmem:[%s788 + $0x4c] sm:$0xf] %vm795, %v585
      %v841 = vld [vmem:[%s788 + $0x50] sm:$0x1]
      %v842 = vsel %vm798, %v586, %v841
      %843 = vst [vmem:[%s788 + $0x50] sm:$0x1] %v842
      %v844 = vld [vmem:[%s788 + $0x54] sm:$0xf]
      %v845 = vsel %vm791, %v593, %v844
      %846 = vst [vmem:[%s788 + $0x54] sm:$0xf] %v845
      %847 = vst.msk [vmem:[%s788 + $0x58] sm:$0xf] %vm795, %v602
      %v848 = vld [vmem:[%s788 + $0x5c] sm:$0x1]
      %v849 = vsel %vm798, %v603, %v848
      %850 = vst [vmem:[%s788 + $0x5c] sm:$0x1] %v849
      %v851 = vld [vmem:[%s788 + $0x60] sm:$0xf]
      %v852 = vsel %vm791, %v610, %v851
      %853 = vst [vmem:[%s788 + $0x60] sm:$0xf] %v852
      %854 = vst.msk [vmem:[%s788 + $0x64] sm:$0xf] %vm795, %v619
      %v855 = vld [vmem:[%s788 + $0x68] sm:$0x1]
      %v856 = vsel %vm798, %v620, %v855
      %857 = vst [vmem:[%s788 + $0x68] sm:$0x1] %v856
      %v858 = vld [vmem:[%s788 + $0x6c] sm:$0xf]
      %v859 = vsel %vm791, %v627, %v858
      %860 = vst [vmem:[%s788 + $0x6c] sm:$0xf] %v859
      %861 = vst.msk [vmem:[%s788 + $0x70] sm:$0xf] %vm795, %v636
      %v862 = vld [vmem:[%s788 + $0x74] sm:$0x1]
      %v863 = vsel %vm798, %v637, %v862
      %864 = vst [vmem:[%s788 + $0x74] sm:$0x1] %v863
      %v865 = vld [vmem:[%s788 + $0x78] sm:$0xf]
      %v866 = vsel %vm791, %v644, %v865
      %867 = vst [vmem:[%s788 + $0x78] sm:$0xf] %v866
      %868 = vst.msk [vmem:[%s788 + $0x7c] sm:$0xf] %vm795, %v653
      %v869 = vld [vmem:[%s788 + $0x80] sm:$0x1]
      %v870 = vsel %vm798, %v654, %v869
      %871 = vst [vmem:[%s788 + $0x80] sm:$0x1] %v870
      %v872 = vld [vmem:[%s788 + $0x84] sm:$0xf]
      %v873 = vsel %vm791, %v661, %v872
      %874 = vst [vmem:[%s788 + $0x84] sm:$0xf] %v873
      %875 = vst.msk [vmem:[%s788 + $0x88] sm:$0xf] %vm795, %v670
      %v876 = vld [vmem:[%s788 + $0x8c] sm:$0x1]
      %v877 = vsel %vm798, %v671, %v876
      %878 = vst [vmem:[%s788 + $0x8c] sm:$0x1] %v877
      %v879 = vld [vmem:[%s788 + $0x90] sm:$0xf]
      %v880 = vsel %vm791, %v678, %v879
      %881 = vst [vmem:[%s788 + $0x90] sm:$0xf] %v880
      %882 = vst.msk [vmem:[%s788 + $0x94] sm:$0xf] %vm795, %v687
      %v883 = vld [vmem:[%s788 + $0x98] sm:$0x1]
      %v884 = vsel %vm798, %v688, %v883
      %885 = vst [vmem:[%s788 + $0x98] sm:$0x1] %v884
      %v886 = vld [vmem:[%s788 + $0x9c] sm:$0xf]
      %v887 = vsel %vm791, %v695, %v886
      %888 = vst [vmem:[%s788 + $0x9c] sm:$0xf] %v887
      %889 = vst.msk [vmem:[%s788 + $0xa0] sm:$0xf] %vm795, %v704
      %v890 = vld [vmem:[%s788 + $0xa4] sm:$0x1]
      %v891 = vsel %vm798, %v705, %v890
      %892 = vst [vmem:[%s788 + $0xa4] sm:$0x1] %v891
      %v893 = vld [vmem:[%s788 + $0xa8] sm:$0xf]
      %v894 = vsel %vm791, %v712, %v893
      %895 = vst [vmem:[%s788 + $0xa8] sm:$0xf] %v894
      %896 = vst.msk [vmem:[%s788 + $0xac] sm:$0xf] %vm795, %v721
      %v897 = vld [vmem:[%s788 + $0xb0] sm:$0x1]
      %v898 = vsel %vm798, %v722, %v897
      %899 = vst [vmem:[%s788 + $0xb0] sm:$0x1] %v898
      %v900 = vld [vmem:[%s788 + $0xb4] sm:$0xf]
      %v901 = vsel %vm791, %v729, %v900
      %902 = vst [vmem:[%s788 + $0xb4] sm:$0xf] %v901
      %903 = vst.msk [vmem:[%s788 + $0xb8] sm:$0xf] %vm795, %v738
      %v904 = vld [vmem:[%s788 + $0xbc] sm:$0x1]
      %v905 = vsel %vm798, %v739, %v904
      %906 = vst [vmem:[%s788 + $0xbc] sm:$0x1] %v905
      %v907 = vld [vmem:[#allocation2] sm:$0xf]
      %v908 = vld [vmem:[#allocation2 + $0x4] sm:$0xf]
      %v909 = vld [vmem:[#allocation2 + $0xc] sm:$0xf]
      %v910 = vld [vmem:[#allocation2 + $0x10] sm:$0xf]
      %v911 = vld [vmem:[#allocation2 + $0x18] sm:$0xf]
      %v912 = vld [vmem:[#allocation2 + $0x1c] sm:$0xf]
      %v913 = vld [vmem:[#allocation2 + $0x24] sm:$0xf]
      %v914 = vld [vmem:[#allocation2 + $0x28] sm:$0xf]
      %v915 = vld [vmem:[#allocation2 + $0x30] sm:$0xf]
      %v916 = vld [vmem:[#allocation2 + $0x34] sm:$0xf]
      %v917 = vld [vmem:[#allocation2 + $0x3c] sm:$0xf]
      %v918 = vld [vmem:[#allocation2 + $0x40] sm:$0xf]
      %v919 = vld [vmem:[#allocation2 + $0x48] sm:$0xf]
      %v920 = vld [vmem:[#allocation2 + $0x4c] sm:$0xf]
      %v921 = vld [vmem:[#allocation2 + $0x54] sm:$0xf]
      %v922 = vld [vmem:[#allocation2 + $0x58] sm:$0xf]
      %v923 = vld [vmem:[#allocation2 + $0x60] sm:$0xf]
      %v924 = vld [vmem:[#allocation2 + $0x64] sm:$0xf]
      %v925 = vld [vmem:[#allocation2 + $0x6c] sm:$0xf]
      %v926 = vld [vmem:[#allocation2 + $0x70] sm:$0xf]
      %v927 = vld [vmem:[#allocation2 + $0x78] sm:$0xf]
      %v928 = vld [vmem:[#allocation2 + $0x7c] sm:$0xf]
      %v929 = vld [vmem:[#allocation2 + $0x84] sm:$0xf]
      %v930 = vld [vmem:[#allocation2 + $0x88] sm:$0xf]
      %v931 = vld [vmem:[#allocation2 + $0x90] sm:$0xf]
      %v932 = vld [vmem:[#allocation2 + $0x94] sm:$0xf]
      %v933 = vld [vmem:[#allocation2 + $0x9c] sm:$0xf]
      %v934 = vld [vmem:[#allocation2 + $0xa0] sm:$0xf]
      %v935 = vld [vmem:[#allocation2 + $0xa8] sm:$0xf]
      %v936 = vld [vmem:[#allocation2 + $0xac] sm:$0xf]
      %v937 = vld [vmem:[#allocation2 + $0xb4] sm:$0xf]
      %v938 = vld [vmem:[#allocation2 + $0xb8] sm:$0xf]
      %v939 = vld [vmem:[%s2] sm:$0x3]
      %v940 = vld [vmem:[#allocation2 + $0x8] sm:$0x1]
      %v941 = vld [vmem:[#allocation2 + $0x14] sm:$0x1]
      %v942 = vld [vmem:[#allocation2 + $0x20] sm:$0x1]
      %v943 = vld [vmem:[#allocation2 + $0x2c] sm:$0x1]
      %v944 = vld [vmem:[#allocation2 + $0x38] sm:$0x1]
      %v945 = vld [vmem:[#allocation2 + $0x44] sm:$0x1]
      %v946 = vld [vmem:[#allocation2 + $0x50] sm:$0x1]
      %v947 = vld [vmem:[#allocation2 + $0x5c] sm:$0x1]
      %v948 = vld [vmem:[#allocation2 + $0x68] sm:$0x1]
      %v949 = vld [vmem:[#allocation2 + $0x74] sm:$0x1]
      %v950 = vld [vmem:[#allocation2 + $0x80] sm:$0x1]
      %v951 = vld [vmem:[#allocation2 + $0x8c] sm:$0x1]
      %v952 = vld [vmem:[#allocation2 + $0x98] sm:$0x1]
      %v953 = vld [vmem:[#allocation2 + $0xa4] sm:$0x1]
      %v954 = vld [vmem:[#allocation2 + $0xb0] sm:$0x1]
      %v955 = vld [vmem:[#allocation2 + $0xbc] sm:$0x1]
      %vm956 = vsmask.f32 3328
      %vm957 = vsmask.f32 7440
      %vm958 = vmor %vm956, %vm957
      %v960 = vshrl.u32 %v907, 16
      %v962 = vrot.slane %v960, 4
      %v963 = vshll.u32 %v907, 16
      %v965 = vrot.slane %v963, 5
      %v966 = vor.u32 %v962, %v965
      %v967 = vrot.slane %v966, 4
      %v969 = vshll.u32 %v908, 16
      %v971 = vrot.slane %v969, 5
      %v972 = vsel %vm958, %v967, %v971
      %v973 = vshrl.u32 %v908, 16
      %v975 = vrot.slane %v973, 4
      %v976 = vor.u32 %v975, %v971
      %v977 = vrot.slane %v976, 4
      %v979 = vshll.u32 %v940, 16
      %v981 = vrot.slane %v979, 5
      %v982 = vsel %vm958, %v977, %v981
      %v984 = vshrl.u32 %v909, 16
      %v986 = vrot.slane %v984, 4
      %v987 = vshll.u32 %v909, 16
      %v989 = vrot.slane %v987, 5
      %v990 = vor.u32 %v986, %v989
      %v991 = vrot.slane %v990, 4
      %v993 = vshll.u32 %v910, 16
      %v995 = vrot.slane %v993, 5
      %v996 = vsel %vm958, %v991, %v995
      %v997 = vshrl.u32 %v910, 16
      %v999 = vrot.slane %v997, 4
      %v1000 = vor.u32 %v999, %v995
      %v1001 = vrot.slane %v1000, 4
      %v1003 = vshll.u32 %v941, 16
      %v1005 = vrot.slane %v1003, 5
      %v1006 = vsel %vm958, %v1001, %v1005
      %v1008 = vshrl.u32 %v911, 16
      %v1010 = vrot.slane %v1008, 4
      %v1011 = vshll.u32 %v911, 16
      %v1013 = vrot.slane %v1011, 5
      %v1014 = vor.u32 %v1010, %v1013
      %v1015 = vrot.slane %v1014, 4
      %v1017 = vshll.u32 %v912, 16
      %v1019 = vrot.slane %v1017, 5
      %v1020 = vsel %vm958, %v1015, %v1019
      %v1021 = vshrl.u32 %v912, 16
      %v1023 = vrot.slane %v1021, 4
      %v1024 = vor.u32 %v1023, %v1019
      %v1025 = vrot.slane %v1024, 4
      %v1027 = vshll.u32 %v942, 16
      %v1029 = vrot.slane %v1027, 5
      %v1030 = vsel %vm958, %v1025, %v1029
      %v1032 = vshrl.u32 %v913, 16
      %v1034 = vrot.slane %v1032, 4
      %v1035 = vshll.u32 %v913, 16
      %v1037 = vrot.slane %v1035, 5
      %v1038 = vor.u32 %v1034, %v1037
      %v1039 = vrot.slane %v1038, 4
      %v1041 = vshll.u32 %v914, 16
      %v1043 = vrot.slane %v1041, 5
      %v1044 = vsel %vm958, %v1039, %v1043
      %v1045 = vshrl.u32 %v914, 16
      %v1047 = vrot.slane %v1045, 4
      %v1048 = vor.u32 %v1047, %v1043
      %v1049 = vrot.slane %v1048, 4
      %v1051 = vshll.u32 %v943, 16
      %v1053 = vrot.slane %v1051, 5
      %v1054 = vsel %vm958, %v1049, %v1053
      %v1056 = vshrl.u32 %v915, 16
      %v1058 = vrot.slane %v1056, 4
      %v1059 = vshll.u32 %v915, 16
      %v1061 = vrot.slane %v1059, 5
      %v1062 = vor.u32 %v1058, %v1061
      %v1063 = vrot.slane %v1062, 4
      %v1065 = vshll.u32 %v916, 16
      %v1067 = vrot.slane %v1065, 5
      %v1068 = vsel %vm958, %v1063, %v1067
      %v1069 = vshrl.u32 %v916, 16
      %v1071 = vrot.slane %v1069, 4
      %v1072 = vor.u32 %v1071, %v1067
      %v1073 = vrot.slane %v1072, 4
      %v1075 = vshll.u32 %v944, 16
      %v1077 = vrot.slane %v1075, 5
      %v1078 = vsel %vm958, %v1073, %v1077
      %v1080 = vshrl.u32 %v917, 16
      %v1082 = vrot.slane %v1080, 4
      %v1083 = vshll.u32 %v917, 16
      %v1085 = vrot.slane %v1083, 5
      %v1086 = vor.u32 %v1082, %v1085
      %v1087 = vrot.slane %v1086, 4
      %v1089 = vshll.u32 %v918, 16
      %v1091 = vrot.slane %v1089, 5
      %v1092 = vsel %vm958, %v1087, %v1091
      %v1093 = vshrl.u32 %v918, 16
      %v1095 = vrot.slane %v1093, 4
      %v1096 = vor.u32 %v1095, %v1091
      %v1097 = vrot.slane %v1096, 4
      %v1099 = vshll.u32 %v945, 16
      %v1101 = vrot.slane %v1099, 5
      %v1102 = vsel %vm958, %v1097, %v1101
      %v1104 = vshrl.u32 %v919, 16
      %v1106 = vrot.slane %v1104, 4
      %v1107 = vshll.u32 %v919, 16
      %v1109 = vrot.slane %v1107, 5
      %v1110 = vor.u32 %v1106, %v1109
      %v1111 = vrot.slane %v1110, 4
      %v1113 = vshll.u32 %v920, 16
      %v1115 = vrot.slane %v1113, 5
      %v1116 = vsel %vm958, %v1111, %v1115
      %v1117 = vshrl.u32 %v920, 16
      %v1119 = vrot.slane %v1117, 4
      %v1120 = vor.u32 %v1119, %v1115
      %v1121 = vrot.slane %v1120, 4
      %v1123 = vshll.u32 %v946, 16
      %v1125 = vrot.slane %v1123, 5
      %v1126 = vsel %vm958, %v1121, %v1125
      %v1128 = vshrl.u32 %v921, 16
      %v1130 = vrot.slane %v1128, 4
      %v1131 = vshll.u32 %v921, 16
      %v1133 = vrot.slane %v1131, 5
      %v1134 = vor.u32 %v1130, %v1133
      %v1135 = vrot.slane %v1134, 4
      %v1137 = vshll.u32 %v922, 16
      %v1139 = vrot.slane %v1137, 5
      %v1140 = vsel %vm958, %v1135, %v1139
      %v1141 = vshrl.u32 %v922, 16
      %v1143 = vrot.slane %v1141, 4
      %v1144 = vor.u32 %v1143, %v1139
      %v1145 = vrot.slane %v1144, 4
      %v1147 = vshll.u32 %v947, 16
      %v1149 = vrot.slane %v1147, 5
      %v1150 = vsel %vm958, %v1145, %v1149
      %v1152 = vshrl.u32 %v923, 16
      %v1154 = vrot.slane %v1152, 4
      %v1155 = vshll.u32 %v923, 16
      %v1157 = vrot.slane %v1155, 5
      %v1158 = vor.u32 %v1154, %v1157
      %v1159 = vrot.slane %v1158, 4
      %v1161 = vshll.u32 %v924, 16
      %v1163 = vrot.slane %v1161, 5
      %v1164 = vsel %vm958, %v1159, %v1163
      %v1165 = vshrl.u32 %v924, 16
      %v1167 = vrot.slane %v1165, 4
      %v1168 = vor.u32 %v1167, %v1163
      %v1169 = vrot.slane %v1168, 4
      %v1171 = vshll.u32 %v948, 16
      %v1173 = vrot.slane %v1171, 5
      %v1174 = vsel %vm958, %v1169, %v1173
      %v1176 = vshrl.u32 %v925, 16
      %v1178 = vrot.slane %v1176, 4
      %v1179 = vshll.u32 %v925, 16
      %v1181 = vrot.slane %v1179, 5
      %v1182 = vor.u32 %v1178, %v1181
      %v1183 = vrot.slane %v1182, 4
      %v1185 = vshll.u32 %v926, 16
      %v1187 = vrot.slane %v1185, 5
      %v1188 = vsel %vm958, %v1183, %v1187
      %v1189 = vshrl.u32 %v926, 16
      %v1191 = vrot.slane %v1189, 4
      %v1192 = vor.u32 %v1191, %v1187
      %v1193 = vrot.slane %v1192, 4
      %v1195 = vshll.u32 %v949, 16
      %v1197 = vrot.slane %v1195, 5
      %v1198 = vsel %vm958, %v1193, %v1197
      %v1200 = vshrl.u32 %v927, 16
      %v1202 = vrot.slane %v1200, 4
      %v1203 = vshll.u32 %v927, 16
      %v1205 = vrot.slane %v1203, 5
      %v1206 = vor.u32 %v1202, %v1205
      %v1207 = vrot.slane %v1206, 4
      %v1209 = vshll.u32 %v928, 16
      %v1211 = vrot.slane %v1209, 5
      %v1212 = vsel %vm958, %v1207, %v1211
      %v1213 = vshrl.u32 %v928, 16
      %v1215 = vrot.slane %v1213, 4
      %v1216 = vor.u32 %v1215, %v1211
      %v1217 = vrot.slane %v1216, 4
      %v1219 = vshll.u32 %v950, 16
      %v1221 = vrot.slane %v1219, 5
      %v1222 = vsel %vm958, %v1217, %v1221
      %v1224 = vshrl.u32 %v929, 16
      %v1226 = vrot.slane %v1224, 4
      %v1227 = vshll.u32 %v929, 16
      %v1229 = vrot.slane %v1227, 5
      %v1230 = vor.u32 %v1226, %v1229
      %v1231 = vrot.slane %v1230, 4
      %v1233 = vshll.u32 %v930, 16
      %v1235 = vrot.slane %v1233, 5
      %v1236 = vsel %vm958, %v1231, %v1235
      %v1237 = vshrl.u32 %v930, 16
      %v1239 = vrot.slane %v1237, 4
      %v1240 = vor.u32 %v1239, %v1235
      %v1241 = vrot.slane %v1240, 4
      %v1243 = vshll.u32 %v951, 16
      %v1245 = vrot.slane %v1243, 5
      %v1246 = vsel %vm958, %v1241, %v1245
      %v1248 = vshrl.u32 %v931, 16
      %v1250 = vrot.slane %v1248, 4
      %v1251 = vshll.u32 %v931, 16
      %v1253 = vrot.slane %v1251, 5
      %v1254 = vor.u32 %v1250, %v1253
      %v1255 = vrot.slane %v1254, 4
      %v1257 = vshll.u32 %v932, 16
      %v1259 = vrot.slane %v1257, 5
      %v1260 = vsel %vm958, %v1255, %v1259
      %v1261 = vshrl.u32 %v932, 16
      %v1263 = vrot.slane %v1261, 4
      %v1264 = vor.u32 %v1263, %v1259
      %v1265 = vrot.slane %v1264, 4
      %v1267 = vshll.u32 %v952, 16
      %v1269 = vrot.slane %v1267, 5
      %v1270 = vsel %vm958, %v1265, %v1269
      %v1272 = vshrl.u32 %v933, 16
      %v1274 = vrot.slane %v1272, 4
      %v1275 = vshll.u32 %v933, 16
      %v1277 = vrot.slane %v1275, 5
      %v1278 = vor.u32 %v1274, %v1277
      %v1279 = vrot.slane %v1278, 4
      %v1281 = vshll.u32 %v934, 16
      %v1283 = vrot.slane %v1281, 5
      %v1284 = vsel %vm958, %v1279, %v1283
      %v1285 = vshrl.u32 %v934, 16
      %v1287 = vrot.slane %v1285, 4
      %v1288 = vor.u32 %v1287, %v1283
      %v1289 = vrot.slane %v1288, 4
      %v1291 = vshll.u32 %v953, 16
      %v1293 = vrot.slane %v1291, 5
      %v1294 = vsel %vm958, %v1289, %v1293
      %v1296 = vshrl.u32 %v935, 16
      %v1298 = vrot.slane %v1296, 4
      %v1299 = vshll.u32 %v935, 16
      %v1301 = vrot.slane %v1299, 5
      %v1302 = vor.u32 %v1298, %v1301
      %v1303 = vrot.slane %v1302, 4
      %v1305 = vshll.u32 %v936, 16
      %v1307 = vrot.slane %v1305, 5
      %v1308 = vsel %vm958, %v1303, %v1307
      %v1309 = vshrl.u32 %v936, 16
      %v1311 = vrot.slane %v1309, 4
      %v1312 = vor.u32 %v1311, %v1307
      %v1313 = vrot.slane %v1312, 4
      %v1315 = vshll.u32 %v954, 16
      %v1317 = vrot.slane %v1315, 5
      %v1318 = vsel %vm958, %v1313, %v1317
      %v1320 = vshrl.u32 %v937, 16
      %v1322 = vrot.slane %v1320, 4
      %v1323 = vshll.u32 %v937, 16
      %v1325 = vrot.slane %v1323, 5
      %v1326 = vor.u32 %v1322, %v1325
      %v1327 = vrot.slane %v1326, 4
      %v1329 = vshll.u32 %v938, 16
      %v1331 = vrot.slane %v1329, 5
      %v1332 = vsel %vm958, %v1327, %v1331
      %v1333 = vshrl.u32 %v938, 16
      %v1335 = vrot.slane %v1333, 4
      %v1336 = vor.u32 %v1335, %v1331
      %v1337 = vrot.slane %v1336, 4
      %v1339 = vshll.u32 %v955, 16
      %v1341 = vrot.slane %v1339, 5
      %v1342 = vsel %vm958, %v1337, %v1341
      %s1343 = scalar_lea.vmem %s2, 2
      %v1344 = vld [vmem:[%s1343] sm:$0x3]
      %v1345 = vunpack.c.l.b16 %v972
      %v1346 = vunpack.c.l.b16 %v982
      %v1347 = vunpack.c.l.b16 %v996
      %v1348 = vunpack.c.l.b16 %v1006
      %v1349 = vunpack.c.l.b16 %v1020
      %v1350 = vunpack.c.l.b16 %v1030
      %v1351 = vunpack.c.l.b16 %v1044
      %v1352 = vunpack.c.l.b16 %v1054
      %v1353 = vunpack.c.l.b16 %v1068
      %v1354 = vunpack.c.l.b16 %v1078
      %v1355 = vunpack.c.l.b16 %v1092
      %v1356 = vunpack.c.l.b16 %v1102
      %v1357 = vunpack.c.l.b16 %v1116
      %v1358 = vunpack.c.l.b16 %v1126
      %v1359 = vunpack.c.l.b16 %v1140
      %v1360 = vunpack.c.l.b16 %v1150
      %v1361 = vunpack.c.l.b16 %v1164
      %v1362 = vunpack.c.l.b16 %v1174
      %v1363 = vunpack.c.l.b16 %v1188
      %v1364 = vunpack.c.l.b16 %v1198
      %v1365 = vunpack.c.l.b16 %v1212
      %v1366 = vunpack.c.l.b16 %v1222
      %v1367 = vunpack.c.l.b16 %v1236
      %v1368 = vunpack.c.l.b16 %v1246
      %v1369 = vunpack.c.l.b16 %v1260
      %v1370 = vunpack.c.l.b16 %v1270
      %v1371 = vunpack.c.l.b16 %v1284
      %v1372 = vunpack.c.l.b16 %v1294
      %v1373 = vunpack.c.l.b16 %v1308
      %v1374 = vunpack.c.l.b16 %v1318
      %v1375 = vunpack.c.l.b16 %v1332
      %v1376 = vunpack.c.l.b16 %v1342
      %v1377 = vpack.c.b16 %v1346, %v1345
      %v1378 = vpack.c.b16 %v1348, %v1347
      %v1379 = vpack.c.b16 %v1350, %v1349
      %v1380 = vpack.c.b16 %v1352, %v1351
      %v1381 = vpack.c.b16 %v1354, %v1353
      %v1382 = vpack.c.b16 %v1356, %v1355
      %v1383 = vpack.c.b16 %v1358, %v1357
      %v1384 = vpack.c.b16 %v1360, %v1359
      %v1385 = vpack.c.b16 %v1362, %v1361
      %v1386 = vpack.c.b16 %v1364, %v1363
      %v1387 = vpack.c.b16 %v1366, %v1365
      %v1388 = vpack.c.b16 %v1368, %v1367
      %v1389 = vpack.c.b16 %v1370, %v1369
      %v1390 = vpack.c.b16 %v1372, %v1371
      %v1391 = vpack.c.b16 %v1374, %v1373
      %v1392 = vpack.c.b16 %v1376, %v1375
      %vm1393 = vcmask 31744
      %v1395 = vsel %vm1393, %v1377, 0
      %v1398 = vsel %vm1393, %v1378, 0
      %v1401 = vsel %vm1393, %v1379, 0
      %v1404 = vsel %vm1393, %v1380, 0
      %v1407 = vsel %vm1393, %v1381, 0
      %v1410 = vsel %vm1393, %v1382, 0
      %v1413 = vsel %vm1393, %v1383, 0
      %v1416 = vsel %vm1393, %v1384, 0
      %v1419 = vsel %vm1393, %v1385, 0
      %v1422 = vsel %vm1393, %v1386, 0
      %v1425 = vsel %vm1393, %v1387, 0
      %v1428 = vsel %vm1393, %v1388, 0
      %v1431 = vsel %vm1393, %v1389, 0
      %v1434 = vsel %vm1393, %v1390, 0
      %v1437 = vsel %vm1393, %v1391, 0
      %v1440 = vsel %vm1393, %v1392, 0
      %vm1442 = vcmask 1041408
      %v1444 = vsel %vm1442, %v1344, 0
      %1446 = vmatpush.bf16.msra.mxu0 0
      %1447 = vmatpush.bf16.msra.mxu0 0
      %1448 = vmatpush.bf16.msra.mxu0 0
      %1449 = vmatpush.bf16.msra.mxu0 0
      %1450 = vmatpush.bf16.msra.mxu0 0
      %1451 = vmatpush.bf16.msra.mxu0 0
      %1452 = vmatpush.bf16.msra.mxu0 0
      %1453 = vmatpush.bf16.msra.mxu0 %v1444
      %1454 = vmatmul.bf16.gmra.mxu0 %v1395
      %v1455 = vpop.f32.mrf.mxu0
      %v1456 = vadd.f32 0.0, %v1455
      %v1457 = vpop.f32.mrf.mxu0
      %v1458 = vadd.f32 0.0, %v1457
      %1459 = vmatmul.bf16.gmra.mxu0 %v1398
      %v1460 = vpop.f32.mrf.mxu0
      %v1461 = vadd.f32 0.0, %v1460
      %v1462 = vpop.f32.mrf.mxu0
      %v1463 = vadd.f32 0.0, %v1462
      %1464 = vmatmul.bf16.gmra.mxu0 %v1401
      %v1465 = vpop.f32.mrf.mxu0
      %v1466 = vadd.f32 0.0, %v1465
      %v1467 = vpop.f32.mrf.mxu0
      %v1468 = vadd.f32 0.0, %v1467
      %1469 = vmatmul.bf16.gmra.mxu0 %v1404
      %v1470 = vpop.f32.mrf.mxu0
      %v1471 = vadd.f32 0.0, %v1470
      %v1472 = vpop.f32.mrf.mxu0
      %v1473 = vadd.f32 0.0, %v1472
      %1474 = vmatmul.bf16.gmra.mxu0 %v1407
      %v1475 = vpop.f32.mrf.mxu0
      %v1476 = vadd.f32 0.0, %v1475
      %v1477 = vpop.f32.mrf.mxu0
      %v1478 = vadd.f32 0.0, %v1477
      %1479 = vmatmul.bf16.gmra.mxu0 %v1410
      %v1480 = vpop.f32.mrf.mxu0
      %v1481 = vadd.f32 0.0, %v1480
      %v1482 = vpop.f32.mrf.mxu0
      %v1483 = vadd.f32 0.0, %v1482
      %1484 = vmatmul.bf16.gmra.mxu0 %v1413
      %v1485 = vpop.f32.mrf.mxu0
      %v1486 = vadd.f32 0.0, %v1485
      %v1487 = vpop.f32.mrf.mxu0
      %v1488 = vadd.f32 0.0, %v1487
      %1489 = vmatmul.bf16.gmra.mxu0 %v1416
      %v1490 = vpop.f32.mrf.mxu0
      %v1491 = vadd.f32 0.0, %v1490
      %v1492 = vpop.f32.mrf.mxu0
      %v1493 = vadd.f32 0.0, %v1492
      %1494 = vmatmul.bf16.gmra.mxu0 %v1419
      %v1495 = vpop.f32.mrf.mxu0
      %v1496 = vadd.f32 0.0, %v1495
      %v1497 = vpop.f32.mrf.mxu0
      %v1498 = vadd.f32 0.0, %v1497
      %1499 = vmatmul.bf16.gmra.mxu0 %v1422
      %v1500 = vpop.f32.mrf.mxu0
      %v1501 = vadd.f32 0.0, %v1500
      %v1502 = vpop.f32.mrf.mxu0
      %v1503 = vadd.f32 0.0, %v1502
      %1504 = vmatmul.bf16.gmra.mxu0 %v1425
      %v1505 = vpop.f32.mrf.mxu0
      %v1506 = vadd.f32 0.0, %v1505
      %v1507 = vpop.f32.mrf.mxu0
      %v1508 = vadd.f32 0.0, %v1507
      %1509 = vmatmul.bf16.gmra.mxu0 %v1428
      %v1510 = vpop.f32.mrf.mxu0
      %v1511 = vadd.f32 0.0, %v1510
      %v1512 = vpop.f32.mrf.mxu0
      %v1513 = vadd.f32 0.0, %v1512
      %1514 = vmatmul.bf16.gmra.mxu0 %v1431
      %v1515 = vpop.f32.mrf.mxu0
      %v1516 = vadd.f32 0.0, %v1515
      %v1517 = vpop.f32.mrf.mxu0
      %v1518 = vadd.f32 0.0, %v1517
      %1519 = vmatmul.bf16.gmra.mxu0 %v1434
      %v1520 = vpop.f32.mrf.mxu0
      %v1521 = vadd.f32 0.0, %v1520
      %v1522 = vpop.f32.mrf.mxu0
      %v1523 = vadd.f32 0.0, %v1522
      %1524 = vmatmul.bf16.gmra.mxu0 %v1437
      %v1525 = vpop.f32.mrf.mxu0
      %v1526 = vadd.f32 0.0, %v1525
      %v1527 = vpop.f32.mrf.mxu0
      %v1528 = vadd.f32 0.0, %v1527
      %1529 = vmatmul.bf16.gmra.mxu0 %v1440
      %v1530 = vpop.f32.mrf.mxu0
      %v1531 = vadd.f32 0.0, %v1530
      %v1532 = vpop.f32.mrf.mxu0
      %v1533 = vadd.f32 0.0, %v1532
      %1534 = vdwg.mxu0
      %v1567 = vunpack.c.l.b16 %v907
      %v1568 = vunpack.c.l.b16 %v908
      %v1569 = vunpack.c.l.b16 %v909
      %v1570 = vunpack.c.l.b16 %v910
      %v1571 = vunpack.c.l.b16 %v911
      %v1572 = vunpack.c.l.b16 %v912
      %v1573 = vunpack.c.l.b16 %v913
      %v1574 = vunpack.c.l.b16 %v914
      %v1575 = vunpack.c.l.b16 %v915
      %v1576 = vunpack.c.l.b16 %v916
      %v1577 = vunpack.c.l.b16 %v917
      %v1578 = vunpack.c.l.b16 %v918
      %v1579 = vunpack.c.l.b16 %v919
      %v1580 = vunpack.c.l.b16 %v920
      %v1581 = vunpack.c.l.b16 %v921
      %v1582 = vunpack.c.l.b16 %v922
      %v1583 = vunpack.c.l.b16 %v923
      %v1584 = vunpack.c.l.b16 %v924
      %v1585 = vunpack.c.l.b16 %v925
      %v1586 = vunpack.c.l.b16 %v926
      %v1587 = vunpack.c.l.b16 %v927
      %v1588 = vunpack.c.l.b16 %v928
      %v1589 = vunpack.c.l.b16 %v929
      %v1590 = vunpack.c.l.b16 %v930
      %v1591 = vunpack.c.l.b16 %v931
      %v1592 = vunpack.c.l.b16 %v932
      %v1593 = vunpack.c.l.b16 %v933
      %v1594 = vunpack.c.l.b16 %v934
      %v1595 = vunpack.c.l.b16 %v935
      %v1596 = vunpack.c.l.b16 %v936
      %v1597 = vunpack.c.l.b16 %v937
      %v1598 = vunpack.c.l.b16 %v938
      %v1599 = vpack.c.b16 %v1568, %v1567
      %v1600 = vpack.c.b16 %v1570, %v1569
      %v1601 = vpack.c.b16 %v1572, %v1571
      %v1602 = vpack.c.b16 %v1574, %v1573
      %v1603 = vpack.c.b16 %v1576, %v1575
      %v1604 = vpack.c.b16 %v1578, %v1577
      %v1605 = vpack.c.b16 %v1580, %v1579
      %v1606 = vpack.c.b16 %v1582, %v1581
      %v1607 = vpack.c.b16 %v1584, %v1583
      %v1608 = vpack.c.b16 %v1586, %v1585
      %v1609 = vpack.c.b16 %v1588, %v1587
      %v1610 = vpack.c.b16 %v1590, %v1589
      %v1611 = vpack.c.b16 %v1592, %v1591
      %v1612 = vpack.c.b16 %v1594, %v1593
      %v1613 = vpack.c.b16 %v1596, %v1595
      %v1614 = vpack.c.b16 %v1598, %v1597
      %v1616 = vsel %vm1393, %v1599, 0
      %v1619 = vsel %vm1393, %v1600, 0
      %v1622 = vsel %vm1393, %v1601, 0
      %v1625 = vsel %vm1393, %v1602, 0
      %v1628 = vsel %vm1393, %v1603, 0
      %v1631 = vsel %vm1393, %v1604, 0
      %v1634 = vsel %vm1393, %v1605, 0
      %v1637 = vsel %vm1393, %v1606, 0
      %v1640 = vsel %vm1393, %v1607, 0
      %v1643 = vsel %vm1393, %v1608, 0
      %v1646 = vsel %vm1393, %v1609, 0
      %v1649 = vsel %vm1393, %v1610, 0
      %v1652 = vsel %vm1393, %v1611, 0
      %v1655 = vsel %vm1393, %v1612, 0
      %v1658 = vsel %vm1393, %v1613, 0
      %v1661 = vsel %vm1393, %v1614, 0
      %v1664 = vsel %vm1442, %v939, 0
      %1666 = vmatpush.bf16.msra.mxu0 0
      %1667 = vmatpush.bf16.msra.mxu0 0
      %1668 = vmatpush.bf16.msra.mxu0 0
      %1669 = vmatpush.bf16.msra.mxu0 0
      %1670 = vmatpush.bf16.msra.mxu0 0
      %1671 = vmatpush.bf16.msra.mxu0 0
      %1672 = vmatpush.bf16.msra.mxu0 0
      %1673 = vmatpush.bf16.msra.mxu0 %v1664
      %1674 = vmatmul.bf16.gmra.mxu0 %v1616
      %v1675 = vpop.f32.mrf.mxu0
      %v1676 = vadd.f32 %v1456, %v1675
      %v1677 = vpop.f32.mrf.mxu0
      %v1678 = vadd.f32 %v1458, %v1677
      %1679 = vmatmul.bf16.gmra.mxu0 %v1619
      %v1680 = vpop.f32.mrf.mxu0
      %v1681 = vadd.f32 %v1461, %v1680
      %v1682 = vpop.f32.mrf.mxu0
      %v1683 = vadd.f32 %v1463, %v1682
      %1684 = vmatmul.bf16.gmra.mxu0 %v1622
      %v1685 = vpop.f32.mrf.mxu0
      %v1686 = vadd.f32 %v1466, %v1685
      %v1687 = vpop.f32.mrf.mxu0
      %v1688 = vadd.f32 %v1468, %v1687
      %1689 = vmatmul.bf16.gmra.mxu0 %v1625
      %v1690 = vpop.f32.mrf.mxu0
      %v1691 = vadd.f32 %v1471, %v1690
      %v1692 = vpop.f32.mrf.mxu0
      %v1693 = vadd.f32 %v1473, %v1692
      %1694 = vmatmul.bf16.gmra.mxu0 %v1628
      %v1695 = vpop.f32.mrf.mxu0
      %v1696 = vadd.f32 %v1476, %v1695
      %v1697 = vpop.f32.mrf.mxu0
      %v1698 = vadd.f32 %v1478, %v1697
      %1699 = vmatmul.bf16.gmra.mxu0 %v1631
      %v1700 = vpop.f32.mrf.mxu0
      %v1701 = vadd.f32 %v1481, %v1700
      %v1702 = vpop.f32.mrf.mxu0
      %v1703 = vadd.f32 %v1483, %v1702
      %1704 = vmatmul.bf16.gmra.mxu0 %v1634
      %v1705 = vpop.f32.mrf.mxu0
      %v1706 = vadd.f32 %v1486, %v1705
      %v1707 = vpop.f32.mrf.mxu0
      %v1708 = vadd.f32 %v1488, %v1707
      %1709 = vmatmul.bf16.gmra.mxu0 %v1637
      %v1710 = vpop.f32.mrf.mxu0
      %v1711 = vadd.f32 %v1491, %v1710
      %v1712 = vpop.f32.mrf.mxu0
      %v1713 = vadd.f32 %v1493, %v1712
      %1714 = vmatmul.bf16.gmra.mxu0 %v1640
      %v1715 = vpop.f32.mrf.mxu0
      %v1716 = vadd.f32 %v1496, %v1715
      %v1717 = vpop.f32.mrf.mxu0
      %v1718 = vadd.f32 %v1498, %v1717
      %1719 = vmatmul.bf16.gmra.mxu0 %v1643
      %v1720 = vpop.f32.mrf.mxu0
      %v1721 = vadd.f32 %v1501, %v1720
      %v1722 = vpop.f32.mrf.mxu0
      %v1723 = vadd.f32 %v1503, %v1722
      %1724 = vmatmul.bf16.gmra.mxu0 %v1646
      %v1725 = vpop.f32.mrf.mxu0
      %v1726 = vadd.f32 %v1506, %v1725
      %v1727 = vpop.f32.mrf.mxu0
      %v1728 = vadd.f32 %v1508, %v1727
      %1729 = vmatmul.bf16.gmra.mxu0 %v1649
      %v1730 = vpop.f32.mrf.mxu0
      %v1731 = vadd.f32 %v1511, %v1730
      %v1732 = vpop.f32.mrf.mxu0
      %v1733 = vadd.f32 %v1513, %v1732
      %1734 = vmatmul.bf16.gmra.mxu0 %v1652
      %v1735 = vpop.f32.mrf.mxu0
      %v1736 = vadd.f32 %v1516, %v1735
      %v1737 = vpop.f32.mrf.mxu0
      %v1738 = vadd.f32 %v1518, %v1737
      %1739 = vmatmul.bf16.gmra.mxu0 %v1655
      %v1740 = vpop.f32.mrf.mxu0
      %v1741 = vadd.f32 %v1521, %v1740
      %v1742 = vpop.f32.mrf.mxu0
      %v1743 = vadd.f32 %v1523, %v1742
      %1744 = vmatmul.bf16.gmra.mxu0 %v1658
      %v1745 = vpop.f32.mrf.mxu0
      %v1746 = vadd.f32 %v1526, %v1745
      %v1747 = vpop.f32.mrf.mxu0
      %v1748 = vadd.f32 %v1528, %v1747
      %1749 = vmatmul.bf16.gmra.mxu0 %v1661
      %v1750 = vpop.f32.mrf.mxu0
      %v1751 = vadd.f32 %v1531, %v1750
      %v1752 = vpop.f32.mrf.mxu0
      %v1753 = vadd.f32 %v1533, %v1752
      %1754 = vdwg.mxu0
      %v1755 = vld [vmem:[#allocation2] sm:$0xe]
      %v1756 = vld [vmem:[#allocation2 + $0xc] sm:$0xe]
      %v1757 = vld [vmem:[#allocation2 + $0x18] sm:$0xe]
      %v1758 = vld [vmem:[#allocation2 + $0x24] sm:$0xe]
      %v1759 = vld [vmem:[#allocation2 + $0x30] sm:$0xe]
      %v1760 = vld [vmem:[#allocation2 + $0x3c] sm:$0xe]
      %v1761 = vld [vmem:[#allocation2 + $0x48] sm:$0xe]
      %v1762 = vld [vmem:[#allocation2 + $0x54] sm:$0xe]
      %v1763 = vld [vmem:[#allocation2 + $0x60] sm:$0xe]
      %v1764 = vld [vmem:[#allocation2 + $0x6c] sm:$0xe]
      %v1765 = vld [vmem:[#allocation2 + $0x78] sm:$0xe]
      %v1766 = vld [vmem:[#allocation2 + $0x84] sm:$0xe]
      %v1767 = vld [vmem:[#allocation2 + $0x90] sm:$0xe]
      %v1768 = vld [vmem:[#allocation2 + $0x9c] sm:$0xe]
      %v1769 = vld [vmem:[#allocation2 + $0xa8] sm:$0xe]
      %v1770 = vld [vmem:[#allocation2 + $0xb4] sm:$0xe]
      %vm1803 = vcmask 1042432
      %vm1804 = vcmask 1046532
      %vm1805 = vmor %vm1803, %vm1804
      %v1806 = vrot.slane %v1755, 5
      %v1807 = vrot.slane %v1806, 4
      %v1808 = vrot.slane %v908, 5
      %v1809 = vsel %vm1805, %v1807, %v1808
      %v1810 = vrot.slane %v1808, 4
      %v1811 = vrot.slane %v940, 5
      %v1812 = vsel %vm1805, %v1810, %v1811
      %v1813 = vrot.slane %v1756, 5
      %v1814 = vrot.slane %v1813, 4
      %v1815 = vrot.slane %v910, 5
      %v1816 = vsel %vm1805, %v1814, %v1815
      %v1817 = vrot.slane %v1815, 4
      %v1818 = vrot.slane %v941, 5
      %v1819 = vsel %vm1805, %v1817, %v1818
      %v1820 = vrot.slane %v1757, 5
      %v1821 = vrot.slane %v1820, 4
      %v1822 = vrot.slane %v912, 5
      %v1823 = vsel %vm1805, %v1821, %v1822
      %v1824 = vrot.slane %v1822, 4
      %v1825 = vrot.slane %v942, 5
      %v1826 = vsel %vm1805, %v1824, %v1825
      %v1827 = vrot.slane %v1758, 5
      %v1828 = vrot.slane %v1827, 4
      %v1829 = vrot.slane %v914, 5
      %v1830 = vsel %vm1805, %v1828, %v1829
      %v1831 = vrot.slane %v1829, 4
      %v1832 = vrot.slane %v943, 5
      %v1833 = vsel %vm1805, %v1831, %v1832
      %v1834 = vrot.slane %v1759, 5
      %v1835 = vrot.slane %v1834, 4
      %v1836 = vrot.slane %v916, 5
      %v1837 = vsel %vm1805, %v1835, %v1836
      %v1838 = vrot.slane %v1836, 4
      %v1839 = vrot.slane %v944, 5
      %v1840 = vsel %vm1805, %v1838, %v1839
      %v1841 = vrot.slane %v1760, 5
      %v1842 = vrot.slane %v1841, 4
      %v1843 = vrot.slane %v918, 5
      %v1844 = vsel %vm1805, %v1842, %v1843
      %v1845 = vrot.slane %v1843, 4
      %v1846 = vrot.slane %v945, 5
      %v1847 = vsel %vm1805, %v1845, %v1846
      %v1848 = vrot.slane %v1761, 5
      %v1849 = vrot.slane %v1848, 4
      %v1850 = vrot.slane %v920, 5
      %v1851 = vsel %vm1805, %v1849, %v1850
      %v1852 = vrot.slane %v1850, 4
      %v1853 = vrot.slane %v946, 5
      %v1854 = vsel %vm1805, %v1852, %v1853
      %v1855 = vrot.slane %v1762, 5
      %v1856 = vrot.slane %v1855, 4
      %v1857 = vrot.slane %v922, 5
      %v1858 = vsel %vm1805, %v1856, %v1857
      %v1859 = vrot.slane %v1857, 4
      %v1860 = vrot.slane %v947, 5
      %v1861 = vsel %vm1805, %v1859, %v1860
      %v1862 = vrot.slane %v1763, 5
      %v1863 = vrot.slane %v1862, 4
      %v1864 = vrot.slane %v924, 5
      %v1865 = vsel %vm1805, %v1863, %v1864
      %v1866 = vrot.slane %v1864, 4
      %v1867 = vrot.slane %v948, 5
      %v1868 = vsel %vm1805, %v1866, %v1867
      %v1869 = vrot.slane %v1764, 5
      %v1870 = vrot.slane %v1869, 4
      %v1871 = vrot.slane %v926, 5
      %v1872 = vsel %vm1805, %v1870, %v1871
      %v1873 = vrot.slane %v1871, 4
      %v1874 = vrot.slane %v949, 5
      %v1875 = vsel %vm1805, %v1873, %v1874
      %v1876 = vrot.slane %v1765, 5
      %v1877 = vrot.slane %v1876, 4
      %v1878 = vrot.slane %v928, 5
      %v1879 = vsel %vm1805, %v1877, %v1878
      %v1880 = vrot.slane %v1878, 4
      %v1881 = vrot.slane %v950, 5
      %v1882 = vsel %vm1805, %v1880, %v1881
      %v1883 = vrot.slane %v1766, 5
      %v1884 = vrot.slane %v1883, 4
      %v1885 = vrot.slane %v930, 5
      %v1886 = vsel %vm1805, %v1884, %v1885
      %v1887 = vrot.slane %v1885, 4
      %v1888 = vrot.slane %v951, 5
      %v1889 = vsel %vm1805, %v1887, %v1888
      %v1890 = vrot.slane %v1767, 5
      %v1891 = vrot.slane %v1890, 4
      %v1892 = vrot.slane %v932, 5
      %v1893 = vsel %vm1805, %v1891, %v1892
      %v1894 = vrot.slane %v1892, 4
      %v1895 = vrot.slane %v952, 5
      %v1896 = vsel %vm1805, %v1894, %v1895
      %v1897 = vrot.slane %v1768, 5
      %v1898 = vrot.slane %v1897, 4
      %v1899 = vrot.slane %v934, 5
      %v1900 = vsel %vm1805, %v1898, %v1899
      %v1901 = vrot.slane %v1899, 4
      %v1902 = vrot.slane %v953, 5
      %v1903 = vsel %vm1805, %v1901, %v1902
      %v1904 = vrot.slane %v1769, 5
      %v1905 = vrot.slane %v1904, 4
      %v1906 = vrot.slane %v936, 5
      %v1907 = vsel %vm1805, %v1905, %v1906
      %v1908 = vrot.slane %v1906, 4
      %v1909 = vrot.slane %v954, 5
      %v1910 = vsel %vm1805, %v1908, %v1909
      %v1911 = vrot.slane %v1770, 5
      %v1912 = vrot.slane %v1911, 4
      %v1913 = vrot.slane %v938, 5
      %v1914 = vsel %vm1805, %v1912, %v1913
      %v1915 = vrot.slane %v1913, 4
      %v1916 = vrot.slane %v955, 5
      %v1917 = vsel %vm1805, %v1915, %v1916
      %s1918 = scalar_lea.vmem %s2, 4
      %v1919 = vld [vmem:[%s1918] sm:$0x3]
      %v1920 = vunpack.c.l.b16 %v1809
      %v1921 = vunpack.c.l.b16 %v1812
      %v1922 = vunpack.c.l.b16 %v1816
      %v1923 = vunpack.c.l.b16 %v1819
      %v1924 = vunpack.c.l.b16 %v1823
      %v1925 = vunpack.c.l.b16 %v1826
      %v1926 = vunpack.c.l.b16 %v1830
      %v1927 = vunpack.c.l.b16 %v1833
      %v1928 = vunpack.c.l.b16 %v1837
      %v1929 = vunpack.c.l.b16 %v1840
      %v1930 = vunpack.c.l.b16 %v1844
      %v1931 = vunpack.c.l.b16 %v1847
      %v1932 = vunpack.c.l.b16 %v1851
      %v1933 = vunpack.c.l.b16 %v1854
      %v1934 = vunpack.c.l.b16 %v1858
      %v1935 = vunpack.c.l.b16 %v1861
      %v1936 = vunpack.c.l.b16 %v1865
      %v1937 = vunpack.c.l.b16 %v1868
      %v1938 = vunpack.c.l.b16 %v1872
      %v1939 = vunpack.c.l.b16 %v1875
      %v1940 = vunpack.c.l.b16 %v1879
      %v1941 = vunpack.c.l.b16 %v1882
      %v1942 = vunpack.c.l.b16 %v1886
      %v1943 = vunpack.c.l.b16 %v1889
      %v1944 = vunpack.c.l.b16 %v1893
      %v1945 = vunpack.c.l.b16 %v1896
      %v1946 = vunpack.c.l.b16 %v1900
      %v1947 = vunpack.c.l.b16 %v1903
      %v1948 = vunpack.c.l.b16 %v1907
      %v1949 = vunpack.c.l.b16 %v1910
      %v1950 = vunpack.c.l.b16 %v1914
      %v1951 = vunpack.c.l.b16 %v1917
      %v1952 = vpack.c.b16 %v1921, %v1920
      %v1953 = vpack.c.b16 %v1923, %v1922
      %v1954 = vpack.c.b16 %v1925, %v1924
      %v1955 = vpack.c.b16 %v1927, %v1926
      %v1956 = vpack.c.b16 %v1929, %v1928
      %v1957 = vpack.c.b16 %v1931, %v1930
      %v1958 = vpack.c.b16 %v1933, %v1932
      %v1959 = vpack.c.b16 %v1935, %v1934
      %v1960 = vpack.c.b16 %v1937, %v1936
      %v1961 = vpack.c.b16 %v1939, %v1938
      %v1962 = vpack.c.b16 %v1941, %v1940
      %v1963 = vpack.c.b16 %v1943, %v1942
      %v1964 = vpack.c.b16 %v1945, %v1944
      %v1965 = vpack.c.b16 %v1947, %v1946
      %v1966 = vpack.c.b16 %v1949, %v1948
      %v1967 = vpack.c.b16 %v1951, %v1950
      %v1969 = vsel %vm1393, %v1952, 0
      %v1972 = vsel %vm1393, %v1953, 0
      %v1975 = vsel %vm1393, %v1954, 0
      %v1978 = vsel %vm1393, %v1955, 0
      %v1981 = vsel %vm1393, %v1956, 0
      %v1984 = vsel %vm1393, %v1957, 0
      %v1987 = vsel %vm1393, %v1958, 0
      %v1990 = vsel %vm1393, %v1959, 0
      %v1993 = vsel %vm1393, %v1960, 0
      %v1996 = vsel %vm1393, %v1961, 0
      %v1999 = vsel %vm1393, %v1962, 0
      %v2002 = vsel %vm1393, %v1963, 0
      %v2005 = vsel %vm1393, %v1964, 0
      %v2008 = vsel %vm1393, %v1965, 0
      %v2011 = vsel %vm1393, %v1966, 0
      %v2014 = vsel %vm1393, %v1967, 0
      %v2017 = vsel %vm1442, %v1919, 0
      %2019 = vmatpush.bf16.msra.mxu0 0
      %2020 = vmatpush.bf16.msra.mxu0 0
      %2021 = vmatpush.bf16.msra.mxu0 0
      %2022 = vmatpush.bf16.msra.mxu0 0
      %2023 = vmatpush.bf16.msra.mxu0 0
      %2024 = vmatpush.bf16.msra.mxu0 0
      %2025 = vmatpush.bf16.msra.mxu0 0
      %2026 = vmatpush.bf16.msra.mxu0 %v2017
      %2027 = vmatmul.bf16.gmra.mxu0 %v1969
      %v2028 = vpop.f32.mrf.mxu0
      %v2029 = vadd.f32 0.0, %v2028
      %v2030 = vpop.f32.mrf.mxu0
      %v2031 = vadd.f32 0.0, %v2030
      %2032 = vmatmul.bf16.gmra.mxu0 %v1972
      %v2033 = vpop.f32.mrf.mxu0
      %v2034 = vadd.f32 0.0, %v2033
      %v2035 = vpop.f32.mrf.mxu0
      %v2036 = vadd.f32 0.0, %v2035
      %2037 = vmatmul.bf16.gmra.mxu0 %v1975
      %v2038 = vpop.f32.mrf.mxu0
      %v2039 = vadd.f32 0.0, %v2038
      %v2040 = vpop.f32.mrf.mxu0
      %v2041 = vadd.f32 0.0, %v2040
      %2042 = vmatmul.bf16.gmra.mxu0 %v1978
      %v2043 = vpop.f32.mrf.mxu0
      %v2044 = vadd.f32 0.0, %v2043
      %v2045 = vpop.f32.mrf.mxu0
      %v2046 = vadd.f32 0.0, %v2045
      %2047 = vmatmul.bf16.gmra.mxu0 %v1981
      %v2048 = vpop.f32.mrf.mxu0
      %v2049 = vadd.f32 0.0, %v2048
      %v2050 = vpop.f32.mrf.mxu0
      %v2051 = vadd.f32 0.0, %v2050
      %2052 = vmatmul.bf16.gmra.mxu0 %v1984
      %v2053 = vpop.f32.mrf.mxu0
      %v2054 = vadd.f32 0.0, %v2053
      %v2055 = vpop.f32.mrf.mxu0
      %v2056 = vadd.f32 0.0, %v2055
      %2057 = vmatmul.bf16.gmra.mxu0 %v1987
      %v2058 = vpop.f32.mrf.mxu0
      %v2059 = vadd.f32 0.0, %v2058
      %v2060 = vpop.f32.mrf.mxu0
      %v2061 = vadd.f32 0.0, %v2060
      %2062 = vmatmul.bf16.gmra.mxu0 %v1990
      %v2063 = vpop.f32.mrf.mxu0
      %v2064 = vadd.f32 0.0, %v2063
      %v2065 = vpop.f32.mrf.mxu0
      %v2066 = vadd.f32 0.0, %v2065
      %2067 = vmatmul.bf16.gmra.mxu0 %v1993
      %v2068 = vpop.f32.mrf.mxu0
      %v2069 = vadd.f32 0.0, %v2068
      %v2070 = vpop.f32.mrf.mxu0
      %v2071 = vadd.f32 0.0, %v2070
      %2072 = vmatmul.bf16.gmra.mxu0 %v1996
      %v2073 = vpop.f32.mrf.mxu0
      %v2074 = vadd.f32 0.0, %v2073
      %v2075 = vpop.f32.mrf.mxu0
      %v2076 = vadd.f32 0.0, %v2075
      %2077 = vmatmul.bf16.gmra.mxu0 %v1999
      %v2078 = vpop.f32.mrf.mxu0
      %v2079 = vadd.f32 0.0, %v2078
      %v2080 = vpop.f32.mrf.mxu0
      %v2081 = vadd.f32 0.0, %v2080
      %2082 = vmatmul.bf16.gmra.mxu0 %v2002
      %v2083 = vpop.f32.mrf.mxu0
      %v2084 = vadd.f32 0.0, %v2083
      %v2085 = vpop.f32.mrf.mxu0
      %v2086 = vadd.f32 0.0, %v2085
      %2087 = vmatmul.bf16.gmra.mxu0 %v2005
      %v2088 = vpop.f32.mrf.mxu0
      %v2089 = vadd.f32 0.0, %v2088
      %v2090 = vpop.f32.mrf.mxu0
      %v2091 = vadd.f32 0.0, %v2090
      %2092 = vmatmul.bf16.gmra.mxu0 %v2008
      %v2093 = vpop.f32.mrf.mxu0
      %v2094 = vadd.f32 0.0, %v2093
      %v2095 = vpop.f32.mrf.mxu0
      %v2096 = vadd.f32 0.0, %v2095
      %2097 = vmatmul.bf16.gmra.mxu0 %v2011
      %v2098 = vpop.f32.mrf.mxu0
      %v2099 = vadd.f32 0.0, %v2098
      %v2100 = vpop.f32.mrf.mxu0
      %v2101 = vadd.f32 0.0, %v2100
      %2102 = vmatmul.bf16.gmra.mxu0 %v2014
      %v2103 = vpop.f32.mrf.mxu0
      %v2104 = vadd.f32 0.0, %v2103
      %v2105 = vpop.f32.mrf.mxu0
      %v2106 = vadd.f32 0.0, %v2105
      %2107 = vdwg.mxu0
      %v2108 = vadd.f32 %v1676, %v2029
      %v2109 = vadd.f32 %v1678, %v2031
      %v2110 = vadd.f32 %v1681, %v2034
      %v2111 = vadd.f32 %v1683, %v2036
      %v2112 = vadd.f32 %v1686, %v2039
      %v2113 = vadd.f32 %v1688, %v2041
      %v2114 = vadd.f32 %v1691, %v2044
      %v2115 = vadd.f32 %v1693, %v2046
      %v2116 = vadd.f32 %v1696, %v2049
      %v2117 = vadd.f32 %v1698, %v2051
      %v2118 = vadd.f32 %v1701, %v2054
      %v2119 = vadd.f32 %v1703, %v2056
      %v2120 = vadd.f32 %v1706, %v2059
      %v2121 = vadd.f32 %v1708, %v2061
      %v2122 = vadd.f32 %v1711, %v2064
      %v2123 = vadd.f32 %v1713, %v2066
      %v2124 = vadd.f32 %v1716, %v2069
      %v2125 = vadd.f32 %v1718, %v2071
      %v2126 = vadd.f32 %v1721, %v2074
      %v2127 = vadd.f32 %v1723, %v2076
      %v2128 = vadd.f32 %v1726, %v2079
      %v2129 = vadd.f32 %v1728, %v2081
      %v2130 = vadd.f32 %v1731, %v2084
      %v2131 = vadd.f32 %v1733, %v2086
      %v2132 = vadd.f32 %v1736, %v2089
      %v2133 = vadd.f32 %v1738, %v2091
      %v2134 = vadd.f32 %v1741, %v2094
      %v2135 = vadd.f32 %v1743, %v2096
      %v2136 = vadd.f32 %v1746, %v2099
      %v2137 = vadd.f32 %v1748, %v2101
      %v2138 = vadd.f32 %v1751, %v2104
      %v2139 = vadd.f32 %v1753, %v2106
      %v2140 = vld [vmem:[%s788] sm:$0xf]
      %v2141 = vld [vmem:[%s788 + $0x4] sm:$0xf]
      %v2142 = vld [vmem:[%s788 + $0xc] sm:$0xf]
      %v2143 = vld [vmem:[%s788 + $0x10] sm:$0xf]
      %v2144 = vld [vmem:[%s788 + $0x18] sm:$0xf]
      %v2145 = vld [vmem:[%s788 + $0x1c] sm:$0xf]
      %v2146 = vld [vmem:[%s788 + $0x24] sm:$0xf]
      %v2147 = vld [vmem:[%s788 + $0x28] sm:$0xf]
      %v2148 = vld [vmem:[%s788 + $0x30] sm:$0xf]
      %v2149 = vld [vmem:[%s788 + $0x34] sm:$0xf]
      %v2150 = vld [vmem:[%s788 + $0x3c] sm:$0xf]
      %v2151 = vld [vmem:[%s788 + $0x40] sm:$0xf]
      %v2152 = vld [vmem:[%s788 + $0x48] sm:$0xf]
      %v2153 = vld [vmem:[%s788 + $0x4c] sm:$0xf]
      %v2154 = vld [vmem:[%s788 + $0x54] sm:$0xf]
      %v2155 = vld [vmem:[%s788 + $0x58] sm:$0xf]
      %v2156 = vld [vmem:[%s788 + $0x60] sm:$0xf]
      %v2157 = vld [vmem:[%s788 + $0x64] sm:$0xf]
      %v2158 = vld [vmem:[%s788 + $0x6c] sm:$0xf]
      %v2159 = vld [vmem:[%s788 + $0x70] sm:$0xf]
      %v2160 = vld [vmem:[%s788 + $0x78] sm:$0xf]
      %v2161 = vld [vmem:[%s788 + $0x7c] sm:$0xf]
      %v2162 = vld [vmem:[%s788 + $0x84] sm:$0xf]
      %v2163 = vld [vmem:[%s788 + $0x88] sm:$0xf]
      %v2164 = vld [vmem:[%s788 + $0x90] sm:$0xf]
      %v2165 = vld [vmem:[%s788 + $0x94] sm:$0xf]
      %v2166 = vld [vmem:[%s788 + $0x9c] sm:$0xf]
      %v2167 = vld [vmem:[%s788 + $0xa0] sm:$0xf]
      %v2168 = vld [vmem:[%s788 + $0xa8] sm:$0xf]
      %v2169 = vld [vmem:[%s788 + $0xac] sm:$0xf]
      %v2170 = vld [vmem:[%s788 + $0xb4] sm:$0xf]
      %v2171 = vld [vmem:[%s788 + $0xb8] sm:$0xf]
      %s2172 = scalar_lea.vmem %s2, 6
      %v2173 = vld [vmem:[%s2172] sm:$0x3]
      %v2206 = vunpack.c.l.b16 %v2140
      %v2207 = vunpack.c.l.b16 %v2141
      %v2208 = vunpack.c.l.b16 %v2142
      %v2209 = vunpack.c.l.b16 %v2143
      %v2210 = vunpack.c.l.b16 %v2144
      %v2211 = vunpack.c.l.b16 %v2145
      %v2212 = vunpack.c.l.b16 %v2146
      %v2213 = vunpack.c.l.b16 %v2147
      %v2214 = vunpack.c.l.b16 %v2148
      %v2215 = vunpack.c.l.b16 %v2149
      %v2216 = vunpack.c.l.b16 %v2150
      %v2217 = vunpack.c.l.b16 %v2151
      %v2218 = vunpack.c.l.b16 %v2152
      %v2219 = vunpack.c.l.b16 %v2153
      %v2220 = vunpack.c.l.b16 %v2154
      %v2221 = vunpack.c.l.b16 %v2155
      %v2222 = vunpack.c.l.b16 %v2156
      %v2223 = vunpack.c.l.b16 %v2157
      %v2224 = vunpack.c.l.b16 %v2158
      %v2225 = vunpack.c.l.b16 %v2159
      %v2226 = vunpack.c.l.b16 %v2160
      %v2227 = vunpack.c.l.b16 %v2161
      %v2228 = vunpack.c.l.b16 %v2162
      %v2229 = vunpack.c.l.b16 %v2163
      %v2230 = vunpack.c.l.b16 %v2164
      %v2231 = vunpack.c.l.b16 %v2165
      %v2232 = vunpack.c.l.b16 %v2166
      %v2233 = vunpack.c.l.b16 %v2167
      %v2234 = vunpack.c.l.b16 %v2168
      %v2235 = vunpack.c.l.b16 %v2169
      %v2236 = vunpack.c.l.b16 %v2170
      %v2237 = vunpack.c.l.b16 %v2171
      %v2238 = vpack.c.b16 %v2207, %v2206
      %v2239 = vpack.c.b16 %v2209, %v2208
      %v2240 = vpack.c.b16 %v2211, %v2210
      %v2241 = vpack.c.b16 %v2213, %v2212
      %v2242 = vpack.c.b16 %v2215, %v2214
      %v2243 = vpack.c.b16 %v2217, %v2216
      %v2244 = vpack.c.b16 %v2219, %v2218
      %v2245 = vpack.c.b16 %v2221, %v2220
      %v2246 = vpack.c.b16 %v2223, %v2222
      %v2247 = vpack.c.b16 %v2225, %v2224
      %v2248 = vpack.c.b16 %v2227, %v2226
      %v2249 = vpack.c.b16 %v2229, %v2228
      %v2250 = vpack.c.b16 %v2231, %v2230
      %v2251 = vpack.c.b16 %v2233, %v2232
      %v2252 = vpack.c.b16 %v2235, %v2234
      %v2253 = vpack.c.b16 %v2237, %v2236
      %v2255 = vsel %vm1393, %v2238, 0
      %v2258 = vsel %vm1393, %v2239, 0
      %v2261 = vsel %vm1393, %v2240, 0
      %v2264 = vsel %vm1393, %v2241, 0
      %v2267 = vsel %vm1393, %v2242, 0
      %v2270 = vsel %vm1393, %v2243, 0
      %v2273 = vsel %vm1393, %v2244, 0
      %v2276 = vsel %vm1393, %v2245, 0
      %v2279 = vsel %vm1393, %v2246, 0
      %v2282 = vsel %vm1393, %v2247, 0
      %v2285 = vsel %vm1393, %v2248, 0
      %v2288 = vsel %vm1393, %v2249, 0
      %v2291 = vsel %vm1393, %v2250, 0
      %v2294 = vsel %vm1393, %v2251, 0
      %v2297 = vsel %vm1393, %v2252, 0
      %v2300 = vsel %vm1393, %v2253, 0
      %v2303 = vsel %vm1442, %v2173, 0
      %2305 = vmatpush.bf16.msra.mxu0 0
      %2306 = vmatpush.bf16.msra.mxu0 0
      %2307 = vmatpush.bf16.msra.mxu0 0
      %2308 = vmatpush.bf16.msra.mxu0 0
      %2309 = vmatpush.bf16.msra.mxu0 0
      %2310 = vmatpush.bf16.msra.mxu0 0
      %2311 = vmatpush.bf16.msra.mxu0 0
      %2312 = vmatpush.bf16.msra.mxu0 %v2303
      %2313 = vmatmul.bf16.gmra.mxu0 %v2255
      %v2314 = vpop.f32.mrf.mxu0
      %v2315 = vadd.f32 0.0, %v2314
      %v2316 = vpop.f32.mrf.mxu0
      %v2317 = vadd.f32 0.0, %v2316
      %2318 = vmatmul.bf16.gmra.mxu0 %v2258
      %v2319 = vpop.f32.mrf.mxu0
      %v2320 = vadd.f32 0.0, %v2319
      %v2321 = vpop.f32.mrf.mxu0
      %v2322 = vadd.f32 0.0, %v2321
      %2323 = vmatmul.bf16.gmra.mxu0 %v2261
      %v2324 = vpop.f32.mrf.mxu0
      %v2325 = vadd.f32 0.0, %v2324
      %v2326 = vpop.f32.mrf.mxu0
      %v2327 = vadd.f32 0.0, %v2326
      %2328 = vmatmul.bf16.gmra.mxu0 %v2264
      %v2329 = vpop.f32.mrf.mxu0
      %v2330 = vadd.f32 0.0, %v2329
      %v2331 = vpop.f32.mrf.mxu0
      %v2332 = vadd.f32 0.0, %v2331
      %2333 = vmatmul.bf16.gmra.mxu0 %v2267
      %v2334 = vpop.f32.mrf.mxu0
      %v2335 = vadd.f32 0.0, %v2334
      %v2336 = vpop.f32.mrf.mxu0
      %v2337 = vadd.f32 0.0, %v2336
      %2338 = vmatmul.bf16.gmra.mxu0 %v2270
      %v2339 = vpop.f32.mrf.mxu0
      %v2340 = vadd.f32 0.0, %v2339
      %v2341 = vpop.f32.mrf.mxu0
      %v2342 = vadd.f32 0.0, %v2341
      %2343 = vmatmul.bf16.gmra.mxu0 %v2273
      %v2344 = vpop.f32.mrf.mxu0
      %v2345 = vadd.f32 0.0, %v2344
      %v2346 = vpop.f32.mrf.mxu0
      %v2347 = vadd.f32 0.0, %v2346
      %2348 = vmatmul.bf16.gmra.mxu0 %v2276
      %v2349 = vpop.f32.mrf.mxu0
      %v2350 = vadd.f32 0.0, %v2349
      %v2351 = vpop.f32.mrf.mxu0
      %v2352 = vadd.f32 0.0, %v2351
      %2353 = vmatmul.bf16.gmra.mxu0 %v2279
      %v2354 = vpop.f32.mrf.mxu0
      %v2355 = vadd.f32 0.0, %v2354
      %v2356 = vpop.f32.mrf.mxu0
      %v2357 = vadd.f32 0.0, %v2356
      %2358 = vmatmul.bf16.gmra.mxu0 %v2282
      %v2359 = vpop.f32.mrf.mxu0
      %v2360 = vadd.f32 0.0, %v2359
      %v2361 = vpop.f32.mrf.mxu0
      %v2362 = vadd.f32 0.0, %v2361
      %2363 = vmatmul.bf16.gmra.mxu0 %v2285
      %v2364 = vpop.f32.mrf.mxu0
      %v2365 = vadd.f32 0.0, %v2364
      %v2366 = vpop.f32.mrf.mxu0
      %v2367 = vadd.f32 0.0, %v2366
      %2368 = vmatmul.bf16.gmra.mxu0 %v2288
      %v2369 = vpop.f32.mrf.mxu0
      %v2370 = vadd.f32 0.0, %v2369
      %v2371 = vpop.f32.mrf.mxu0
      %v2372 = vadd.f32 0.0, %v2371
      %2373 = vmatmul.bf16.gmra.mxu0 %v2291
      %v2374 = vpop.f32.mrf.mxu0
      %v2375 = vadd.f32 0.0, %v2374
      %v2376 = vpop.f32.mrf.mxu0
      %v2377 = vadd.f32 0.0, %v2376
      %2378 = vmatmul.bf16.gmra.mxu0 %v2294
      %v2379 = vpop.f32.mrf.mxu0
      %v2380 = vadd.f32 0.0, %v2379
      %v2381 = vpop.f32.mrf.mxu0
      %v2382 = vadd.f32 0.0, %v2381
      %2383 = vmatmul.bf16.gmra.mxu0 %v2297
      %v2384 = vpop.f32.mrf.mxu0
      %v2385 = vadd.f32 0.0, %v2384
      %v2386 = vpop.f32.mrf.mxu0
      %v2387 = vadd.f32 0.0, %v2386
      %2388 = vmatmul.bf16.gmra.mxu0 %v2300
      %v2389 = vpop.f32.mrf.mxu0
      %v2390 = vadd.f32 0.0, %v2389
      %v2391 = vpop.f32.mrf.mxu0
      %v2392 = vadd.f32 0.0, %v2391
      %2393 = vdwg.mxu0
      %v2394 = vadd.f32 %v2108, %v2315
      %v2395 = vadd.f32 %v2109, %v2317
      %v2396 = vadd.f32 %v2110, %v2320
      %v2397 = vadd.f32 %v2111, %v2322
      %v2398 = vadd.f32 %v2112, %v2325
      %v2399 = vadd.f32 %v2113, %v2327
      %v2400 = vadd.f32 %v2114, %v2330
      %v2401 = vadd.f32 %v2115, %v2332
      %v2402 = vadd.f32 %v2116, %v2335
      %v2403 = vadd.f32 %v2117, %v2337
      %v2404 = vadd.f32 %v2118, %v2340
      %v2405 = vadd.f32 %v2119, %v2342
      %v2406 = vadd.f32 %v2120, %v2345
      %v2407 = vadd.f32 %v2121, %v2347
      %v2408 = vadd.f32 %v2122, %v2350
      %v2409 = vadd.f32 %v2123, %v2352
      %v2410 = vadd.f32 %v2124, %v2355
      %v2411 = vadd.f32 %v2125, %v2357
      %v2412 = vadd.f32 %v2126, %v2360
      %v2413 = vadd.f32 %v2127, %v2362
      %v2414 = vadd.f32 %v2128, %v2365
      %v2415 = vadd.f32 %v2129, %v2367
      %v2416 = vadd.f32 %v2130, %v2370
      %v2417 = vadd.f32 %v2131, %v2372
      %v2418 = vadd.f32 %v2132, %v2375
      %v2419 = vadd.f32 %v2133, %v2377
      %v2420 = vadd.f32 %v2134, %v2380
      %v2421 = vadd.f32 %v2135, %v2382
      %v2422 = vadd.f32 %v2136, %v2385
      %v2423 = vadd.f32 %v2137, %v2387
      %v2424 = vadd.f32 %v2138, %v2390
      %v2425 = vadd.f32 %v2139, %v2392
      %v2426 = vld [vmem:[%s788] sm:$0xf]
      %v2427 = vld [vmem:[%s788 + $0x4] sm:$0xf]
      %v2428 = vld [vmem:[%s788 + $0x8] sm:$0x1]
      %v2429 = vld [vmem:[%s788 + $0xc] sm:$0xf]
      %v2430 = vld [vmem:[%s788 + $0x10] sm:$0xf]
      %v2431 = vld [vmem:[%s788 + $0x14] sm:$0x1]
      %v2432 = vld [vmem:[%s788 + $0x18] sm:$0xf]
      %v2433 = vld [vmem:[%s788 + $0x1c] sm:$0xf]
      %v2434 = vld [vmem:[%s788 + $0x20] sm:$0x1]
      %v2435 = vld [vmem:[%s788 + $0x24] sm:$0xf]
      %v2436 = vld [vmem:[%s788 + $0x28] sm:$0xf]
      %v2437 = vld [vmem:[%s788 + $0x2c] sm:$0x1]
      %v2438 = vld [vmem:[%s788 + $0x30] sm:$0xf]
      %v2439 = vld [vmem:[%s788 + $0x34] sm:$0xf]
      %v2440 = vld [vmem:[%s788 + $0x38] sm:$0x1]
      %v2441 = vld [vmem:[%s788 + $0x3c] sm:$0xf]
      %v2442 = vld [vmem:[%s788 + $0x40] sm:$0xf]
      %v2443 = vld [vmem:[%s788 + $0x44] sm:$0x1]
      %v2444 = vld [vmem:[%s788 + $0x48] sm:$0xf]
      %v2445 = vld [vmem:[%s788 + $0x4c] sm:$0xf]
      %v2446 = vld [vmem:[%s788 + $0x50] sm:$0x1]
      %v2447 = vld [vmem:[%s788 + $0x54] sm:$0xf]
      %v2448 = vld [vmem:[%s788 + $0x58] sm:$0xf]
      %v2449 = vld [vmem:[%s788 + $0x5c] sm:$0x1]
      %v2450 = vld [vmem:[%s788 + $0x60] sm:$0xf]
      %v2451 = vld [vmem:[%s788 + $0x64] sm:$0xf]
      %v2452 = vld [vmem:[%s788 + $0x68] sm:$0x1]
      %v2453 = vld [vmem:[%s788 + $0x6c] sm:$0xf]
      %v2454 = vld [vmem:[%s788 + $0x70] sm:$0xf]
      %v2455 = vld [vmem:[%s788 + $0x74] sm:$0x1]
      %v2456 = vld [vmem:[%s788 + $0x78] sm:$0xf]
      %v2457 = vld [vmem:[%s788 + $0x7c] sm:$0xf]
      %v2458 = vld [vmem:[%s788 + $0x80] sm:$0x1]
      %v2459 = vld [vmem:[%s788 + $0x84] sm:$0xf]
      %v2460 = vld [vmem:[%s788 + $0x88] sm:$0xf]
      %v2461 = vld [vmem:[%s788 + $0x8c] sm:$0x1]
      %v2462 = vld [vmem:[%s788 + $0x90] sm:$0xf]
      %v2463 = vld [vmem:[%s788 + $0x94] sm:$0xf]
      %v2464 = vld [vmem:[%s788 + $0x98] sm:$0x1]
      %v2465 = vld [vmem:[%s788 + $0x9c] sm:$0xf]
      %v2466 = vld [vmem:[%s788 + $0xa0] sm:$0xf]
      %v2467 = vld [vmem:[%s788 + $0xa4] sm:$0x1]
      %v2468 = vld [vmem:[%s788 + $0xa8] sm:$0xf]
      %v2469 = vld [vmem:[%s788 + $0xac] sm:$0xf]
      %v2470 = vld [vmem:[%s788 + $0xb0] sm:$0x1]
      %v2471 = vld [vmem:[%s788 + $0xb4] sm:$0xf]
      %v2472 = vld [vmem:[%s788 + $0xb8] sm:$0xf]
      %v2473 = vld [vmem:[%s788 + $0xbc] sm:$0x1]
      %v2475 = vshrl.u32 %v2426, 16
      %v2477 = vrot.slane %v2475, 4
      %v2478 = vshll.u32 %v2426, 16
      %v2480 = vrot.slane %v2478, 5
      %v2481 = vor.u32 %v2477, %v2480
      %v2482 = vrot.slane %v2481, 4
      %v2484 = vshll.u32 %v2427, 16
      %v2486 = vrot.slane %v2484, 5
      %v2487 = vsel %vm958, %v2482, %v2486
      %v2488 = vshrl.u32 %v2427, 16
      %v2490 = vrot.slane %v2488, 4
      %v2491 = vor.u32 %v2490, %v2486
      %v2492 = vrot.slane %v2491, 4
      %v2494 = vshll.u32 %v2428, 16
      %v2496 = vrot.slane %v2494, 5
      %v2497 = vsel %vm958, %v2492, %v2496
      %v2499 = vshrl.u32 %v2429, 16
      %v2501 = vrot.slane %v2499, 4
      %v2502 = vshll.u32 %v2429, 16
      %v2504 = vrot.slane %v2502, 5
      %v2505 = vor.u32 %v2501, %v2504
      %v2506 = vrot.slane %v2505, 4
      %v2508 = vshll.u32 %v2430, 16
      %v2510 = vrot.slane %v2508, 5
      %v2511 = vsel %vm958, %v2506, %v2510
      %v2512 = vshrl.u32 %v2430, 16
      %v2514 = vrot.slane %v2512, 4
      %v2515 = vor.u32 %v2514, %v2510
      %v2516 = vrot.slane %v2515, 4
      %v2518 = vshll.u32 %v2431, 16
      %v2520 = vrot.slane %v2518, 5
      %v2521 = vsel %vm958, %v2516, %v2520
      %v2523 = vshrl.u32 %v2432, 16
      %v2525 = vrot.slane %v2523, 4
      %v2526 = vshll.u32 %v2432, 16
      %v2528 = vrot.slane %v2526, 5
      %v2529 = vor.u32 %v2525, %v2528
      %v2530 = vrot.slane %v2529, 4
      %v2532 = vshll.u32 %v2433, 16
      %v2534 = vrot.slane %v2532, 5
      %v2535 = vsel %vm958, %v2530, %v2534
      %v2536 = vshrl.u32 %v2433, 16
      %v2538 = vrot.slane %v2536, 4
      %v2539 = vor.u32 %v2538, %v2534
      %v2540 = vrot.slane %v2539, 4
      %v2542 = vshll.u32 %v2434, 16
      %v2544 = vrot.slane %v2542, 5
      %v2545 = vsel %vm958, %v2540, %v2544
      %v2547 = vshrl.u32 %v2435, 16
      %v2549 = vrot.slane %v2547, 4
      %v2550 = vshll.u32 %v2435, 16
      %v2552 = vrot.slane %v2550, 5
      %v2553 = vor.u32 %v2549, %v2552
      %v2554 = vrot.slane %v2553, 4
      %v2556 = vshll.u32 %v2436, 16
      %v2558 = vrot.slane %v2556, 5
      %v2559 = vsel %vm958, %v2554, %v2558
      %v2560 = vshrl.u32 %v2436, 16
      %v2562 = vrot.slane %v2560, 4
      %v2563 = vor.u32 %v2562, %v2558
      %v2564 = vrot.slane %v2563, 4
      %v2566 = vshll.u32 %v2437, 16
      %v2568 = vrot.slane %v2566, 5
      %v2569 = vsel %vm958, %v2564, %v2568
      %v2571 = vshrl.u32 %v2438, 16
      %v2573 = vrot.slane %v2571, 4
      %v2574 = vshll.u32 %v2438, 16
      %v2576 = vrot.slane %v2574, 5
      %v2577 = vor.u32 %v2573, %v2576
      %v2578 = vrot.slane %v2577, 4
      %v2580 = vshll.u32 %v2439, 16
      %v2582 = vrot.slane %v2580, 5
      %v2583 = vsel %vm958, %v2578, %v2582
      %v2584 = vshrl.u32 %v2439, 16
      %v2586 = vrot.slane %v2584, 4
      %v2587 = vor.u32 %v2586, %v2582
      %v2588 = vrot.slane %v2587, 4
      %v2590 = vshll.u32 %v2440, 16
      %v2592 = vrot.slane %v2590, 5
      %v2593 = vsel %vm958, %v2588, %v2592
      %v2595 = vshrl.u32 %v2441, 16
      %v2597 = vrot.slane %v2595, 4
      %v2598 = vshll.u32 %v2441, 16
      %v2600 = vrot.slane %v2598, 5
      %v2601 = vor.u32 %v2597, %v2600
      %v2602 = vrot.slane %v2601, 4
      %v2604 = vshll.u32 %v2442, 16
      %v2606 = vrot.slane %v2604, 5
      %v2607 = vsel %vm958, %v2602, %v2606
      %v2608 = vshrl.u32 %v2442, 16
      %v2610 = vrot.slane %v2608, 4
      %v2611 = vor.u32 %v2610, %v2606
      %v2612 = vrot.slane %v2611, 4
      %v2614 = vshll.u32 %v2443, 16
      %v2616 = vrot.slane %v2614, 5
      %v2617 = vsel %vm958, %v2612, %v2616
      %v2619 = vshrl.u32 %v2444, 16
      %v2621 = vrot.slane %v2619, 4
      %v2622 = vshll.u32 %v2444, 16
      %v2624 = vrot.slane %v2622, 5
      %v2625 = vor.u32 %v2621, %v2624
      %v2626 = vrot.slane %v2625, 4
      %v2628 = vshll.u32 %v2445, 16
      %v2630 = vrot.slane %v2628, 5
      %v2631 = vsel %vm958, %v2626, %v2630
      %v2632 = vshrl.u32 %v2445, 16
      %v2634 = vrot.slane %v2632, 4
      %v2635 = vor.u32 %v2634, %v2630
      %v2636 = vrot.slane %v2635, 4
      %v2638 = vshll.u32 %v2446, 16
      %v2640 = vrot.slane %v2638, 5
      %v2641 = vsel %vm958, %v2636, %v2640
      %v2643 = vshrl.u32 %v2447, 16
      %v2645 = vrot.slane %v2643, 4
      %v2646 = vshll.u32 %v2447, 16
      %v2648 = vrot.slane %v2646, 5
      %v2649 = vor.u32 %v2645, %v2648
      %v2650 = vrot.slane %v2649, 4
      %v2652 = vshll.u32 %v2448, 16
      %v2654 = vrot.slane %v2652, 5
      %v2655 = vsel %vm958, %v2650, %v2654
      %v2656 = vshrl.u32 %v2448, 16
      %v2658 = vrot.slane %v2656, 4
      %v2659 = vor.u32 %v2658, %v2654
      %v2660 = vrot.slane %v2659, 4
      %v2662 = vshll.u32 %v2449, 16
      %v2664 = vrot.slane %v2662, 5
      %v2665 = vsel %vm958, %v2660, %v2664
      %v2667 = vshrl.u32 %v2450, 16
      %v2669 = vrot.slane %v2667, 4
      %v2670 = vshll.u32 %v2450, 16
      %v2672 = vrot.slane %v2670, 5
      %v2673 = vor.u32 %v2669, %v2672
      %v2674 = vrot.slane %v2673, 4
      %v2676 = vshll.u32 %v2451, 16
      %v2678 = vrot.slane %v2676, 5
      %v2679 = vsel %vm958, %v2674, %v2678
      %v2680 = vshrl.u32 %v2451, 16
      %v2682 = vrot.slane %v2680, 4
      %v2683 = vor.u32 %v2682, %v2678
      %v2684 = vrot.slane %v2683, 4
      %v2686 = vshll.u32 %v2452, 16
      %v2688 = vrot.slane %v2686, 5
      %v2689 = vsel %vm958, %v2684, %v2688
      %v2691 = vshrl.u32 %v2453, 16
      %v2693 = vrot.slane %v2691, 4
      %v2694 = vshll.u32 %v2453, 16
      %v2696 = vrot.slane %v2694, 5
      %v2697 = vor.u32 %v2693, %v2696
      %v2698 = vrot.slane %v2697, 4
      %v2700 = vshll.u32 %v2454, 16
      %v2702 = vrot.slane %v2700, 5
      %v2703 = vsel %vm958, %v2698, %v2702
      %v2704 = vshrl.u32 %v2454, 16
      %v2706 = vrot.slane %v2704, 4
      %v2707 = vor.u32 %v2706, %v2702
      %v2708 = vrot.slane %v2707, 4
      %v2710 = vshll.u32 %v2455, 16
      %v2712 = vrot.slane %v2710, 5
      %v2713 = vsel %vm958, %v2708, %v2712
      %v2715 = vshrl.u32 %v2456, 16
      %v2717 = vrot.slane %v2715, 4
      %v2718 = vshll.u32 %v2456, 16
      %v2720 = vrot.slane %v2718, 5
      %v2721 = vor.u32 %v2717, %v2720
      %v2722 = vrot.slane %v2721, 4
      %v2724 = vshll.u32 %v2457, 16
      %v2726 = vrot.slane %v2724, 5
      %v2727 = vsel %vm958, %v2722, %v2726
      %v2728 = vshrl.u32 %v2457, 16
      %v2730 = vrot.slane %v2728, 4
      %v2731 = vor.u32 %v2730, %v2726
      %v2732 = vrot.slane %v2731, 4
      %v2734 = vshll.u32 %v2458, 16
      %v2736 = vrot.slane %v2734, 5
      %v2737 = vsel %vm958, %v2732, %v2736
      %v2739 = vshrl.u32 %v2459, 16
      %v2741 = vrot.slane %v2739, 4
      %v2742 = vshll.u32 %v2459, 16
      %v2744 = vrot.slane %v2742, 5
      %v2745 = vor.u32 %v2741, %v2744
      %v2746 = vrot.slane %v2745, 4
      %v2748 = vshll.u32 %v2460, 16
      %v2750 = vrot.slane %v2748, 5
      %v2751 = vsel %vm958, %v2746, %v2750
      %v2752 = vshrl.u32 %v2460, 16
      %v2754 = vrot.slane %v2752, 4
      %v2755 = vor.u32 %v2754, %v2750
      %v2756 = vrot.slane %v2755, 4
      %v2758 = vshll.u32 %v2461, 16
      %v2760 = vrot.slane %v2758, 5
      %v2761 = vsel %vm958, %v2756, %v2760
      %v2763 = vshrl.u32 %v2462, 16
      %v2765 = vrot.slane %v2763, 4
      %v2766 = vshll.u32 %v2462, 16
      %v2768 = vrot.slane %v2766, 5
      %v2769 = vor.u32 %v2765, %v2768
      %v2770 = vrot.slane %v2769, 4
      %v2772 = vshll.u32 %v2463, 16
      %v2774 = vrot.slane %v2772, 5
      %v2775 = vsel %vm958, %v2770, %v2774
      %v2776 = vshrl.u32 %v2463, 16
      %v2778 = vrot.slane %v2776, 4
      %v2779 = vor.u32 %v2778, %v2774
      %v2780 = vrot.slane %v2779, 4
      %v2782 = vshll.u32 %v2464, 16
      %v2784 = vrot.slane %v2782, 5
      %v2785 = vsel %vm958, %v2780, %v2784
      %v2787 = vshrl.u32 %v2465, 16
      %v2789 = vrot.slane %v2787, 4
      %v2790 = vshll.u32 %v2465, 16
      %v2792 = vrot.slane %v2790, 5
      %v2793 = vor.u32 %v2789, %v2792
      %v2794 = vrot.slane %v2793, 4
      %v2796 = vshll.u32 %v2466, 16
      %v2798 = vrot.slane %v2796, 5
      %v2799 = vsel %vm958, %v2794, %v2798
      %v2800 = vshrl.u32 %v2466, 16
      %v2802 = vrot.slane %v2800, 4
      %v2803 = vor.u32 %v2802, %v2798
      %v2804 = vrot.slane %v2803, 4
      %v2806 = vshll.u32 %v2467, 16
      %v2808 = vrot.slane %v2806, 5
      %v2809 = vsel %vm958, %v2804, %v2808
      %v2811 = vshrl.u32 %v2468, 16
      %v2813 = vrot.slane %v2811, 4
      %v2814 = vshll.u32 %v2468, 16
      %v2816 = vrot.slane %v2814, 5
      %v2817 = vor.u32 %v2813, %v2816
      %v2818 = vrot.slane %v2817, 4
      %v2820 = vshll.u32 %v2469, 16
      %v2822 = vrot.slane %v2820, 5
      %v2823 = vsel %vm958, %v2818, %v2822
      %v2824 = vshrl.u32 %v2469, 16
      %v2826 = vrot.slane %v2824, 4
      %v2827 = vor.u32 %v2826, %v2822
      %v2828 = vrot.slane %v2827, 4
      %v2830 = vshll.u32 %v2470, 16
      %v2832 = vrot.slane %v2830, 5
      %v2833 = vsel %vm958, %v2828, %v2832
      %v2835 = vshrl.u32 %v2471, 16
      %v2837 = vrot.slane %v2835, 4
      %v2838 = vshll.u32 %v2471, 16
      %v2840 = vrot.slane %v2838, 5
      %v2841 = vor.u32 %v2837, %v2840
      %v2842 = vrot.slane %v2841, 4
      %v2844 = vshll.u32 %v2472, 16
      %v2846 = vrot.slane %v2844, 5
      %v2847 = vsel %vm958, %v2842, %v2846
      %v2848 = vshrl.u32 %v2472, 16
      %v2850 = vrot.slane %v2848, 4
      %v2851 = vor.u32 %v2850, %v2846
      %v2852 = vrot.slane %v2851, 4
      %v2854 = vshll.u32 %v2473, 16
      %v2856 = vrot.slane %v2854, 5
      %v2857 = vsel %vm958, %v2852, %v2856
      %s2858 = scalar_lea.vmem %s2, 8
      %v2859 = vld [vmem:[%s2858] sm:$0x3]
      %v2860 = vunpack.c.l.b16 %v2487
      %v2861 = vunpack.c.l.b16 %v2497
      %v2862 = vunpack.c.l.b16 %v2511
      %v2863 = vunpack.c.l.b16 %v2521
      %v2864 = vunpack.c.l.b16 %v2535
      %v2865 = vunpack.c.l.b16 %v2545
      %v2866 = vunpack.c.l.b16 %v2559
      %v2867 = vunpack.c.l.b16 %v2569
      %v2868 = vunpack.c.l.b16 %v2583
      %v2869 = vunpack.c.l.b16 %v2593
      %v2870 = vunpack.c.l.b16 %v2607
      %v2871 = vunpack.c.l.b16 %v2617
      %v2872 = vunpack.c.l.b16 %v2631
      %v2873 = vunpack.c.l.b16 %v2641
      %v2874 = vunpack.c.l.b16 %v2655
      %v2875 = vunpack.c.l.b16 %v2665
      %v2876 = vunpack.c.l.b16 %v2679
      %v2877 = vunpack.c.l.b16 %v2689
      %v2878 = vunpack.c.l.b16 %v2703
      %v2879 = vunpack.c.l.b16 %v2713
      %v2880 = vunpack.c.l.b16 %v2727
      %v2881 = vunpack.c.l.b16 %v2737
      %v2882 = vunpack.c.l.b16 %v2751
      %v2883 = vunpack.c.l.b16 %v2761
      %v2884 = vunpack.c.l.b16 %v2775
      %v2885 = vunpack.c.l.b16 %v2785
      %v2886 = vunpack.c.l.b16 %v2799
      %v2887 = vunpack.c.l.b16 %v2809
      %v2888 = vunpack.c.l.b16 %v2823
      %v2889 = vunpack.c.l.b16 %v2833
      %v2890 = vunpack.c.l.b16 %v2847
      %v2891 = vunpack.c.l.b16 %v2857
      %v2892 = vpack.c.b16 %v2861, %v2860
      %v2893 = vpack.c.b16 %v2863, %v2862
      %v2894 = vpack.c.b16 %v2865, %v2864
      %v2895 = vpack.c.b16 %v2867, %v2866
      %v2896 = vpack.c.b16 %v2869, %v2868
      %v2897 = vpack.c.b16 %v2871, %v2870
      %v2898 = vpack.c.b16 %v2873, %v2872
      %v2899 = vpack.c.b16 %v2875, %v2874
      %v2900 = vpack.c.b16 %v2877, %v2876
      %v2901 = vpack.c.b16 %v2879, %v2878
      %v2902 = vpack.c.b16 %v2881, %v2880
      %v2903 = vpack.c.b16 %v2883, %v2882
      %v2904 = vpack.c.b16 %v2885, %v2884
      %v2905 = vpack.c.b16 %v2887, %v2886
      %v2906 = vpack.c.b16 %v2889, %v2888
      %v2907 = vpack.c.b16 %v2891, %v2890
      %v2909 = vsel %vm1393, %v2892, 0
      %v2912 = vsel %vm1393, %v2893, 0
      %v2915 = vsel %vm1393, %v2894, 0
      %v2918 = vsel %vm1393, %v2895, 0
      %v2921 = vsel %vm1393, %v2896, 0
      %v2924 = vsel %vm1393, %v2897, 0
      %v2927 = vsel %vm1393, %v2898, 0
      %v2930 = vsel %vm1393, %v2899, 0
      %v2933 = vsel %vm1393, %v2900, 0
      %v2936 = vsel %vm1393, %v2901, 0
      %v2939 = vsel %vm1393, %v2902, 0
      %v2942 = vsel %vm1393, %v2903, 0
      %v2945 = vsel %vm1393, %v2904, 0
      %v2948 = vsel %vm1393, %v2905, 0
      %v2951 = vsel %vm1393, %v2906, 0
      %v2954 = vsel %vm1393, %v2907, 0
      %v2957 = vsel %vm1442, %v2859, 0
      %2959 = vmatpush.bf16.msra.mxu0 0
      %2960 = vmatpush.bf16.msra.mxu0 0
      %2961 = vmatpush.bf16.msra.mxu0 0
      %2962 = vmatpush.bf16.msra.mxu0 0
      %2963 = vmatpush.bf16.msra.mxu0 0
      %2964 = vmatpush.bf16.msra.mxu0 0
      %2965 = vmatpush.bf16.msra.mxu0 0
      %2966 = vmatpush.bf16.msra.mxu0 %v2957
      %2967 = vmatmul.bf16.gmra.mxu0 %v2909
      %v2968 = vpop.f32.mrf.mxu0
      %v2969 = vadd.f32 0.0, %v2968
      %v2970 = vpop.f32.mrf.mxu0
      %v2971 = vadd.f32 0.0, %v2970
      %2972 = vmatmul.bf16.gmra.mxu0 %v2912
      %v2973 = vpop.f32.mrf.mxu0
      %v2974 = vadd.f32 0.0, %v2973
      %v2975 = vpop.f32.mrf.mxu0
      %v2976 = vadd.f32 0.0, %v2975
      %2977 = vmatmul.bf16.gmra.mxu0 %v2915
      %v2978 = vpop.f32.mrf.mxu0
      %v2979 = vadd.f32 0.0, %v2978
      %v2980 = vpop.f32.mrf.mxu0
      %v2981 = vadd.f32 0.0, %v2980
      %2982 = vmatmul.bf16.gmra.mxu0 %v2918
      %v2983 = vpop.f32.mrf.mxu0
      %v2984 = vadd.f32 0.0, %v2983
      %v2985 = vpop.f32.mrf.mxu0
      %v2986 = vadd.f32 0.0, %v2985
      %2987 = vmatmul.bf16.gmra.mxu0 %v2921
      %v2988 = vpop.f32.mrf.mxu0
      %v2989 = vadd.f32 0.0, %v2988
      %v2990 = vpop.f32.mrf.mxu0
      %v2991 = vadd.f32 0.0, %v2990
      %2992 = vmatmul.bf16.gmra.mxu0 %v2924
      %v2993 = vpop.f32.mrf.mxu0
      %v2994 = vadd.f32 0.0, %v2993
      %v2995 = vpop.f32.mrf.mxu0
      %v2996 = vadd.f32 0.0, %v2995
      %2997 = vmatmul.bf16.gmra.mxu0 %v2927
      %v2998 = vpop.f32.mrf.mxu0
      %v2999 = vadd.f32 0.0, %v2998
      %v3000 = vpop.f32.mrf.mxu0
      %v3001 = vadd.f32 0.0, %v3000
      %3002 = vmatmul.bf16.gmra.mxu0 %v2930
      %v3003 = vpop.f32.mrf.mxu0
      %v3004 = vadd.f32 0.0, %v3003
      %v3005 = vpop.f32.mrf.mxu0
      %v3006 = vadd.f32 0.0, %v3005
      %3007 = vmatmul.bf16.gmra.mxu0 %v2933
      %v3008 = vpop.f32.mrf.mxu0
      %v3009 = vadd.f32 0.0, %v3008
      %v3010 = vpop.f32.mrf.mxu0
      %v3011 = vadd.f32 0.0, %v3010
      %3012 = vmatmul.bf16.gmra.mxu0 %v2936
      %v3013 = vpop.f32.mrf.mxu0
      %v3014 = vadd.f32 0.0, %v3013
      %v3015 = vpop.f32.mrf.mxu0
      %v3016 = vadd.f32 0.0, %v3015
      %3017 = vmatmul.bf16.gmra.mxu0 %v2939
      %v3018 = vpop.f32.mrf.mxu0
      %v3019 = vadd.f32 0.0, %v3018
      %v3020 = vpop.f32.mrf.mxu0
      %v3021 = vadd.f32 0.0, %v3020
      %3022 = vmatmul.bf16.gmra.mxu0 %v2942
      %v3023 = vpop.f32.mrf.mxu0
      %v3024 = vadd.f32 0.0, %v3023
      %v3025 = vpop.f32.mrf.mxu0
      %v3026 = vadd.f32 0.0, %v3025
      %3027 = vmatmul.bf16.gmra.mxu0 %v2945
      %v3028 = vpop.f32.mrf.mxu0
      %v3029 = vadd.f32 0.0, %v3028
      %v3030 = vpop.f32.mrf.mxu0
      %v3031 = vadd.f32 0.0, %v3030
      %3032 = vmatmul.bf16.gmra.mxu0 %v2948
      %v3033 = vpop.f32.mrf.mxu0
      %v3034 = vadd.f32 0.0, %v3033
      %v3035 = vpop.f32.mrf.mxu0
      %v3036 = vadd.f32 0.0, %v3035
      %3037 = vmatmul.bf16.gmra.mxu0 %v2951
      %v3038 = vpop.f32.mrf.mxu0
      %v3039 = vadd.f32 0.0, %v3038
      %v3040 = vpop.f32.mrf.mxu0
      %v3041 = vadd.f32 0.0, %v3040
      %3042 = vmatmul.bf16.gmra.mxu0 %v2954
      %v3043 = vpop.f32.mrf.mxu0
      %v3044 = vadd.f32 0.0, %v3043
      %v3045 = vpop.f32.mrf.mxu0
      %v3046 = vadd.f32 0.0, %v3045
      %3047 = vdwg.mxu0
      %v3048 = vadd.f32 %v2394, %v2969
      %v3049 = vadd.f32 %v2395, %v2971
      %v3050 = vadd.f32 %v2396, %v2974
      %v3051 = vadd.f32 %v2397, %v2976
      %v3052 = vadd.f32 %v2398, %v2979
      %v3053 = vadd.f32 %v2399, %v2981
      %v3054 = vadd.f32 %v2400, %v2984
      %v3055 = vadd.f32 %v2401, %v2986
      %v3056 = vadd.f32 %v2402, %v2989
      %v3057 = vadd.f32 %v2403, %v2991
      %v3058 = vadd.f32 %v2404, %v2994
      %v3059 = vadd.f32 %v2405, %v2996
      %v3060 = vadd.f32 %v2406, %v2999
      %v3061 = vadd.f32 %v2407, %v3001
      %v3062 = vadd.f32 %v2408, %v3004
      %v3063 = vadd.f32 %v2409, %v3006
      %v3064 = vadd.f32 %v2410, %v3009
      %v3065 = vadd.f32 %v2411, %v3011
      %v3066 = vadd.f32 %v2412, %v3014
      %v3067 = vadd.f32 %v2413, %v3016
      %v3068 = vadd.f32 %v2414, %v3019
      %v3069 = vadd.f32 %v2415, %v3021
      %v3070 = vadd.f32 %v2416, %v3024
      %v3071 = vadd.f32 %v2417, %v3026
      %v3072 = vadd.f32 %v2418, %v3029
      %v3073 = vadd.f32 %v2419, %v3031
      %v3074 = vadd.f32 %v2420, %v3034
      %v3075 = vadd.f32 %v2421, %v3036
      %v3076 = vadd.f32 %v2422, %v3039
      %v3077 = vadd.f32 %v2423, %v3041
      %v3078 = vadd.f32 %v2424, %v3044
      %v3079 = vadd.f32 %v2425, %v3046
      %v3080 = vld [vmem:[%s788] sm:$0xe]
      %v3081 = vld [vmem:[%s788 + $0xc] sm:$0xe]
      %v3082 = vld [vmem:[%s788 + $0x18] sm:$0xe]
      %v3083 = vld [vmem:[%s788 + $0x24] sm:$0xe]
      %v3084 = vld [vmem:[%s788 + $0x30] sm:$0xe]
      %v3085 = vld [vmem:[%s788 + $0x3c] sm:$0xe]
      %v3086 = vld [vmem:[%s788 + $0x48] sm:$0xe]
      %v3087 = vld [vmem:[%s788 + $0x54] sm:$0xe]
      %v3088 = vld [vmem:[%s788 + $0x60] sm:$0xe]
      %v3089 = vld [vmem:[%s788 + $0x6c] sm:$0xe]
      %v3090 = vld [vmem:[%s788 + $0x78] sm:$0xe]
      %v3091 = vld [vmem:[%s788 + $0x84] sm:$0xe]
      %v3092 = vld [vmem:[%s788 + $0x90] sm:$0xe]
      %v3093 = vld [vmem:[%s788 + $0x9c] sm:$0xe]
      %v3094 = vld [vmem:[%s788 + $0xa8] sm:$0xe]
      %v3095 = vld [vmem:[%s788 + $0xb4] sm:$0xe]
      %v3144 = vrot.slane %v3080, 5
      %v3145 = vrot.slane %v3144, 4
      %v3146 = vrot.slane %v2427, 5
      %v3147 = vsel %vm1805, %v3145, %v3146
      %v3148 = vrot.slane %v3146, 4
      %v3149 = vrot.slane %v2428, 5
      %v3150 = vsel %vm1805, %v3148, %v3149
      %v3151 = vrot.slane %v3081, 5
      %v3152 = vrot.slane %v3151, 4
      %v3153 = vrot.slane %v2430, 5
      %v3154 = vsel %vm1805, %v3152, %v3153
      %v3155 = vrot.slane %v3153, 4
      %v3156 = vrot.slane %v2431, 5
      %v3157 = vsel %vm1805, %v3155, %v3156
      %v3158 = vrot.slane %v3082, 5
      %v3159 = vrot.slane %v3158, 4
      %v3160 = vrot.slane %v2433, 5
      %v3161 = vsel %vm1805, %v3159, %v3160
      %v3162 = vrot.slane %v3160, 4
      %v3163 = vrot.slane %v2434, 5
      %v3164 = vsel %vm1805, %v3162, %v3163
      %v3165 = vrot.slane %v3083, 5
      %v3166 = vrot.slane %v3165, 4
      %v3167 = vrot.slane %v2436, 5
      %v3168 = vsel %vm1805, %v3166, %v3167
      %v3169 = vrot.slane %v3167, 4
      %v3170 = vrot.slane %v2437, 5
      %v3171 = vsel %vm1805, %v3169, %v3170
      %v3172 = vrot.slane %v3084, 5
      %v3173 = vrot.slane %v3172, 4
      %v3174 = vrot.slane %v2439, 5
      %v3175 = vsel %vm1805, %v3173, %v3174
      %v3176 = vrot.slane %v3174, 4
      %v3177 = vrot.slane %v2440, 5
      %v3178 = vsel %vm1805, %v3176, %v3177
      %v3179 = vrot.slane %v3085, 5
      %v3180 = vrot.slane %v3179, 4
      %v3181 = vrot.slane %v2442, 5
      %v3182 = vsel %vm1805, %v3180, %v3181
      %v3183 = vrot.slane %v3181, 4
      %v3184 = vrot.slane %v2443, 5
      %v3185 = vsel %vm1805, %v3183, %v3184
      %v3186 = vrot.slane %v3086, 5
      %v3187 = vrot.slane %v3186, 4
      %v3188 = vrot.slane %v2445, 5
      %v3189 = vsel %vm1805, %v3187, %v3188
      %v3190 = vrot.slane %v3188, 4
      %v3191 = vrot.slane %v2446, 5
      %v3192 = vsel %vm1805, %v3190, %v3191
      %v3193 = vrot.slane %v3087, 5
      %v3194 = vrot.slane %v3193, 4
      %v3195 = vrot.slane %v2448, 5
      %v3196 = vsel %vm1805, %v3194, %v3195
      %v3197 = vrot.slane %v3195, 4
      %v3198 = vrot.slane %v2449, 5
      %v3199 = vsel %vm1805, %v3197, %v3198
      %v3200 = vrot.slane %v3088, 5
      %v3201 = vrot.slane %v3200, 4
      %v3202 = vrot.slane %v2451, 5
      %v3203 = vsel %vm1805, %v3201, %v3202
      %v3204 = vrot.slane %v3202, 4
      %v3205 = vrot.slane %v2452, 5
      %v3206 = vsel %vm1805, %v3204, %v3205
      %v3207 = vrot.slane %v3089, 5
      %v3208 = vrot.slane %v3207, 4
      %v3209 = vrot.slane %v2454, 5
      %v3210 = vsel %vm1805, %v3208, %v3209
      %v3211 = vrot.slane %v3209, 4
      %v3212 = vrot.slane %v2455, 5
      %v3213 = vsel %vm1805, %v3211, %v3212
      %v3214 = vrot.slane %v3090, 5
      %v3215 = vrot.slane %v3214, 4
      %v3216 = vrot.slane %v2457, 5
      %v3217 = vsel %vm1805, %v3215, %v3216
      %v3218 = vrot.slane %v3216, 4
      %v3219 = vrot.slane %v2458, 5
      %v3220 = vsel %vm1805, %v3218, %v3219
      %v3221 = vrot.slane %v3091, 5
      %v3222 = vrot.slane %v3221, 4
      %v3223 = vrot.slane %v2460, 5
      %v3224 = vsel %vm1805, %v3222, %v3223
      %v3225 = vrot.slane %v3223, 4
      %v3226 = vrot.slane %v2461, 5
      %v3227 = vsel %vm1805, %v3225, %v3226
      %v3228 = vrot.slane %v3092, 5
      %v3229 = vrot.slane %v3228, 4
      %v3230 = vrot.slane %v2463, 5
      %v3231 = vsel %vm1805, %v3229, %v3230
      %v3232 = vrot.slane %v3230, 4
      %v3233 = vrot.slane %v2464, 5
      %v3234 = vsel %vm1805, %v3232, %v3233
      %v3235 = vrot.slane %v3093, 5
      %v3236 = vrot.slane %v3235, 4
      %v3237 = vrot.slane %v2466, 5
      %v3238 = vsel %vm1805, %v3236, %v3237
      %v3239 = vrot.slane %v3237, 4
      %v3240 = vrot.slane %v2467, 5
      %v3241 = vsel %vm1805, %v3239, %v3240
      %v3242 = vrot.slane %v3094, 5
      %v3243 = vrot.slane %v3242, 4
      %v3244 = vrot.slane %v2469, 5
      %v3245 = vsel %vm1805, %v3243, %v3244
      %v3246 = vrot.slane %v3244, 4
      %v3247 = vrot.slane %v2470, 5
      %v3248 = vsel %vm1805, %v3246, %v3247
      %v3249 = vrot.slane %v3095, 5
      %v3250 = vrot.slane %v3249, 4
      %v3251 = vrot.slane %v2472, 5
      %v3252 = vsel %vm1805, %v3250, %v3251
      %v3253 = vrot.slane %v3251, 4
      %v3254 = vrot.slane %v2473, 5
      %v3255 = vsel %vm1805, %v3253, %v3254
      %s3256 = scalar_lea.vmem %s2, 10
      %v3257 = vld [vmem:[%s3256] sm:$0x3]
      %v3258 = vunpack.c.l.b16 %v3147
      %v3259 = vunpack.c.l.b16 %v3150
      %v3260 = vunpack.c.l.b16 %v3154
      %v3261 = vunpack.c.l.b16 %v3157
      %v3262 = vunpack.c.l.b16 %v3161
      %v3263 = vunpack.c.l.b16 %v3164
      %v3264 = vunpack.c.l.b16 %v3168
      %v3265 = vunpack.c.l.b16 %v3171
      %v3266 = vunpack.c.l.b16 %v3175
      %v3267 = vunpack.c.l.b16 %v3178
      %v3268 = vunpack.c.l.b16 %v3182
      %v3269 = vunpack.c.l.b16 %v3185
      %v3270 = vunpack.c.l.b16 %v3189
      %v3271 = vunpack.c.l.b16 %v3192
      %v3272 = vunpack.c.l.b16 %v3196
      %v3273 = vunpack.c.l.b16 %v3199
      %v3274 = vunpack.c.l.b16 %v3203
      %v3275 = vunpack.c.l.b16 %v3206
      %v3276 = vunpack.c.l.b16 %v3210
      %v3277 = vunpack.c.l.b16 %v3213
      %v3278 = vunpack.c.l.b16 %v3217
      %v3279 = vunpack.c.l.b16 %v3220
      %v3280 = vunpack.c.l.b16 %v3224
      %v3281 = vunpack.c.l.b16 %v3227
      %v3282 = vunpack.c.l.b16 %v3231
      %v3283 = vunpack.c.l.b16 %v3234
      %v3284 = vunpack.c.l.b16 %v3238
      %v3285 = vunpack.c.l.b16 %v3241
      %v3286 = vunpack.c.l.b16 %v3245
      %v3287 = vunpack.c.l.b16 %v3248
      %v3288 = vunpack.c.l.b16 %v3252
      %v3289 = vunpack.c.l.b16 %v3255
      %v3290 = vpack.c.b16 %v3259, %v3258
      %v3291 = vpack.c.b16 %v3261, %v3260
      %v3292 = vpack.c.b16 %v3263, %v3262
      %v3293 = vpack.c.b16 %v3265, %v3264
      %v3294 = vpack.c.b16 %v3267, %v3266
      %v3295 = vpack.c.b16 %v3269, %v3268
      %v3296 = vpack.c.b16 %v3271, %v3270
      %v3297 = vpack.c.b16 %v3273, %v3272
      %v3298 = vpack.c.b16 %v3275, %v3274
      %v3299 = vpack.c.b16 %v3277, %v3276
      %v3300 = vpack.c.b16 %v3279, %v3278
      %v3301 = vpack.c.b16 %v3281, %v3280
      %v3302 = vpack.c.b16 %v3283, %v3282
      %v3303 = vpack.c.b16 %v3285, %v3284
      %v3304 = vpack.c.b16 %v3287, %v3286
      %v3305 = vpack.c.b16 %v3289, %v3288
      %v3307 = vsel %vm1393, %v3290, 0
      %v3310 = vsel %vm1393, %v3291, 0
      %v3313 = vsel %vm1393, %v3292, 0
      %v3316 = vsel %vm1393, %v3293, 0
      %v3319 = vsel %vm1393, %v3294, 0
      %v3322 = vsel %vm1393, %v3295, 0
      %v3325 = vsel %vm1393, %v3296, 0
      %v3328 = vsel %vm1393, %v3297, 0
      %v3331 = vsel %vm1393, %v3298, 0
      %v3334 = vsel %vm1393, %v3299, 0
      %v3337 = vsel %vm1393, %v3300, 0
      %v3340 = vsel %vm1393, %v3301, 0
      %v3343 = vsel %vm1393, %v3302, 0
      %v3346 = vsel %vm1393, %v3303, 0
      %v3349 = vsel %vm1393, %v3304, 0
      %v3352 = vsel %vm1393, %v3305, 0
      %v3355 = vsel %vm1442, %v3257, 0
      %3357 = vmatpush.bf16.msra.mxu0 0
      %3358 = vmatpush.bf16.msra.mxu0 0
      %3359 = vmatpush.bf16.msra.mxu0 0
      %3360 = vmatpush.bf16.msra.mxu0 0
      %3361 = vmatpush.bf16.msra.mxu0 0
      %3362 = vmatpush.bf16.msra.mxu0 0
      %3363 = vmatpush.bf16.msra.mxu0 0
      %3364 = vmatpush.bf16.msra.mxu0 %v3355
      %3365 = vmatmul.bf16.gmra.mxu0 %v3307
      %v3366 = vpop.f32.mrf.mxu0
      %v3367 = vadd.f32 0.0, %v3366
      %v3368 = vpop.f32.mrf.mxu0
      %v3369 = vadd.f32 0.0, %v3368
      %3370 = vmatmul.bf16.gmra.mxu0 %v3310
      %v3371 = vpop.f32.mrf.mxu0
      %v3372 = vadd.f32 0.0, %v3371
      %v3373 = vpop.f32.mrf.mxu0
      %v3374 = vadd.f32 0.0, %v3373
      %3375 = vmatmul.bf16.gmra.mxu0 %v3313
      %v3376 = vpop.f32.mrf.mxu0
      %v3377 = vadd.f32 0.0, %v3376
      %v3378 = vpop.f32.mrf.mxu0
      %v3379 = vadd.f32 0.0, %v3378
      %3380 = vmatmul.bf16.gmra.mxu0 %v3316
      %v3381 = vpop.f32.mrf.mxu0
      %v3382 = vadd.f32 0.0, %v3381
      %v3383 = vpop.f32.mrf.mxu0
      %v3384 = vadd.f32 0.0, %v3383
      %3385 = vmatmul.bf16.gmra.mxu0 %v3319
      %v3386 = vpop.f32.mrf.mxu0
      %v3387 = vadd.f32 0.0, %v3386
      %v3388 = vpop.f32.mrf.mxu0
      %v3389 = vadd.f32 0.0, %v3388
      %3390 = vmatmul.bf16.gmra.mxu0 %v3322
      %v3391 = vpop.f32.mrf.mxu0
      %v3392 = vadd.f32 0.0, %v3391
      %v3393 = vpop.f32.mrf.mxu0
      %v3394 = vadd.f32 0.0, %v3393
      %3395 = vmatmul.bf16.gmra.mxu0 %v3325
      %v3396 = vpop.f32.mrf.mxu0
      %v3397 = vadd.f32 0.0, %v3396
      %v3398 = vpop.f32.mrf.mxu0
      %v3399 = vadd.f32 0.0, %v3398
      %3400 = vmatmul.bf16.gmra.mxu0 %v3328
      %v3401 = vpop.f32.mrf.mxu0
      %v3402 = vadd.f32 0.0, %v3401
      %v3403 = vpop.f32.mrf.mxu0
      %v3404 = vadd.f32 0.0, %v3403
      %3405 = vmatmul.bf16.gmra.mxu0 %v3331
      %v3406 = vpop.f32.mrf.mxu0
      %v3407 = vadd.f32 0.0, %v3406
      %v3408 = vpop.f32.mrf.mxu0
      %v3409 = vadd.f32 0.0, %v3408
      %3410 = vmatmul.bf16.gmra.mxu0 %v3334
      %v3411 = vpop.f32.mrf.mxu0
      %v3412 = vadd.f32 0.0, %v3411
      %v3413 = vpop.f32.mrf.mxu0
      %v3414 = vadd.f32 0.0, %v3413
      %3415 = vmatmul.bf16.gmra.mxu0 %v3337
      %v3416 = vpop.f32.mrf.mxu0
      %v3417 = vadd.f32 0.0, %v3416
      %v3418 = vpop.f32.mrf.mxu0
      %v3419 = vadd.f32 0.0, %v3418
      %3420 = vmatmul.bf16.gmra.mxu0 %v3340
      %v3421 = vpop.f32.mrf.mxu0
      %v3422 = vadd.f32 0.0, %v3421
      %v3423 = vpop.f32.mrf.mxu0
      %v3424 = vadd.f32 0.0, %v3423
      %3425 = vmatmul.bf16.gmra.mxu0 %v3343
      %v3426 = vpop.f32.mrf.mxu0
      %v3427 = vadd.f32 0.0, %v3426
      %v3428 = vpop.f32.mrf.mxu0
      %v3429 = vadd.f32 0.0, %v3428
      %3430 = vmatmul.bf16.gmra.mxu0 %v3346
      %v3431 = vpop.f32.mrf.mxu0
      %v3432 = vadd.f32 0.0, %v3431
      %v3433 = vpop.f32.mrf.mxu0
      %v3434 = vadd.f32 0.0, %v3433
      %3435 = vmatmul.bf16.gmra.mxu0 %v3349
      %v3436 = vpop.f32.mrf.mxu0
      %v3437 = vadd.f32 0.0, %v3436
      %v3438 = vpop.f32.mrf.mxu0
      %v3439 = vadd.f32 0.0, %v3438
      %3440 = vmatmul.bf16.gmra.mxu0 %v3352
      %v3441 = vpop.f32.mrf.mxu0
      %v3442 = vadd.f32 0.0, %v3441
      %v3443 = vpop.f32.mrf.mxu0
      %v3444 = vadd.f32 0.0, %v3443
      %3445 = vdwg.mxu0
      %v3446 = vadd.f32 %v3048, %v3367
      %v3447 = vadd.f32 %v3049, %v3369
      %v3448 = vadd.f32 %v3050, %v3372
      %v3449 = vadd.f32 %v3051, %v3374
      %v3450 = vadd.f32 %v3052, %v3377
      %v3451 = vadd.f32 %v3053, %v3379
      %v3452 = vadd.f32 %v3054, %v3382
      %v3453 = vadd.f32 %v3055, %v3384
      %v3454 = vadd.f32 %v3056, %v3387
      %v3455 = vadd.f32 %v3057, %v3389
      %v3456 = vadd.f32 %v3058, %v3392
      %v3457 = vadd.f32 %v3059, %v3394
      %v3458 = vadd.f32 %v3060, %v3397
      %v3459 = vadd.f32 %v3061, %v3399
      %v3460 = vadd.f32 %v3062, %v3402
      %v3461 = vadd.f32 %v3063, %v3404
      %v3462 = vadd.f32 %v3064, %v3407
      %v3463 = vadd.f32 %v3065, %v3409
      %v3464 = vadd.f32 %v3066, %v3412
      %v3465 = vadd.f32 %v3067, %v3414
      %v3466 = vadd.f32 %v3068, %v3417
      %v3467 = vadd.f32 %v3069, %v3419
      %v3468 = vadd.f32 %v3070, %v3422
      %v3469 = vadd.f32 %v3071, %v3424
      %v3470 = vadd.f32 %v3072, %v3427
      %v3471 = vadd.f32 %v3073, %v3429
      %v3472 = vadd.f32 %v3074, %v3432
      %v3473 = vadd.f32 %v3075, %v3434
      %v3474 = vadd.f32 %v3076, %v3437
      %v3475 = vadd.f32 %v3077, %v3439
      %v3476 = vadd.f32 %v3078, %v3442
      %v3477 = vadd.f32 %v3079, %v3444
      %s3478 = scalar_lea.vmem [#allocation2], 24
      %v3479 = vld [vmem:[%s3478] sm:$0xf]
      %v3480 = vld [vmem:[%s3478 + $0x4] sm:$0xf]
      %v3481 = vld [vmem:[%s3478 + $0xc] sm:$0xf]
      %v3482 = vld [vmem:[%s3478 + $0x10] sm:$0xf]
      %v3483 = vld [vmem:[%s3478 + $0x18] sm:$0xf]
      %v3484 = vld [vmem:[%s3478 + $0x1c] sm:$0xf]
      %v3485 = vld [vmem:[%s3478 + $0x24] sm:$0xf]
      %v3486 = vld [vmem:[%s3478 + $0x28] sm:$0xf]
      %v3487 = vld [vmem:[%s3478 + $0x30] sm:$0xf]
      %v3488 = vld [vmem:[%s3478 + $0x34] sm:$0xf]
      %v3489 = vld [vmem:[%s3478 + $0x3c] sm:$0xf]
      %v3490 = vld [vmem:[%s3478 + $0x40] sm:$0xf]
      %v3491 = vld [vmem:[%s3478 + $0x48] sm:$0xf]
      %v3492 = vld [vmem:[%s3478 + $0x4c] sm:$0xf]
      %v3493 = vld [vmem:[%s3478 + $0x54] sm:$0xf]
      %v3494 = vld [vmem:[%s3478 + $0x58] sm:$0xf]
      %v3495 = vld [vmem:[%s3478 + $0x60] sm:$0xf]
      %v3496 = vld [vmem:[%s3478 + $0x64] sm:$0xf]
      %v3497 = vld [vmem:[%s3478 + $0x6c] sm:$0xf]
      %v3498 = vld [vmem:[%s3478 + $0x70] sm:$0xf]
      %v3499 = vld [vmem:[%s3478 + $0x78] sm:$0xf]
      %v3500 = vld [vmem:[%s3478 + $0x7c] sm:$0xf]
      %v3501 = vld [vmem:[%s3478 + $0x84] sm:$0xf]
      %v3502 = vld [vmem:[%s3478 + $0x88] sm:$0xf]
      %v3503 = vld [vmem:[%s3478 + $0x90] sm:$0xf]
      %v3504 = vld [vmem:[%s3478 + $0x94] sm:$0xf]
      %v3505 = vld [vmem:[%s3478 + $0x9c] sm:$0xf]
      %v3506 = vld [vmem:[%s3478 + $0xa0] sm:$0xf]
      %v3507 = vld [vmem:[%s3478 + $0xa8] sm:$0xf]
      %v3508 = vld [vmem:[%s3478 + $0xac] sm:$0xf]
      %v3509 = vld [vmem:[%s3478 + $0xb4] sm:$0xf]
      %v3510 = vld [vmem:[%s3478 + $0xb8] sm:$0xf]
      %s3511 = scalar_lea.vmem %s2, 12
      %v3512 = vld [vmem:[%s3511] sm:$0x3]
      %v3545 = vunpack.c.l.b16 %v3479
      %v3546 = vunpack.c.l.b16 %v3480
      %v3547 = vunpack.c.l.b16 %v3481
      %v3548 = vunpack.c.l.b16 %v3482
      %v3549 = vunpack.c.l.b16 %v3483
      %v3550 = vunpack.c.l.b16 %v3484
      %v3551 = vunpack.c.l.b16 %v3485
      %v3552 = vunpack.c.l.b16 %v3486
      %v3553 = vunpack.c.l.b16 %v3487
      %v3554 = vunpack.c.l.b16 %v3488
      %v3555 = vunpack.c.l.b16 %v3489
      %v3556 = vunpack.c.l.b16 %v3490
      %v3557 = vunpack.c.l.b16 %v3491
      %v3558 = vunpack.c.l.b16 %v3492
      %v3559 = vunpack.c.l.b16 %v3493
      %v3560 = vunpack.c.l.b16 %v3494
      %v3561 = vunpack.c.l.b16 %v3495
      %v3562 = vunpack.c.l.b16 %v3496
      %v3563 = vunpack.c.l.b16 %v3497
      %v3564 = vunpack.c.l.b16 %v3498
      %v3565 = vunpack.c.l.b16 %v3499
      %v3566 = vunpack.c.l.b16 %v3500
      %v3567 = vunpack.c.l.b16 %v3501
      %v3568 = vunpack.c.l.b16 %v3502
      %v3569 = vunpack.c.l.b16 %v3503
      %v3570 = vunpack.c.l.b16 %v3504
      %v3571 = vunpack.c.l.b16 %v3505
      %v3572 = vunpack.c.l.b16 %v3506
      %v3573 = vunpack.c.l.b16 %v3507
      %v3574 = vunpack.c.l.b16 %v3508
      %v3575 = vunpack.c.l.b16 %v3509
      %v3576 = vunpack.c.l.b16 %v3510
      %v3577 = vpack.c.b16 %v3546, %v3545
      %v3578 = vpack.c.b16 %v3548, %v3547
      %v3579 = vpack.c.b16 %v3550, %v3549
      %v3580 = vpack.c.b16 %v3552, %v3551
      %v3581 = vpack.c.b16 %v3554, %v3553
      %v3582 = vpack.c.b16 %v3556, %v3555
      %v3583 = vpack.c.b16 %v3558, %v3557
      %v3584 = vpack.c.b16 %v3560, %v3559
      %v3585 = vpack.c.b16 %v3562, %v3561
      %v3586 = vpack.c.b16 %v3564, %v3563
      %v3587 = vpack.c.b16 %v3566, %v3565
      %v3588 = vpack.c.b16 %v3568, %v3567
      %v3589 = vpack.c.b16 %v3570, %v3569
      %v3590 = vpack.c.b16 %v3572, %v3571
      %v3591 = vpack.c.b16 %v3574, %v3573
      %v3592 = vpack.c.b16 %v3576, %v3575
      %v3594 = vsel %vm1393, %v3577, 0
      %v3597 = vsel %vm1393, %v3578, 0
      %v3600 = vsel %vm1393, %v3579, 0
      %v3603 = vsel %vm1393, %v3580, 0
      %v3606 = vsel %vm1393, %v3581, 0
      %v3609 = vsel %vm1393, %v3582, 0
      %v3612 = vsel %vm1393, %v3583, 0
      %v3615 = vsel %vm1393, %v3584, 0
      %v3618 = vsel %vm1393, %v3585, 0
      %v3621 = vsel %vm1393, %v3586, 0
      %v3624 = vsel %vm1393, %v3587, 0
      %v3627 = vsel %vm1393, %v3588, 0
      %v3630 = vsel %vm1393, %v3589, 0
      %v3633 = vsel %vm1393, %v3590, 0
      %v3636 = vsel %vm1393, %v3591, 0
      %v3639 = vsel %vm1393, %v3592, 0
      %v3642 = vsel %vm1442, %v3512, 0
      %3644 = vmatpush.bf16.msra.mxu0 0
      %3645 = vmatpush.bf16.msra.mxu0 0
      %3646 = vmatpush.bf16.msra.mxu0 0
      %3647 = vmatpush.bf16.msra.mxu0 0
      %3648 = vmatpush.bf16.msra.mxu0 0
      %3649 = vmatpush.bf16.msra.mxu0 0
      %3650 = vmatpush.bf16.msra.mxu0 0
      %3651 = vmatpush.bf16.msra.mxu0 %v3642
      %3652 = vmatmul.bf16.gmra.mxu0 %v3594
      %v3653 = vpop.f32.mrf.mxu0
      %v3654 = vadd.f32 0.0, %v3653
      %v3655 = vpop.f32.mrf.mxu0
      %v3656 = vadd.f32 0.0, %v3655
      %3657 = vmatmul.bf16.gmra.mxu0 %v3597
      %v3658 = vpop.f32.mrf.mxu0
      %v3659 = vadd.f32 0.0, %v3658
      %v3660 = vpop.f32.mrf.mxu0
      %v3661 = vadd.f32 0.0, %v3660
      %3662 = vmatmul.bf16.gmra.mxu0 %v3600
      %v3663 = vpop.f32.mrf.mxu0
      %v3664 = vadd.f32 0.0, %v3663
      %v3665 = vpop.f32.mrf.mxu0
      %v3666 = vadd.f32 0.0, %v3665
      %3667 = vmatmul.bf16.gmra.mxu0 %v3603
      %v3668 = vpop.f32.mrf.mxu0
      %v3669 = vadd.f32 0.0, %v3668
      %v3670 = vpop.f32.mrf.mxu0
      %v3671 = vadd.f32 0.0, %v3670
      %3672 = vmatmul.bf16.gmra.mxu0 %v3606
      %v3673 = vpop.f32.mrf.mxu0
      %v3674 = vadd.f32 0.0, %v3673
      %v3675 = vpop.f32.mrf.mxu0
      %v3676 = vadd.f32 0.0, %v3675
      %3677 = vmatmul.bf16.gmra.mxu0 %v3609
      %v3678 = vpop.f32.mrf.mxu0
      %v3679 = vadd.f32 0.0, %v3678
      %v3680 = vpop.f32.mrf.mxu0
      %v3681 = vadd.f32 0.0, %v3680
      %3682 = vmatmul.bf16.gmra.mxu0 %v3612
      %v3683 = vpop.f32.mrf.mxu0
      %v3684 = vadd.f32 0.0, %v3683
      %v3685 = vpop.f32.mrf.mxu0
      %v3686 = vadd.f32 0.0, %v3685
      %3687 = vmatmul.bf16.gmra.mxu0 %v3615
      %v3688 = vpop.f32.mrf.mxu0
      %v3689 = vadd.f32 0.0, %v3688
      %v3690 = vpop.f32.mrf.mxu0
      %v3691 = vadd.f32 0.0, %v3690
      %3692 = vmatmul.bf16.gmra.mxu0 %v3618
      %v3693 = vpop.f32.mrf.mxu0
      %v3694 = vadd.f32 0.0, %v3693
      %v3695 = vpop.f32.mrf.mxu0
      %v3696 = vadd.f32 0.0, %v3695
      %3697 = vmatmul.bf16.gmra.mxu0 %v3621
      %v3698 = vpop.f32.mrf.mxu0
      %v3699 = vadd.f32 0.0, %v3698
      %v3700 = vpop.f32.mrf.mxu0
      %v3701 = vadd.f32 0.0, %v3700
      %3702 = vmatmul.bf16.gmra.mxu0 %v3624
      %v3703 = vpop.f32.mrf.mxu0
      %v3704 = vadd.f32 0.0, %v3703
      %v3705 = vpop.f32.mrf.mxu0
      %v3706 = vadd.f32 0.0, %v3705
      %3707 = vmatmul.bf16.gmra.mxu0 %v3627
      %v3708 = vpop.f32.mrf.mxu0
      %v3709 = vadd.f32 0.0, %v3708
      %v3710 = vpop.f32.mrf.mxu0
      %v3711 = vadd.f32 0.0, %v3710
      %3712 = vmatmul.bf16.gmra.mxu0 %v3630
      %v3713 = vpop.f32.mrf.mxu0
      %v3714 = vadd.f32 0.0, %v3713
      %v3715 = vpop.f32.mrf.mxu0
      %v3716 = vadd.f32 0.0, %v3715
      %3717 = vmatmul.bf16.gmra.mxu0 %v3633
      %v3718 = vpop.f32.mrf.mxu0
      %v3719 = vadd.f32 0.0, %v3718
      %v3720 = vpop.f32.mrf.mxu0
      %v3721 = vadd.f32 0.0, %v3720
      %3722 = vmatmul.bf16.gmra.mxu0 %v3636
      %v3723 = vpop.f32.mrf.mxu0
      %v3724 = vadd.f32 0.0, %v3723
      %v3725 = vpop.f32.mrf.mxu0
      %v3726 = vadd.f32 0.0, %v3725
      %3727 = vmatmul.bf16.gmra.mxu0 %v3639
      %v3728 = vpop.f32.mrf.mxu0
      %v3729 = vadd.f32 0.0, %v3728
      %v3730 = vpop.f32.mrf.mxu0
      %v3731 = vadd.f32 0.0, %v3730
      %3732 = vdwg.mxu0
      %v3733 = vadd.f32 %v3446, %v3654
      %v3734 = vadd.f32 %v3447, %v3656
      %v3735 = vadd.f32 %v3448, %v3659
      %v3736 = vadd.f32 %v3449, %v3661
      %v3737 = vadd.f32 %v3450, %v3664
      %v3738 = vadd.f32 %v3451, %v3666
      %v3739 = vadd.f32 %v3452, %v3669
      %v3740 = vadd.f32 %v3453, %v3671
      %v3741 = vadd.f32 %v3454, %v3674
      %v3742 = vadd.f32 %v3455, %v3676
      %v3743 = vadd.f32 %v3456, %v3679
      %v3744 = vadd.f32 %v3457, %v3681
      %v3745 = vadd.f32 %v3458, %v3684
      %v3746 = vadd.f32 %v3459, %v3686
      %v3747 = vadd.f32 %v3460, %v3689
      %v3748 = vadd.f32 %v3461, %v3691
      %v3749 = vadd.f32 %v3462, %v3694
      %v3750 = vadd.f32 %v3463, %v3696
      %v3751 = vadd.f32 %v3464, %v3699
      %v3752 = vadd.f32 %v3465, %v3701
      %v3753 = vadd.f32 %v3466, %v3704
      %v3754 = vadd.f32 %v3467, %v3706
      %v3755 = vadd.f32 %v3468, %v3709
      %v3756 = vadd.f32 %v3469, %v3711
      %v3757 = vadd.f32 %v3470, %v3714
      %v3758 = vadd.f32 %v3471, %v3716
      %v3759 = vadd.f32 %v3472, %v3719
      %v3760 = vadd.f32 %v3473, %v3721
      %v3761 = vadd.f32 %v3474, %v3724
      %v3762 = vadd.f32 %v3475, %v3726
      %v3763 = vadd.f32 %v3476, %v3729
      %v3764 = vadd.f32 %v3477, %v3731
      %v3765 = vld [vmem:[%s3478] sm:$0xf]
      %v3766 = vld [vmem:[%s3478 + $0x4] sm:$0xf]
      %v3767 = vld [vmem:[%s3478 + $0x8] sm:$0x1]
      %v3768 = vld [vmem:[%s3478 + $0xc] sm:$0xf]
      %v3769 = vld [vmem:[%s3478 + $0x10] sm:$0xf]
      %v3770 = vld [vmem:[%s3478 + $0x14] sm:$0x1]
      %v3771 = vld [vmem:[%s3478 + $0x18] sm:$0xf]
      %v3772 = vld [vmem:[%s3478 + $0x1c] sm:$0xf]
      %v3773 = vld [vmem:[%s3478 + $0x20] sm:$0x1]
      %v3774 = vld [vmem:[%s3478 + $0x24] sm:$0xf]
      %v3775 = vld [vmem:[%s3478 + $0x28] sm:$0xf]
      %v3776 = vld [vmem:[%s3478 + $0x2c] sm:$0x1]
      %v3777 = vld [vmem:[%s3478 + $0x30] sm:$0xf]
      %v3778 = vld [vmem:[%s3478 + $0x34] sm:$0xf]
      %v3779 = vld [vmem:[%s3478 + $0x38] sm:$0x1]
      %v3780 = vld [vmem:[%s3478 + $0x3c] sm:$0xf]
      %v3781 = vld [vmem:[%s3478 + $0x40] sm:$0xf]
      %v3782 = vld [vmem:[%s3478 + $0x44] sm:$0x1]
      %v3783 = vld [vmem:[%s3478 + $0x48] sm:$0xf]
      %v3784 = vld [vmem:[%s3478 + $0x4c] sm:$0xf]
      %v3785 = vld [vmem:[%s3478 + $0x50] sm:$0x1]
      %v3786 = vld [vmem:[%s3478 + $0x54] sm:$0xf]
      %v3787 = vld [vmem:[%s3478 + $0x58] sm:$0xf]
      %v3788 = vld [vmem:[%s3478 + $0x5c] sm:$0x1]
      %v3789 = vld [vmem:[%s3478 + $0x60] sm:$0xf]
      %v3790 = vld [vmem:[%s3478 + $0x64] sm:$0xf]
      %v3791 = vld [vmem:[%s3478 + $0x68] sm:$0x1]
      %v3792 = vld [vmem:[%s3478 + $0x6c] sm:$0xf]
      %v3793 = vld [vmem:[%s3478 + $0x70] sm:$0xf]
      %v3794 = vld [vmem:[%s3478 + $0x74] sm:$0x1]
      %v3795 = vld [vmem:[%s3478 + $0x78] sm:$0xf]
      %v3796 = vld [vmem:[%s3478 + $0x7c] sm:$0xf]
      %v3797 = vld [vmem:[%s3478 + $0x80] sm:$0x1]
      %v3798 = vld [vmem:[%s3478 + $0x84] sm:$0xf]
      %v3799 = vld [vmem:[%s3478 + $0x88] sm:$0xf]
      %v3800 = vld [vmem:[%s3478 + $0x8c] sm:$0x1]
      %v3801 = vld [vmem:[%s3478 + $0x90] sm:$0xf]
      %v3802 = vld [vmem:[%s3478 + $0x94] sm:$0xf]
      %v3803 = vld [vmem:[%s3478 + $0x98] sm:$0x1]
      %v3804 = vld [vmem:[%s3478 + $0x9c] sm:$0xf]
      %v3805 = vld [vmem:[%s3478 + $0xa0] sm:$0xf]
      %v3806 = vld [vmem:[%s3478 + $0xa4] sm:$0x1]
      %v3807 = vld [vmem:[%s3478 + $0xa8] sm:$0xf]
      %v3808 = vld [vmem:[%s3478 + $0xac] sm:$0xf]
      %v3809 = vld [vmem:[%s3478 + $0xb0] sm:$0x1]
      %v3810 = vld [vmem:[%s3478 + $0xb4] sm:$0xf]
      %v3811 = vld [vmem:[%s3478 + $0xb8] sm:$0xf]
      %v3812 = vld [vmem:[%s3478 + $0xbc] sm:$0x1]
      %v3814 = vshrl.u32 %v3765, 16
      %v3816 = vrot.slane %v3814, 4
      %v3817 = vshll.u32 %v3765, 16
      %v3819 = vrot.slane %v3817, 5
      %v3820 = vor.u32 %v3816, %v3819
      %v3821 = vrot.slane %v3820, 4
      %v3823 = vshll.u32 %v3766, 16
      %v3825 = vrot.slane %v3823, 5
      %v3826 = vsel %vm958, %v3821, %v3825
      %v3827 = vshrl.u32 %v3766, 16
      %v3829 = vrot.slane %v3827, 4
      %v3830 = vor.u32 %v3829, %v3825
      %v3831 = vrot.slane %v3830, 4
      %v3833 = vshll.u32 %v3767, 16
      %v3835 = vrot.slane %v3833, 5
      %v3836 = vsel %vm958, %v3831, %v3835
      %v3838 = vshrl.u32 %v3768, 16
      %v3840 = vrot.slane %v3838, 4
      %v3841 = vshll.u32 %v3768, 16
      %v3843 = vrot.slane %v3841, 5
      %v3844 = vor.u32 %v3840, %v3843
      %v3845 = vrot.slane %v3844, 4
      %v3847 = vshll.u32 %v3769, 16
      %v3849 = vrot.slane %v3847, 5
      %v3850 = vsel %vm958, %v3845, %v3849
      %v3851 = vshrl.u32 %v3769, 16
      %v3853 = vrot.slane %v3851, 4
      %v3854 = vor.u32 %v3853, %v3849
      %v3855 = vrot.slane %v3854, 4
      %v3857 = vshll.u32 %v3770, 16
      %v3859 = vrot.slane %v3857, 5
      %v3860 = vsel %vm958, %v3855, %v3859
      %v3862 = vshrl.u32 %v3771, 16
      %v3864 = vrot.slane %v3862, 4
      %v3865 = vshll.u32 %v3771, 16
      %v3867 = vrot.slane %v3865, 5
      %v3868 = vor.u32 %v3864, %v3867
      %v3869 = vrot.slane %v3868, 4
      %v3871 = vshll.u32 %v3772, 16
      %v3873 = vrot.slane %v3871, 5
      %v3874 = vsel %vm958, %v3869, %v3873
      %v3875 = vshrl.u32 %v3772, 16
      %v3877 = vrot.slane %v3875, 4
      %v3878 = vor.u32 %v3877, %v3873
      %v3879 = vrot.slane %v3878, 4
      %v3881 = vshll.u32 %v3773, 16
      %v3883 = vrot.slane %v3881, 5
      %v3884 = vsel %vm958, %v3879, %v3883
      %v3886 = vshrl.u32 %v3774, 16
      %v3888 = vrot.slane %v3886, 4
      %v3889 = vshll.u32 %v3774, 16
      %v3891 = vrot.slane %v3889, 5
      %v3892 = vor.u32 %v3888, %v3891
      %v3893 = vrot.slane %v3892, 4
      %v3895 = vshll.u32 %v3775, 16
      %v3897 = vrot.slane %v3895, 5
      %v3898 = vsel %vm958, %v3893, %v3897
      %v3899 = vshrl.u32 %v3775, 16
      %v3901 = vrot.slane %v3899, 4
      %v3902 = vor.u32 %v3901, %v3897
      %v3903 = vrot.slane %v3902, 4
      %v3905 = vshll.u32 %v3776, 16
      %v3907 = vrot.slane %v3905, 5
      %v3908 = vsel %vm958, %v3903, %v3907
      %v3910 = vshrl.u32 %v3777, 16
      %v3912 = vrot.slane %v3910, 4
      %v3913 = vshll.u32 %v3777, 16
      %v3915 = vrot.slane %v3913, 5
      %v3916 = vor.u32 %v3912, %v3915
      %v3917 = vrot.slane %v3916, 4
      %v3919 = vshll.u32 %v3778, 16
      %v3921 = vrot.slane %v3919, 5
      %v3922 = vsel %vm958, %v3917, %v3921
      %v3923 = vshrl.u32 %v3778, 16
      %v3925 = vrot.slane %v3923, 4
      %v3926 = vor.u32 %v3925, %v3921
      %v3927 = vrot.slane %v3926, 4
      %v3929 = vshll.u32 %v3779, 16
      %v3931 = vrot.slane %v3929, 5
      %v3932 = vsel %vm958, %v3927, %v3931
      %v3934 = vshrl.u32 %v3780, 16
      %v3936 = vrot.slane %v3934, 4
      %v3937 = vshll.u32 %v3780, 16
      %v3939 = vrot.slane %v3937, 5
      %v3940 = vor.u32 %v3936, %v3939
      %v3941 = vrot.slane %v3940, 4
      %v3943 = vshll.u32 %v3781, 16
      %v3945 = vrot.slane %v3943, 5
      %v3946 = vsel %vm958, %v3941, %v3945
      %v3947 = vshrl.u32 %v3781, 16
      %v3949 = vrot.slane %v3947, 4
      %v3950 = vor.u32 %v3949, %v3945
      %v3951 = vrot.slane %v3950, 4
      %v3953 = vshll.u32 %v3782, 16
      %v3955 = vrot.slane %v3953, 5
      %v3956 = vsel %vm958, %v3951, %v3955
      %v3958 = vshrl.u32 %v3783, 16
      %v3960 = vrot.slane %v3958, 4
      %v3961 = vshll.u32 %v3783, 16
      %v3963 = vrot.slane %v3961, 5
      %v3964 = vor.u32 %v3960, %v3963
      %v3965 = vrot.slane %v3964, 4
      %v3967 = vshll.u32 %v3784, 16
      %v3969 = vrot.slane %v3967, 5
      %v3970 = vsel %vm958, %v3965, %v3969
      %v3971 = vshrl.u32 %v3784, 16
      %v3973 = vrot.slane %v3971, 4
      %v3974 = vor.u32 %v3973, %v3969
      %v3975 = vrot.slane %v3974, 4
      %v3977 = vshll.u32 %v3785, 16
      %v3979 = vrot.slane %v3977, 5
      %v3980 = vsel %vm958, %v3975, %v3979
      %v3982 = vshrl.u32 %v3786, 16
      %v3984 = vrot.slane %v3982, 4
      %v3985 = vshll.u32 %v3786, 16
      %v3987 = vrot.slane %v3985, 5
      %v3988 = vor.u32 %v3984, %v3987
      %v3989 = vrot.slane %v3988, 4
      %v3991 = vshll.u32 %v3787, 16
      %v3993 = vrot.slane %v3991, 5
      %v3994 = vsel %vm958, %v3989, %v3993
      %v3995 = vshrl.u32 %v3787, 16
      %v3997 = vrot.slane %v3995, 4
      %v3998 = vor.u32 %v3997, %v3993
      %v3999 = vrot.slane %v3998, 4
      %v4001 = vshll.u32 %v3788, 16
      %v4003 = vrot.slane %v4001, 5
      %v4004 = vsel %vm958, %v3999, %v4003
      %v4006 = vshrl.u32 %v3789, 16
      %v4008 = vrot.slane %v4006, 4
      %v4009 = vshll.u32 %v3789, 16
      %v4011 = vrot.slane %v4009, 5
      %v4012 = vor.u32 %v4008, %v4011
      %v4013 = vrot.slane %v4012, 4
      %v4015 = vshll.u32 %v3790, 16
      %v4017 = vrot.slane %v4015, 5
      %v4018 = vsel %vm958, %v4013, %v4017
      %v4019 = vshrl.u32 %v3790, 16
      %v4021 = vrot.slane %v4019, 4
      %v4022 = vor.u32 %v4021, %v4017
      %v4023 = vrot.slane %v4022, 4
      %v4025 = vshll.u32 %v3791, 16
      %v4027 = vrot.slane %v4025, 5
      %v4028 = vsel %vm958, %v4023, %v4027
      %v4030 = vshrl.u32 %v3792, 16
      %v4032 = vrot.slane %v4030, 4
      %v4033 = vshll.u32 %v3792, 16
      %v4035 = vrot.slane %v4033, 5
      %v4036 = vor.u32 %v4032, %v4035
      %v4037 = vrot.slane %v4036, 4
      %v4039 = vshll.u32 %v3793, 16
      %v4041 = vrot.slane %v4039, 5
      %v4042 = vsel %vm958, %v4037, %v4041
      %v4043 = vshrl.u32 %v3793, 16
      %v4045 = vrot.slane %v4043, 4
      %v4046 = vor.u32 %v4045, %v4041
      %v4047 = vrot.slane %v4046, 4
      %v4049 = vshll.u32 %v3794, 16
      %v4051 = vrot.slane %v4049, 5
      %v4052 = vsel %vm958, %v4047, %v4051
      %v4054 = vshrl.u32 %v3795, 16
      %v4056 = vrot.slane %v4054, 4
      %v4057 = vshll.u32 %v3795, 16
      %v4059 = vrot.slane %v4057, 5
      %v4060 = vor.u32 %v4056, %v4059
      %v4061 = vrot.slane %v4060, 4
      %v4063 = vshll.u32 %v3796, 16
      %v4065 = vrot.slane %v4063, 5
      %v4066 = vsel %vm958, %v4061, %v4065
      %v4067 = vshrl.u32 %v3796, 16
      %v4069 = vrot.slane %v4067, 4
      %v4070 = vor.u32 %v4069, %v4065
      %v4071 = vrot.slane %v4070, 4
      %v4073 = vshll.u32 %v3797, 16
      %v4075 = vrot.slane %v4073, 5
      %v4076 = vsel %vm958, %v4071, %v4075
      %v4078 = vshrl.u32 %v3798, 16
      %v4080 = vrot.slane %v4078, 4
      %v4081 = vshll.u32 %v3798, 16
      %v4083 = vrot.slane %v4081, 5
      %v4084 = vor.u32 %v4080, %v4083
      %v4085 = vrot.slane %v4084, 4
      %v4087 = vshll.u32 %v3799, 16
      %v4089 = vrot.slane %v4087, 5
      %v4090 = vsel %vm958, %v4085, %v4089
      %v4091 = vshrl.u32 %v3799, 16
      %v4093 = vrot.slane %v4091, 4
      %v4094 = vor.u32 %v4093, %v4089
      %v4095 = vrot.slane %v4094, 4
      %v4097 = vshll.u32 %v3800, 16
      %v4099 = vrot.slane %v4097, 5
      %v4100 = vsel %vm958, %v4095, %v4099
      %v4102 = vshrl.u32 %v3801, 16
      %v4104 = vrot.slane %v4102, 4
      %v4105 = vshll.u32 %v3801, 16
      %v4107 = vrot.slane %v4105, 5
      %v4108 = vor.u32 %v4104, %v4107
      %v4109 = vrot.slane %v4108, 4
      %v4111 = vshll.u32 %v3802, 16
      %v4113 = vrot.slane %v4111, 5
      %v4114 = vsel %vm958, %v4109, %v4113
      %v4115 = vshrl.u32 %v3802, 16
      %v4117 = vrot.slane %v4115, 4
      %v4118 = vor.u32 %v4117, %v4113
      %v4119 = vrot.slane %v4118, 4
      %v4121 = vshll.u32 %v3803, 16
      %v4123 = vrot.slane %v4121, 5
      %v4124 = vsel %vm958, %v4119, %v4123
      %v4126 = vshrl.u32 %v3804, 16
      %v4128 = vrot.slane %v4126, 4
      %v4129 = vshll.u32 %v3804, 16
      %v4131 = vrot.slane %v4129, 5
      %v4132 = vor.u32 %v4128, %v4131
      %v4133 = vrot.slane %v4132, 4
      %v4135 = vshll.u32 %v3805, 16
      %v4137 = vrot.slane %v4135, 5
      %v4138 = vsel %vm958, %v4133, %v4137
      %v4139 = vshrl.u32 %v3805, 16
      %v4141 = vrot.slane %v4139, 4
      %v4142 = vor.u32 %v4141, %v4137
      %v4143 = vrot.slane %v4142, 4
      %v4145 = vshll.u32 %v3806, 16
      %v4147 = vrot.slane %v4145, 5
      %v4148 = vsel %vm958, %v4143, %v4147
      %v4150 = vshrl.u32 %v3807, 16
      %v4152 = vrot.slane %v4150, 4
      %v4153 = vshll.u32 %v3807, 16
      %v4155 = vrot.slane %v4153, 5
      %v4156 = vor.u32 %v4152, %v4155
      %v4157 = vrot.slane %v4156, 4
      %v4159 = vshll.u32 %v3808, 16
      %v4161 = vrot.slane %v4159, 5
      %v4162 = vsel %vm958, %v4157, %v4161
      %v4163 = vshrl.u32 %v3808, 16
      %v4165 = vrot.slane %v4163, 4
      %v4166 = vor.u32 %v4165, %v4161
      %v4167 = vrot.slane %v4166, 4
      %v4169 = vshll.u32 %v3809, 16
      %v4171 = vrot.slane %v4169, 5
      %v4172 = vsel %vm958, %v4167, %v4171
      %v4174 = vshrl.u32 %v3810, 16
      %v4176 = vrot.slane %v4174, 4
      %v4177 = vshll.u32 %v3810, 16
      %v4179 = vrot.slane %v4177, 5
      %v4180 = vor.u32 %v4176, %v4179
      %v4181 = vrot.slane %v4180, 4
      %v4183 = vshll.u32 %v3811, 16
      %v4185 = vrot.slane %v4183, 5
      %v4186 = vsel %vm958, %v4181, %v4185
      %v4187 = vshrl.u32 %v3811, 16
      %v4189 = vrot.slane %v4187, 4
      %v4190 = vor.u32 %v4189, %v4185
      %v4191 = vrot.slane %v4190, 4
      %v4193 = vshll.u32 %v3812, 16
      %v4195 = vrot.slane %v4193, 5
      %v4196 = vsel %vm958, %v4191, %v4195
      %s4197 = scalar_lea.vmem %s2, 14
      %v4198 = vld [vmem:[%s4197] sm:$0x3]
      %v4199 = vunpack.c.l.b16 %v3826
      %v4200 = vunpack.c.l.b16 %v3836
      %v4201 = vunpack.c.l.b16 %v3850
      %v4202 = vunpack.c.l.b16 %v3860
      %v4203 = vunpack.c.l.b16 %v3874
      %v4204 = vunpack.c.l.b16 %v3884
      %v4205 = vunpack.c.l.b16 %v3898
      %v4206 = vunpack.c.l.b16 %v3908
      %v4207 = vunpack.c.l.b16 %v3922
      %v4208 = vunpack.c.l.b16 %v3932
      %v4209 = vunpack.c.l.b16 %v3946
      %v4210 = vunpack.c.l.b16 %v3956
      %v4211 = vunpack.c.l.b16 %v3970
      %v4212 = vunpack.c.l.b16 %v3980
      %v4213 = vunpack.c.l.b16 %v3994
      %v4214 = vunpack.c.l.b16 %v4004
      %v4215 = vunpack.c.l.b16 %v4018
      %v4216 = vunpack.c.l.b16 %v4028
      %v4217 = vunpack.c.l.b16 %v4042
      %v4218 = vunpack.c.l.b16 %v4052
      %v4219 = vunpack.c.l.b16 %v4066
      %v4220 = vunpack.c.l.b16 %v4076
      %v4221 = vunpack.c.l.b16 %v4090
      %v4222 = vunpack.c.l.b16 %v4100
      %v4223 = vunpack.c.l.b16 %v4114
      %v4224 = vunpack.c.l.b16 %v4124
      %v4225 = vunpack.c.l.b16 %v4138
      %v4226 = vunpack.c.l.b16 %v4148
      %v4227 = vunpack.c.l.b16 %v4162
      %v4228 = vunpack.c.l.b16 %v4172
      %v4229 = vunpack.c.l.b16 %v4186
      %v4230 = vunpack.c.l.b16 %v4196
      %v4231 = vpack.c.b16 %v4200, %v4199
      %v4232 = vpack.c.b16 %v4202, %v4201
      %v4233 = vpack.c.b16 %v4204, %v4203
      %v4234 = vpack.c.b16 %v4206, %v4205
      %v4235 = vpack.c.b16 %v4208, %v4207
      %v4236 = vpack.c.b16 %v4210, %v4209
      %v4237 = vpack.c.b16 %v4212, %v4211
      %v4238 = vpack.c.b16 %v4214, %v4213
      %v4239 = vpack.c.b16 %v4216, %v4215
      %v4240 = vpack.c.b16 %v4218, %v4217
      %v4241 = vpack.c.b16 %v4220, %v4219
      %v4242 = vpack.c.b16 %v4222, %v4221
      %v4243 = vpack.c.b16 %v4224, %v4223
      %v4244 = vpack.c.b16 %v4226, %v4225
      %v4245 = vpack.c.b16 %v4228, %v4227
      %v4246 = vpack.c.b16 %v4230, %v4229
      %v4248 = vsel %vm1393, %v4231, 0
      %v4251 = vsel %vm1393, %v4232, 0
      %v4254 = vsel %vm1393, %v4233, 0
      %v4257 = vsel %vm1393, %v4234, 0
      %v4260 = vsel %vm1393, %v4235, 0
      %v4263 = vsel %vm1393, %v4236, 0
      %v4266 = vsel %vm1393, %v4237, 0
      %v4269 = vsel %vm1393, %v4238, 0
      %v4272 = vsel %vm1393, %v4239, 0
      %v4275 = vsel %vm1393, %v4240, 0
      %v4278 = vsel %vm1393, %v4241, 0
      %v4281 = vsel %vm1393, %v4242, 0
      %v4284 = vsel %vm1393, %v4243, 0
      %v4287 = vsel %vm1393, %v4244, 0
      %v4290 = vsel %vm1393, %v4245, 0
      %v4293 = vsel %vm1393, %v4246, 0
      %v4296 = vsel %vm1442, %v4198, 0
      %4298 = vmatpush.bf16.msra.mxu0 0
      %4299 = vmatpush.bf16.msra.mxu0 0
      %4300 = vmatpush.bf16.msra.mxu0 0
      %4301 = vmatpush.bf16.msra.mxu0 0
      %4302 = vmatpush.bf16.msra.mxu0 0
      %4303 = vmatpush.bf16.msra.mxu0 0
      %4304 = vmatpush.bf16.msra.mxu0 0
      %4305 = vmatpush.bf16.msra.mxu0 %v4296
      %4306 = vmatmul.bf16.gmra.mxu0 %v4248
      %v4307 = vpop.f32.mrf.mxu0
      %v4308 = vadd.f32 0.0, %v4307
      %v4309 = vpop.f32.mrf.mxu0
      %v4310 = vadd.f32 0.0, %v4309
      %4311 = vmatmul.bf16.gmra.mxu0 %v4251
      %v4312 = vpop.f32.mrf.mxu0
      %v4313 = vadd.f32 0.0, %v4312
      %v4314 = vpop.f32.mrf.mxu0
      %v4315 = vadd.f32 0.0, %v4314
      %4316 = vmatmul.bf16.gmra.mxu0 %v4254
      %v4317 = vpop.f32.mrf.mxu0
      %v4318 = vadd.f32 0.0, %v4317
      %v4319 = vpop.f32.mrf.mxu0
      %v4320 = vadd.f32 0.0, %v4319
      %4321 = vmatmul.bf16.gmra.mxu0 %v4257
      %v4322 = vpop.f32.mrf.mxu0
      %v4323 = vadd.f32 0.0, %v4322
      %v4324 = vpop.f32.mrf.mxu0
      %v4325 = vadd.f32 0.0, %v4324
      %4326 = vmatmul.bf16.gmra.mxu0 %v4260
      %v4327 = vpop.f32.mrf.mxu0
      %v4328 = vadd.f32 0.0, %v4327
      %v4329 = vpop.f32.mrf.mxu0
      %v4330 = vadd.f32 0.0, %v4329
      %4331 = vmatmul.bf16.gmra.mxu0 %v4263
      %v4332 = vpop.f32.mrf.mxu0
      %v4333 = vadd.f32 0.0, %v4332
      %v4334 = vpop.f32.mrf.mxu0
      %v4335 = vadd.f32 0.0, %v4334
      %4336 = vmatmul.bf16.gmra.mxu0 %v4266
      %v4337 = vpop.f32.mrf.mxu0
      %v4338 = vadd.f32 0.0, %v4337
      %v4339 = vpop.f32.mrf.mxu0
      %v4340 = vadd.f32 0.0, %v4339
      %4341 = vmatmul.bf16.gmra.mxu0 %v4269
      %v4342 = vpop.f32.mrf.mxu0
      %v4343 = vadd.f32 0.0, %v4342
      %v4344 = vpop.f32.mrf.mxu0
      %v4345 = vadd.f32 0.0, %v4344
      %4346 = vmatmul.bf16.gmra.mxu0 %v4272
      %v4347 = vpop.f32.mrf.mxu0
      %v4348 = vadd.f32 0.0, %v4347
      %v4349 = vpop.f32.mrf.mxu0
      %v4350 = vadd.f32 0.0, %v4349
      %4351 = vmatmul.bf16.gmra.mxu0 %v4275
      %v4352 = vpop.f32.mrf.mxu0
      %v4353 = vadd.f32 0.0, %v4352
      %v4354 = vpop.f32.mrf.mxu0
      %v4355 = vadd.f32 0.0, %v4354
      %4356 = vmatmul.bf16.gmra.mxu0 %v4278
      %v4357 = vpop.f32.mrf.mxu0
      %v4358 = vadd.f32 0.0, %v4357
      %v4359 = vpop.f32.mrf.mxu0
      %v4360 = vadd.f32 0.0, %v4359
      %4361 = vmatmul.bf16.gmra.mxu0 %v4281
      %v4362 = vpop.f32.mrf.mxu0
      %v4363 = vadd.f32 0.0, %v4362
      %v4364 = vpop.f32.mrf.mxu0
      %v4365 = vadd.f32 0.0, %v4364
      %4366 = vmatmul.bf16.gmra.mxu0 %v4284
      %v4367 = vpop.f32.mrf.mxu0
      %v4368 = vadd.f32 0.0, %v4367
      %v4369 = vpop.f32.mrf.mxu0
      %v4370 = vadd.f32 0.0, %v4369
      %4371 = vmatmul.bf16.gmra.mxu0 %v4287
      %v4372 = vpop.f32.mrf.mxu0
      %v4373 = vadd.f32 0.0, %v4372
      %v4374 = vpop.f32.mrf.mxu0
      %v4375 = vadd.f32 0.0, %v4374
      %4376 = vmatmul.bf16.gmra.mxu0 %v4290
      %v4377 = vpop.f32.mrf.mxu0
      %v4378 = vadd.f32 0.0, %v4377
      %v4379 = vpop.f32.mrf.mxu0
      %v4380 = vadd.f32 0.0, %v4379
      %4381 = vmatmul.bf16.gmra.mxu0 %v4293
      %v4382 = vpop.f32.mrf.mxu0
      %v4383 = vadd.f32 0.0, %v4382
      %v4384 = vpop.f32.mrf.mxu0
      %v4385 = vadd.f32 0.0, %v4384
      %4386 = vdwg.mxu0
      %v4387 = vadd.f32 %v3733, %v4308
      %v4388 = vadd.f32 %v3734, %v4310
      %v4389 = vadd.f32 %v3735, %v4313
      %v4390 = vadd.f32 %v3736, %v4315
      %v4391 = vadd.f32 %v3737, %v4318
      %v4392 = vadd.f32 %v3738, %v4320
      %v4393 = vadd.f32 %v3739, %v4323
      %v4394 = vadd.f32 %v3740, %v4325
      %v4395 = vadd.f32 %v3741, %v4328
      %v4396 = vadd.f32 %v3742, %v4330
      %v4397 = vadd.f32 %v3743, %v4333
      %v4398 = vadd.f32 %v3744, %v4335
      %v4399 = vadd.f32 %v3745, %v4338
      %v4400 = vadd.f32 %v3746, %v4340
      %v4401 = vadd.f32 %v3747, %v4343
      %v4402 = vadd.f32 %v3748, %v4345
      %v4403 = vadd.f32 %v3749, %v4348
      %v4404 = vadd.f32 %v3750, %v4350
      %v4405 = vadd.f32 %v3751, %v4353
      %v4406 = vadd.f32 %v3752, %v4355
      %v4407 = vadd.f32 %v3753, %v4358
      %v4408 = vadd.f32 %v3754, %v4360
      %v4409 = vadd.f32 %v3755, %v4363
      %v4410 = vadd.f32 %v3756, %v4365
      %v4411 = vadd.f32 %v3757, %v4368
      %v4412 = vadd.f32 %v3758, %v4370
      %v4413 = vadd.f32 %v3759, %v4373
      %v4414 = vadd.f32 %v3760, %v4375
      %v4415 = vadd.f32 %v3761, %v4378
      %v4416 = vadd.f32 %v3762, %v4380
      %v4417 = vadd.f32 %v3763, %v4383
      %v4418 = vadd.f32 %v3764, %v4385
      %v4419 = vld [vmem:[%s3478] sm:$0xe]
      %v4420 = vld [vmem:[%s3478 + $0xc] sm:$0xe]
      %v4421 = vld [vmem:[%s3478 + $0x18] sm:$0xe]
      %v4422 = vld [vmem:[%s3478 + $0x24] sm:$0xe]
      %v4423 = vld [vmem:[%s3478 + $0x30] sm:$0xe]
      %v4424 = vld [vmem:[%s3478 + $0x3c] sm:$0xe]
      %v4425 = vld [vmem:[%s3478 + $0x48] sm:$0xe]
      %v4426 = vld [vmem:[%s3478 + $0x54] sm:$0xe]
      %v4427 = vld [vmem:[%s3478 + $0x60] sm:$0xe]
      %v4428 = vld [vmem:[%s3478 + $0x6c] sm:$0xe]
      %v4429 = vld [vmem:[%s3478 + $0x78] sm:$0xe]
      %v4430 = vld [vmem:[%s3478 + $0x84] sm:$0xe]
      %v4431 = vld [vmem:[%s3478 + $0x90] sm:$0xe]
      %v4432 = vld [vmem:[%s3478 + $0x9c] sm:$0xe]
      %v4433 = vld [vmem:[%s3478 + $0xa8] sm:$0xe]
      %v4434 = vld [vmem:[%s3478 + $0xb4] sm:$0xe]
      %v4483 = vrot.slane %v4419, 5
      %v4484 = vrot.slane %v4483, 4
      %v4485 = vrot.slane %v3766, 5
      %v4486 = vsel %vm1805, %v4484, %v4485
      %v4487 = vrot.slane %v4485, 4
      %v4488 = vrot.slane %v3767, 5
      %v4489 = vsel %vm1805, %v4487, %v4488
      %v4490 = vrot.slane %v4420, 5
      %v4491 = vrot.slane %v4490, 4
      %v4492 = vrot.slane %v3769, 5
      %v4493 = vsel %vm1805, %v4491, %v4492
      %v4494 = vrot.slane %v4492, 4
      %v4495 = vrot.slane %v3770, 5
      %v4496 = vsel %vm1805, %v4494, %v4495
      %v4497 = vrot.slane %v4421, 5
      %v4498 = vrot.slane %v4497, 4
      %v4499 = vrot.slane %v3772, 5
      %v4500 = vsel %vm1805, %v4498, %v4499
      %v4501 = vrot.slane %v4499, 4
      %v4502 = vrot.slane %v3773, 5
      %v4503 = vsel %vm1805, %v4501, %v4502
      %v4504 = vrot.slane %v4422, 5
      %v4505 = vrot.slane %v4504, 4
      %v4506 = vrot.slane %v3775, 5
      %v4507 = vsel %vm1805, %v4505, %v4506
      %v4508 = vrot.slane %v4506, 4
      %v4509 = vrot.slane %v3776, 5
      %v4510 = vsel %vm1805, %v4508, %v4509
      %v4511 = vrot.slane %v4423, 5
      %v4512 = vrot.slane %v4511, 4
      %v4513 = vrot.slane %v3778, 5
      %v4514 = vsel %vm1805, %v4512, %v4513
      %v4515 = vrot.slane %v4513, 4
      %v4516 = vrot.slane %v3779, 5
      %v4517 = vsel %vm1805, %v4515, %v4516
      %v4518 = vrot.slane %v4424, 5
      %v4519 = vrot.slane %v4518, 4
      %v4520 = vrot.slane %v3781, 5
      %v4521 = vsel %vm1805, %v4519, %v4520
      %v4522 = vrot.slane %v4520, 4
      %v4523 = vrot.slane %v3782, 5
      %v4524 = vsel %vm1805, %v4522, %v4523
      %v4525 = vrot.slane %v4425, 5
      %v4526 = vrot.slane %v4525, 4
      %v4527 = vrot.slane %v3784, 5
      %v4528 = vsel %vm1805, %v4526, %v4527
      %v4529 = vrot.slane %v4527, 4
      %v4530 = vrot.slane %v3785, 5
      %v4531 = vsel %vm1805, %v4529, %v4530
      %v4532 = vrot.slane %v4426, 5
      %v4533 = vrot.slane %v4532, 4
      %v4534 = vrot.slane %v3787, 5
      %v4535 = vsel %vm1805, %v4533, %v4534
      %v4536 = vrot.slane %v4534, 4
      %v4537 = vrot.slane %v3788, 5
      %v4538 = vsel %vm1805, %v4536, %v4537
      %v4539 = vrot.slane %v4427, 5
      %v4540 = vrot.slane %v4539, 4
      %v4541 = vrot.slane %v3790, 5
      %v4542 = vsel %vm1805, %v4540, %v4541
      %v4543 = vrot.slane %v4541, 4
      %v4544 = vrot.slane %v3791, 5
      %v4545 = vsel %vm1805, %v4543, %v4544
      %v4546 = vrot.slane %v4428, 5
      %v4547 = vrot.slane %v4546, 4
      %v4548 = vrot.slane %v3793, 5
      %v4549 = vsel %vm1805, %v4547, %v4548
      %v4550 = vrot.slane %v4548, 4
      %v4551 = vrot.slane %v3794, 5
      %v4552 = vsel %vm1805, %v4550, %v4551
      %v4553 = vrot.slane %v4429, 5
      %v4554 = vrot.slane %v4553, 4
      %v4555 = vrot.slane %v3796, 5
      %v4556 = vsel %vm1805, %v4554, %v4555
      %v4557 = vrot.slane %v4555, 4
      %v4558 = vrot.slane %v3797, 5
      %v4559 = vsel %vm1805, %v4557, %v4558
      %v4560 = vrot.slane %v4430, 5
      %v4561 = vrot.slane %v4560, 4
      %v4562 = vrot.slane %v3799, 5
      %v4563 = vsel %vm1805, %v4561, %v4562
      %v4564 = vrot.slane %v4562, 4
      %v4565 = vrot.slane %v3800, 5
      %v4566 = vsel %vm1805, %v4564, %v4565
      %v4567 = vrot.slane %v4431, 5
      %v4568 = vrot.slane %v4567, 4
      %v4569 = vrot.slane %v3802, 5
      %v4570 = vsel %vm1805, %v4568, %v4569
      %v4571 = vrot.slane %v4569, 4
      %v4572 = vrot.slane %v3803, 5
      %v4573 = vsel %vm1805, %v4571, %v4572
      %v4574 = vrot.slane %v4432, 5
      %v4575 = vrot.slane %v4574, 4
      %v4576 = vrot.slane %v3805, 5
      %v4577 = vsel %vm1805, %v4575, %v4576
      %v4578 = vrot.slane %v4576, 4
      %v4579 = vrot.slane %v3806, 5
      %v4580 = vsel %vm1805, %v4578, %v4579
      %v4581 = vrot.slane %v4433, 5
      %v4582 = vrot.slane %v4581, 4
      %v4583 = vrot.slane %v3808, 5
      %v4584 = vsel %vm1805, %v4582, %v4583
      %v4585 = vrot.slane %v4583, 4
      %v4586 = vrot.slane %v3809, 5
      %v4587 = vsel %vm1805, %v4585, %v4586
      %v4588 = vrot.slane %v4434, 5
      %v4589 = vrot.slane %v4588, 4
      %v4590 = vrot.slane %v3811, 5
      %v4591 = vsel %vm1805, %v4589, %v4590
      %v4592 = vrot.slane %v4590, 4
      %v4593 = vrot.slane %v3812, 5
      %v4594 = vsel %vm1805, %v4592, %v4593
      %s4595 = scalar_lea.vmem %s2, 16
      %v4596 = vld [vmem:[%s4595] sm:$0x3]
      %v4597 = vunpack.c.l.b16 %v4486
      %v4598 = vunpack.c.l.b16 %v4489
      %v4599 = vunpack.c.l.b16 %v4493
      %v4600 = vunpack.c.l.b16 %v4496
      %v4601 = vunpack.c.l.b16 %v4500
      %v4602 = vunpack.c.l.b16 %v4503
      %v4603 = vunpack.c.l.b16 %v4507
      %v4604 = vunpack.c.l.b16 %v4510
      %v4605 = vunpack.c.l.b16 %v4514
      %v4606 = vunpack.c.l.b16 %v4517
      %v4607 = vunpack.c.l.b16 %v4521
      %v4608 = vunpack.c.l.b16 %v4524
      %v4609 = vunpack.c.l.b16 %v4528
      %v4610 = vunpack.c.l.b16 %v4531
      %v4611 = vunpack.c.l.b16 %v4535
      %v4612 = vunpack.c.l.b16 %v4538
      %v4613 = vunpack.c.l.b16 %v4542
      %v4614 = vunpack.c.l.b16 %v4545
      %v4615 = vunpack.c.l.b16 %v4549
      %v4616 = vunpack.c.l.b16 %v4552
      %v4617 = vunpack.c.l.b16 %v4556
      %v4618 = vunpack.c.l.b16 %v4559
      %v4619 = vunpack.c.l.b16 %v4563
      %v4620 = vunpack.c.l.b16 %v4566
      %v4621 = vunpack.c.l.b16 %v4570
      %v4622 = vunpack.c.l.b16 %v4573
      %v4623 = vunpack.c.l.b16 %v4577
      %v4624 = vunpack.c.l.b16 %v4580
      %v4625 = vunpack.c.l.b16 %v4584
      %v4626 = vunpack.c.l.b16 %v4587
      %v4627 = vunpack.c.l.b16 %v4591
      %v4628 = vunpack.c.l.b16 %v4594
      %v4629 = vpack.c.b16 %v4598, %v4597
      %v4630 = vpack.c.b16 %v4600, %v4599
      %v4631 = vpack.c.b16 %v4602, %v4601
      %v4632 = vpack.c.b16 %v4604, %v4603
      %v4633 = vpack.c.b16 %v4606, %v4605
      %v4634 = vpack.c.b16 %v4608, %v4607
      %v4635 = vpack.c.b16 %v4610, %v4609
      %v4636 = vpack.c.b16 %v4612, %v4611
      %v4637 = vpack.c.b16 %v4614, %v4613
      %v4638 = vpack.c.b16 %v4616, %v4615
      %v4639 = vpack.c.b16 %v4618, %v4617
      %v4640 = vpack.c.b16 %v4620, %v4619
      %v4641 = vpack.c.b16 %v4622, %v4621
      %v4642 = vpack.c.b16 %v4624, %v4623
      %v4643 = vpack.c.b16 %v4626, %v4625
      %v4644 = vpack.c.b16 %v4628, %v4627
      %v4646 = vsel %vm1393, %v4629, 0
      %v4649 = vsel %vm1393, %v4630, 0
      %v4652 = vsel %vm1393, %v4631, 0
      %v4655 = vsel %vm1393, %v4632, 0
      %v4658 = vsel %vm1393, %v4633, 0
      %v4661 = vsel %vm1393, %v4634, 0
      %v4664 = vsel %vm1393, %v4635, 0
      %v4667 = vsel %vm1393, %v4636, 0
      %v4670 = vsel %vm1393, %v4637, 0
      %v4673 = vsel %vm1393, %v4638, 0
      %v4676 = vsel %vm1393, %v4639, 0
      %v4679 = vsel %vm1393, %v4640, 0
      %v4682 = vsel %vm1393, %v4641, 0
      %v4685 = vsel %vm1393, %v4642, 0
      %v4688 = vsel %vm1393, %v4643, 0
      %v4691 = vsel %vm1393, %v4644, 0
      %v4694 = vsel %vm1442, %v4596, 0
      %4696 = vmatpush.bf16.msra.mxu0 0
      %4697 = vmatpush.bf16.msra.mxu0 0
      %4698 = vmatpush.bf16.msra.mxu0 0
      %4699 = vmatpush.bf16.msra.mxu0 0
      %4700 = vmatpush.bf16.msra.mxu0 0
      %4701 = vmatpush.bf16.msra.mxu0 0
      %4702 = vmatpush.bf16.msra.mxu0 0
      %4703 = vmatpush.bf16.msra.mxu0 %v4694
      %4704 = vmatmul.bf16.gmra.mxu0 %v4646
      %v4705 = vpop.f32.mrf.mxu0
      %v4706 = vadd.f32 0.0, %v4705
      %v4707 = vpop.f32.mrf.mxu0
      %v4708 = vadd.f32 0.0, %v4707
      %4709 = vmatmul.bf16.gmra.mxu0 %v4649
      %v4710 = vpop.f32.mrf.mxu0
      %v4711 = vadd.f32 0.0, %v4710
      %v4712 = vpop.f32.mrf.mxu0
      %v4713 = vadd.f32 0.0, %v4712
      %4714 = vmatmul.bf16.gmra.mxu0 %v4652
      %v4715 = vpop.f32.mrf.mxu0
      %v4716 = vadd.f32 0.0, %v4715
      %v4717 = vpop.f32.mrf.mxu0
      %v4718 = vadd.f32 0.0, %v4717
      %4719 = vmatmul.bf16.gmra.mxu0 %v4655
      %v4720 = vpop.f32.mrf.mxu0
      %v4721 = vadd.f32 0.0, %v4720
      %v4722 = vpop.f32.mrf.mxu0
      %v4723 = vadd.f32 0.0, %v4722
      %4724 = vmatmul.bf16.gmra.mxu0 %v4658
      %v4725 = vpop.f32.mrf.mxu0
      %v4726 = vadd.f32 0.0, %v4725
      %v4727 = vpop.f32.mrf.mxu0
      %v4728 = vadd.f32 0.0, %v4727
      %4729 = vmatmul.bf16.gmra.mxu0 %v4661
      %v4730 = vpop.f32.mrf.mxu0
      %v4731 = vadd.f32 0.0, %v4730
      %v4732 = vpop.f32.mrf.mxu0
      %v4733 = vadd.f32 0.0, %v4732
      %4734 = vmatmul.bf16.gmra.mxu0 %v4664
      %v4735 = vpop.f32.mrf.mxu0
      %v4736 = vadd.f32 0.0, %v4735
      %v4737 = vpop.f32.mrf.mxu0
      %v4738 = vadd.f32 0.0, %v4737
      %4739 = vmatmul.bf16.gmra.mxu0 %v4667
      %v4740 = vpop.f32.mrf.mxu0
      %v4741 = vadd.f32 0.0, %v4740
      %v4742 = vpop.f32.mrf.mxu0
      %v4743 = vadd.f32 0.0, %v4742
      %4744 = vmatmul.bf16.gmra.mxu0 %v4670
      %v4745 = vpop.f32.mrf.mxu0
      %v4746 = vadd.f32 0.0, %v4745
      %v4747 = vpop.f32.mrf.mxu0
      %v4748 = vadd.f32 0.0, %v4747
      %4749 = vmatmul.bf16.gmra.mxu0 %v4673
      %v4750 = vpop.f32.mrf.mxu0
      %v4751 = vadd.f32 0.0, %v4750
      %v4752 = vpop.f32.mrf.mxu0
      %v4753 = vadd.f32 0.0, %v4752
      %4754 = vmatmul.bf16.gmra.mxu0 %v4676
      %v4755 = vpop.f32.mrf.mxu0
      %v4756 = vadd.f32 0.0, %v4755
      %v4757 = vpop.f32.mrf.mxu0
      %v4758 = vadd.f32 0.0, %v4757
      %4759 = vmatmul.bf16.gmra.mxu0 %v4679
      %v4760 = vpop.f32.mrf.mxu0
      %v4761 = vadd.f32 0.0, %v4760
      %v4762 = vpop.f32.mrf.mxu0
      %v4763 = vadd.f32 0.0, %v4762
      %4764 = vmatmul.bf16.gmra.mxu0 %v4682
      %v4765 = vpop.f32.mrf.mxu0
      %v4766 = vadd.f32 0.0, %v4765
      %v4767 = vpop.f32.mrf.mxu0
      %v4768 = vadd.f32 0.0, %v4767
      %4769 = vmatmul.bf16.gmra.mxu0 %v4685
      %v4770 = vpop.f32.mrf.mxu0
      %v4771 = vadd.f32 0.0, %v4770
      %v4772 = vpop.f32.mrf.mxu0
      %v4773 = vadd.f32 0.0, %v4772
      %4774 = vmatmul.bf16.gmra.mxu0 %v4688
      %v4775 = vpop.f32.mrf.mxu0
      %v4776 = vadd.f32 0.0, %v4775
      %v4777 = vpop.f32.mrf.mxu0
      %v4778 = vadd.f32 0.0, %v4777
      %4779 = vmatmul.bf16.gmra.mxu0 %v4691
      %v4780 = vpop.f32.mrf.mxu0
      %v4781 = vadd.f32 0.0, %v4780
      %v4782 = vpop.f32.mrf.mxu0
      %v4783 = vadd.f32 0.0, %v4782
      %4784 = vdwg.mxu0
      %v4785 = vadd.f32 %v4387, %v4706
      %v4786 = vadd.f32 %v4388, %v4708
      %v4787 = vadd.f32 %v4389, %v4711
      %v4788 = vadd.f32 %v4390, %v4713
      %v4789 = vadd.f32 %v4391, %v4716
      %v4790 = vadd.f32 %v4392, %v4718
      %v4791 = vadd.f32 %v4393, %v4721
      %v4792 = vadd.f32 %v4394, %v4723
      %v4793 = vadd.f32 %v4395, %v4726
      %v4794 = vadd.f32 %v4396, %v4728
      %v4795 = vadd.f32 %v4397, %v4731
      %v4796 = vadd.f32 %v4398, %v4733
      %v4797 = vadd.f32 %v4399, %v4736
      %v4798 = vadd.f32 %v4400, %v4738
      %v4799 = vadd.f32 %v4401, %v4741
      %v4800 = vadd.f32 %v4402, %v4743
      %v4801 = vadd.f32 %v4403, %v4746
      %v4802 = vadd.f32 %v4404, %v4748
      %v4803 = vadd.f32 %v4405, %v4751
      %v4804 = vadd.f32 %v4406, %v4753
      %v4805 = vadd.f32 %v4407, %v4756
      %v4806 = vadd.f32 %v4408, %v4758
      %v4807 = vadd.f32 %v4409, %v4761
      %v4808 = vadd.f32 %v4410, %v4763
      %v4809 = vadd.f32 %v4411, %v4766
      %v4810 = vadd.f32 %v4412, %v4768
      %v4811 = vadd.f32 %v4413, %v4771
      %v4812 = vadd.f32 %v4414, %v4773
      %v4813 = vadd.f32 %v4415, %v4776
      %v4814 = vadd.f32 %v4416, %v4778
      %v4815 = vadd.f32 %v4417, %v4781
      %v4816 = vadd.f32 %v4418, %v4783
      %v4817 = vpack.c.bf16 %v4785, %v4785
      %v4818 = vpack.c.bf16 %v4786, %v4786
      %v4819 = vpack.c.bf16 %v4787, %v4787
      %v4820 = vpack.c.bf16 %v4788, %v4788
      %v4821 = vpack.c.bf16 %v4789, %v4789
      %v4822 = vpack.c.bf16 %v4790, %v4790
      %v4823 = vpack.c.bf16 %v4791, %v4791
      %v4824 = vpack.c.bf16 %v4792, %v4792
      %v4825 = vpack.c.bf16 %v4793, %v4793
      %v4826 = vpack.c.bf16 %v4794, %v4794
      %v4827 = vpack.c.bf16 %v4795, %v4795
      %v4828 = vpack.c.bf16 %v4796, %v4796
      %v4829 = vpack.c.bf16 %v4797, %v4797
      %v4830 = vpack.c.bf16 %v4798, %v4798
      %v4831 = vpack.c.bf16 %v4799, %v4799
      %v4832 = vpack.c.bf16 %v4800, %v4800
      %v4833 = vpack.c.bf16 %v4801, %v4801
      %v4834 = vpack.c.bf16 %v4802, %v4802
      %v4835 = vpack.c.bf16 %v4803, %v4803
      %v4836 = vpack.c.bf16 %v4804, %v4804
      %v4837 = vpack.c.bf16 %v4805, %v4805
      %v4838 = vpack.c.bf16 %v4806, %v4806
      %v4839 = vpack.c.bf16 %v4807, %v4807
      %v4840 = vpack.c.bf16 %v4808, %v4808
      %v4841 = vpack.c.bf16 %v4809, %v4809
      %v4842 = vpack.c.bf16 %v4810, %v4810
      %v4843 = vpack.c.bf16 %v4811, %v4811
      %v4844 = vpack.c.bf16 %v4812, %v4812
      %v4845 = vpack.c.bf16 %v4813, %v4813
      %v4846 = vpack.c.bf16 %v4814, %v4814
      %v4847 = vpack.c.bf16 %v4815, %v4815
      %v4848 = vpack.c.bf16 %v4816, %v4816
      %4849 = vst.msk [vmem:[%s204] sm:$0xf] %vm795, %v4817
      %4850 = vst.msk [vmem:[%s204 + $0x4] sm:$0xf] %vm795, %v4818
      %4851 = vst.msk [vmem:[%s204 + $0x8] sm:$0xf] %vm795, %v4819
      %4852 = vst.msk [vmem:[%s204 + $0xc] sm:$0xf] %vm795, %v4820
      %4853 = vst.msk [vmem:[%s204 + $0x10] sm:$0xf] %vm795, %v4821
      %4854 = vst.msk [vmem:[%s204 + $0x14] sm:$0xf] %vm795, %v4822
      %4855 = vst.msk [vmem:[%s204 + $0x18] sm:$0xf] %vm795, %v4823
      %4856 = vst.msk [vmem:[%s204 + $0x1c] sm:$0xf] %vm795, %v4824
      %4857 = vst.msk [vmem:[%s204 + $0x20] sm:$0xf] %vm795, %v4825
      %4858 = vst.msk [vmem:[%s204 + $0x24] sm:$0xf] %vm795, %v4826
      %4859 = vst.msk [vmem:[%s204 + $0x28] sm:$0xf] %vm795, %v4827
      %4860 = vst.msk [vmem:[%s204 + $0x2c] sm:$0xf] %vm795, %v4828
      %4861 = vst.msk [vmem:[%s204 + $0x30] sm:$0xf] %vm795, %v4829
      %4862 = vst.msk [vmem:[%s204 + $0x34] sm:$0xf] %vm795, %v4830
      %4863 = vst.msk [vmem:[%s204 + $0x38] sm:$0xf] %vm795, %v4831
      %4864 = vst.msk [vmem:[%s204 + $0x3c] sm:$0xf] %vm795, %v4832
      %4865 = vst.msk [vmem:[%s204 + $0x40] sm:$0xf] %vm795, %v4833
      %4866 = vst.msk [vmem:[%s204 + $0x44] sm:$0xf] %vm795, %v4834
      %4867 = vst.msk [vmem:[%s204 + $0x48] sm:$0xf] %vm795, %v4835
      %4868 = vst.msk [vmem:[%s204 + $0x4c] sm:$0xf] %vm795, %v4836
      %4869 = vst.msk [vmem:[%s204 + $0x50] sm:$0xf] %vm795, %v4837
      %4870 = vst.msk [vmem:[%s204 + $0x54] sm:$0xf] %vm795, %v4838
      %4871 = vst.msk [vmem:[%s204 + $0x58] sm:$0xf] %vm795, %v4839
      %4872 = vst.msk [vmem:[%s204 + $0x5c] sm:$0xf] %vm795, %v4840
      %4873 = vst.msk [vmem:[%s204 + $0x60] sm:$0xf] %vm795, %v4841
      %4874 = vst.msk [vmem:[%s204 + $0x64] sm:$0xf] %vm795, %v4842
      %4875 = vst.msk [vmem:[%s204 + $0x68] sm:$0xf] %vm795, %v4843
      %4876 = vst.msk [vmem:[%s204 + $0x6c] sm:$0xf] %vm795, %v4844
      %4877 = vst.msk [vmem:[%s204 + $0x70] sm:$0xf] %vm795, %v4845
      %4878 = vst.msk [vmem:[%s204 + $0x74] sm:$0xf] %vm795, %v4846
      %4879 = vst.msk [vmem:[%s204 + $0x78] sm:$0xf] %vm795, %v4847
      %4880 = vst.msk [vmem:[%s204 + $0x7c] sm:$0xf] %vm795, %v4848
      %v4881 = vsel %vm1393, %v4785, 0.0
      %v4882 = vsel %vm1393, %v4786, 0.0
      %v4883 = vadd.f32 %v4881, %v4882
      %v4884 = vsel %vm1393, %v4787, 0.0
      %v4885 = vadd.f32 %v4883, %v4884
      %v4886 = vsel %vm1393, %v4788, 0.0
      %v4887 = vadd.f32 %v4885, %v4886
      %v4888 = vsel %vm1393, %v4789, 0.0
      %v4889 = vadd.f32 %v4887, %v4888
      %v4890 = vsel %vm1393, %v4790, 0.0
      %v4891 = vadd.f32 %v4889, %v4890
      %v4892 = vsel %vm1393, %v4791, 0.0
      %v4893 = vadd.f32 %v4891, %v4892
      %v4894 = vsel %vm1393, %v4792, 0.0
      %v4895 = vadd.f32 %v4893, %v4894
      %v4896 = vsel %vm1393, %v4793, 0.0
      %v4897 = vadd.f32 %v4895, %v4896
      %v4898 = vsel %vm1393, %v4794, 0.0
      %v4899 = vadd.f32 %v4897, %v4898
      %v4900 = vsel %vm1393, %v4795, 0.0
      %v4901 = vadd.f32 %v4899, %v4900
      %v4902 = vsel %vm1393, %v4796, 0.0
      %v4903 = vadd.f32 %v4901, %v4902
      %v4904 = vsel %vm1393, %v4797, 0.0
      %v4905 = vadd.f32 %v4903, %v4904
      %v4906 = vsel %vm1393, %v4798, 0.0
      %v4907 = vadd.f32 %v4905, %v4906
      %v4908 = vsel %vm1393, %v4799, 0.0
      %v4909 = vadd.f32 %v4907, %v4908
      %v4910 = vsel %vm1393, %v4800, 0.0
      %v4911 = vadd.f32 %v4909, %v4910
      %v4912 = vsel %vm1393, %v4801, 0.0
      %v4913 = vadd.f32 %v4911, %v4912
      %v4914 = vsel %vm1393, %v4802, 0.0
      %v4915 = vadd.f32 %v4913, %v4914
      %v4916 = vsel %vm1393, %v4803, 0.0
      %v4917 = vadd.f32 %v4915, %v4916
      %v4918 = vsel %vm1393, %v4804, 0.0
      %v4919 = vadd.f32 %v4917, %v4918
      %v4920 = vsel %vm1393, %v4805, 0.0
      %v4921 = vadd.f32 %v4919, %v4920
      %v4922 = vsel %vm1393, %v4806, 0.0
      %v4923 = vadd.f32 %v4921, %v4922
      %v4924 = vsel %vm1393, %v4807, 0.0
      %v4925 = vadd.f32 %v4923, %v4924
      %v4926 = vsel %vm1393, %v4808, 0.0
      %v4927 = vadd.f32 %v4925, %v4926
      %v4928 = vsel %vm1393, %v4809, 0.0
      %v4929 = vadd.f32 %v4927, %v4928
      %v4930 = vsel %vm1393, %v4810, 0.0
      %v4931 = vadd.f32 %v4929, %v4930
      %v4932 = vsel %vm1393, %v4811, 0.0
      %v4933 = vadd.f32 %v4931, %v4932
      %v4934 = vsel %vm1393, %v4812, 0.0
      %v4935 = vadd.f32 %v4933, %v4934
      %v4936 = vsel %vm1393, %v4813, 0.0
      %v4937 = vadd.f32 %v4935, %v4936
      %v4938 = vsel %vm1393, %v4814, 0.0
      %v4939 = vadd.f32 %v4937, %v4938
      %v4940 = vsel %vm1393, %v4815, 0.0
      %v4941 = vadd.f32 %v4939, %v4940
      %v4942 = vsel %vm1393, %v4816, 0.0
      %v4943 = vadd.f32 %v4941, %v4942
      %v4944 = vrot.slane %v4943, 4
      %v4945 = vadd.f32 %v4943, %v4944
      %v4946 = vrot.slane %v4945, 2
      %v4947 = vadd.f32 %v4945, %v4946
      %v4948 = vrot.slane %v4947, 1
      %v4949 = vadd.f32 %v4947, %v4948
      %v4950 = vmul.f32 %v4785, %v4785
      %v4951 = vmul.f32 %v4786, %v4786
      %v4952 = vmul.f32 %v4787, %v4787
      %v4953 = vmul.f32 %v4788, %v4788
      %v4954 = vmul.f32 %v4789, %v4789
      %v4955 = vmul.f32 %v4790, %v4790
      %v4956 = vmul.f32 %v4791, %v4791
      %v4957 = vmul.f32 %v4792, %v4792
      %v4958 = vmul.f32 %v4793, %v4793
      %v4959 = vmul.f32 %v4794, %v4794
      %v4960 = vmul.f32 %v4795, %v4795
      %v4961 = vmul.f32 %v4796, %v4796
      %v4962 = vmul.f32 %v4797, %v4797
      %v4963 = vmul.f32 %v4798, %v4798
      %v4964 = vmul.f32 %v4799, %v4799
      %v4965 = vmul.f32 %v4800, %v4800
      %v4966 = vmul.f32 %v4801, %v4801
      %v4967 = vmul.f32 %v4802, %v4802
      %v4968 = vmul.f32 %v4803, %v4803
      %v4969 = vmul.f32 %v4804, %v4804
      %v4970 = vmul.f32 %v4805, %v4805
      %v4971 = vmul.f32 %v4806, %v4806
      %v4972 = vmul.f32 %v4807, %v4807
      %v4973 = vmul.f32 %v4808, %v4808
      %v4974 = vmul.f32 %v4809, %v4809
      %v4975 = vmul.f32 %v4810, %v4810
      %v4976 = vmul.f32 %v4811, %v4811
      %v4977 = vmul.f32 %v4812, %v4812
      %v4978 = vmul.f32 %v4813, %v4813
      %v4979 = vmul.f32 %v4814, %v4814
      %v4980 = vmul.f32 %v4815, %v4815
      %v4981 = vmul.f32 %v4816, %v4816
      %v4982 = vsel %vm1393, %v4950, 0.0
      %v4983 = vsel %vm1393, %v4951, 0.0
      %v4984 = vadd.f32 %v4982, %v4983
      %v4985 = vsel %vm1393, %v4952, 0.0
      %v4986 = vadd.f32 %v4984, %v4985
      %v4987 = vsel %vm1393, %v4953, 0.0
      %v4988 = vadd.f32 %v4986, %v4987
      %v4989 = vsel %vm1393, %v4954, 0.0
      %v4990 = vadd.f32 %v4988, %v4989
      %v4991 = vsel %vm1393, %v4955, 0.0
      %v4992 = vadd.f32 %v4990, %v4991
      %v4993 = vsel %vm1393, %v4956, 0.0
      %v4994 = vadd.f32 %v4992, %v4993
      %v4995 = vsel %vm1393, %v4957, 0.0
      %v4996 = vadd.f32 %v4994, %v4995
      %v4997 = vsel %vm1393, %v4958, 0.0
      %v4998 = vadd.f32 %v4996, %v4997
      %v4999 = vsel %vm1393, %v4959, 0.0
      %v5000 = vadd.f32 %v4998, %v4999
      %v5001 = vsel %vm1393, %v4960, 0.0
      %v5002 = vadd.f32 %v5000, %v5001
      %v5003 = vsel %vm1393, %v4961, 0.0
      %v5004 = vadd.f32 %v5002, %v5003
      %v5005 = vsel %vm1393, %v4962, 0.0
      %v5006 = vadd.f32 %v5004, %v5005
      %v5007 = vsel %vm1393, %v4963, 0.0
      %v5008 = vadd.f32 %v5006, %v5007
      %v5009 = vsel %vm1393, %v4964, 0.0
      %v5010 = vadd.f32 %v5008, %v5009
      %v5011 = vsel %vm1393, %v4965, 0.0
      %v5012 = vadd.f32 %v5010, %v5011
      %v5013 = vsel %vm1393, %v4966, 0.0
      %v5014 = vadd.f32 %v5012, %v5013
      %v5015 = vsel %vm1393, %v4967, 0.0
      %v5016 = vadd.f32 %v5014, %v5015
      %v5017 = vsel %vm1393, %v4968, 0.0
      %v5018 = vadd.f32 %v5016, %v5017
      %v5019 = vsel %vm1393, %v4969, 0.0
      %v5020 = vadd.f32 %v5018, %v5019
      %v5021 = vsel %vm1393, %v4970, 0.0
      %v5022 = vadd.f32 %v5020, %v5021
      %v5023 = vsel %vm1393, %v4971, 0.0
      %v5024 = vadd.f32 %v5022, %v5023
      %v5025 = vsel %vm1393, %v4972, 0.0
      %v5026 = vadd.f32 %v5024, %v5025
      %v5027 = vsel %vm1393, %v4973, 0.0
      %v5028 = vadd.f32 %v5026, %v5027
      %v5029 = vsel %vm1393, %v4974, 0.0
      %v5030 = vadd.f32 %v5028, %v5029
      %v5031 = vsel %vm1393, %v4975, 0.0
      %v5032 = vadd.f32 %v5030, %v5031
      %v5033 = vsel %vm1393, %v4976, 0.0
      %v5034 = vadd.f32 %v5032, %v5033
      %v5035 = vsel %vm1393, %v4977, 0.0
      %v5036 = vadd.f32 %v5034, %v5035
      %v5037 = vsel %vm1393, %v4978, 0.0
      %v5038 = vadd.f32 %v5036, %v5037
      %v5039 = vsel %vm1393, %v4979, 0.0
      %v5040 = vadd.f32 %v5038, %v5039
      %v5041 = vsel %vm1393, %v4980, 0.0
      %v5042 = vadd.f32 %v5040, %v5041
      %v5043 = vsel %vm1393, %v4981, 0.0
      %v5044 = vadd.f32 %v5042, %v5043
      %v5045 = vrot.slane %v5044, 4
      %v5046 = vadd.f32 %v5044, %v5045
      %v5047 = vrot.slane %v5046, 2
      %v5048 = vadd.f32 %v5046, %v5047
      %v5049 = vrot.slane %v5048, 1
      %v5050 = vadd.f32 %v5048, %v5049
      %vm5051 = vcmask 1040384
      %v5052 = vsel %vm5051, %v4949, %v5050
      %vm5053 = vcmask 25600
      %5054 = vst.msk [vmem:[%s208] sm:$0x3] %vm5053, %v5052
      %p5055 = scmp.lt.s32.totalorder %s16, 1
      %s5056 = scalar_select %p5055, %s16, 1
      %s5057 = smul.addr %s5056, 32
      %s5058 = smul.addr %s5057, 4
      %s5059 = scalar_lea.vmem %s3, %s5058
      %p5060 = scmp.lt.s32.totalorder %s16, 1
      %s5061 = scalar_select %p5060, %s16, 1
      %s5062 = smul.addr %s5061, 2
      %s5063 = scalar_lea.vmem %s4, %s5062
      // Predicated region
      $region37: #{residual_block_forward.6} parent=31 // pred_check
        %p5064 = pneg %p102
      $region38: #{residual_block_forward.6} parent=31 // pred_check_branch
        %5066 = sbr.rel (%p5064) target = $region40
      $region39: #{residual_block_forward.6} parent=31 // pred_region
        _
      $region40: #{residual_block_forward.6} parent=31 // pred_fallthru
        _
      // Predicated region
      $region41: #{residual_block_forward.6} parent=31 // pred_check
        %p5067 = pneg %p128
      $region42: #{residual_block_forward.6} parent=31 // pred_check_branch
        %5069 = sbr.rel (%p5067) target = $region44
      $region43: #{residual_block_forward.6} parent=31 // pred_region
        _
      $region44: #{residual_block_forward.6} parent=31 // pred_fallthru
        _
    $region32: #{residual_block_forward.6} parent=5 // pred_fallthru
      _
    %p5070 = scmp.le.s32.totalorder 2, %s11
    // Predicated region
    $region45: #{residual_block_forward.6} parent=5 // pred_check
      %p5071 = pneg %p5070
    $region46: #{residual_block_forward.6} parent=5 // pred_check_branch
      %5073 = sbr.rel (%p5071) target = $region48
    $region47: #{residual_block_forward.6} parent=5 // pred_region
      %s5074 = ssub.s32 %s11, 2
      // Predicated region
      $region49: #{residual_block_forward.6} parent=47 // pred_check
        %p5075 = pneg %p108
      $region50: #{residual_block_forward.6} parent=47 // pred_check_branch
        %5077 = sbr.rel (%p5075) target = $region52
      $region51: #{residual_block_forward.6} parent=47 // pred_region
        %p5078 = scmp.lt.s32.totalorder %s17, 1
        %s5079 = scalar_select %p5078, %s17, 1
        %s5080 = smul.addr %s5079, 32
        %s5081 = smul.addr %s5080, 4
        %s5082 = scalar_lea.vmem %s3, %s5081
      $region52: #{residual_block_forward.6} parent=47 // pred_fallthru
        _
      // Predicated region
      $region53: #{residual_block_forward.6} parent=47 // pred_check
        %p5083 = pneg %p134
      $region54: #{residual_block_forward.6} parent=47 // pred_check_branch
        %5085 = sbr.rel (%p5083) target = $region56
      $region55: #{residual_block_forward.6} parent=47 // pred_region
        %p5086 = scmp.lt.s32.totalorder %s17, 1
        %s5087 = scalar_select %p5086, %s17, 1
        %s5088 = smul.addr %s5087, 2
        %s5089 = scalar_lea.vmem %s4, %s5088
      $region56: #{residual_block_forward.6} parent=47 // pred_fallthru
        _
    $region48: #{residual_block_forward.6} parent=5 // pred_fallthru
      _
  $region6: #{residual_block_forward.6} parent=0 // loop_footer
    %s15 = sadd.s32 1, %s11
  $region7: #{residual_block_forward.6} parent=0 // loop_footer_branch
    %10 = sbr.rel target = $region3
  $region8: #{residual_block_forward.6} parent=0 // loop_exit
    _

</llo_original>
